<compile_context>
chip_gen: v7x
topology: tpu7x:2x2x1
jax: 0.10.0
libtpu: 0.0.40
codegen_flags: <defaults>
</compile_context>

<pallas_src>
import functools

import numpy as np

import jax
import jax.numpy as jnp
from jax import lax
from jax.experimental import pallas as pl
from jax.experimental.pallas import tpu as pltpu

NUM_HEADS = 3
NEG_SLOPE = 0.2
NODE_BUCKET = 128            # fixed row bucket -> stable shapes / compile-cache reuse

_VMEM = pl.BlockSpec(memory_space=pltpu.MemorySpace.VMEM)
_SMEM = pl.BlockSpec(memory_space=pltpu.MemorySpace.SMEM)


# ------------------------------ fused kernel -------------------------------- #

def _fused_kernel(bounds_ref, scales_ref, x_ref,
                  Wcomb0_ref, bbig0_ref, WcombHET_ref, bhA_ref,
                  linW_ref, linb_ref, out_ref):
    """One grid step == one admission: med_med (or Linear fallback) + 3 GAT_HE
    modules + per-type pooling, all on VMEM-resident data."""
    H = NUM_HEADS
    _, Np, D = x_ref.shape
    LW = Wcomb0_ref.shape[1]
    b = pl.program_id(0)

    nd = bounds_ref[b, 0]            # #diag nodes
    b2 = bounds_ref[b, 1]            # nd + #proc
    b3 = bounds_ref[b, 2]            # nd + #proc + #med  (= N real nodes)

    # row index = dst node, col index = src node (kept live; masks built lazily)
    r = lax.broadcasted_iota(jnp.int32, (Np, Np), 0)
    c = lax.broadcasted_iota(jnp.int32, (Np, Np), 1)
    eye = r == c                                         # self loops (all nodes)

    def gat(big, mask, scale, bh):
        """One GAT_HE / GAT_HO module: 3 heads, mean, +bias, *scale, ReLU.
        `big` = [ h_0 | h_1 | h_2 | a_dst(3) | a_src(3) | pad ]  (f32, [Np, LW])."""
        acc = jnp.zeros((Np, D), jnp.float32)
        for k in range(H):                               # static unroll
            h_bf = big[:, k * D:(k + 1) * D].astype(jnp.bfloat16)
            a_dst = big[:, H * D + k:H * D + k + 1]               # [Np, 1]
            a_src = big[:, H * D + H + k:H * D + H + k + 1]       # [Np, 1]
            # relayout per-node src logits: sublane-major column -> lane-major row
            a_src_row = jnp.sum(jnp.where(eye, a_src, 0.0), axis=0, keepdims=True)
            e = a_dst + a_src_row                        # e[dst, src]
            e = jnp.maximum(e, NEG_SLOPE * e)            # leaky relu (mul + max)
            e = jnp.where(mask, e, jnp.float32(-1e30))   # single masking pass
            p = jnp.exp(e - jnp.max(e, axis=1, keepdims=True))
            inv = pl.reciprocal(jnp.sum(p, axis=1, keepdims=True), approx=True)
            # normalize AFTER the value matmul: [Np, D] multiply instead of [Np, Np]
            acc = acc + jnp.dot(p.astype(jnp.bfloat16), h_bf,
                                preferred_element_type=jnp.float32) * inv
        out = (acc * (1.0 / H) + bh) * scale
        return jnp.maximum(out, 0.0)

    x_bf = x_ref[0]                                      # [Np, D] bf16

    # ---- module 0: med_med (GAT_HO, shared Linear folded into Wcomb0) ------
    mask0 = ((r >= b2) & (r < b3) & (c >= b2) & (c < b3)) | eye
    big0 = jnp.dot(x_bf, Wcomb0_ref[...],
                   preferred_element_type=jnp.float32) + bbig0_ref[...]
    x1_gat = gat(big0, mask0, scales_ref[b, 0], bhA_ref[0])

    # Linear fallback (used when the admission has no medications)
    x1_lin = jnp.maximum(
        jnp.dot(x_bf, linW_ref[...], preferred_element_type=jnp.float32)
        + linb_ref[...], 0.0)

    g = scales_ref[b, 4]              # 1.0 if #med > 0 else 0.0
    ng = scales_ref[b, 5]             # 1.0 - g (precomputed on host)
    x1 = x1_gat * g + x1_lin * ng

    # ---- modules 1..3: GAT_HE on x1; scale == 0 reproduces the zeros branch --
    x1_bf = x1.astype(jnp.bfloat16)
    x_out = x1
    for m in range(1, 4):                                # static unroll
        Wm = WcombHET_ref[:, (m - 1) * LW:m * LW]        # lane-aligned weight slice
        big = jnp.dot(x1_bf, Wm, preferred_element_type=jnp.float32)
        if m == 1:    # diag_med : src = med, dst = diag
            mask = ((r < nd) & (c >= b2) & (c < b3)) | eye
        elif m == 2:  # pro_med  : src = med, dst = proc
            mask = ((r >= nd) & (r < b2) & (c >= b2) & (c < b3)) | eye
        else:         # diag_pro : src = diag, dst = proc
            mask = ((r >= nd) & (r < b2) & (c < nd)) | eye
        x_out = x_out + gat(big, mask, scales_ref[b, m], bhA_ref[m])

    # ---- per-node-type pooled sums via a tiny [8, Np] selection matmul ------
    rr = lax.broadcasted_iota(jnp.int32, (8, Np), 0)
    cc = lax.broadcasted_iota(jnp.int32, (8, Np), 1)
    pool = jnp.where(((rr == 0) & (cc < nd))
                     | ((rr == 1) & (cc >= nd) & (cc < b2))
                     | ((rr == 2) & (cc >= b2) & (cc < b3)),
                     jnp.float32(1.0), jnp.float32(0.0))
    out_ref[0] = jnp.dot(pool, x_out, preferred_element_type=jnp.float32)


@functools.lru_cache(maxsize=None)
def _build_fused_call(B, Np, D, LW):
    grid_spec = pltpu.PrefetchScalarGridSpec(
        num_scalar_prefetch=0,
        grid=(B,),
        in_specs=[
            _SMEM,                                            # bounds [B, 4] i32
            _SMEM,                                            # scales [B, 8] f32
            pl.BlockSpec((1, Np, D), lambda b: (b, 0, 0)),    # x      [B, Np, D] bf16
            _VMEM,                                            # Wcomb0   [D, LW]   bf16
            _VMEM,                                            # bbig0    [1, LW]   f32
            _VMEM,                                            # WcombHET [D, 3*LW] bf16
            _VMEM,                                            # bhA      [4, 1, D] f32
            _VMEM,                                            # linW     [D, D]    bf16
            _VMEM,                                            # linb     [1, D]    f32
        ],
        out_specs=pl.BlockSpec((1, 8, D), lambda b: (b, 0, 0)),
    )
    call = pl.pallas_call(
        _fused_kernel,
        out_shape=jax.ShapeDtypeStruct((B, 8, D), jnp.float32),
        grid_spec=grid_spec,
        compiler_params=pltpu.CompilerParams(
            dimension_semantics=("parallel",),
            vmem_limit_bytes=32 * 1024 * 1024),
    )
    return jax.jit(call)


# --------------------------- parameter creation ----------------------------- #

def init_params(key, voc_size, emb_dim):
    H, D = NUM_HEADS, emb_dim
    LW = max(128, ((H * D + 2 * H + 127) // 128) * 128)   # lane-dense packed width
    keys = iter(jax.random.split(key, 64))

    def nrm(shape, s=0.1):
        return jax.random.normal(next(keys), shape, jnp.float32) * s

    def gat_pack(with_lin_bias):
        W_lin = nrm((D, D))                       # torch Linear weight [out, in]
        b = nrm((D,)) if with_lin_bias else jnp.zeros((D,), jnp.float32)
        W_k = nrm((H, D, D))                      # per-head GATConv.lin weight
        a_s = nrm((H, D))                         # att_src
        a_d = nrm((H, D))                         # att_dst
        b_h = nrm((H, D))                         # per-head GATConv bias
        WkT = jnp.transpose(W_k, (0, 2, 1))       # [H, in, out] so h = xw @ WkT
        wd = jnp.einsum('hio,ho->hi', WkT, a_d)   # a_dst = xw @ wd
        vs = jnp.einsum('hio,ho->hi', WkT, a_s)   # a_src = xw @ vs
        Wbig = jnp.zeros((D, LW), jnp.float32)
        Wbig = Wbig.at[:, :H * D].set(jnp.transpose(WkT, (1, 0, 2)).reshape(D, H * D))
        Wbig = Wbig.at[:, H * D:H * D + H].set(wd.T)
        Wbig = Wbig.at[:, H * D + H:H * D + 2 * H].set(vs.T)
        # fold the shared Linear (and its bias) into the packed weight (f32, once)
        Wcomb = W_lin.T @ Wbig                                    # [D, LW]
        bbig = b[None, :] @ Wbig                                  # [1, LW]
        # NOTE: random init uses mean of per-head biases; checkpoint loading should map
        # the single concat=False GATConv bias directly instead of averaging.
        return dict(Wcomb=Wcomb, bbig=bbig, bh=jnp.mean(b_h, axis=0))

    # module order: med_med (GAT_HO, lin bias), diag_med, pro_med, diag_pro (GAT_HE)
    mods = [gat_pack(True), gat_pack(False), gat_pack(False), gat_pack(False)]
    W_lin2 = nrm((D, D))                                          # GraphNet.linear
    return dict(
        node_emb=nrm((sum(voc_size), D), 0.5),
        Wcomb0=mods[0]['Wcomb'].astype(jnp.bfloat16),             # [D, LW]
        bbig0=mods[0]['bbig'],                                    # [1, LW] f32
        WcombHET=jnp.concatenate([m['Wcomb'] for m in mods[1:]],
                                 axis=1).astype(jnp.bfloat16),    # [D, 3*LW]
        bhA=jnp.stack([m['bh'] for m in mods])[:, None, :],       # [4, 1, D]
        linW=W_lin2.T.astype(jnp.bfloat16),                       # [D, D]
        linb=nrm((D,))[None, :],                                  # [1, D]
    )


# ------------------------------- forward ------------------------------------ #

def graphnet_forward_batch(params, admissions, voc_size, emb_dim):
    """Batch of admissions -> one pallas_call (grid over admissions).
    Returns a list of (i1, i2, i3) tuples, each [1, 1, emb_dim]."""
    B = len(admissions)
    D = emb_dim
    LW = params['Wcomb0'].shape[-1]

    node_lists, metas = [], []
    max_n = 1
    for adm in admissions:
        nd, npr, nm = len(adm[0]), len(adm[1]), len(adm[2])
        n0 = sorted(adm[0])
        n1 = sorted(p + voc_size[0] for p in adm[1])
        n2 = sorted(m + voc_size[0] + voc_size[1] for m in adm[2])
        nodes = sorted(n0 + n1 + n2)          # -> diag block, then proc, then med
        node_lists.append(nodes)
        metas.append((nd, npr, nm))
        max_n = max(max_n, len(nodes))
    Np = NODE_BUCKET * (-(-max_n // NODE_BUCKET))     # fixed-bucket padding

    idx = np.zeros((B, Np), np.int32)
    bounds = np.zeros((B, 4), np.int32)
    scales = np.zeros((B, 8), np.float32)
    for i, (nodes, (nd, npr, nm)) in enumerate(zip(node_lists, metas)):
        idx[i, :len(nodes)] = np.asarray(nodes, np.int32)
        bounds[i, :3] = (nd, nd + npr, nd + npr + nm)
        inv_nm = 1.0 / nm if nm > 0 else 0.0
        inv_nd = 1.0 / nd if nd > 0 else 0.0
        scales[i, 0] = inv_nm                            # med_med  /= nm
        scales[i, 1] = inv_nm if nd > 0 else 0.0         # diag_med (0 disables)
        scales[i, 2] = inv_nm if npr > 0 else 0.0        # pro_med  (0 disables)
        scales[i, 3] = inv_nd if npr > 0 else 0.0        # diag_pro (0 disables)
        scales[i, 4] = 1.0 if nm > 0 else 0.0            # gate: GAT vs Linear fallback
        scales[i, 5] = 0.0 if nm > 0 else 1.0            # 1 - gate

    # node embedding gather + pad (host glue); bf16 for MXU operands / halved DMA
    x = params['node_emb'][jnp.asarray(idx)].astype(jnp.bfloat16)     # [B, Np, D]

    call = _build_fused_call(B, Np, D, LW)
    pooled = call(jnp.asarray(bounds), jnp.asarray(scales), x,
                  params['Wcomb0'], params['bbig0'], params['WcombHET'],
                  params['bhA'], params['linW'], params['linb'])      # [B, 8, D]

    outs = []
    for i in range(B):
        outs.append((pooled[i, 0][None, None, :],
                     pooled[i, 1][None, None, :],
                     pooled[i, 2][None, None, :]))
    return outs


def graphnet_forward(params, adm, voc_size, emb_dim):
    return graphnet_forward_batch(params, [adm], voc_size, emb_dim)[0]


# --------------------------------- demo -------------------------------------- #

if __name__ == "__main__":
    key = jax.random.PRNGKey(0)
    voc_size = (4, 3, 5)       # (#diagnoses, #procedures, #medications)
    emb_dim = 32
    params = init_params(key, voc_size, emb_dim)

    admissions = [
        [[0, 2], [1], [0, 3, 4]],   # diag + proc + med   -> full GAT path
        [[1, 3], [0, 2], []],       # no medications      -> Linear fallback + diag_pro
        [[0], [], [1, 2]],          # no procedures       -> med_med + diag_med only
    ]

    outs = graphnet_forward_batch(params, admissions, voc_size, emb_dim)
    outs = jax.block_until_ready(outs)

    for (i1, i2, i3) in outs:
        assert i1.shape == (1, 1, emb_dim)
        assert i2.shape == (1, 1, emb_dim)
        assert i3.shape == (1, 1, emb_dim)
        assert bool(jnp.all(jnp.isfinite(i1)))
        assert bool(jnp.all(jnp.isfinite(i2)))
        assert bool(jnp.all(jnp.isfinite(i3)))
    # no medications -> med embedding is exactly zero (matches torch semantics)
    assert bool(jnp.all(outs[1][2] == 0.0))
    # no procedures  -> proc embedding is exactly zero
    assert bool(jnp.all(outs[2][1] == 0.0))

    # single-admission API still works (B=1 grid, reuses the compile cache per shape)
    i1, i2, i3 = graphnet_forward(params, admissions[0], voc_size, emb_dim)
    jax.block_until_ready((i1, i2, i3))
    assert i1.shape == (1, 1, emb_dim)

    print("KERNEL_OK")
</pallas_src>

<mosaic_0001>
module attributes {stable_mosaic.version = 11 : i64} {
  func.func @_fused_kernel(%arg0: i32, %arg1: memref<3x4xi32, #tpu.memory_space<smem>>, %arg2: memref<3x8xf32, #tpu.memory_space<smem>>, %arg3: memref<1x128x32xbf16, #tpu.memory_space<vmem>>, %arg4: memref<32x128xbf16, #tpu.memory_space<vmem>>, %arg5: memref<1x128xf32, #tpu.memory_space<vmem>>, %arg6: memref<32x384xbf16, #tpu.memory_space<vmem>>, %arg7: memref<4x1x32xf32, #tpu.memory_space<vmem>>, %arg8: memref<32x32xbf16, #tpu.memory_space<vmem>>, %arg9: memref<1x32xf32, #tpu.memory_space<vmem>>, %arg10: memref<1x8x32xf32, #tpu.memory_space<vmem>>) attributes {dimension_semantics = [#tpu.dimension_semantics<parallel>], iteration_bounds = array<i64: 3>, scalar_prefetch = 0 : i64, scratch_operands = 0 : i64, tpu.core_type = #tpu.core_type<tc>, window_params = [{transform_indices = @transform_0, window_bounds = array<i64: 3, 4>}, {transform_indices = @transform_1, window_bounds = array<i64: 3, 8>}, {transform_indices = @transform_2, window_bounds = array<i64: 1, 128, 32>}, {pipeline_mode = #tpu.pipeline_mode<synchronous>, transform_indices = @transform_3, window_bounds = array<i64: 32, 128>}, {pipeline_mode = #tpu.pipeline_mode<synchronous>, transform_indices = @transform_4, window_bounds = array<i64: 1, 128>}, {pipeline_mode = #tpu.pipeline_mode<synchronous>, transform_indices = @transform_5, window_bounds = array<i64: 32, 384>}, {pipeline_mode = #tpu.pipeline_mode<synchronous>, transform_indices = @transform_6, window_bounds = array<i64: 4, 1, 32>}, {pipeline_mode = #tpu.pipeline_mode<synchronous>, transform_indices = @transform_7, window_bounds = array<i64: 32, 32>}, {pipeline_mode = #tpu.pipeline_mode<synchronous>, transform_indices = @transform_8, window_bounds = array<i64: 1, 32>}, {transform_indices = @transform_9, window_bounds = array<i64: 1, 8, 32>}]} {
    %0 = arith.index_cast %arg0 : i32 to index
    %c0 = arith.constant 0 : index
    %1 = memref.load %arg1[%0, %c0] : memref<3x4xi32, #tpu.memory_space<smem>>
    %2 = arith.index_cast %arg0 : i32 to index
    %c1 = arith.constant 1 : index
    %3 = memref.load %arg1[%2, %c1] : memref<3x4xi32, #tpu.memory_space<smem>>
    %4 = arith.index_cast %arg0 : i32 to index
    %c2 = arith.constant 2 : index
    %5 = memref.load %arg1[%4, %c2] : memref<3x4xi32, #tpu.memory_space<smem>>
    %6 = tpu.iota {dimensions = array<i32: 0>} : vector<128x128xi32>
    %7 = tpu.iota {dimensions = array<i32: 1>} : vector<128x128xi32>
    %8 = arith.cmpi eq, %6, %7 : vector<128x128xi32>
    %c0_0 = arith.constant 0 : index
    %c0_1 = arith.constant 0 : index
    %c0_2 = arith.constant 0 : index
    %9 = vector.load %arg3[%c0_0, %c0_1, %c0_2] : memref<1x128x32xbf16, #tpu.memory_space<vmem>>, vector<1x128x32xbf16>
    %10 = vector.shape_cast %9 : vector<1x128x32xbf16> to vector<128x32xbf16>
    %11 = vector.broadcast %3 : i32 to vector<128x128xi32>
    %12 = arith.cmpi sge, %6, %11 : vector<128x128xi32>
    %13 = vector.broadcast %5 : i32 to vector<128x128xi32>
    %14 = arith.cmpi slt, %6, %13 : vector<128x128xi32>
    %15 = arith.andi %12, %14 : vector<128x128xi1>
    %16 = vector.broadcast %3 : i32 to vector<128x128xi32>
    %17 = arith.cmpi sge, %7, %16 : vector<128x128xi32>
    %18 = arith.andi %15, %17 : vector<128x128xi1>
    %19 = vector.broadcast %5 : i32 to vector<128x128xi32>
    %20 = arith.cmpi slt, %7, %19 : vector<128x128xi32>
    %21 = arith.andi %18, %20 : vector<128x128xi1>
    %22 = arith.ori %21, %8 : vector<128x128xi1>
    %c0_3 = arith.constant 0 : index
    %c0_4 = arith.constant 0 : index
    %23 = vector.load %arg4[%c0_3, %c0_4] : memref<32x128xbf16, #tpu.memory_space<vmem>>, vector<32x128xbf16>
    %cst = arith.constant dense<0.000000e+00> : vector<128x128xf32>
    %24 = tpu.matmul %10, %23, %cst {dimension_numbers = #tpu.dot_dimension_numbers<[1], [0], [0], [1], [0, 0, 1, 1], [], []>} : vector<128x32xbf16>, vector<32x128xbf16>, vector<128x128xf32> -> vector<128x128xf32>
    %c0_5 = arith.constant 0 : index
    %c0_6 = arith.constant 0 : index
    %25 = vector.load %arg5[%c0_5, %c0_6] : memref<1x128xf32, #tpu.memory_space<vmem>>, vector<1x128xf32>
    %26 = vector.broadcast %25 : vector<1x128xf32> to vector<128x128xf32>
    %27 = arith.addf %24, %26 : vector<128x128xf32>
    %28 = arith.index_cast %arg0 : i32 to index
    %c0_7 = arith.constant 0 : index
    %29 = memref.load %arg2[%28, %c0_7] : memref<3x8xf32, #tpu.memory_space<smem>>
    %c0_8 = arith.constant 0 : index
    %c0_9 = arith.constant 0 : index
    %c0_10 = arith.constant 0 : index
    %30 = vector.load %arg7[%c0_8, %c0_9, %c0_10] : memref<4x1x32xf32, #tpu.memory_space<vmem>>, vector<1x1x32xf32>
    %31 = vector.shape_cast %30 : vector<1x1x32xf32> to vector<1x32xf32>
    %cst_11 = arith.constant 0.000000e+00 : f32
    %32 = vector.broadcast %cst_11 : f32 to vector<128x32xf32>
    %33 = vector.extract_strided_slice %27 {offsets = [0, 0], sizes = [128, 32], strides = [1, 1]} : vector<128x128xf32> to vector<128x32xf32>
    %34 = arith.truncf %33 : vector<128x32xf32> to vector<128x32xbf16>
    %35 = vector.extract_strided_slice %27 {offsets = [0, 96], sizes = [128, 1], strides = [1, 1]} : vector<128x128xf32> to vector<128x1xf32>
    %36 = vector.extract_strided_slice %27 {offsets = [0, 99], sizes = [128, 1], strides = [1, 1]} : vector<128x128xf32> to vector<128x1xf32>
    %cst_12 = arith.constant 0.000000e+00 : f32
    %37 = vector.shape_cast %36 : vector<128x1xf32> to vector<128x1xf32>
    %38 = vector.broadcast %37 : vector<128x1xf32> to vector<128x128xf32>
    %39 = vector.broadcast %cst_12 : f32 to vector<128x128xf32>
    %40 = arith.select %8, %38, %39 : vector<128x128xi1>, vector<128x128xf32>
    %cst_13 = arith.constant dense<0.000000e+00> : vector<128xf32>
    %41 = vector.multi_reduction <add>, %40, %cst_13 [0] : vector<128x128xf32> to vector<128xf32>
    %42 = vector.shape_cast %41 : vector<128xf32> to vector<1x128xf32>
    %43 = vector.broadcast %35 : vector<128x1xf32> to vector<128x128xf32>
    %44 = vector.broadcast %42 : vector<1x128xf32> to vector<128x128xf32>
    %45 = arith.addf %43, %44 : vector<128x128xf32>
    %cst_14 = arith.constant 2.000000e-01 : f32
    %46 = vector.broadcast %cst_14 : f32 to vector<128x128xf32>
    %47 = arith.mulf %46, %45 : vector<128x128xf32>
    %48 = arith.maximumf %45, %47 : vector<128x128xf32>
    %cst_15 = arith.constant -1.000000e+30 : f32
    %49 = vector.broadcast %cst_15 : f32 to vector<128x128xf32>
    %50 = arith.select %22, %48, %49 : vector<128x128xi1>, vector<128x128xf32>
    %cst_16 = arith.constant dense<0xFF800000> : vector<128xf32>
    %51 = vector.multi_reduction <maximumf>, %50, %cst_16 [1] : vector<128x128xf32> to vector<128xf32>
    %52 = vector.shape_cast %51 : vector<128xf32> to vector<128x1xf32>
    %53 = vector.broadcast %52 : vector<128x1xf32> to vector<128x128xf32>
    %54 = arith.subf %50, %53 : vector<128x128xf32>
    %55 = math.exp %54 : vector<128x128xf32>
    %cst_17 = arith.constant dense<0.000000e+00> : vector<128xf32>
    %56 = vector.multi_reduction <add>, %55, %cst_17 [1] : vector<128x128xf32> to vector<128xf32>
    %57 = vector.shape_cast %56 : vector<128xf32> to vector<128x1xf32>
    %58 = tpu.reciprocal %57 {approx = true} : vector<128x1xf32> -> vector<128x1xf32>
    %59 = arith.truncf %55 : vector<128x128xf32> to vector<128x128xbf16>
    %cst_18 = arith.constant dense<0.000000e+00> : vector<128x32xf32>
    %60 = tpu.matmul %59, %34, %cst_18 {dimension_numbers = #tpu.dot_dimension_numbers<[1], [0], [0], [1], [0, 0, 1, 1], [], []>} : vector<128x128xbf16>, vector<128x32xbf16>, vector<128x32xf32> -> vector<128x32xf32>
    %61 = vector.broadcast %58 : vector<128x1xf32> to vector<128x32xf32>
    %62 = arith.mulf %60, %61 : vector<128x32xf32>
    %63 = arith.addf %32, %62 : vector<128x32xf32>
    %64 = vector.extract_strided_slice %27 {offsets = [0, 32], sizes = [128, 32], strides = [1, 1]} : vector<128x128xf32> to vector<128x32xf32>
    %65 = arith.truncf %64 : vector<128x32xf32> to vector<128x32xbf16>
    %66 = vector.extract_strided_slice %27 {offsets = [0, 97], sizes = [128, 1], strides = [1, 1]} : vector<128x128xf32> to vector<128x1xf32>
    %67 = vector.extract_strided_slice %27 {offsets = [0, 100], sizes = [128, 1], strides = [1, 1]} : vector<128x128xf32> to vector<128x1xf32>
    %cst_19 = arith.constant 0.000000e+00 : f32
    %68 = vector.shape_cast %67 : vector<128x1xf32> to vector<128x1xf32>
    %69 = vector.broadcast %68 : vector<128x1xf32> to vector<128x128xf32>
    %70 = vector.broadcast %cst_19 : f32 to vector<128x128xf32>
    %71 = arith.select %8, %69, %70 : vector<128x128xi1>, vector<128x128xf32>
    %cst_20 = arith.constant dense<0.000000e+00> : vector<128xf32>
    %72 = vector.multi_reduction <add>, %71, %cst_20 [0] : vector<128x128xf32> to vector<128xf32>
    %73 = vector.shape_cast %72 : vector<128xf32> to vector<1x128xf32>
    %74 = vector.broadcast %66 : vector<128x1xf32> to vector<128x128xf32>
    %75 = vector.broadcast %73 : vector<1x128xf32> to vector<128x128xf32>
    %76 = arith.addf %74, %75 : vector<128x128xf32>
    %cst_21 = arith.constant 2.000000e-01 : f32
    %77 = vector.broadcast %cst_21 : f32 to vector<128x128xf32>
    %78 = arith.mulf %77, %76 : vector<128x128xf32>
    %79 = arith.maximumf %76, %78 : vector<128x128xf32>
    %cst_22 = arith.constant -1.000000e+30 : f32
    %80 = vector.broadcast %cst_22 : f32 to vector<128x128xf32>
    %81 = arith.select %22, %79, %80 : vector<128x128xi1>, vector<128x128xf32>
    %cst_23 = arith.constant dense<0xFF800000> : vector<128xf32>
    %82 = vector.multi_reduction <maximumf>, %81, %cst_23 [1] : vector<128x128xf32> to vector<128xf32>
    %83 = vector.shape_cast %82 : vector<128xf32> to vector<128x1xf32>
    %84 = vector.broadcast %83 : vector<128x1xf32> to vector<128x128xf32>
    %85 = arith.subf %81, %84 : vector<128x128xf32>
    %86 = math.exp %85 : vector<128x128xf32>
    %cst_24 = arith.constant dense<0.000000e+00> : vector<128xf32>
    %87 = vector.multi_reduction <add>, %86, %cst_24 [1] : vector<128x128xf32> to vector<128xf32>
    %88 = vector.shape_cast %87 : vector<128xf32> to vector<128x1xf32>
    %89 = tpu.reciprocal %88 {approx = true} : vector<128x1xf32> -> vector<128x1xf32>
    %90 = arith.truncf %86 : vector<128x128xf32> to vector<128x128xbf16>
    %cst_25 = arith.constant dense<0.000000e+00> : vector<128x32xf32>
    %91 = tpu.matmul %90, %65, %cst_25 {dimension_numbers = #tpu.dot_dimension_numbers<[1], [0], [0], [1], [0, 0, 1, 1], [], []>} : vector<128x128xbf16>, vector<128x32xbf16>, vector<128x32xf32> -> vector<128x32xf32>
    %92 = vector.broadcast %89 : vector<128x1xf32> to vector<128x32xf32>
    %93 = arith.mulf %91, %92 : vector<128x32xf32>
    %94 = arith.addf %63, %93 : vector<128x32xf32>
    %95 = vector.extract_strided_slice %27 {offsets = [0, 64], sizes = [128, 32], strides = [1, 1]} : vector<128x128xf32> to vector<128x32xf32>
    %96 = arith.truncf %95 : vector<128x32xf32> to vector<128x32xbf16>
    %97 = vector.extract_strided_slice %27 {offsets = [0, 98], sizes = [128, 1], strides = [1, 1]} : vector<128x128xf32> to vector<128x1xf32>
    %98 = vector.extract_strided_slice %27 {offsets = [0, 101], sizes = [128, 1], strides = [1, 1]} : vector<128x128xf32> to vector<128x1xf32>
    %cst_26 = arith.constant 0.000000e+00 : f32
    %99 = vector.shape_cast %98 : vector<128x1xf32> to vector<128x1xf32>
    %100 = vector.broadcast %99 : vector<128x1xf32> to vector<128x128xf32>
    %101 = vector.broadcast %cst_26 : f32 to vector<128x128xf32>
    %102 = arith.select %8, %100, %101 : vector<128x128xi1>, vector<128x128xf32>
    %cst_27 = arith.constant dense<0.000000e+00> : vector<128xf32>
    %103 = vector.multi_reduction <add>, %102, %cst_27 [0] : vector<128x128xf32> to vector<128xf32>
    %104 = vector.shape_cast %103 : vector<128xf32> to vector<1x128xf32>
    %105 = vector.broadcast %97 : vector<128x1xf32> to vector<128x128xf32>
    %106 = vector.broadcast %104 : vector<1x128xf32> to vector<128x128xf32>
    %107 = arith.addf %105, %106 : vector<128x128xf32>
    %cst_28 = arith.constant 2.000000e-01 : f32
    %108 = vector.broadcast %cst_28 : f32 to vector<128x128xf32>
    %109 = arith.mulf %108, %107 : vector<128x128xf32>
    %110 = arith.maximumf %107, %109 : vector<128x128xf32>
    %cst_29 = arith.constant -1.000000e+30 : f32
    %111 = vector.broadcast %cst_29 : f32 to vector<128x128xf32>
    %112 = arith.select %22, %110, %111 : vector<128x128xi1>, vector<128x128xf32>
    %cst_30 = arith.constant dense<0xFF800000> : vector<128xf32>
    %113 = vector.multi_reduction <maximumf>, %112, %cst_30 [1] : vector<128x128xf32> to vector<128xf32>
    %114 = vector.shape_cast %113 : vector<128xf32> to vector<128x1xf32>
    %115 = vector.broadcast %114 : vector<128x1xf32> to vector<128x128xf32>
    %116 = arith.subf %112, %115 : vector<128x128xf32>
    %117 = math.exp %116 : vector<128x128xf32>
    %cst_31 = arith.constant dense<0.000000e+00> : vector<128xf32>
    %118 = vector.multi_reduction <add>, %117, %cst_31 [1] : vector<128x128xf32> to vector<128xf32>
    %119 = vector.shape_cast %118 : vector<128xf32> to vector<128x1xf32>
    %120 = tpu.reciprocal %119 {approx = true} : vector<128x1xf32> -> vector<128x1xf32>
    %121 = arith.truncf %117 : vector<128x128xf32> to vector<128x128xbf16>
    %cst_32 = arith.constant dense<0.000000e+00> : vector<128x32xf32>
    %122 = tpu.matmul %121, %96, %cst_32 {dimension_numbers = #tpu.dot_dimension_numbers<[1], [0], [0], [1], [0, 0, 1, 1], [], []>} : vector<128x128xbf16>, vector<128x32xbf16>, vector<128x32xf32> -> vector<128x32xf32>
    %123 = vector.broadcast %120 : vector<128x1xf32> to vector<128x32xf32>
    %124 = arith.mulf %122, %123 : vector<128x32xf32>
    %125 = arith.addf %94, %124 : vector<128x32xf32>
    %cst_33 = arith.constant 0.333333343 : f32
    %126 = vector.broadcast %cst_33 : f32 to vector<128x32xf32>
    %127 = arith.mulf %125, %126 : vector<128x32xf32>
    %128 = vector.broadcast %31 : vector<1x32xf32> to vector<128x32xf32>
    %129 = arith.addf %127, %128 : vector<128x32xf32>
    %130 = vector.broadcast %29 : f32 to vector<128x32xf32>
    %131 = arith.mulf %129, %130 : vector<128x32xf32>
    %cst_34 = arith.constant 0.000000e+00 : f32
    %132 = vector.broadcast %cst_34 : f32 to vector<128x32xf32>
    %133 = arith.maximumf %131, %132 : vector<128x32xf32>
    %c0_35 = arith.constant 0 : index
    %c0_36 = arith.constant 0 : index
    %134 = vector.load %arg8[%c0_35, %c0_36] : memref<32x32xbf16, #tpu.memory_space<vmem>>, vector<32x32xbf16>
    %cst_37 = arith.constant dense<0.000000e+00> : vector<128x32xf32>
    %135 = tpu.matmul %10, %134, %cst_37 {dimension_numbers = #tpu.dot_dimension_numbers<[1], [0], [0], [1], [0, 0, 1, 1], [], []>} : vector<128x32xbf16>, vector<32x32xbf16>, vector<128x32xf32> -> vector<128x32xf32>
    %c0_38 = arith.constant 0 : index
    %c0_39 = arith.constant 0 : index
    %136 = vector.load %arg9[%c0_38, %c0_39] : memref<1x32xf32, #tpu.memory_space<vmem>>, vector<1x32xf32>
    %137 = vector.broadcast %136 : vector<1x32xf32> to vector<128x32xf32>
    %138 = arith.addf %135, %137 : vector<128x32xf32>
    %cst_40 = arith.constant 0.000000e+00 : f32
    %139 = vector.broadcast %cst_40 : f32 to vector<128x32xf32>
    %140 = arith.maximumf %138, %139 : vector<128x32xf32>
    %141 = arith.index_cast %arg0 : i32 to index
    %c4 = arith.constant 4 : index
    %142 = memref.load %arg2[%141, %c4] : memref<3x8xf32, #tpu.memory_space<smem>>
    %143 = arith.index_cast %arg0 : i32 to index
    %c5 = arith.constant 5 : index
    %144 = memref.load %arg2[%143, %c5] : memref<3x8xf32, #tpu.memory_space<smem>>
    %145 = vector.broadcast %142 : f32 to vector<128x32xf32>
    %146 = arith.mulf %133, %145 : vector<128x32xf32>
    %147 = vector.broadcast %144 : f32 to vector<128x32xf32>
    %148 = arith.mulf %140, %147 : vector<128x32xf32>
    %149 = arith.addf %146, %148 : vector<128x32xf32>
    %150 = arith.truncf %149 : vector<128x32xf32> to vector<128x32xbf16>
    %c0_41 = arith.constant 0 : index
    %c0_42 = arith.constant 0 : index
    %151 = vector.load %arg6[%c0_41, %c0_42] : memref<32x384xbf16, #tpu.memory_space<vmem>>, vector<32x128xbf16>
    %cst_43 = arith.constant dense<0.000000e+00> : vector<128x128xf32>
    %152 = tpu.matmul %150, %151, %cst_43 {dimension_numbers = #tpu.dot_dimension_numbers<[1], [0], [0], [1], [0, 0, 1, 1], [], []>} : vector<128x32xbf16>, vector<32x128xbf16>, vector<128x128xf32> -> vector<128x128xf32>
    %153 = vector.broadcast %1 : i32 to vector<128x128xi32>
    %154 = arith.cmpi slt, %6, %153 : vector<128x128xi32>
    %155 = vector.broadcast %3 : i32 to vector<128x128xi32>
    %156 = arith.cmpi sge, %7, %155 : vector<128x128xi32>
    %157 = arith.andi %154, %156 : vector<128x128xi1>
    %158 = vector.broadcast %5 : i32 to vector<128x128xi32>
    %159 = arith.cmpi slt, %7, %158 : vector<128x128xi32>
    %160 = arith.andi %157, %159 : vector<128x128xi1>
    %161 = arith.ori %160, %8 : vector<128x128xi1>
    %162 = arith.index_cast %arg0 : i32 to index
    %c1_44 = arith.constant 1 : index
    %163 = memref.load %arg2[%162, %c1_44] : memref<3x8xf32, #tpu.memory_space<smem>>
    %c1_45 = arith.constant 1 : index
    %c0_46 = arith.constant 0 : index
    %c0_47 = arith.constant 0 : index
    %164 = vector.load %arg7[%c1_45, %c0_46, %c0_47] : memref<4x1x32xf32, #tpu.memory_space<vmem>>, vector<1x1x32xf32>
    %165 = vector.shape_cast %164 : vector<1x1x32xf32> to vector<1x32xf32>
    %cst_48 = arith.constant 0.000000e+00 : f32
    %166 = vector.broadcast %cst_48 : f32 to vector<128x32xf32>
    %167 = vector.extract_strided_slice %152 {offsets = [0, 0], sizes = [128, 32], strides = [1, 1]} : vector<128x128xf32> to vector<128x32xf32>
    %168 = arith.truncf %167 : vector<128x32xf32> to vector<128x32xbf16>
    %169 = vector.extract_strided_slice %152 {offsets = [0, 96], sizes = [128, 1], strides = [1, 1]} : vector<128x128xf32> to vector<128x1xf32>
    %170 = vector.extract_strided_slice %152 {offsets = [0, 99], sizes = [128, 1], strides = [1, 1]} : vector<128x128xf32> to vector<128x1xf32>
    %cst_49 = arith.constant 0.000000e+00 : f32
    %171 = vector.shape_cast %170 : vector<128x1xf32> to vector<128x1xf32>
    %172 = vector.broadcast %171 : vector<128x1xf32> to vector<128x128xf32>
    %173 = vector.broadcast %cst_49 : f32 to vector<128x128xf32>
    %174 = arith.select %8, %172, %173 : vector<128x128xi1>, vector<128x128xf32>
    %cst_50 = arith.constant dense<0.000000e+00> : vector<128xf32>
    %175 = vector.multi_reduction <add>, %174, %cst_50 [0] : vector<128x128xf32> to vector<128xf32>
    %176 = vector.shape_cast %175 : vector<128xf32> to vector<1x128xf32>
    %177 = vector.broadcast %169 : vector<128x1xf32> to vector<128x128xf32>
    %178 = vector.broadcast %176 : vector<1x128xf32> to vector<128x128xf32>
    %179 = arith.addf %177, %178 : vector<128x128xf32>
    %cst_51 = arith.constant 2.000000e-01 : f32
    %180 = vector.broadcast %cst_51 : f32 to vector<128x128xf32>
    %181 = arith.mulf %180, %179 : vector<128x128xf32>
    %182 = arith.maximumf %179, %181 : vector<128x128xf32>
    %cst_52 = arith.constant -1.000000e+30 : f32
    %183 = vector.broadcast %cst_52 : f32 to vector<128x128xf32>
    %184 = arith.select %161, %182, %183 : vector<128x128xi1>, vector<128x128xf32>
    %cst_53 = arith.constant dense<0xFF800000> : vector<128xf32>
    %185 = vector.multi_reduction <maximumf>, %184, %cst_53 [1] : vector<128x128xf32> to vector<128xf32>
    %186 = vector.shape_cast %185 : vector<128xf32> to vector<128x1xf32>
    %187 = vector.broadcast %186 : vector<128x1xf32> to vector<128x128xf32>
    %188 = arith.subf %184, %187 : vector<128x128xf32>
    %189 = math.exp %188 : vector<128x128xf32>
    %cst_54 = arith.constant dense<0.000000e+00> : vector<128xf32>
    %190 = vector.multi_reduction <add>, %189, %cst_54 [1] : vector<128x128xf32> to vector<128xf32>
    %191 = vector.shape_cast %190 : vector<128xf32> to vector<128x1xf32>
    %192 = tpu.reciprocal %191 {approx = true} : vector<128x1xf32> -> vector<128x1xf32>
    %193 = arith.truncf %189 : vector<128x128xf32> to vector<128x128xbf16>
    %cst_55 = arith.constant dense<0.000000e+00> : vector<128x32xf32>
    %194 = tpu.matmul %193, %168, %cst_55 {dimension_numbers = #tpu.dot_dimension_numbers<[1], [0], [0], [1], [0, 0, 1, 1], [], []>} : vector<128x128xbf16>, vector<128x32xbf16>, vector<128x32xf32> -> vector<128x32xf32>
    %195 = vector.broadcast %192 : vector<128x1xf32> to vector<128x32xf32>
    %196 = arith.mulf %194, %195 : vector<128x32xf32>
    %197 = arith.addf %166, %196 : vector<128x32xf32>
    %198 = vector.extract_strided_slice %152 {offsets = [0, 32], sizes = [128, 32], strides = [1, 1]} : vector<128x128xf32> to vector<128x32xf32>
    %199 = arith.truncf %198 : vector<128x32xf32> to vector<128x32xbf16>
    %200 = vector.extract_strided_slice %152 {offsets = [0, 97], sizes = [128, 1], strides = [1, 1]} : vector<128x128xf32> to vector<128x1xf32>
    %201 = vector.extract_strided_slice %152 {offsets = [0, 100], sizes = [128, 1], strides = [1, 1]} : vector<128x128xf32> to vector<128x1xf32>
    %cst_56 = arith.constant 0.000000e+00 : f32
    %202 = vector.shape_cast %201 : vector<128x1xf32> to vector<128x1xf32>
    %203 = vector.broadcast %202 : vector<128x1xf32> to vector<128x128xf32>
    %204 = vector.broadcast %cst_56 : f32 to vector<128x128xf32>
    %205 = arith.select %8, %203, %204 : vector<128x128xi1>, vector<128x128xf32>
    %cst_57 = arith.constant dense<0.000000e+00> : vector<128xf32>
    %206 = vector.multi_reduction <add>, %205, %cst_57 [0] : vector<128x128xf32> to vector<128xf32>
    %207 = vector.shape_cast %206 : vector<128xf32> to vector<1x128xf32>
    %208 = vector.broadcast %200 : vector<128x1xf32> to vector<128x128xf32>
    %209 = vector.broadcast %207 : vector<1x128xf32> to vector<128x128xf32>
    %210 = arith.addf %208, %209 : vector<128x128xf32>
    %cst_58 = arith.constant 2.000000e-01 : f32
    %211 = vector.broadcast %cst_58 : f32 to vector<128x128xf32>
    %212 = arith.mulf %211, %210 : vector<128x128xf32>
    %213 = arith.maximumf %210, %212 : vector<128x128xf32>
    %cst_59 = arith.constant -1.000000e+30 : f32
    %214 = vector.broadcast %cst_59 : f32 to vector<128x128xf32>
    %215 = arith.select %161, %213, %214 : vector<128x128xi1>, vector<128x128xf32>
    %cst_60 = arith.constant dense<0xFF800000> : vector<128xf32>
    %216 = vector.multi_reduction <maximumf>, %215, %cst_60 [1] : vector<128x128xf32> to vector<128xf32>
    %217 = vector.shape_cast %216 : vector<128xf32> to vector<128x1xf32>
    %218 = vector.broadcast %217 : vector<128x1xf32> to vector<128x128xf32>
    %219 = arith.subf %215, %218 : vector<128x128xf32>
    %220 = math.exp %219 : vector<128x128xf32>
    %cst_61 = arith.constant dense<0.000000e+00> : vector<128xf32>
    %221 = vector.multi_reduction <add>, %220, %cst_61 [1] : vector<128x128xf32> to vector<128xf32>
    %222 = vector.shape_cast %221 : vector<128xf32> to vector<128x1xf32>
    %223 = tpu.reciprocal %222 {approx = true} : vector<128x1xf32> -> vector<128x1xf32>
    %224 = arith.truncf %220 : vector<128x128xf32> to vector<128x128xbf16>
    %cst_62 = arith.constant dense<0.000000e+00> : vector<128x32xf32>
    %225 = tpu.matmul %224, %199, %cst_62 {dimension_numbers = #tpu.dot_dimension_numbers<[1], [0], [0], [1], [0, 0, 1, 1], [], []>} : vector<128x128xbf16>, vector<128x32xbf16>, vector<128x32xf32> -> vector<128x32xf32>
    %226 = vector.broadcast %223 : vector<128x1xf32> to vector<128x32xf32>
    %227 = arith.mulf %225, %226 : vector<128x32xf32>
    %228 = arith.addf %197, %227 : vector<128x32xf32>
    %229 = vector.extract_strided_slice %152 {offsets = [0, 64], sizes = [128, 32], strides = [1, 1]} : vector<128x128xf32> to vector<128x32xf32>
    %230 = arith.truncf %229 : vector<128x32xf32> to vector<128x32xbf16>
    %231 = vector.extract_strided_slice %152 {offsets = [0, 98], sizes = [128, 1], strides = [1, 1]} : vector<128x128xf32> to vector<128x1xf32>
    %232 = vector.extract_strided_slice %152 {offsets = [0, 101], sizes = [128, 1], strides = [1, 1]} : vector<128x128xf32> to vector<128x1xf32>
    %cst_63 = arith.constant 0.000000e+00 : f32
    %233 = vector.shape_cast %232 : vector<128x1xf32> to vector<128x1xf32>
    %234 = vector.broadcast %233 : vector<128x1xf32> to vector<128x128xf32>
    %235 = vector.broadcast %cst_63 : f32 to vector<128x128xf32>
    %236 = arith.select %8, %234, %235 : vector<128x128xi1>, vector<128x128xf32>
    %cst_64 = arith.constant dense<0.000000e+00> : vector<128xf32>
    %237 = vector.multi_reduction <add>, %236, %cst_64 [0] : vector<128x128xf32> to vector<128xf32>
    %238 = vector.shape_cast %237 : vector<128xf32> to vector<1x128xf32>
    %239 = vector.broadcast %231 : vector<128x1xf32> to vector<128x128xf32>
    %240 = vector.broadcast %238 : vector<1x128xf32> to vector<128x128xf32>
    %241 = arith.addf %239, %240 : vector<128x128xf32>
    %cst_65 = arith.constant 2.000000e-01 : f32
    %242 = vector.broadcast %cst_65 : f32 to vector<128x128xf32>
    %243 = arith.mulf %242, %241 : vector<128x128xf32>
    %244 = arith.maximumf %241, %243 : vector<128x128xf32>
    %cst_66 = arith.constant -1.000000e+30 : f32
    %245 = vector.broadcast %cst_66 : f32 to vector<128x128xf32>
    %246 = arith.select %161, %244, %245 : vector<128x128xi1>, vector<128x128xf32>
    %cst_67 = arith.constant dense<0xFF800000> : vector<128xf32>
    %247 = vector.multi_reduction <maximumf>, %246, %cst_67 [1] : vector<128x128xf32> to vector<128xf32>
    %248 = vector.shape_cast %247 : vector<128xf32> to vector<128x1xf32>
    %249 = vector.broadcast %248 : vector<128x1xf32> to vector<128x128xf32>
    %250 = arith.subf %246, %249 : vector<128x128xf32>
    %251 = math.exp %250 : vector<128x128xf32>
    %cst_68 = arith.constant dense<0.000000e+00> : vector<128xf32>
    %252 = vector.multi_reduction <add>, %251, %cst_68 [1] : vector<128x128xf32> to vector<128xf32>
    %253 = vector.shape_cast %252 : vector<128xf32> to vector<128x1xf32>
    %254 = tpu.reciprocal %253 {approx = true} : vector<128x1xf32> -> vector<128x1xf32>
    %255 = arith.truncf %251 : vector<128x128xf32> to vector<128x128xbf16>
    %cst_69 = arith.constant dense<0.000000e+00> : vector<128x32xf32>
    %256 = tpu.matmul %255, %230, %cst_69 {dimension_numbers = #tpu.dot_dimension_numbers<[1], [0], [0], [1], [0, 0, 1, 1], [], []>} : vector<128x128xbf16>, vector<128x32xbf16>, vector<128x32xf32> -> vector<128x32xf32>
    %257 = vector.broadcast %254 : vector<128x1xf32> to vector<128x32xf32>
    %258 = arith.mulf %256, %257 : vector<128x32xf32>
    %259 = arith.addf %228, %258 : vector<128x32xf32>
    %cst_70 = arith.constant 0.333333343 : f32
    %260 = vector.broadcast %cst_70 : f32 to vector<128x32xf32>
    %261 = arith.mulf %259, %260 : vector<128x32xf32>
    %262 = vector.broadcast %165 : vector<1x32xf32> to vector<128x32xf32>
    %263 = arith.addf %261, %262 : vector<128x32xf32>
    %264 = vector.broadcast %163 : f32 to vector<128x32xf32>
    %265 = arith.mulf %263, %264 : vector<128x32xf32>
    %cst_71 = arith.constant 0.000000e+00 : f32
    %266 = vector.broadcast %cst_71 : f32 to vector<128x32xf32>
    %267 = arith.maximumf %265, %266 : vector<128x32xf32>
    %268 = arith.addf %149, %267 : vector<128x32xf32>
    %c0_72 = arith.constant 0 : index
    %c128 = arith.constant 128 : index
    %269 = vector.load %arg6[%c0_72, %c128] : memref<32x384xbf16, #tpu.memory_space<vmem>>, vector<32x128xbf16>
    %cst_73 = arith.constant dense<0.000000e+00> : vector<128x128xf32>
    %270 = tpu.matmul %150, %269, %cst_73 {dimension_numbers = #tpu.dot_dimension_numbers<[1], [0], [0], [1], [0, 0, 1, 1], [], []>} : vector<128x32xbf16>, vector<32x128xbf16>, vector<128x128xf32> -> vector<128x128xf32>
    %271 = vector.broadcast %1 : i32 to vector<128x128xi32>
    %272 = arith.cmpi sge, %6, %271 : vector<128x128xi32>
    %273 = vector.broadcast %3 : i32 to vector<128x128xi32>
    %274 = arith.cmpi slt, %6, %273 : vector<128x128xi32>
    %275 = arith.andi %272, %274 : vector<128x128xi1>
    %276 = vector.broadcast %3 : i32 to vector<128x128xi32>
    %277 = arith.cmpi sge, %7, %276 : vector<128x128xi32>
    %278 = arith.andi %275, %277 : vector<128x128xi1>
    %279 = vector.broadcast %5 : i32 to vector<128x128xi32>
    %280 = arith.cmpi slt, %7, %279 : vector<128x128xi32>
    %281 = arith.andi %278, %280 : vector<128x128xi1>
    %282 = arith.ori %281, %8 : vector<128x128xi1>
    %283 = arith.index_cast %arg0 : i32 to index
    %c2_74 = arith.constant 2 : index
    %284 = memref.load %arg2[%283, %c2_74] : memref<3x8xf32, #tpu.memory_space<smem>>
    %c2_75 = arith.constant 2 : index
    %c0_76 = arith.constant 0 : index
    %c0_77 = arith.constant 0 : index
    %285 = vector.load %arg7[%c2_75, %c0_76, %c0_77] : memref<4x1x32xf32, #tpu.memory_space<vmem>>, vector<1x1x32xf32>
    %286 = vector.shape_cast %285 : vector<1x1x32xf32> to vector<1x32xf32>
    %cst_78 = arith.constant 0.000000e+00 : f32
    %287 = vector.broadcast %cst_78 : f32 to vector<128x32xf32>
    %288 = vector.extract_strided_slice %270 {offsets = [0, 0], sizes = [128, 32], strides = [1, 1]} : vector<128x128xf32> to vector<128x32xf32>
    %289 = arith.truncf %288 : vector<128x32xf32> to vector<128x32xbf16>
    %290 = vector.extract_strided_slice %270 {offsets = [0, 96], sizes = [128, 1], strides = [1, 1]} : vector<128x128xf32> to vector<128x1xf32>
    %291 = vector.extract_strided_slice %270 {offsets = [0, 99], sizes = [128, 1], strides = [1, 1]} : vector<128x128xf32> to vector<128x1xf32>
    %cst_79 = arith.constant 0.000000e+00 : f32
    %292 = vector.shape_cast %291 : vector<128x1xf32> to vector<128x1xf32>
    %293 = vector.broadcast %292 : vector<128x1xf32> to vector<128x128xf32>
    %294 = vector.broadcast %cst_79 : f32 to vector<128x128xf32>
    %295 = arith.select %8, %293, %294 : vector<128x128xi1>, vector<128x128xf32>
    %cst_80 = arith.constant dense<0.000000e+00> : vector<128xf32>
    %296 = vector.multi_reduction <add>, %295, %cst_80 [0] : vector<128x128xf32> to vector<128xf32>
    %297 = vector.shape_cast %296 : vector<128xf32> to vector<1x128xf32>
    %298 = vector.broadcast %290 : vector<128x1xf32> to vector<128x128xf32>
    %299 = vector.broadcast %297 : vector<1x128xf32> to vector<128x128xf32>
    %300 = arith.addf %298, %299 : vector<128x128xf32>
    %cst_81 = arith.constant 2.000000e-01 : f32
    %301 = vector.broadcast %cst_81 : f32 to vector<128x128xf32>
    %302 = arith.mulf %301, %300 : vector<128x128xf32>
    %303 = arith.maximumf %300, %302 : vector<128x128xf32>
    %cst_82 = arith.constant -1.000000e+30 : f32
    %304 = vector.broadcast %cst_82 : f32 to vector<128x128xf32>
    %305 = arith.select %282, %303, %304 : vector<128x128xi1>, vector<128x128xf32>
    %cst_83 = arith.constant dense<0xFF800000> : vector<128xf32>
    %306 = vector.multi_reduction <maximumf>, %305, %cst_83 [1] : vector<128x128xf32> to vector<128xf32>
    %307 = vector.shape_cast %306 : vector<128xf32> to vector<128x1xf32>
    %308 = vector.broadcast %307 : vector<128x1xf32> to vector<128x128xf32>
    %309 = arith.subf %305, %308 : vector<128x128xf32>
    %310 = math.exp %309 : vector<128x128xf32>
    %cst_84 = arith.constant dense<0.000000e+00> : vector<128xf32>
    %311 = vector.multi_reduction <add>, %310, %cst_84 [1] : vector<128x128xf32> to vector<128xf32>
    %312 = vector.shape_cast %311 : vector<128xf32> to vector<128x1xf32>
    %313 = tpu.reciprocal %312 {approx = true} : vector<128x1xf32> -> vector<128x1xf32>
    %314 = arith.truncf %310 : vector<128x128xf32> to vector<128x128xbf16>
    %cst_85 = arith.constant dense<0.000000e+00> : vector<128x32xf32>
    %315 = tpu.matmul %314, %289, %cst_85 {dimension_numbers = #tpu.dot_dimension_numbers<[1], [0], [0], [1], [0, 0, 1, 1], [], []>} : vector<128x128xbf16>, vector<128x32xbf16>, vector<128x32xf32> -> vector<128x32xf32>
    %316 = vector.broadcast %313 : vector<128x1xf32> to vector<128x32xf32>
    %317 = arith.mulf %315, %316 : vector<128x32xf32>
    %318 = arith.addf %287, %317 : vector<128x32xf32>
    %319 = vector.extract_strided_slice %270 {offsets = [0, 32], sizes = [128, 32], strides = [1, 1]} : vector<128x128xf32> to vector<128x32xf32>
    %320 = arith.truncf %319 : vector<128x32xf32> to vector<128x32xbf16>
    %321 = vector.extract_strided_slice %270 {offsets = [0, 97], sizes = [128, 1], strides = [1, 1]} : vector<128x128xf32> to vector<128x1xf32>
    %322 = vector.extract_strided_slice %270 {offsets = [0, 100], sizes = [128, 1], strides = [1, 1]} : vector<128x128xf32> to vector<128x1xf32>
    %cst_86 = arith.constant 0.000000e+00 : f32
    %323 = vector.shape_cast %322 : vector<128x1xf32> to vector<128x1xf32>
    %324 = vector.broadcast %323 : vector<128x1xf32> to vector<128x128xf32>
    %325 = vector.broadcast %cst_86 : f32 to vector<128x128xf32>
    %326 = arith.select %8, %324, %325 : vector<128x128xi1>, vector<128x128xf32>
    %cst_87 = arith.constant dense<0.000000e+00> : vector<128xf32>
    %327 = vector.multi_reduction <add>, %326, %cst_87 [0] : vector<128x128xf32> to vector<128xf32>
    %328 = vector.shape_cast %327 : vector<128xf32> to vector<1x128xf32>
    %329 = vector.broadcast %321 : vector<128x1xf32> to vector<128x128xf32>
    %330 = vector.broadcast %328 : vector<1x128xf32> to vector<128x128xf32>
    %331 = arith.addf %329, %330 : vector<128x128xf32>
    %cst_88 = arith.constant 2.000000e-01 : f32
    %332 = vector.broadcast %cst_88 : f32 to vector<128x128xf32>
    %333 = arith.mulf %332, %331 : vector<128x128xf32>
    %334 = arith.maximumf %331, %333 : vector<128x128xf32>
    %cst_89 = arith.constant -1.000000e+30 : f32
    %335 = vector.broadcast %cst_89 : f32 to vector<128x128xf32>
    %336 = arith.select %282, %334, %335 : vector<128x128xi1>, vector<128x128xf32>
    %cst_90 = arith.constant dense<0xFF800000> : vector<128xf32>
    %337 = vector.multi_reduction <maximumf>, %336, %cst_90 [1] : vector<128x128xf32> to vector<128xf32>
    %338 = vector.shape_cast %337 : vector<128xf32> to vector<128x1xf32>
    %339 = vector.broadcast %338 : vector<128x1xf32> to vector<128x128xf32>
    %340 = arith.subf %336, %339 : vector<128x128xf32>
    %341 = math.exp %340 : vector<128x128xf32>
    %cst_91 = arith.constant dense<0.000000e+00> : vector<128xf32>
    %342 = vector.multi_reduction <add>, %341, %cst_91 [1] : vector<128x128xf32> to vector<128xf32>
    %343 = vector.shape_cast %342 : vector<128xf32> to vector<128x1xf32>
    %344 = tpu.reciprocal %343 {approx = true} : vector<128x1xf32> -> vector<128x1xf32>
    %345 = arith.truncf %341 : vector<128x128xf32> to vector<128x128xbf16>
    %cst_92 = arith.constant dense<0.000000e+00> : vector<128x32xf32>
    %346 = tpu.matmul %345, %320, %cst_92 {dimension_numbers = #tpu.dot_dimension_numbers<[1], [0], [0], [1], [0, 0, 1, 1], [], []>} : vector<128x128xbf16>, vector<128x32xbf16>, vector<128x32xf32> -> vector<128x32xf32>
    %347 = vector.broadcast %344 : vector<128x1xf32> to vector<128x32xf32>
    %348 = arith.mulf %346, %347 : vector<128x32xf32>
    %349 = arith.addf %318, %348 : vector<128x32xf32>
    %350 = vector.extract_strided_slice %270 {offsets = [0, 64], sizes = [128, 32], strides = [1, 1]} : vector<128x128xf32> to vector<128x32xf32>
    %351 = arith.truncf %350 : vector<128x32xf32> to vector<128x32xbf16>
    %352 = vector.extract_strided_slice %270 {offsets = [0, 98], sizes = [128, 1], strides = [1, 1]} : vector<128x128xf32> to vector<128x1xf32>
    %353 = vector.extract_strided_slice %270 {offsets = [0, 101], sizes = [128, 1], strides = [1, 1]} : vector<128x128xf32> to vector<128x1xf32>
    %cst_93 = arith.constant 0.000000e+00 : f32
    %354 = vector.shape_cast %353 : vector<128x1xf32> to vector<128x1xf32>
    %355 = vector.broadcast %354 : vector<128x1xf32> to vector<128x128xf32>
    %356 = vector.broadcast %cst_93 : f32 to vector<128x128xf32>
    %357 = arith.select %8, %355, %356 : vector<128x128xi1>, vector<128x128xf32>
    %cst_94 = arith.constant dense<0.000000e+00> : vector<128xf32>
    %358 = vector.multi_reduction <add>, %357, %cst_94 [0] : vector<128x128xf32> to vector<128xf32>
    %359 = vector.shape_cast %358 : vector<128xf32> to vector<1x128xf32>
    %360 = vector.broadcast %352 : vector<128x1xf32> to vector<128x128xf32>
    %361 = vector.broadcast %359 : vector<1x128xf32> to vector<128x128xf32>
    %362 = arith.addf %360, %361 : vector<128x128xf32>
    %cst_95 = arith.constant 2.000000e-01 : f32
    %363 = vector.broadcast %cst_95 : f32 to vector<128x128xf32>
    %364 = arith.mulf %363, %362 : vector<128x128xf32>
    %365 = arith.maximumf %362, %364 : vector<128x128xf32>
    %cst_96 = arith.constant -1.000000e+30 : f32
    %366 = vector.broadcast %cst_96 : f32 to vector<128x128xf32>
    %367 = arith.select %282, %365, %366 : vector<128x128xi1>, vector<128x128xf32>
    %cst_97 = arith.constant dense<0xFF800000> : vector<128xf32>
    %368 = vector.multi_reduction <maximumf>, %367, %cst_97 [1] : vector<128x128xf32> to vector<128xf32>
    %369 = vector.shape_cast %368 : vector<128xf32> to vector<128x1xf32>
    %370 = vector.broadcast %369 : vector<128x1xf32> to vector<128x128xf32>
    %371 = arith.subf %367, %370 : vector<128x128xf32>
    %372 = math.exp %371 : vector<128x128xf32>
    %cst_98 = arith.constant dense<0.000000e+00> : vector<128xf32>
    %373 = vector.multi_reduction <add>, %372, %cst_98 [1] : vector<128x128xf32> to vector<128xf32>
    %374 = vector.shape_cast %373 : vector<128xf32> to vector<128x1xf32>
    %375 = tpu.reciprocal %374 {approx = true} : vector<128x1xf32> -> vector<128x1xf32>
    %376 = arith.truncf %372 : vector<128x128xf32> to vector<128x128xbf16>
    %cst_99 = arith.constant dense<0.000000e+00> : vector<128x32xf32>
    %377 = tpu.matmul %376, %351, %cst_99 {dimension_numbers = #tpu.dot_dimension_numbers<[1], [0], [0], [1], [0, 0, 1, 1], [], []>} : vector<128x128xbf16>, vector<128x32xbf16>, vector<128x32xf32> -> vector<128x32xf32>
    %378 = vector.broadcast %375 : vector<128x1xf32> to vector<128x32xf32>
    %379 = arith.mulf %377, %378 : vector<128x32xf32>
    %380 = arith.addf %349, %379 : vector<128x32xf32>
    %cst_100 = arith.constant 0.333333343 : f32
    %381 = vector.broadcast %cst_100 : f32 to vector<128x32xf32>
    %382 = arith.mulf %380, %381 : vector<128x32xf32>
    %383 = vector.broadcast %286 : vector<1x32xf32> to vector<128x32xf32>
    %384 = arith.addf %382, %383 : vector<128x32xf32>
    %385 = vector.broadcast %284 : f32 to vector<128x32xf32>
    %386 = arith.mulf %384, %385 : vector<128x32xf32>
    %cst_101 = arith.constant 0.000000e+00 : f32
    %387 = vector.broadcast %cst_101 : f32 to vector<128x32xf32>
    %388 = arith.maximumf %386, %387 : vector<128x32xf32>
    %389 = arith.addf %268, %388 : vector<128x32xf32>
    %c0_102 = arith.constant 0 : index
    %c256 = arith.constant 256 : index
    %390 = vector.load %arg6[%c0_102, %c256] : memref<32x384xbf16, #tpu.memory_space<vmem>>, vector<32x128xbf16>
    %cst_103 = arith.constant dense<0.000000e+00> : vector<128x128xf32>
    %391 = tpu.matmul %150, %390, %cst_103 {dimension_numbers = #tpu.dot_dimension_numbers<[1], [0], [0], [1], [0, 0, 1, 1], [], []>} : vector<128x32xbf16>, vector<32x128xbf16>, vector<128x128xf32> -> vector<128x128xf32>
    %392 = vector.broadcast %1 : i32 to vector<128x128xi32>
    %393 = arith.cmpi sge, %6, %392 : vector<128x128xi32>
    %394 = vector.broadcast %3 : i32 to vector<128x128xi32>
    %395 = arith.cmpi slt, %6, %394 : vector<128x128xi32>
    %396 = arith.andi %393, %395 : vector<128x128xi1>
    %397 = vector.broadcast %1 : i32 to vector<128x128xi32>
    %398 = arith.cmpi slt, %7, %397 : vector<128x128xi32>
    %399 = arith.andi %396, %398 : vector<128x128xi1>
    %400 = arith.ori %399, %8 : vector<128x128xi1>
    %401 = arith.index_cast %arg0 : i32 to index
    %c3 = arith.constant 3 : index
    %402 = memref.load %arg2[%401, %c3] : memref<3x8xf32, #tpu.memory_space<smem>>
    %c3_104 = arith.constant 3 : index
    %c0_105 = arith.constant 0 : index
    %c0_106 = arith.constant 0 : index
    %403 = vector.load %arg7[%c3_104, %c0_105, %c0_106] : memref<4x1x32xf32, #tpu.memory_space<vmem>>, vector<1x1x32xf32>
    %404 = vector.shape_cast %403 : vector<1x1x32xf32> to vector<1x32xf32>
    %cst_107 = arith.constant 0.000000e+00 : f32
    %405 = vector.broadcast %cst_107 : f32 to vector<128x32xf32>
    %406 = vector.extract_strided_slice %391 {offsets = [0, 0], sizes = [128, 32], strides = [1, 1]} : vector<128x128xf32> to vector<128x32xf32>
    %407 = arith.truncf %406 : vector<128x32xf32> to vector<128x32xbf16>
    %408 = vector.extract_strided_slice %391 {offsets = [0, 96], sizes = [128, 1], strides = [1, 1]} : vector<128x128xf32> to vector<128x1xf32>
    %409 = vector.extract_strided_slice %391 {offsets = [0, 99], sizes = [128, 1], strides = [1, 1]} : vector<128x128xf32> to vector<128x1xf32>
    %cst_108 = arith.constant 0.000000e+00 : f32
    %410 = vector.shape_cast %409 : vector<128x1xf32> to vector<128x1xf32>
    %411 = vector.broadcast %410 : vector<128x1xf32> to vector<128x128xf32>
    %412 = vector.broadcast %cst_108 : f32 to vector<128x128xf32>
    %413 = arith.select %8, %411, %412 : vector<128x128xi1>, vector<128x128xf32>
    %cst_109 = arith.constant dense<0.000000e+00> : vector<128xf32>
    %414 = vector.multi_reduction <add>, %413, %cst_109 [0] : vector<128x128xf32> to vector<128xf32>
    %415 = vector.shape_cast %414 : vector<128xf32> to vector<1x128xf32>
    %416 = vector.broadcast %408 : vector<128x1xf32> to vector<128x128xf32>
    %417 = vector.broadcast %415 : vector<1x128xf32> to vector<128x128xf32>
    %418 = arith.addf %416, %417 : vector<128x128xf32>
    %cst_110 = arith.constant 2.000000e-01 : f32
    %419 = vector.broadcast %cst_110 : f32 to vector<128x128xf32>
    %420 = arith.mulf %419, %418 : vector<128x128xf32>
    %421 = arith.maximumf %418, %420 : vector<128x128xf32>
    %cst_111 = arith.constant -1.000000e+30 : f32
    %422 = vector.broadcast %cst_111 : f32 to vector<128x128xf32>
    %423 = arith.select %400, %421, %422 : vector<128x128xi1>, vector<128x128xf32>
    %cst_112 = arith.constant dense<0xFF800000> : vector<128xf32>
    %424 = vector.multi_reduction <maximumf>, %423, %cst_112 [1] : vector<128x128xf32> to vector<128xf32>
    %425 = vector.shape_cast %424 : vector<128xf32> to vector<128x1xf32>
    %426 = vector.broadcast %425 : vector<128x1xf32> to vector<128x128xf32>
    %427 = arith.subf %423, %426 : vector<128x128xf32>
    %428 = math.exp %427 : vector<128x128xf32>
    %cst_113 = arith.constant dense<0.000000e+00> : vector<128xf32>
    %429 = vector.multi_reduction <add>, %428, %cst_113 [1] : vector<128x128xf32> to vector<128xf32>
    %430 = vector.shape_cast %429 : vector<128xf32> to vector<128x1xf32>
    %431 = tpu.reciprocal %430 {approx = true} : vector<128x1xf32> -> vector<128x1xf32>
    %432 = arith.truncf %428 : vector<128x128xf32> to vector<128x128xbf16>
    %cst_114 = arith.constant dense<0.000000e+00> : vector<128x32xf32>
    %433 = tpu.matmul %432, %407, %cst_114 {dimension_numbers = #tpu.dot_dimension_numbers<[1], [0], [0], [1], [0, 0, 1, 1], [], []>} : vector<128x128xbf16>, vector<128x32xbf16>, vector<128x32xf32> -> vector<128x32xf32>
    %434 = vector.broadcast %431 : vector<128x1xf32> to vector<128x32xf32>
    %435 = arith.mulf %433, %434 : vector<128x32xf32>
    %436 = arith.addf %405, %435 : vector<128x32xf32>
    %437 = vector.extract_strided_slice %391 {offsets = [0, 32], sizes = [128, 32], strides = [1, 1]} : vector<128x128xf32> to vector<128x32xf32>
    %438 = arith.truncf %437 : vector<128x32xf32> to vector<128x32xbf16>
    %439 = vector.extract_strided_slice %391 {offsets = [0, 97], sizes = [128, 1], strides = [1, 1]} : vector<128x128xf32> to vector<128x1xf32>
    %440 = vector.extract_strided_slice %391 {offsets = [0, 100], sizes = [128, 1], strides = [1, 1]} : vector<128x128xf32> to vector<128x1xf32>
    %cst_115 = arith.constant 0.000000e+00 : f32
    %441 = vector.shape_cast %440 : vector<128x1xf32> to vector<128x1xf32>
    %442 = vector.broadcast %441 : vector<128x1xf32> to vector<128x128xf32>
    %443 = vector.broadcast %cst_115 : f32 to vector<128x128xf32>
    %444 = arith.select %8, %442, %443 : vector<128x128xi1>, vector<128x128xf32>
    %cst_116 = arith.constant dense<0.000000e+00> : vector<128xf32>
    %445 = vector.multi_reduction <add>, %444, %cst_116 [0] : vector<128x128xf32> to vector<128xf32>
    %446 = vector.shape_cast %445 : vector<128xf32> to vector<1x128xf32>
    %447 = vector.broadcast %439 : vector<128x1xf32> to vector<128x128xf32>
    %448 = vector.broadcast %446 : vector<1x128xf32> to vector<128x128xf32>
    %449 = arith.addf %447, %448 : vector<128x128xf32>
    %cst_117 = arith.constant 2.000000e-01 : f32
    %450 = vector.broadcast %cst_117 : f32 to vector<128x128xf32>
    %451 = arith.mulf %450, %449 : vector<128x128xf32>
    %452 = arith.maximumf %449, %451 : vector<128x128xf32>
    %cst_118 = arith.constant -1.000000e+30 : f32
    %453 = vector.broadcast %cst_118 : f32 to vector<128x128xf32>
    %454 = arith.select %400, %452, %453 : vector<128x128xi1>, vector<128x128xf32>
    %cst_119 = arith.constant dense<0xFF800000> : vector<128xf32>
    %455 = vector.multi_reduction <maximumf>, %454, %cst_119 [1] : vector<128x128xf32> to vector<128xf32>
    %456 = vector.shape_cast %455 : vector<128xf32> to vector<128x1xf32>
    %457 = vector.broadcast %456 : vector<128x1xf32> to vector<128x128xf32>
    %458 = arith.subf %454, %457 : vector<128x128xf32>
    %459 = math.exp %458 : vector<128x128xf32>
    %cst_120 = arith.constant dense<0.000000e+00> : vector<128xf32>
    %460 = vector.multi_reduction <add>, %459, %cst_120 [1] : vector<128x128xf32> to vector<128xf32>
    %461 = vector.shape_cast %460 : vector<128xf32> to vector<128x1xf32>
    %462 = tpu.reciprocal %461 {approx = true} : vector<128x1xf32> -> vector<128x1xf32>
    %463 = arith.truncf %459 : vector<128x128xf32> to vector<128x128xbf16>
    %cst_121 = arith.constant dense<0.000000e+00> : vector<128x32xf32>
    %464 = tpu.matmul %463, %438, %cst_121 {dimension_numbers = #tpu.dot_dimension_numbers<[1], [0], [0], [1], [0, 0, 1, 1], [], []>} : vector<128x128xbf16>, vector<128x32xbf16>, vector<128x32xf32> -> vector<128x32xf32>
    %465 = vector.broadcast %462 : vector<128x1xf32> to vector<128x32xf32>
    %466 = arith.mulf %464, %465 : vector<128x32xf32>
    %467 = arith.addf %436, %466 : vector<128x32xf32>
    %468 = vector.extract_strided_slice %391 {offsets = [0, 64], sizes = [128, 32], strides = [1, 1]} : vector<128x128xf32> to vector<128x32xf32>
    %469 = arith.truncf %468 : vector<128x32xf32> to vector<128x32xbf16>
    %470 = vector.extract_strided_slice %391 {offsets = [0, 98], sizes = [128, 1], strides = [1, 1]} : vector<128x128xf32> to vector<128x1xf32>
    %471 = vector.extract_strided_slice %391 {offsets = [0, 101], sizes = [128, 1], strides = [1, 1]} : vector<128x128xf32> to vector<128x1xf32>
    %cst_122 = arith.constant 0.000000e+00 : f32
    %472 = vector.shape_cast %471 : vector<128x1xf32> to vector<128x1xf32>
    %473 = vector.broadcast %472 : vector<128x1xf32> to vector<128x128xf32>
    %474 = vector.broadcast %cst_122 : f32 to vector<128x128xf32>
    %475 = arith.select %8, %473, %474 : vector<128x128xi1>, vector<128x128xf32>
    %cst_123 = arith.constant dense<0.000000e+00> : vector<128xf32>
    %476 = vector.multi_reduction <add>, %475, %cst_123 [0] : vector<128x128xf32> to vector<128xf32>
    %477 = vector.shape_cast %476 : vector<128xf32> to vector<1x128xf32>
    %478 = vector.broadcast %470 : vector<128x1xf32> to vector<128x128xf32>
    %479 = vector.broadcast %477 : vector<1x128xf32> to vector<128x128xf32>
    %480 = arith.addf %478, %479 : vector<128x128xf32>
    %cst_124 = arith.constant 2.000000e-01 : f32
    %481 = vector.broadcast %cst_124 : f32 to vector<128x128xf32>
    %482 = arith.mulf %481, %480 : vector<128x128xf32>
    %483 = arith.maximumf %480, %482 : vector<128x128xf32>
    %cst_125 = arith.constant -1.000000e+30 : f32
    %484 = vector.broadcast %cst_125 : f32 to vector<128x128xf32>
    %485 = arith.select %400, %483, %484 : vector<128x128xi1>, vector<128x128xf32>
    %cst_126 = arith.constant dense<0xFF800000> : vector<128xf32>
    %486 = vector.multi_reduction <maximumf>, %485, %cst_126 [1] : vector<128x128xf32> to vector<128xf32>
    %487 = vector.shape_cast %486 : vector<128xf32> to vector<128x1xf32>
    %488 = vector.broadcast %487 : vector<128x1xf32> to vector<128x128xf32>
    %489 = arith.subf %485, %488 : vector<128x128xf32>
    %490 = math.exp %489 : vector<128x128xf32>
    %cst_127 = arith.constant dense<0.000000e+00> : vector<128xf32>
    %491 = vector.multi_reduction <add>, %490, %cst_127 [1] : vector<128x128xf32> to vector<128xf32>
    %492 = vector.shape_cast %491 : vector<128xf32> to vector<128x1xf32>
    %493 = tpu.reciprocal %492 {approx = true} : vector<128x1xf32> -> vector<128x1xf32>
    %494 = arith.truncf %490 : vector<128x128xf32> to vector<128x128xbf16>
    %cst_128 = arith.constant dense<0.000000e+00> : vector<128x32xf32>
    %495 = tpu.matmul %494, %469, %cst_128 {dimension_numbers = #tpu.dot_dimension_numbers<[1], [0], [0], [1], [0, 0, 1, 1], [], []>} : vector<128x128xbf16>, vector<128x32xbf16>, vector<128x32xf32> -> vector<128x32xf32>
    %496 = vector.broadcast %493 : vector<128x1xf32> to vector<128x32xf32>
    %497 = arith.mulf %495, %496 : vector<128x32xf32>
    %498 = arith.addf %467, %497 : vector<128x32xf32>
    %cst_129 = arith.constant 0.333333343 : f32
    %499 = vector.broadcast %cst_129 : f32 to vector<128x32xf32>
    %500 = arith.mulf %498, %499 : vector<128x32xf32>
    %501 = vector.broadcast %404 : vector<1x32xf32> to vector<128x32xf32>
    %502 = arith.addf %500, %501 : vector<128x32xf32>
    %503 = vector.broadcast %402 : f32 to vector<128x32xf32>
    %504 = arith.mulf %502, %503 : vector<128x32xf32>
    %cst_130 = arith.constant 0.000000e+00 : f32
    %505 = vector.broadcast %cst_130 : f32 to vector<128x32xf32>
    %506 = arith.maximumf %504, %505 : vector<128x32xf32>
    %507 = arith.addf %389, %506 : vector<128x32xf32>
    %508 = tpu.iota {dimensions = array<i32: 0>} : vector<8x128xi32>
    %509 = tpu.iota {dimensions = array<i32: 1>} : vector<8x128xi32>
    %c0_i32 = arith.constant 0 : i32
    %510 = vector.broadcast %c0_i32 : i32 to vector<8x128xi32>
    %511 = arith.cmpi eq, %508, %510 : vector<8x128xi32>
    %512 = vector.broadcast %1 : i32 to vector<8x128xi32>
    %513 = arith.cmpi slt, %509, %512 : vector<8x128xi32>
    %514 = arith.andi %511, %513 : vector<8x128xi1>
    %c1_i32 = arith.constant 1 : i32
    %515 = vector.broadcast %c1_i32 : i32 to vector<8x128xi32>
    %516 = arith.cmpi eq, %508, %515 : vector<8x128xi32>
    %517 = vector.broadcast %1 : i32 to vector<8x128xi32>
    %518 = arith.cmpi sge, %509, %517 : vector<8x128xi32>
    %519 = arith.andi %516, %518 : vector<8x128xi1>
    %520 = vector.broadcast %3 : i32 to vector<8x128xi32>
    %521 = arith.cmpi slt, %509, %520 : vector<8x128xi32>
    %522 = arith.andi %519, %521 : vector<8x128xi1>
    %523 = arith.ori %514, %522 : vector<8x128xi1>
    %c2_i32 = arith.constant 2 : i32
    %524 = vector.broadcast %c2_i32 : i32 to vector<8x128xi32>
    %525 = arith.cmpi eq, %508, %524 : vector<8x128xi32>
    %526 = vector.broadcast %3 : i32 to vector<8x128xi32>
    %527 = arith.cmpi sge, %509, %526 : vector<8x128xi32>
    %528 = arith.andi %525, %527 : vector<8x128xi1>
    %529 = vector.broadcast %5 : i32 to vector<8x128xi32>
    %530 = arith.cmpi slt, %509, %529 : vector<8x128xi32>
    %531 = arith.andi %528, %530 : vector<8x128xi1>
    %532 = arith.ori %523, %531 : vector<8x128xi1>
    %cst_131 = arith.constant 1.000000e+00 : f32
    %cst_132 = arith.constant 0.000000e+00 : f32
    %533 = vector.broadcast %cst_131 : f32 to vector<8x128xf32>
    %534 = vector.broadcast %cst_132 : f32 to vector<8x128xf32>
    %535 = arith.select %532, %533, %534 : vector<8x128xi1>, vector<8x128xf32>
    %cst_133 = arith.constant dense<0.000000e+00> : vector<8x32xf32>
    %536 = tpu.matmul %535, %507, %cst_133 {dimension_numbers = #tpu.dot_dimension_numbers<[1], [0], [0], [1], [0, 0, 1, 1], [], []>} : vector<8x128xf32>, vector<128x32xf32>, vector<8x32xf32> -> vector<8x32xf32>
    %c0_134 = arith.constant 0 : index
    %c0_135 = arith.constant 0 : index
    %c0_136 = arith.constant 0 : index
    %537 = vector.load %arg10[%c0_134, %c0_135, %c0_136] : memref<1x8x32xf32, #tpu.memory_space<vmem>>, vector<1x8x32xf32>
    %538 = vector.shape_cast %537 : vector<1x8x32xf32> to vector<8x32xf32>
    %539 = vector.shape_cast %536 : vector<8x32xf32> to vector<1x8x32xf32>
    tpu.vector_store %arg10[%c0_134, %c0_135, %c0_136], %539 {strides = array<i32>} : memref<1x8x32xf32, #tpu.memory_space<vmem>>, vector<1x8x32xf32>,
    return
  }
  func.func @transform_0(%arg0: i32) -> (i32, i32) {
    %c0_i32 = arith.constant 0 : i32
    %c0_i32_0 = arith.constant 0 : i32
    %c0_i32_1 = arith.constant 0 : i32
    return %c0_i32, %c0_i32_0 : i32, i32
  }
  func.func @transform_1(%arg0: i32) -> (i32, i32) {
    %c0_i32 = arith.constant 0 : i32
    %c0_i32_0 = arith.constant 0 : i32
    %c0_i32_1 = arith.constant 0 : i32
    return %c0_i32, %c0_i32_0 : i32, i32
  }
  func.func @transform_2(%arg0: i32) -> (i32, i32, i32) {
    %c0_i32 = arith.constant 0 : i32
    %c0_i32_0 = arith.constant 0 : i32
    %c0_i32_1 = arith.constant 0 : i32
    return %arg0, %c0_i32, %c0_i32_0 : i32, i32, i32
  }
  func.func @transform_3(%arg0: i32) -> (i32, i32) {
    %c0_i32 = arith.constant 0 : i32
    %c0_i32_0 = arith.constant 0 : i32
    %c0_i32_1 = arith.constant 0 : i32
    return %c0_i32, %c0_i32_0 : i32, i32
  }
  func.func @transform_4(%arg0: i32) -> (i32, i32) {
    %c0_i32 = arith.constant 0 : i32
    %c0_i32_0 = arith.constant 0 : i32
    %c0_i32_1 = arith.constant 0 : i32
    return %c0_i32, %c0_i32_0 : i32, i32
  }
  func.func @transform_5(%arg0: i32) -> (i32, i32) {
    %c0_i32 = arith.constant 0 : i32
    %c0_i32_0 = arith.constant 0 : i32
    %c0_i32_1 = arith.constant 0 : i32
    return %c0_i32, %c0_i32_0 : i32, i32
  }
  func.func @transform_6(%arg0: i32) -> (i32, i32, i32) {
    %c0_i32 = arith.constant 0 : i32
    %c0_i32_0 = arith.constant 0 : i32
    %c0_i32_1 = arith.constant 0 : i32
    %c0_i32_2 = arith.constant 0 : i32
    return %c0_i32, %c0_i32_0, %c0_i32_1 : i32, i32, i32
  }
  func.func @transform_7(%arg0: i32) -> (i32, i32) {
    %c0_i32 = arith.constant 0 : i32
    %c0_i32_0 = arith.constant 0 : i32
    %c0_i32_1 = arith.constant 0 : i32
    return %c0_i32, %c0_i32_0 : i32, i32
  }
  func.func @transform_8(%arg0: i32) -> (i32, i32) {
    %c0_i32 = arith.constant 0 : i32
    %c0_i32_0 = arith.constant 0 : i32
    %c0_i32_1 = arith.constant 0 : i32
    return %c0_i32, %c0_i32_0 : i32, i32
  }
  func.func @transform_9(%arg0: i32) -> (i32, i32, i32) {
    %c0_i32 = arith.constant 0 : i32
    %c0_i32_0 = arith.constant 0 : i32
    %c0_i32_1 = arith.constant 0 : i32
    return %arg0, %c0_i32, %c0_i32_0 : i32, i32, i32
  }
}

</mosaic_0001>

<llo_original>
// kernel: tpu_custom_call.1
$region0: #{tpu_custom_call.1}
  #allocation0 [shape = 'u32[]', space=smem, size = 0x4, offset = 0x4, fixed_abs, tag = 'smem constant byte address 0x4 - core index']
  #allocation1 [shape = 'u32[144,128]{1,0:T(1,128)}', space=vmem, size = 0x12000, scoped, tag = 'internal scratch']
  %s0 = inlined_call_operand.vmem [shape: s32[3,4], index: 0, kind: input, shape index: {}]
  %s1 = inlined_call_operand.vmem [shape: f32[3,8], index: 1, kind: input, shape index: {}]
  %s2 = inlined_call_operand.vmem [shape: bf16[3,128,32], index: 2, kind: input, shape index: {}]
  %s3 = inlined_call_operand.vmem [shape: bf16[32,128], index: 3, kind: input, shape index: {}]
  %s4 = inlined_call_operand.vmem [shape: f32[1,128], index: 4, kind: input, shape index: {}]
  %s5 = inlined_call_operand.vmem [shape: bf16[32,384], index: 5, kind: input, shape index: {}]
  %s6 = inlined_call_operand.vmem [shape: f32[4,1,32], index: 6, kind: input, shape index: {}]
  %s7 = inlined_call_operand.vmem [shape: bf16[32,32], index: 7, kind: input, shape index: {}]
  %s8 = inlined_call_operand.vmem [shape: f32[1,32], index: 8, kind: input, shape index: {}]
  %s9 = inlined_call_operand.hbm [shape: f32[3,8,32], index: 9, kind: output, shape index: {}]
  %s10 = sld [smem:[#allocation0]]
  $region77: #{tpu_custom_call.1} parent=0
    _
  %s12 = ssub.s32 1, %s10
  %s13 = scalar_select 0, %s12, %s10
  $region1: #{tpu_custom_call.1} parent=0
    #allocation2 [shape = 'u8[2048]{0}', space=smem, size = 0x800, scoped, tag = 'input window, operand 0, single buffered']
    #allocation3 [shape = 's32[2]{0}', space=sflag, size = 0x8, scoped, tag = 'scoped memory for tpu_custom_call.1']
    #allocation4 [shape = 's32[2]{0}', space=sflag, size = 0x8, scoped, tag = 'scoped memory for tpu_custom_call.1']
    #allocation5 [shape = 'u8[2048]{0}', space=smem, size = 0x800, scoped, tag = 'input window, operand 1, single buffered']
    #allocation6 [shape = 's32[1]{0}', space=sflag, size = 0x4, scoped, tag = 'scoped memory for tpu_custom_call.1']
    #allocation7 [shape = 'u8[8192]{0}', space=vmem, size = 0x2000, scoped, tag = 'output window, operand 0']
    %14 = vsyncpa [#allocation4], 0
    %15 = vsyncpa [#allocation6], 0
    %16 = vsyncpa [#allocation3], 0
    %s17 = scalar_lea.sflag [#allocation3], 1
    %18 = vsyncpa %s17, 0
    loop: start=0, step=1, limit=5
    $region2: #{tpu_custom_call.1} parent=1 // loop_pre_header
      _
    $region3: #{tpu_custom_call.1} parent=1 // loop_header
      %s20 = sphi 0, %s24
      %p21 = scmp.ge.s32.totalorder %s20, 5
      %s28 = sphi 0, %s28
      %s30 = sphi 0, %s28
      %s31 = sphi 0, %s30
      %s45 = sphi 0, %s31
      %s49 = sphi 0, %s49
      %s51 = sphi 0, %s49
      %s52 = sphi 0, %s51
      %s66 = sphi 0, %s52
      %s72 = sphi 0, %s74
      %s75 = sphi 0, %s72
      %s76 = sphi 0, %s75
      %s92 = sphi 0, %s76
      %s96 = sphi 0, %s96
      %s98 = sphi 0, %s96
      %s99 = sphi 0, %s98
      %s113 = sphi 0, %s99
      %s117 = sphi 0, %s117
      %s119 = sphi 0, %s117
      %s120 = sphi 0, %s119
      %s134 = sphi 0, %s120
      %s138 = sphi 0, %s138
      %s140 = sphi 0, %s138
      %s141 = sphi 0, %s140
      %s155 = sphi 0, %s141
      %s159 = sphi 0, %s159
      %s161 = sphi 0, %s159
      %s162 = sphi 0, %s161
      %s176 = sphi 0, %s162
      %s180 = sphi 0, %s180
      %s182 = sphi 0, %s180
      %s183 = sphi 0, %s182
      %s197 = sphi 0, %s183
      %s201 = sphi 0, %s201
      %s203 = sphi 0, %s201
      %s204 = sphi 0, %s203
      %s218 = sphi 0, %s204
      %s224 = sphi 0, %s226
      %s227 = sphi 0, %s224
      %s228 = sphi 0, %s227
      %s244 = sphi 0, %s228
    $region4: #{tpu_custom_call.1} parent=1 // loop_header_branch
      %23 = sbr.rel (%p21) target = $region8
    $region5: #{tpu_custom_call.1} parent=1 // loop_body
      %s25 = ssub.s32 %s20, 1
      %s26 = ssub.s32 %s20, 2
      %s27 = sadd.s32 %s20, 1
      %s29 = sadd.s32 %s28, 1
      %p32 = scmp.eq.s32.totalorder %s20, 2
      %p33 = scmp.ne.s32.totalorder %s28, %s30
      %p34 = scmp.eq.s32.totalorder %s20, 0
      %p35 = por %p33, %p34
      %p36 = scmp.ne.s32.totalorder %s28, %s30
      %p37 = scmp.eq.s32.totalorder %s25, 2
      %p38 = por %p36, %p37
      %p39 = scmp.ne.s32.totalorder %s30, %s31
      %p40 = scmp.eq.s32.totalorder %s25, 0
      %p41 = por %p39, %p40
      %p42 = scmp.ne.s32.totalorder %s30, %s31
      %p43 = scmp.eq.s32.totalorder %s26, 2
      %p44 = por %p42, %p43
      %p46 = scmp.ne.s32.totalorder %s31, %s45
      %p47 = scmp.eq.s32.totalorder %s26, 0
      %p48 = por %p46, %p47
      %s50 = sadd.s32 %s49, 1
      %p53 = scmp.eq.s32.totalorder %s20, 2
      %p54 = scmp.ne.s32.totalorder %s49, %s51
      %p55 = scmp.eq.s32.totalorder %s20, 0
      %p56 = por %p54, %p55
      %p57 = scmp.ne.s32.totalorder %s49, %s51
      %p58 = scmp.eq.s32.totalorder %s25, 2
      %p59 = por %p57, %p58
      %p60 = scmp.ne.s32.totalorder %s51, %s52
      %p61 = scmp.eq.s32.totalorder %s25, 0
      %p62 = por %p60, %p61
      %p63 = scmp.ne.s32.totalorder %s51, %s52
      %p64 = scmp.eq.s32.totalorder %s26, 2
      %p65 = por %p63, %p64
      %p67 = scmp.ne.s32.totalorder %s52, %s66
      %p68 = scmp.eq.s32.totalorder %s26, 0
      %p69 = por %p67, %p68
      %s70 = ssub.s32 %s20, %s27
      %p71 = scmp.eq.s32.totalorder %s70, 0
      %s73 = sadd.s32 %s72, 1
      %s74 = scalar_select %p71, %s72, %s73
      %p77 = pneg %p71
      %p78 = scmp.eq.s32.totalorder %s20, 2
      %p79 = por %p77, %p78
      %p80 = scmp.ne.s32.totalorder %s72, %s75
      %p81 = scmp.eq.s32.totalorder %s20, 0
      %p82 = por %p80, %p81
      %p83 = scmp.ne.s32.totalorder %s72, %s75
      %p84 = scmp.eq.s32.totalorder %s25, 2
      %p85 = por %p83, %p84
      %p86 = scmp.ne.s32.totalorder %s75, %s76
      %p87 = scmp.eq.s32.totalorder %s25, 0
      %p88 = por %p86, %p87
      %p89 = scmp.ne.s32.totalorder %s75, %s76
      %p90 = scmp.eq.s32.totalorder %s26, 2
      %p91 = por %p89, %p90
      %p93 = scmp.ne.s32.totalorder %s76, %s92
      %p94 = scmp.eq.s32.totalorder %s26, 0
      %p95 = por %p93, %p94
      %s97 = sadd.s32 %s96, 1
      %p100 = scmp.eq.s32.totalorder %s20, 2
      %p101 = scmp.ne.s32.totalorder %s96, %s98
      %p102 = scmp.eq.s32.totalorder %s20, 0
      %p103 = por %p101, %p102
      %p104 = scmp.ne.s32.totalorder %s96, %s98
      %p105 = scmp.eq.s32.totalorder %s25, 2
      %p106 = por %p104, %p105
      %p107 = scmp.ne.s32.totalorder %s98, %s99
      %p108 = scmp.eq.s32.totalorder %s25, 0
      %p109 = por %p107, %p108
      %p110 = scmp.ne.s32.totalorder %s98, %s99
      %p111 = scmp.eq.s32.totalorder %s26, 2
      %p112 = por %p110, %p111
      %p114 = scmp.ne.s32.totalorder %s99, %s113
      %p115 = scmp.eq.s32.totalorder %s26, 0
      %p116 = por %p114, %p115
      %s118 = sadd.s32 %s117, 1
      %p121 = scmp.eq.s32.totalorder %s20, 2
      %p122 = scmp.ne.s32.totalorder %s117, %s119
      %p123 = scmp.eq.s32.totalorder %s20, 0
      %p124 = por %p122, %p123
      %p125 = scmp.ne.s32.totalorder %s117, %s119
      %p126 = scmp.eq.s32.totalorder %s25, 2
      %p127 = por %p125, %p126
      %p128 = scmp.ne.s32.totalorder %s119, %s120
      %p129 = scmp.eq.s32.totalorder %s25, 0
      %p130 = por %p128, %p129
      %p131 = scmp.ne.s32.totalorder %s119, %s120
      %p132 = scmp.eq.s32.totalorder %s26, 2
      %p133 = por %p131, %p132
      %p135 = scmp.ne.s32.totalorder %s120, %s134
      %p136 = scmp.eq.s32.totalorder %s26, 0
      %p137 = por %p135, %p136
      %s139 = sadd.s32 %s138, 1
      %p142 = scmp.eq.s32.totalorder %s20, 2
      %p143 = scmp.ne.s32.totalorder %s138, %s140
      %p144 = scmp.eq.s32.totalorder %s20, 0
      %p145 = por %p143, %p144
      %p146 = scmp.ne.s32.totalorder %s138, %s140
      %p147 = scmp.eq.s32.totalorder %s25, 2
      %p148 = por %p146, %p147
      %p149 = scmp.ne.s32.totalorder %s140, %s141
      %p150 = scmp.eq.s32.totalorder %s25, 0
      %p151 = por %p149, %p150
      %p152 = scmp.ne.s32.totalorder %s140, %s141
      %p153 = scmp.eq.s32.totalorder %s26, 2
      %p154 = por %p152, %p153
      %p156 = scmp.ne.s32.totalorder %s141, %s155
      %p157 = scmp.eq.s32.totalorder %s26, 0
      %p158 = por %p156, %p157
      %s160 = sadd.s32 %s159, 1
      %p163 = scmp.eq.s32.totalorder %s20, 2
      %p164 = scmp.ne.s32.totalorder %s159, %s161
      %p165 = scmp.eq.s32.totalorder %s20, 0
      %p166 = por %p164, %p165
      %p167 = scmp.ne.s32.totalorder %s159, %s161
      %p168 = scmp.eq.s32.totalorder %s25, 2
      %p169 = por %p167, %p168
      %p170 = scmp.ne.s32.totalorder %s161, %s162
      %p171 = scmp.eq.s32.totalorder %s25, 0
      %p172 = por %p170, %p171
      %p173 = scmp.ne.s32.totalorder %s161, %s162
      %p174 = scmp.eq.s32.totalorder %s26, 2
      %p175 = por %p173, %p174
      %p177 = scmp.ne.s32.totalorder %s162, %s176
      %p178 = scmp.eq.s32.totalorder %s26, 0
      %p179 = por %p177, %p178
      %s181 = sadd.s32 %s180, 1
      %p184 = scmp.eq.s32.totalorder %s20, 2
      %p185 = scmp.ne.s32.totalorder %s180, %s182
      %p186 = scmp.eq.s32.totalorder %s20, 0
      %p187 = por %p185, %p186
      %p188 = scmp.ne.s32.totalorder %s180, %s182
      %p189 = scmp.eq.s32.totalorder %s25, 2
      %p190 = por %p188, %p189
      %p191 = scmp.ne.s32.totalorder %s182, %s183
      %p192 = scmp.eq.s32.totalorder %s25, 0
      %p193 = por %p191, %p192
      %p194 = scmp.ne.s32.totalorder %s182, %s183
      %p195 = scmp.eq.s32.totalorder %s26, 2
      %p196 = por %p194, %p195
      %p198 = scmp.ne.s32.totalorder %s183, %s197
      %p199 = scmp.eq.s32.totalorder %s26, 0
      %p200 = por %p198, %p199
      %s202 = sadd.s32 %s201, 1
      %p205 = scmp.eq.s32.totalorder %s20, 2
      %p206 = scmp.ne.s32.totalorder %s201, %s203
      %p207 = scmp.eq.s32.totalorder %s20, 0
      %p208 = por %p206, %p207
      %p209 = scmp.ne.s32.totalorder %s201, %s203
      %p210 = scmp.eq.s32.totalorder %s25, 2
      %p211 = por %p209, %p210
      %p212 = scmp.ne.s32.totalorder %s203, %s204
      %p213 = scmp.eq.s32.totalorder %s25, 0
      %p214 = por %p212, %p213
      %p215 = scmp.ne.s32.totalorder %s203, %s204
      %p216 = scmp.eq.s32.totalorder %s26, 2
      %p217 = por %p215, %p216
      %p219 = scmp.ne.s32.totalorder %s204, %s218
      %p220 = scmp.eq.s32.totalorder %s26, 0
      %p221 = por %p219, %p220
      %s222 = ssub.s32 %s20, %s27
      %p223 = scmp.eq.s32.totalorder %s222, 0
      %s225 = sadd.s32 %s224, 1
      %s226 = scalar_select %p223, %s224, %s225
      %p229 = pneg %p223
      %p230 = scmp.eq.s32.totalorder %s20, 2
      %p231 = por %p229, %p230
      %p232 = scmp.ne.s32.totalorder %s224, %s227
      %p233 = scmp.eq.s32.totalorder %s20, 0
      %p234 = por %p232, %p233
      %p235 = scmp.ne.s32.totalorder %s224, %s227
      %p236 = scmp.eq.s32.totalorder %s25, 2
      %p237 = por %p235, %p236
      %p238 = scmp.ne.s32.totalorder %s227, %s228
      %p239 = scmp.eq.s32.totalorder %s25, 0
      %p240 = por %p238, %p239
      %p241 = scmp.ne.s32.totalorder %s227, %s228
      %p242 = scmp.eq.s32.totalorder %s26, 2
      %p243 = por %p241, %p242
      %p245 = scmp.ne.s32.totalorder %s228, %s244
      %p246 = scmp.eq.s32.totalorder %s26, 0
      %p247 = por %p245, %p246
      %p248 = scmp.le.s32.totalorder 1, %s20
      %p249 = scmp.lt.s32.totalorder %s20, 4
      %p250 = pnand %p248, %p249
      %p251 = pneg %p250
      // Predicated region
      $region9: #{tpu_custom_call.1} parent=5 // pred_check
        _
      $region10: #{tpu_custom_call.1} parent=5 // pred_check_branch
        %253 = sbr.rel (%p250) target = $region12
      $region11: #{tpu_custom_call.1} parent=5 // pred_region
        %s254 = ssub.s32 %s20, 1
        // Predicated region
        $region13: #{tpu_custom_call.1} parent=11 // pred_check
          %p255 = pneg %p41
        $region14: #{tpu_custom_call.1} parent=11 // pred_check_branch
          %257 = sbr.rel (%p255) target = $region16
        $region15: #{tpu_custom_call.1} parent=11 // pred_region
          %s259 = ssub.s32 64, 64
          %260 = vsyncadd [#allocation4], %s259
          %s262 = sshll.u32 %s0, 4
          %s263 = int_to_ptr.vmem [resolvable:$true] %s262
          %265 = dma.vmem_to_smem %s263, 64, [#allocation2], [#allocation4]
        $region16: #{tpu_custom_call.1} parent=11 // pred_fallthru
          _
        // Predicated region
        $region17: #{tpu_custom_call.1} parent=11 // pred_check
          %p266 = pneg %p62
        $region18: #{tpu_custom_call.1} parent=11 // pred_check_branch
          %268 = sbr.rel (%p266) target = $region20
        $region19: #{tpu_custom_call.1} parent=11 // pred_region
          %s270 = ssub.s32 64, 64
          %271 = vsyncadd [#allocation6], %s270
          %s273 = sshll.u32 %s1, 4
          %s274 = int_to_ptr.vmem [resolvable:$true] %s273
          %276 = dma.vmem_to_smem %s274, 64, [#allocation5], [#allocation6]
        $region20: #{tpu_custom_call.1} parent=11 // pred_fallthru
          _
        // Predicated region
        $region21: #{tpu_custom_call.1} parent=11 // pred_check
          %p277 = pneg %p109
        $region22: #{tpu_custom_call.1} parent=11 // pred_check_branch
          %279 = sbr.rel (%p277) target = $region24
        $region23: #{tpu_custom_call.1} parent=11 // pred_region
          _
        $region24: #{tpu_custom_call.1} parent=11 // pred_fallthru
          _
        // Predicated region
        $region25: #{tpu_custom_call.1} parent=11 // pred_check
          %p280 = pneg %p130
        $region26: #{tpu_custom_call.1} parent=11 // pred_check_branch
          %282 = sbr.rel (%p280) target = $region28
        $region27: #{tpu_custom_call.1} parent=11 // pred_region
          _
        $region28: #{tpu_custom_call.1} parent=11 // pred_fallthru
          _
        // Predicated region
        $region29: #{tpu_custom_call.1} parent=11 // pred_check
          %p283 = pneg %p151
        $region30: #{tpu_custom_call.1} parent=11 // pred_check_branch
          %285 = sbr.rel (%p283) target = $region32
        $region31: #{tpu_custom_call.1} parent=11 // pred_region
          _
        $region32: #{tpu_custom_call.1} parent=11 // pred_fallthru
          _
        // Predicated region
        $region33: #{tpu_custom_call.1} parent=11 // pred_check
          %p286 = pneg %p172
        $region34: #{tpu_custom_call.1} parent=11 // pred_check_branch
          %288 = sbr.rel (%p286) target = $region36
        $region35: #{tpu_custom_call.1} parent=11 // pred_region
          _
        $region36: #{tpu_custom_call.1} parent=11 // pred_fallthru
          _
        // Predicated region
        $region37: #{tpu_custom_call.1} parent=11 // pred_check
          %p289 = pneg %p193
        $region38: #{tpu_custom_call.1} parent=11 // pred_check_branch
          %291 = sbr.rel (%p289) target = $region40
        $region39: #{tpu_custom_call.1} parent=11 // pred_region
          _
        $region40: #{tpu_custom_call.1} parent=11 // pred_fallthru
          _
        // Predicated region
        $region41: #{tpu_custom_call.1} parent=11 // pred_check
          %p292 = pneg %p214
        $region42: #{tpu_custom_call.1} parent=11 // pred_check_branch
          %294 = sbr.rel (%p292) target = $region44
        $region43: #{tpu_custom_call.1} parent=11 // pred_region
          _
        $region44: #{tpu_custom_call.1} parent=11 // pred_fallthru
          _
      $region12: #{tpu_custom_call.1} parent=5 // pred_fallthru
        _
      %p295 = scmp.lt.s32.totalorder %s20, 3
      // Predicated region
      $region45: #{tpu_custom_call.1} parent=5 // pred_check
        %p296 = pneg %p295
      $region46: #{tpu_custom_call.1} parent=5 // pred_check_branch
        %298 = sbr.rel (%p296) target = $region48
      $region47: #{tpu_custom_call.1} parent=5 // pred_region
        // Predicated region
        $region49: #{tpu_custom_call.1} parent=47 // pred_check
          %p299 = pneg %p82
        $region50: #{tpu_custom_call.1} parent=47 // pred_check_branch
          %301 = sbr.rel (%p299) target = $region52
        $region51: #{tpu_custom_call.1} parent=47 // pred_region
          %p302 = scmp.lt.s32.totalorder %s20, 2
          %s303 = scalar_select %p302, %s20, 2
          %s304 = smul.addr %s303, 16
          %s305 = smul.addr %s304, 4
          %s306 = scalar_lea.vmem %s2, %s305
        $region52: #{tpu_custom_call.1} parent=47 // pred_fallthru
          _
      $region48: #{tpu_custom_call.1} parent=5 // pred_fallthru
        _
      %p307 = scmp.le.s32.totalorder 1, %s20
      %p308 = scmp.lt.s32.totalorder %s20, 4
      %p309 = pnand %p307, %p308
      %p310 = pneg %p309
      // Predicated region
      $region53: #{tpu_custom_call.1} parent=5 // pred_check
        _
      $region54: #{tpu_custom_call.1} parent=5 // pred_check_branch
        %312 = sbr.rel (%p309) target = $region56
      $region55: #{tpu_custom_call.1} parent=5 // pred_region
        %s313 = ssub.s32 %s20, 1
        // Predicated region
        $region57: #{tpu_custom_call.1} parent=55 // pred_check
          %p314 = pneg %p41
        $region58: #{tpu_custom_call.1} parent=55 // pred_check_branch
          %316 = sbr.rel (%p314) target = $region60
        $region59: #{tpu_custom_call.1} parent=55 // pred_region
          %317 = dma.done [#allocation4], 64
        $region60: #{tpu_custom_call.1} parent=55 // pred_fallthru
          _
        // Predicated region
        $region61: #{tpu_custom_call.1} parent=55 // pred_check
          %p318 = pneg %p62
        $region62: #{tpu_custom_call.1} parent=55 // pred_check_branch
          %320 = sbr.rel (%p318) target = $region64
        $region63: #{tpu_custom_call.1} parent=55 // pred_region
          %321 = dma.done [#allocation6], 64
        $region64: #{tpu_custom_call.1} parent=55 // pred_fallthru
          _
        %322 = sfence
        %p323 = pneg %p41
        %p324 = pneg %p38
        %p325 = pneg %p62
        %p326 = pneg %p59
        %p327 = scmp.lt.s32.totalorder %s25, 2
        %s328 = scalar_select %p327, %s25, 2
        %s329 = smul.addr %s328, 16
        %s330 = smul.addr %s329, 4
        %s331 = scalar_lea.vmem %s2, %s330
        %p332 = pneg %p88
        %p333 = pneg %p85
        %p334 = pneg %p109
        %p335 = pneg %p106
        %p336 = pneg %p130
        %p337 = pneg %p127
        %p338 = pneg %p151
        %p339 = pneg %p148
        %p340 = pneg %p172
        %p341 = pneg %p169
        %p342 = pneg %p193
        %p343 = pneg %p190
        %p344 = pneg %p214
        %p345 = pneg %p211
        %p346 = pneg %p240
        %p347 = pneg %p237
        %s348 = sand.u32 %s227, 1
        %s349 = scalar_lea.sflag [#allocation3], %s348
        %s350 = sand.u32 %s227, 1
        %s351 = smul.addr %s350, 8
        %s352 = scalar_lea.vmem [#allocation7], %s351
        %p353 = scmp.lt.s32.totalorder %s25, 2
        %s354 = scalar_select %p353, %s25, 2
        %s355 = smul.addr %s354, 16
        %s356 = smul.addr %s355, 4
        %s357 = scalar_lea.vmem %s2, %s356
        %s359 = smul.u32 %s25, 128
        %s360 = sld [smem:[#allocation2 + %s359]]
        %s361 = sadd.s32 %s359, 1
        %s362 = sld [smem:[#allocation2 + %s361]]
        %s363 = sadd.s32 %s359, 2
        %s364 = sld [smem:[#allocation2 + %s363]]
        %v365 = vlaneseq
        %v366 = vshrl.u32 %v365, 7
        %v367 = vadd.s32 %v366, 8
        %v368 = vadd.s32 %v366, 16
        %v369 = vadd.s32 %v366, 24
        %v370 = vadd.s32 %v366, 32
        %v371 = vadd.s32 %v366, 40
        %v372 = vadd.s32 %v366, 48
        %v373 = vadd.s32 %v366, 56
        %v374 = vadd.s32 %v366, 64
        %v375 = vadd.s32 %v366, 72
        %v376 = vadd.s32 %v366, 80
        %v377 = vadd.s32 %v366, 88
        %v378 = vadd.s32 %v366, 96
        %v379 = vadd.s32 %v366, 104
        %v380 = vadd.s32 %v366, 112
        %v381 = vadd.s32 %v366, 120
        %v382 = vlaneseq
        %v383 = vand.u32 %v382, 127
        %vm384 = vcmp.eq.s32.totalorder %v366, %v383
        %vm385 = vcmp.eq.s32.totalorder %v367, %v383
        %vm386 = vcmp.eq.s32.totalorder %v368, %v383
        %vm387 = vcmp.eq.s32.totalorder %v369, %v383
        %vm388 = vcmp.eq.s32.totalorder %v370, %v383
        %vm389 = vcmp.eq.s32.totalorder %v371, %v383
        %vm390 = vcmp.eq.s32.totalorder %v372, %v383
        %vm391 = vcmp.eq.s32.totalorder %v373, %v383
        %vm392 = vcmp.eq.s32.totalorder %v374, %v383
        %vm393 = vcmp.eq.s32.totalorder %v375, %v383
        %vm394 = vcmp.eq.s32.totalorder %v376, %v383
        %vm395 = vcmp.eq.s32.totalorder %v377, %v383
        %vm396 = vcmp.eq.s32.totalorder %v378, %v383
        %vm397 = vcmp.eq.s32.totalorder %v379, %v383
        %vm398 = vcmp.eq.s32.totalorder %v380, %v383
        %vm399 = vcmp.eq.s32.totalorder %v381, %v383
        %v400 = vld [vmem:[%s357] sm:$0xf]
        %v401 = vld [vmem:[%s357 + $0x4] sm:$0xf]
        %v402 = vld [vmem:[%s357 + $0x8] sm:$0xf]
        %v403 = vld [vmem:[%s357 + $0xc] sm:$0xf]
        %v404 = vld [vmem:[%s357 + $0x10] sm:$0xf]
        %v405 = vld [vmem:[%s357 + $0x14] sm:$0xf]
        %v406 = vld [vmem:[%s357 + $0x18] sm:$0xf]
        %v407 = vld [vmem:[%s357 + $0x1c] sm:$0xf]
        %v408 = vld [vmem:[%s357 + $0x20] sm:$0xf]
        %v409 = vld [vmem:[%s357 + $0x24] sm:$0xf]
        %v410 = vld [vmem:[%s357 + $0x28] sm:$0xf]
        %v411 = vld [vmem:[%s357 + $0x2c] sm:$0xf]
        %v412 = vld [vmem:[%s357 + $0x30] sm:$0xf]
        %v413 = vld [vmem:[%s357 + $0x34] sm:$0xf]
        %v414 = vld [vmem:[%s357 + $0x38] sm:$0xf]
        %v415 = vld [vmem:[%s357 + $0x3c] sm:$0xf]
        %v416 = vstv %s362
        %vm417 = vcmp.ge.s32.totalorder %v366, %v416
        %vm418 = vcmp.ge.s32.totalorder %v367, %v416
        %vm419 = vcmp.ge.s32.totalorder %v368, %v416
        %vm420 = vcmp.ge.s32.totalorder %v369, %v416
        %vm421 = vcmp.ge.s32.totalorder %v370, %v416
        %vm422 = vcmp.ge.s32.totalorder %v371, %v416
        %vm423 = vcmp.ge.s32.totalorder %v372, %v416
        %vm424 = vcmp.ge.s32.totalorder %v373, %v416
        %vm425 = vcmp.ge.s32.totalorder %v374, %v416
        %vm426 = vcmp.ge.s32.totalorder %v375, %v416
        %vm427 = vcmp.ge.s32.totalorder %v376, %v416
        %vm428 = vcmp.ge.s32.totalorder %v377, %v416
        %vm429 = vcmp.ge.s32.totalorder %v378, %v416
        %vm430 = vcmp.ge.s32.totalorder %v379, %v416
        %vm431 = vcmp.ge.s32.totalorder %v380, %v416
        %vm432 = vcmp.ge.s32.totalorder %v381, %v416
        %v433 = vstv %s364
        %vm434 = vcmp.lt.s32.totalorder %v366, %v433
        %vm435 = vcmp.lt.s32.totalorder %v367, %v433
        %vm436 = vcmp.lt.s32.totalorder %v368, %v433
        %vm437 = vcmp.lt.s32.totalorder %v369, %v433
        %vm438 = vcmp.lt.s32.totalorder %v370, %v433
        %vm439 = vcmp.lt.s32.totalorder %v371, %v433
        %vm440 = vcmp.lt.s32.totalorder %v372, %v433
        %vm441 = vcmp.lt.s32.totalorder %v373, %v433
        %vm442 = vcmp.lt.s32.totalorder %v374, %v433
        %vm443 = vcmp.lt.s32.totalorder %v375, %v433
        %vm444 = vcmp.lt.s32.totalorder %v376, %v433
        %vm445 = vcmp.lt.s32.totalorder %v377, %v433
        %vm446 = vcmp.lt.s32.totalorder %v378, %v433
        %vm447 = vcmp.lt.s32.totalorder %v379, %v433
        %vm448 = vcmp.lt.s32.totalorder %v380, %v433
        %vm449 = vcmp.lt.s32.totalorder %v381, %v433
        %vm450 = vmand %vm417, %vm434
        %vm451 = vmand %vm418, %vm435
        %vm452 = vmand %vm419, %vm436
        %vm453 = vmand %vm420, %vm437
        %vm454 = vmand %vm421, %vm438
        %vm455 = vmand %vm422, %vm439
        %vm456 = vmand %vm423, %vm440
        %vm457 = vmand %vm424, %vm441
        %vm458 = vmand %vm425, %vm442
        %vm459 = vmand %vm426, %vm443
        %vm460 = vmand %vm427, %vm444
        %vm461 = vmand %vm428, %vm445
        %vm462 = vmand %vm429, %vm446
        %vm463 = vmand %vm430, %vm447
        %vm464 = vmand %vm431, %vm448
        %vm465 = vmand %vm432, %vm449
        %vm466 = vcmp.ge.s32.totalorder %v383, %v416
        %vm467 = vmand %vm450, %vm466
        %vm468 = vmand %vm451, %vm466
        %vm469 = vmand %vm452, %vm466
        %vm470 = vmand %vm453, %vm466
        %vm471 = vmand %vm454, %vm466
        %vm472 = vmand %vm455, %vm466
        %vm473 = vmand %vm456, %vm466
        %vm474 = vmand %vm457, %vm466
        %vm475 = vmand %vm458, %vm466
        %vm476 = vmand %vm459, %vm466
        %vm477 = vmand %vm460, %vm466
        %vm478 = vmand %vm461, %vm466
        %vm479 = vmand %vm462, %vm466
        %vm480 = vmand %vm463, %vm466
        %vm481 = vmand %vm464, %vm466
        %vm482 = vmand %vm465, %vm466
        %vm483 = vcmp.lt.s32.totalorder %v383, %v433
        %vm484 = vmand %vm467, %vm483
        %vm485 = vmand %vm468, %vm483
        %vm486 = vmand %vm469, %vm483
        %vm487 = vmand %vm470, %vm483
        %vm488 = vmand %vm471, %vm483
        %vm489 = vmand %vm472, %vm483
        %vm490 = vmand %vm473, %vm483
        %vm491 = vmand %vm474, %vm483
        %vm492 = vmand %vm475, %vm483
        %vm493 = vmand %vm476, %vm483
        %vm494 = vmand %vm477, %vm483
        %vm495 = vmand %vm478, %vm483
        %vm496 = vmand %vm479, %vm483
        %vm497 = vmand %vm480, %vm483
        %vm498 = vmand %vm481, %vm483
        %vm499 = vmand %vm482, %vm483
        %vm500 = vmor %vm484, %vm384
        %vm501 = vmor %vm485, %vm385
        %vm502 = vmor %vm486, %vm386
        %vm503 = vmor %vm487, %vm387
        %vm504 = vmor %vm488, %vm388
        %vm505 = vmor %vm489, %vm389
        %vm506 = vmor %vm490, %vm390
        %vm507 = vmor %vm491, %vm391
        %vm508 = vmor %vm492, %vm392
        %vm509 = vmor %vm493, %vm393
        %vm510 = vmor %vm494, %vm394
        %vm511 = vmor %vm495, %vm395
        %vm512 = vmor %vm496, %vm396
        %vm513 = vmor %vm497, %vm397
        %vm514 = vmor %vm498, %vm398
        %vm515 = vmor %vm499, %vm399
        %v516 = vld [vmem:[%s3] sm:$0xf]
        %v517 = vld [vmem:[%s3 + $0x4] sm:$0xf]
        %v518 = vld [vmem:[%s3 + $0x8] sm:$0xf]
        %v519 = vld [vmem:[%s3 + $0xc] sm:$0xf]
        %v520 = vld [vmem:[%s4] sm:$0x1]
        %v522 = vlaneseq
        %v523 = vshrl.u32 %v522, 7
        %v524 = vsub.s32 0, %v523
        %v525 = vrot.slane %v520, %v524
        %v543 = vunpack.c.l.b16 %v400
        %v544 = vunpack.c.l.b16 %v401
        %v545 = vunpack.c.l.b16 %v402
        %v546 = vunpack.c.l.b16 %v403
        %v547 = vunpack.c.l.b16 %v404
        %v548 = vunpack.c.l.b16 %v405
        %v549 = vunpack.c.l.b16 %v406
        %v550 = vunpack.c.l.b16 %v407
        %v551 = vunpack.c.l.b16 %v408
        %v552 = vunpack.c.l.b16 %v409
        %v553 = vunpack.c.l.b16 %v410
        %v554 = vunpack.c.l.b16 %v411
        %v555 = vunpack.c.l.b16 %v412
        %v556 = vunpack.c.l.b16 %v413
        %v557 = vunpack.c.l.b16 %v414
        %v558 = vunpack.c.l.b16 %v415
        %v559 = vpack.c.b16 %v544, %v543
        %v560 = vpack.c.b16 %v546, %v545
        %v561 = vpack.c.b16 %v548, %v547
        %v562 = vpack.c.b16 %v550, %v549
        %v563 = vpack.c.b16 %v552, %v551
        %v564 = vpack.c.b16 %v554, %v553
        %v565 = vpack.c.b16 %v556, %v555
        %v566 = vpack.c.b16 %v558, %v557
        %v571 = vunpack.c.l.b16 %v516
        %v572 = vunpack.c.l.b16 %v517
        %v573 = vunpack.c.l.b16 %v518
        %v574 = vunpack.c.l.b16 %v519
        %v575 = vpack.c.b16 %v572, %v571
        %v576 = vpack.c.b16 %v574, %v573
        %vm579 = vcmask 261120
        %v581 = vsel %vm579, %v559, 0
        %v584 = vsel %vm579, %v560, 0
        %v587 = vsel %vm579, %v561, 0
        %v590 = vsel %vm579, %v562, 0
        %v593 = vsel %vm579, %v563, 0
        %v596 = vsel %vm579, %v564, 0
        %v599 = vsel %vm579, %v565, 0
        %v602 = vsel %vm579, %v566, 0
        %604 = vmatprep.subr.bf16.mxu0 0
        %605 = vmatpush1.bf16.msra.mxu0 %v575
        %606 = vmatprep.subr.bf16.mxu0 0
        %607 = vmatpush1.bf16.msra.mxu0 %v576
        %608 = vmatprep.subr.bf16.mxu0 0
        %609 = vmatpush1.bf16.msra.mxu0 0
        %610 = vmatprep.subr.bf16.mxu0 0
        %611 = vmatpush1.bf16.msra.mxu0 0
        %612 = vmatprep.subr.bf16.mxu0 0
        %613 = vmatpush1.bf16.msra.mxu0 0
        %614 = vmatprep.subr.bf16.mxu0 0
        %615 = vmatpush1.bf16.msra.mxu0 0
        %616 = vmatprep.subr.bf16.mxu0 0
        %617 = vmatpush1.bf16.msra.mxu0 0
        %618 = vmatprep.subr.bf16.mxu0 0
        %619 = vmatpush1.bf16.msra.mxu0 0
        %620 = vmatprep.subr.bf16.mxu0 0
        %621 = vmatpush1.bf16.msra.mxu0 0
        %622 = vmatprep.subr.bf16.mxu0 0
        %623 = vmatpush1.bf16.msra.mxu0 0
        %624 = vmatprep.subr.bf16.mxu0 0
        %625 = vmatpush1.bf16.msra.mxu0 0
        %626 = vmatprep.subr.bf16.mxu0 0
        %627 = vmatpush1.bf16.msra.mxu0 0
        %628 = vmatprep.subr.bf16.mxu0 0
        %629 = vmatpush1.bf16.msra.mxu0 0
        %630 = vmatprep.subr.bf16.mxu0 0
        %631 = vmatpush1.bf16.msra.mxu0 0
        %632 = vmatprep.subr.bf16.mxu0 0
        %633 = vmatpush1.bf16.msra.mxu0 0
        %634 = vmatprep.subr.bf16.mxu0 0
        %635 = vmatpush1.bf16.msra.mxu0 0
        %636 = vmatprep.mubr.bf16.mxu0 0
        %637 = vmatmul.mubr.bf16.gmra.mrb[0].mxu0 %v581
        %v638 = vpop.f32.mrb[0].mxu0
        %v639 = vadd.f32 %v525, %v638
        %v640 = vpop.f32.mrb[0].mxu0
        %v641 = vpop.f32.mrb[0].mxu0
        %v642 = vadd.f32 %v525, %v641
        %v643 = vpop.f32.mrb[0].mxu0
        %644 = vmatprep.mubr.bf16.mxu0 0
        %645 = vmatmul.mubr.bf16.gmra.mrb[0].mxu0 %v584
        %v646 = vpop.f32.mrb[0].mxu0
        %v647 = vadd.f32 %v525, %v646
        %v648 = vpop.f32.mrb[0].mxu0
        %v649 = vpop.f32.mrb[0].mxu0
        %v650 = vadd.f32 %v525, %v649
        %v651 = vpop.f32.mrb[0].mxu0
        %652 = vmatprep.mubr.bf16.mxu0 0
        %653 = vmatmul.mubr.bf16.gmra.mrb[0].mxu0 %v587
        %v654 = vpop.f32.mrb[0].mxu0
        %v655 = vadd.f32 %v525, %v654
        %v656 = vpop.f32.mrb[0].mxu0
        %v657 = vpop.f32.mrb[0].mxu0
        %v658 = vadd.f32 %v525, %v657
        %v659 = vpop.f32.mrb[0].mxu0
        %660 = vmatprep.mubr.bf16.mxu0 0
        %661 = vmatmul.mubr.bf16.gmra.mrb[0].mxu0 %v590
        %v662 = vpop.f32.mrb[0].mxu0
        %v663 = vadd.f32 %v525, %v662
        %v664 = vpop.f32.mrb[0].mxu0
        %v665 = vpop.f32.mrb[0].mxu0
        %v666 = vadd.f32 %v525, %v665
        %v667 = vpop.f32.mrb[0].mxu0
        %668 = vmatprep.mubr.bf16.mxu0 0
        %669 = vmatmul.mubr.bf16.gmra.mrb[0].mxu0 %v593
        %v670 = vpop.f32.mrb[0].mxu0
        %v671 = vadd.f32 %v525, %v670
        %v672 = vpop.f32.mrb[0].mxu0
        %v673 = vpop.f32.mrb[0].mxu0
        %v674 = vadd.f32 %v525, %v673
        %v675 = vpop.f32.mrb[0].mxu0
        %676 = vmatprep.mubr.bf16.mxu0 0
        %677 = vmatmul.mubr.bf16.gmra.mrb[0].mxu0 %v596
        %v678 = vpop.f32.mrb[0].mxu0
        %v679 = vadd.f32 %v525, %v678
        %v680 = vpop.f32.mrb[0].mxu0
        %v681 = vpop.f32.mrb[0].mxu0
        %v682 = vadd.f32 %v525, %v681
        %v683 = vpop.f32.mrb[0].mxu0
        %684 = vmatprep.mubr.bf16.mxu0 0
        %685 = vmatmul.mubr.bf16.gmra.mrb[0].mxu0 %v599
        %v686 = vpop.f32.mrb[0].mxu0
        %v687 = vadd.f32 %v525, %v686
        %v688 = vpop.f32.mrb[0].mxu0
        %v689 = vpop.f32.mrb[0].mxu0
        %v690 = vadd.f32 %v525, %v689
        %v691 = vpop.f32.mrb[0].mxu0
        %692 = vmatprep.mubr.bf16.mxu0 0
        %693 = vmatmul.mubr.bf16.gmra.mrb[0].mxu0 %v602
        %v694 = vpop.f32.mrb[0].mxu0
        %v695 = vadd.f32 %v525, %v694
        %v696 = vpop.f32.mrb[0].mxu0
        %v697 = vpop.f32.mrb[0].mxu0
        %v698 = vadd.f32 %v525, %v697
        %v699 = vpop.f32.mrb[0].mxu0
        %700 = vdwg.mxu0
        %s701 = sld [smem:[#allocation5 + %s359]]
        %v702 = vld [vmem:[%s6] sm:$0x1]
        %v703 = vpack.c.bf16 %v642, %v639
        %v704 = vpack.c.bf16 %v650, %v647
        %v705 = vpack.c.bf16 %v658, %v655
        %v706 = vpack.c.bf16 %v666, %v663
        %v707 = vpack.c.bf16 %v674, %v671
        %v708 = vpack.c.bf16 %v682, %v679
        %v709 = vpack.c.bf16 %v690, %v687
        %v710 = vpack.c.bf16 %v698, %v695
        %712 = vset.pattern.permute.xlu0 99
        %713 = vperm.xlu0 %712, %v639
        %v714 = vpop.permute.xlu0 %713
        %717 = vset.pattern.permute.xlu0 99
        %718 = vperm.xlu0 %717, %v642
        %v719 = vpop.permute.xlu0 %718
        %722 = vset.pattern.permute.xlu0 99
        %723 = vperm.xlu0 %722, %v647
        %v724 = vpop.permute.xlu0 %723
        %727 = vset.pattern.permute.xlu0 99
        %728 = vperm.xlu0 %727, %v650
        %v729 = vpop.permute.xlu0 %728
        %732 = vset.pattern.permute.xlu0 99
        %733 = vperm.xlu0 %732, %v655
        %v734 = vpop.permute.xlu0 %733
        %737 = vset.pattern.permute.xlu0 99
        %738 = vperm.xlu0 %737, %v658
        %v739 = vpop.permute.xlu0 %738
        %742 = vset.pattern.permute.xlu0 99
        %743 = vperm.xlu0 %742, %v663
        %v744 = vpop.permute.xlu0 %743
        %747 = vset.pattern.permute.xlu0 99
        %748 = vperm.xlu0 %747, %v666
        %v749 = vpop.permute.xlu0 %748
        %752 = vset.pattern.permute.xlu0 99
        %753 = vperm.xlu0 %752, %v671
        %v754 = vpop.permute.xlu0 %753
        %757 = vset.pattern.permute.xlu0 99
        %758 = vperm.xlu0 %757, %v674
        %v759 = vpop.permute.xlu0 %758
        %762 = vset.pattern.permute.xlu0 99
        %763 = vperm.xlu0 %762, %v679
        %v764 = vpop.permute.xlu0 %763
        %767 = vset.pattern.permute.xlu0 99
        %768 = vperm.xlu0 %767, %v682
        %v769 = vpop.permute.xlu0 %768
        %772 = vset.pattern.permute.xlu0 99
        %773 = vperm.xlu0 %772, %v687
        %v774 = vpop.permute.xlu0 %773
        %777 = vset.pattern.permute.xlu0 99
        %778 = vperm.xlu0 %777, %v690
        %v779 = vpop.permute.xlu0 %778
        %782 = vset.pattern.permute.xlu0 99
        %783 = vperm.xlu0 %782, %v695
        %v784 = vpop.permute.xlu0 %783
        %787 = vset.pattern.permute.xlu0 99
        %788 = vperm.xlu0 %787, %v698
        %v789 = vpop.permute.xlu0 %788
        %v791 = vsel %vm384, %v714, 0.0
        %v792 = vsel %vm385, %v719, 0.0
        %v793 = vsel %vm386, %v724, 0.0
        %v794 = vsel %vm387, %v729, 0.0
        %v795 = vsel %vm388, %v734, 0.0
        %v796 = vsel %vm389, %v739, 0.0
        %v797 = vsel %vm390, %v744, 0.0
        %v798 = vsel %vm391, %v749, 0.0
        %v799 = vsel %vm392, %v754, 0.0
        %v800 = vsel %vm393, %v759, 0.0
        %v801 = vsel %vm394, %v764, 0.0
        %v802 = vsel %vm395, %v769, 0.0
        %v803 = vsel %vm396, %v774, 0.0
        %v804 = vsel %vm397, %v779, 0.0
        %v805 = vsel %vm398, %v784, 0.0
        %v806 = vsel %vm399, %v789, 0.0
        %v807 = vadd.f32 %v791, %v792
        %v808 = vadd.f32 %v807, %v793
        %v809 = vadd.f32 %v808, %v794
        %v810 = vadd.f32 %v809, %v795
        %v811 = vadd.f32 %v810, %v796
        %v812 = vadd.f32 %v811, %v797
        %v813 = vadd.f32 %v812, %v798
        %v814 = vadd.f32 %v813, %v799
        %v815 = vadd.f32 %v814, %v800
        %v816 = vadd.f32 %v815, %v801
        %v817 = vadd.f32 %v816, %v802
        %v818 = vadd.f32 %v817, %v803
        %v819 = vadd.f32 %v818, %v804
        %v820 = vadd.f32 %v819, %v805
        %v821 = vadd.f32 %v820, %v806
        %v822 = vrot.slane %v821, 4
        %v823 = vadd.f32 %v821, %v822
        %v824 = vrot.slane %v823, 2
        %v825 = vadd.f32 %v823, %v824
        %v826 = vrot.slane %v825, 1
        %v827 = vadd.f32 %v825, %v826
        %828 = vset.pattern.permute.xlu0 96
        %829 = vperm.xlu0 %828, %v639
        %v830 = vpop.permute.xlu0 %829
        %832 = vset.pattern.permute.xlu0 96
        %833 = vperm.xlu0 %832, %v642
        %v834 = vpop.permute.xlu0 %833
        %836 = vset.pattern.permute.xlu0 96
        %837 = vperm.xlu0 %836, %v647
        %v838 = vpop.permute.xlu0 %837
        %840 = vset.pattern.permute.xlu0 96
        %841 = vperm.xlu0 %840, %v650
        %v842 = vpop.permute.xlu0 %841
        %844 = vset.pattern.permute.xlu0 96
        %845 = vperm.xlu0 %844, %v655
        %v846 = vpop.permute.xlu0 %845
        %848 = vset.pattern.permute.xlu0 96
        %849 = vperm.xlu0 %848, %v658
        %v850 = vpop.permute.xlu0 %849
        %852 = vset.pattern.permute.xlu0 96
        %853 = vperm.xlu0 %852, %v663
        %v854 = vpop.permute.xlu0 %853
        %856 = vset.pattern.permute.xlu0 96
        %857 = vperm.xlu0 %856, %v666
        %v858 = vpop.permute.xlu0 %857
        %860 = vset.pattern.permute.xlu0 96
        %861 = vperm.xlu0 %860, %v671
        %v862 = vpop.permute.xlu0 %861
        %864 = vset.pattern.permute.xlu0 96
        %865 = vperm.xlu0 %864, %v674
        %v866 = vpop.permute.xlu0 %865
        %868 = vset.pattern.permute.xlu0 96
        %869 = vperm.xlu0 %868, %v679
        %v870 = vpop.permute.xlu0 %869
        %872 = vset.pattern.permute.xlu0 96
        %873 = vperm.xlu0 %872, %v682
        %v874 = vpop.permute.xlu0 %873
        %876 = vset.pattern.permute.xlu0 96
        %877 = vperm.xlu0 %876, %v687
        %v878 = vpop.permute.xlu0 %877
        %880 = vset.pattern.permute.xlu0 96
        %881 = vperm.xlu0 %880, %v690
        %v882 = vpop.permute.xlu0 %881
        %884 = vset.pattern.permute.xlu0 96
        %885 = vperm.xlu0 %884, %v695
        %v886 = vpop.permute.xlu0 %885
        %888 = vset.pattern.permute.xlu0 96
        %889 = vperm.xlu0 %888, %v698
        %v890 = vpop.permute.xlu0 %889
        %v892 = vadd.f32 %v830, %v827
        %v893 = vadd.f32 %v834, %v827
        %v894 = vadd.f32 %v838, %v827
        %v895 = vadd.f32 %v842, %v827
        %v896 = vadd.f32 %v846, %v827
        %v897 = vadd.f32 %v850, %v827
        %v898 = vadd.f32 %v854, %v827
        %v899 = vadd.f32 %v858, %v827
        %v900 = vadd.f32 %v862, %v827
        %v901 = vadd.f32 %v866, %v827
        %v902 = vadd.f32 %v870, %v827
        %v903 = vadd.f32 %v874, %v827
        %v904 = vadd.f32 %v878, %v827
        %v905 = vadd.f32 %v882, %v827
        %v906 = vadd.f32 %v886, %v827
        %v907 = vadd.f32 %v890, %v827
        %v908 = vmul.f32 %v892, 0.2
        %v909 = vmul.f32 %v893, 0.2
        %v910 = vmul.f32 %v894, 0.2
        %v911 = vmul.f32 %v895, 0.2
        %v912 = vmul.f32 %v896, 0.2
        %v913 = vmul.f32 %v897, 0.2
        %v914 = vmul.f32 %v898, 0.2
        %v915 = vmul.f32 %v899, 0.2
        %v916 = vmul.f32 %v900, 0.2
        %v917 = vmul.f32 %v901, 0.2
        %v918 = vmul.f32 %v902, 0.2
        %v919 = vmul.f32 %v903, 0.2
        %v920 = vmul.f32 %v904, 0.2
        %v921 = vmul.f32 %v905, 0.2
        %v922 = vmul.f32 %v906, 0.2
        %v923 = vmul.f32 %v907, 0.2
        %v924 = vmax.f32 %v892, %v908
        %v925 = vmax.f32 %v893, %v909
        %v926 = vmax.f32 %v894, %v910
        %v927 = vmax.f32 %v895, %v911
        %v928 = vmax.f32 %v896, %v912
        %v929 = vmax.f32 %v897, %v913
        %v930 = vmax.f32 %v898, %v914
        %v931 = vmax.f32 %v899, %v915
        %v932 = vmax.f32 %v900, %v916
        %v933 = vmax.f32 %v901, %v917
        %v934 = vmax.f32 %v902, %v918
        %v935 = vmax.f32 %v903, %v919
        %v936 = vmax.f32 %v904, %v920
        %v937 = vmax.f32 %v905, %v921
        %v938 = vmax.f32 %v906, %v922
        %v939 = vmax.f32 %v907, %v923
        %v940 = vsel %vm500, %v924, -1e+30
        %v941 = vsel %vm501, %v925, -1e+30
        %v942 = vsel %vm502, %v926, -1e+30
        %v943 = vsel %vm503, %v927, -1e+30
        %v944 = vsel %vm504, %v928, -1e+30
        %v945 = vsel %vm505, %v929, -1e+30
        %v946 = vsel %vm506, %v930, -1e+30
        %v947 = vsel %vm507, %v931, -1e+30
        %v948 = vsel %vm508, %v932, -1e+30
        %v949 = vsel %vm509, %v933, -1e+30
        %v950 = vsel %vm510, %v934, -1e+30
        %v951 = vsel %vm511, %v935, -1e+30
        %v952 = vsel %vm512, %v936, -1e+30
        %v953 = vsel %vm513, %v937, -1e+30
        %v954 = vsel %vm514, %v938, -1e+30
        %v955 = vsel %vm515, %v939, -1e+30
        %956 = vmax.xlane.f32.xlu0 %v940
        %v957 = vpop.xlane.xlu0 %956
        %958 = vmax.xlane.f32.xlu0 %v941
        %v959 = vpop.xlane.xlu0 %958
        %960 = vmax.xlane.f32.xlu0 %v942
        %v961 = vpop.xlane.xlu0 %960
        %962 = vmax.xlane.f32.xlu0 %v943
        %v963 = vpop.xlane.xlu0 %962
        %964 = vmax.xlane.f32.xlu0 %v944
        %v965 = vpop.xlane.xlu0 %964
        %966 = vmax.xlane.f32.xlu0 %v945
        %v967 = vpop.xlane.xlu0 %966
        %968 = vmax.xlane.f32.xlu0 %v946
        %v969 = vpop.xlane.xlu0 %968
        %970 = vmax.xlane.f32.xlu0 %v947
        %v971 = vpop.xlane.xlu0 %970
        %972 = vmax.xlane.f32.xlu0 %v948
        %v973 = vpop.xlane.xlu0 %972
        %974 = vmax.xlane.f32.xlu0 %v949
        %v975 = vpop.xlane.xlu0 %974
        %976 = vmax.xlane.f32.xlu0 %v950
        %v977 = vpop.xlane.xlu0 %976
        %978 = vmax.xlane.f32.xlu0 %v951
        %v979 = vpop.xlane.xlu0 %978
        %980 = vmax.xlane.f32.xlu0 %v952
        %v981 = vpop.xlane.xlu0 %980
        %982 = vmax.xlane.f32.xlu0 %v953
        %v983 = vpop.xlane.xlu0 %982
        %984 = vmax.xlane.f32.xlu0 %v954
        %v985 = vpop.xlane.xlu0 %984
        %986 = vmax.xlane.f32.xlu0 %v955
        %v987 = vpop.xlane.xlu0 %986
        %v988 = vsub.f32 %v940, %v957
        %v989 = vsub.f32 %v941, %v959
        %v990 = vsub.f32 %v942, %v961
        %v991 = vsub.f32 %v943, %v963
        %v992 = vsub.f32 %v944, %v965
        %v993 = vsub.f32 %v945, %v967
        %v994 = vsub.f32 %v946, %v969
        %v995 = vsub.f32 %v947, %v971
        %v996 = vsub.f32 %v948, %v973
        %v997 = vsub.f32 %v949, %v975
        %v998 = vsub.f32 %v950, %v977
        %v999 = vsub.f32 %v951, %v979
        %v1000 = vsub.f32 %v952, %v981
        %v1001 = vsub.f32 %v953, %v983
        %v1002 = vsub.f32 %v954, %v985
        %v1003 = vsub.f32 %v955, %v987
        %v1004 = vmul.f32 %v988, 1.442695
        %v1005 = vpow.pop %v1004
        %v1006 = vmul.f32 %v989, 1.442695
        %v1007 = vpow.pop %v1006
        %v1008 = vmul.f32 %v990, 1.442695
        %v1009 = vpow.pop %v1008
        %v1010 = vmul.f32 %v991, 1.442695
        %v1011 = vpow.pop %v1010
        %v1012 = vmul.f32 %v992, 1.442695
        %v1013 = vpow.pop %v1012
        %v1014 = vmul.f32 %v993, 1.442695
        %v1015 = vpow.pop %v1014
        %v1016 = vmul.f32 %v994, 1.442695
        %v1017 = vpow.pop %v1016
        %v1018 = vmul.f32 %v995, 1.442695
        %v1019 = vpow.pop %v1018
        %v1020 = vmul.f32 %v996, 1.442695
        %v1021 = vpow.pop %v1020
        %v1022 = vmul.f32 %v997, 1.442695
        %v1023 = vpow.pop %v1022
        %v1024 = vmul.f32 %v998, 1.442695
        %v1025 = vpow.pop %v1024
        %v1026 = vmul.f32 %v999, 1.442695
        %v1027 = vpow.pop %v1026
        %v1028 = vmul.f32 %v1000, 1.442695
        %v1029 = vpow.pop %v1028
        %v1030 = vmul.f32 %v1001, 1.442695
        %v1031 = vpow.pop %v1030
        %v1032 = vmul.f32 %v1002, 1.442695
        %v1033 = vpow.pop %v1032
        %v1034 = vmul.f32 %v1003, 1.442695
        %v1035 = vpow.pop %v1034
        %1036 = vadd.xlane.f32.xlu0 %v1005
        %v1037 = vpop.xlane.xlu0 %1036
        %1038 = vadd.xlane.f32.xlu0 %v1007
        %v1039 = vpop.xlane.xlu0 %1038
        %1040 = vadd.xlane.f32.xlu0 %v1009
        %v1041 = vpop.xlane.xlu0 %1040
        %1042 = vadd.xlane.f32.xlu0 %v1011
        %v1043 = vpop.xlane.xlu0 %1042
        %1044 = vadd.xlane.f32.xlu0 %v1013
        %v1045 = vpop.xlane.xlu0 %1044
        %1046 = vadd.xlane.f32.xlu0 %v1015
        %v1047 = vpop.xlane.xlu0 %1046
        %1048 = vadd.xlane.f32.xlu0 %v1017
        %v1049 = vpop.xlane.xlu0 %1048
        %1050 = vadd.xlane.f32.xlu0 %v1019
        %v1051 = vpop.xlane.xlu0 %1050
        %1052 = vadd.xlane.f32.xlu0 %v1021
        %v1053 = vpop.xlane.xlu0 %1052
        %1054 = vadd.xlane.f32.xlu0 %v1023
        %v1055 = vpop.xlane.xlu0 %1054
        %1056 = vadd.xlane.f32.xlu0 %v1025
        %v1057 = vpop.xlane.xlu0 %1056
        %1058 = vadd.xlane.f32.xlu0 %v1027
        %v1059 = vpop.xlane.xlu0 %1058
        %1060 = vadd.xlane.f32.xlu0 %v1029
        %v1061 = vpop.xlane.xlu0 %1060
        %1062 = vadd.xlane.f32.xlu0 %v1031
        %v1063 = vpop.xlane.xlu0 %1062
        %1064 = vadd.xlane.f32.xlu0 %v1033
        %v1065 = vpop.xlane.xlu0 %1064
        %1066 = vadd.xlane.f32.xlu0 %v1035
        %v1067 = vpop.xlane.xlu0 %1066
        %v1068 = vrcp.pop %v1037
        %v1069 = vrcp.pop %v1039
        %v1070 = vrcp.pop %v1041
        %v1071 = vrcp.pop %v1043
        %v1072 = vrcp.pop %v1045
        %v1073 = vrcp.pop %v1047
        %v1074 = vrcp.pop %v1049
        %v1075 = vrcp.pop %v1051
        %v1076 = vrcp.pop %v1053
        %v1077 = vrcp.pop %v1055
        %v1078 = vrcp.pop %v1057
        %v1079 = vrcp.pop %v1059
        %v1080 = vrcp.pop %v1061
        %v1081 = vrcp.pop %v1063
        %v1082 = vrcp.pop %v1065
        %v1083 = vrcp.pop %v1067
        %v1084 = vpack.c.bf16 %v1007, %v1005
        %v1085 = vpack.c.bf16 %v1011, %v1009
        %v1086 = vpack.c.bf16 %v1015, %v1013
        %v1087 = vpack.c.bf16 %v1019, %v1017
        %v1088 = vpack.c.bf16 %v1023, %v1021
        %v1089 = vpack.c.bf16 %v1027, %v1025
        %v1090 = vpack.c.bf16 %v1031, %v1029
        %v1091 = vpack.c.bf16 %v1035, %v1033
        %1092 = vmatprep.subr.bf16.mxu0 0
        %1093 = vmatpush1.bf16.msra.mxu0 %v703
        %1094 = vmatprep.subr.bf16.mxu0 0
        %1095 = vmatpush1.bf16.msra.mxu0 %v704
        %1096 = vmatprep.subr.bf16.mxu0 0
        %1097 = vmatpush1.bf16.msra.mxu0 %v705
        %1098 = vmatprep.subr.bf16.mxu0 0
        %1099 = vmatpush1.bf16.msra.mxu0 %v706
        %1100 = vmatprep.subr.bf16.mxu0 0
        %1101 = vmatpush1.bf16.msra.mxu0 %v707
        %1102 = vmatprep.subr.bf16.mxu0 0
        %1103 = vmatpush1.bf16.msra.mxu0 %v708
        %1104 = vmatprep.subr.bf16.mxu0 0
        %1105 = vmatpush1.bf16.msra.mxu0 %v709
        %1106 = vmatprep.subr.bf16.mxu0 0
        %1107 = vmatpush1.bf16.msra.mxu0 %v710
        %1108 = vmatprep.subr.bf16.mxu0 0
        %1109 = vmatpush1.bf16.msra.mxu0 0
        %1110 = vmatprep.subr.bf16.mxu0 0
        %1111 = vmatpush1.bf16.msra.mxu0 0
        %1112 = vmatprep.subr.bf16.mxu0 0
        %1113 = vmatpush1.bf16.msra.mxu0 0
        %1114 = vmatprep.subr.bf16.mxu0 0
        %1115 = vmatpush1.bf16.msra.mxu0 0
        %1116 = vmatprep.subr.bf16.mxu0 0
        %1117 = vmatpush1.bf16.msra.mxu0 0
        %1118 = vmatprep.subr.bf16.mxu0 0
        %1119 = vmatpush1.bf16.msra.mxu0 0
        %1120 = vmatprep.subr.bf16.mxu0 0
        %1121 = vmatpush1.bf16.msra.mxu0 0
        %1122 = vmatprep.subr.bf16.mxu0 0
        %1123 = vmatpush1.bf16.msra.mxu0 0
        %1124 = vmatprep.mubr.bf16.mxu0 0
        %1125 = vmatmul.mubr.bf16.gmra.mrb[0].mxu0 %v1084
        %v1126 = vpop.f32.mrb[0].mxu0
        %v1127 = vadd.f32 0.0, %v1126
        %v1128 = vpop.f32.mrb[0].mxu0
        %v1129 = vpop.f32.mrb[0].mxu0
        %v1130 = vadd.f32 0.0, %v1129
        %v1131 = vpop.f32.mrb[0].mxu0
        %1132 = vmatprep.mubr.bf16.mxu0 0
        %1133 = vmatmul.mubr.bf16.gmra.mrb[0].mxu0 %v1085
        %v1134 = vpop.f32.mrb[0].mxu0
        %v1135 = vadd.f32 0.0, %v1134
        %v1136 = vpop.f32.mrb[0].mxu0
        %v1137 = vpop.f32.mrb[0].mxu0
        %v1138 = vadd.f32 0.0, %v1137
        %v1139 = vpop.f32.mrb[0].mxu0
        %1140 = vmatprep.mubr.bf16.mxu0 0
        %1141 = vmatmul.mubr.bf16.gmra.mrb[0].mxu0 %v1086
        %v1142 = vpop.f32.mrb[0].mxu0
        %v1143 = vadd.f32 0.0, %v1142
        %v1144 = vpop.f32.mrb[0].mxu0
        %v1145 = vpop.f32.mrb[0].mxu0
        %v1146 = vadd.f32 0.0, %v1145
        %v1147 = vpop.f32.mrb[0].mxu0
        %1148 = vmatprep.mubr.bf16.mxu0 0
        %1149 = vmatmul.mubr.bf16.gmra.mrb[0].mxu0 %v1087
        %v1150 = vpop.f32.mrb[0].mxu0
        %v1151 = vadd.f32 0.0, %v1150
        %v1152 = vpop.f32.mrb[0].mxu0
        %v1153 = vpop.f32.mrb[0].mxu0
        %v1154 = vadd.f32 0.0, %v1153
        %v1155 = vpop.f32.mrb[0].mxu0
        %1156 = vmatprep.mubr.bf16.mxu0 0
        %1157 = vmatmul.mubr.bf16.gmra.mrb[0].mxu0 %v1088
        %v1158 = vpop.f32.mrb[0].mxu0
        %v1159 = vadd.f32 0.0, %v1158
        %v1160 = vpop.f32.mrb[0].mxu0
        %v1161 = vpop.f32.mrb[0].mxu0
        %v1162 = vadd.f32 0.0, %v1161
        %v1163 = vpop.f32.mrb[0].mxu0
        %1164 = vmatprep.mubr.bf16.mxu0 0
        %1165 = vmatmul.mubr.bf16.gmra.mrb[0].mxu0 %v1089
        %v1166 = vpop.f32.mrb[0].mxu0
        %v1167 = vadd.f32 0.0, %v1166
        %v1168 = vpop.f32.mrb[0].mxu0
        %v1169 = vpop.f32.mrb[0].mxu0
        %v1170 = vadd.f32 0.0, %v1169
        %v1171 = vpop.f32.mrb[0].mxu0
        %1172 = vmatprep.mubr.bf16.mxu0 0
        %1173 = vmatmul.mubr.bf16.gmra.mrb[0].mxu0 %v1090
        %v1174 = vpop.f32.mrb[0].mxu0
        %v1175 = vadd.f32 0.0, %v1174
        %v1176 = vpop.f32.mrb[0].mxu0
        %v1177 = vpop.f32.mrb[0].mxu0
        %v1178 = vadd.f32 0.0, %v1177
        %v1179 = vpop.f32.mrb[0].mxu0
        %1180 = vmatprep.mubr.bf16.mxu0 0
        %1181 = vmatmul.mubr.bf16.gmra.mrb[0].mxu0 %v1091
        %v1182 = vpop.f32.mrb[0].mxu0
        %v1183 = vadd.f32 0.0, %v1182
        %v1184 = vpop.f32.mrb[0].mxu0
        %v1185 = vpop.f32.mrb[0].mxu0
        %v1186 = vadd.f32 0.0, %v1185
        %v1187 = vpop.f32.mrb[0].mxu0
        %1188 = vdwg.mxu0
        %v1189 = vmul.f32 %v1127, %v1068
        %v1190 = vmul.f32 %v1130, %v1069
        %v1191 = vmul.f32 %v1135, %v1070
        %v1192 = vmul.f32 %v1138, %v1071
        %v1193 = vmul.f32 %v1143, %v1072
        %v1194 = vmul.f32 %v1146, %v1073
        %v1195 = vmul.f32 %v1151, %v1074
        %v1196 = vmul.f32 %v1154, %v1075
        %v1197 = vmul.f32 %v1159, %v1076
        %v1198 = vmul.f32 %v1162, %v1077
        %v1199 = vmul.f32 %v1167, %v1078
        %v1200 = vmul.f32 %v1170, %v1079
        %v1201 = vmul.f32 %v1175, %v1080
        %v1202 = vmul.f32 %v1178, %v1081
        %v1203 = vmul.f32 %v1183, %v1082
        %v1204 = vmul.f32 %v1186, %v1083
        %v1205 = vadd.f32 %v1189, 0.0
        %v1206 = vadd.f32 %v1190, 0.0
        %v1207 = vadd.f32 %v1191, 0.0
        %v1208 = vadd.f32 %v1192, 0.0
        %v1209 = vadd.f32 %v1193, 0.0
        %v1210 = vadd.f32 %v1194, 0.0
        %v1211 = vadd.f32 %v1195, 0.0
        %v1212 = vadd.f32 %v1196, 0.0
        %v1213 = vadd.f32 %v1197, 0.0
        %v1214 = vadd.f32 %v1198, 0.0
        %v1215 = vadd.f32 %v1199, 0.0
        %v1216 = vadd.f32 %v1200, 0.0
        %v1217 = vadd.f32 %v1201, 0.0
        %v1218 = vadd.f32 %v1202, 0.0
        %v1219 = vadd.f32 %v1203, 0.0
        %v1220 = vadd.f32 %v1204, 0.0
        %1221 = vset.pattern.permute.xlu0 100
        %1222 = vperm.xlu0 %1221, %v639
        %v1223 = vpop.permute.xlu0 %1222
        %1225 = vset.pattern.permute.xlu0 100
        %1226 = vperm.xlu0 %1225, %v642
        %v1227 = vpop.permute.xlu0 %1226
        %1229 = vset.pattern.permute.xlu0 100
        %1230 = vperm.xlu0 %1229, %v647
        %v1231 = vpop.permute.xlu0 %1230
        %1233 = vset.pattern.permute.xlu0 100
        %1234 = vperm.xlu0 %1233, %v650
        %v1235 = vpop.permute.xlu0 %1234
        %1237 = vset.pattern.permute.xlu0 100
        %1238 = vperm.xlu0 %1237, %v655
        %v1239 = vpop.permute.xlu0 %1238
        %1241 = vset.pattern.permute.xlu0 100
        %1242 = vperm.xlu0 %1241, %v658
        %v1243 = vpop.permute.xlu0 %1242
        %1245 = vset.pattern.permute.xlu0 100
        %1246 = vperm.xlu0 %1245, %v663
        %v1247 = vpop.permute.xlu0 %1246
        %1249 = vset.pattern.permute.xlu0 100
        %1250 = vperm.xlu0 %1249, %v666
        %v1251 = vpop.permute.xlu0 %1250
        %1253 = vset.pattern.permute.xlu0 100
        %1254 = vperm.xlu0 %1253, %v671
        %v1255 = vpop.permute.xlu0 %1254
        %1257 = vset.pattern.permute.xlu0 100
        %1258 = vperm.xlu0 %1257, %v674
        %v1259 = vpop.permute.xlu0 %1258
        %1261 = vset.pattern.permute.xlu0 100
        %1262 = vperm.xlu0 %1261, %v679
        %v1263 = vpop.permute.xlu0 %1262
        %1265 = vset.pattern.permute.xlu0 100
        %1266 = vperm.xlu0 %1265, %v682
        %v1267 = vpop.permute.xlu0 %1266
        %1269 = vset.pattern.permute.xlu0 100
        %1270 = vperm.xlu0 %1269, %v687
        %v1271 = vpop.permute.xlu0 %1270
        %1273 = vset.pattern.permute.xlu0 100
        %1274 = vperm.xlu0 %1273, %v690
        %v1275 = vpop.permute.xlu0 %1274
        %1277 = vset.pattern.permute.xlu0 100
        %1278 = vperm.xlu0 %1277, %v695
        %v1279 = vpop.permute.xlu0 %1278
        %1281 = vset.pattern.permute.xlu0 100
        %1282 = vperm.xlu0 %1281, %v698
        %v1283 = vpop.permute.xlu0 %1282
        %v1285 = vsel %vm384, %v1223, 0.0
        %v1286 = vsel %vm385, %v1227, 0.0
        %v1287 = vsel %vm386, %v1231, 0.0
        %v1288 = vsel %vm387, %v1235, 0.0
        %v1289 = vsel %vm388, %v1239, 0.0
        %v1290 = vsel %vm389, %v1243, 0.0
        %v1291 = vsel %vm390, %v1247, 0.0
        %v1292 = vsel %vm391, %v1251, 0.0
        %v1293 = vsel %vm392, %v1255, 0.0
        %v1294 = vsel %vm393, %v1259, 0.0
        %v1295 = vsel %vm394, %v1263, 0.0
        %v1296 = vsel %vm395, %v1267, 0.0
        %v1297 = vsel %vm396, %v1271, 0.0
        %v1298 = vsel %vm397, %v1275, 0.0
        %v1299 = vsel %vm398, %v1279, 0.0
        %v1300 = vsel %vm399, %v1283, 0.0
        %v1301 = vadd.f32 %v1285, %v1286
        %v1302 = vadd.f32 %v1301, %v1287
        %v1303 = vadd.f32 %v1302, %v1288
        %v1304 = vadd.f32 %v1303, %v1289
        %v1305 = vadd.f32 %v1304, %v1290
        %v1306 = vadd.f32 %v1305, %v1291
        %v1307 = vadd.f32 %v1306, %v1292
        %v1308 = vadd.f32 %v1307, %v1293
        %v1309 = vadd.f32 %v1308, %v1294
        %v1310 = vadd.f32 %v1309, %v1295
        %v1311 = vadd.f32 %v1310, %v1296
        %v1312 = vadd.f32 %v1311, %v1297
        %v1313 = vadd.f32 %v1312, %v1298
        %v1314 = vadd.f32 %v1313, %v1299
        %v1315 = vadd.f32 %v1314, %v1300
        %v1316 = vrot.slane %v1315, 4
        %v1317 = vadd.f32 %v1315, %v1316
        %v1318 = vrot.slane %v1317, 2
        %v1319 = vadd.f32 %v1317, %v1318
        %v1320 = vrot.slane %v1319, 1
        %v1321 = vadd.f32 %v1319, %v1320
        %1322 = vset.pattern.permute.xlu0 97
        %1323 = vperm.xlu0 %1322, %v639
        %v1324 = vpop.permute.xlu0 %1323
        %1326 = vset.pattern.permute.xlu0 97
        %1327 = vperm.xlu0 %1326, %v642
        %v1328 = vpop.permute.xlu0 %1327
        %1330 = vset.pattern.permute.xlu0 97
        %1331 = vperm.xlu0 %1330, %v647
        %v1332 = vpop.permute.xlu0 %1331
        %1334 = vset.pattern.permute.xlu0 97
        %1335 = vperm.xlu0 %1334, %v650
        %v1336 = vpop.permute.xlu0 %1335
        %1338 = vset.pattern.permute.xlu0 97
        %1339 = vperm.xlu0 %1338, %v655
        %v1340 = vpop.permute.xlu0 %1339
        %1342 = vset.pattern.permute.xlu0 97
        %1343 = vperm.xlu0 %1342, %v658
        %v1344 = vpop.permute.xlu0 %1343
        %1346 = vset.pattern.permute.xlu0 97
        %1347 = vperm.xlu0 %1346, %v663
        %v1348 = vpop.permute.xlu0 %1347
        %1350 = vset.pattern.permute.xlu0 97
        %1351 = vperm.xlu0 %1350, %v666
        %v1352 = vpop.permute.xlu0 %1351
        %1354 = vset.pattern.permute.xlu0 97
        %1355 = vperm.xlu0 %1354, %v671
        %v1356 = vpop.permute.xlu0 %1355
        %1358 = vset.pattern.permute.xlu0 97
        %1359 = vperm.xlu0 %1358, %v674
        %v1360 = vpop.permute.xlu0 %1359
        %1362 = vset.pattern.permute.xlu0 97
        %1363 = vperm.xlu0 %1362, %v679
        %v1364 = vpop.permute.xlu0 %1363
        %1366 = vset.pattern.permute.xlu0 97
        %1367 = vperm.xlu0 %1366, %v682
        %v1368 = vpop.permute.xlu0 %1367
        %1370 = vset.pattern.permute.xlu0 97
        %1371 = vperm.xlu0 %1370, %v687
        %v1372 = vpop.permute.xlu0 %1371
        %1374 = vset.pattern.permute.xlu0 97
        %1375 = vperm.xlu0 %1374, %v690
        %v1376 = vpop.permute.xlu0 %1375
        %1378 = vset.pattern.permute.xlu0 97
        %1379 = vperm.xlu0 %1378, %v695
        %v1380 = vpop.permute.xlu0 %1379
        %1382 = vset.pattern.permute.xlu0 97
        %1383 = vperm.xlu0 %1382, %v698
        %v1384 = vpop.permute.xlu0 %1383
        %v1386 = vadd.f32 %v1324, %v1321
        %v1387 = vadd.f32 %v1328, %v1321
        %v1388 = vadd.f32 %v1332, %v1321
        %v1389 = vadd.f32 %v1336, %v1321
        %v1390 = vadd.f32 %v1340, %v1321
        %v1391 = vadd.f32 %v1344, %v1321
        %v1392 = vadd.f32 %v1348, %v1321
        %v1393 = vadd.f32 %v1352, %v1321
        %v1394 = vadd.f32 %v1356, %v1321
        %v1395 = vadd.f32 %v1360, %v1321
        %v1396 = vadd.f32 %v1364, %v1321
        %v1397 = vadd.f32 %v1368, %v1321
        %v1398 = vadd.f32 %v1372, %v1321
        %v1399 = vadd.f32 %v1376, %v1321
        %v1400 = vadd.f32 %v1380, %v1321
        %v1401 = vadd.f32 %v1384, %v1321
        %v1402 = vmul.f32 %v1386, 0.2
        %v1403 = vmul.f32 %v1387, 0.2
        %v1404 = vmul.f32 %v1388, 0.2
        %v1405 = vmul.f32 %v1389, 0.2
        %v1406 = vmul.f32 %v1390, 0.2
        %v1407 = vmul.f32 %v1391, 0.2
        %v1408 = vmul.f32 %v1392, 0.2
        %v1409 = vmul.f32 %v1393, 0.2
        %v1410 = vmul.f32 %v1394, 0.2
        %v1411 = vmul.f32 %v1395, 0.2
        %v1412 = vmul.f32 %v1396, 0.2
        %v1413 = vmul.f32 %v1397, 0.2
        %v1414 = vmul.f32 %v1398, 0.2
        %v1415 = vmul.f32 %v1399, 0.2
        %v1416 = vmul.f32 %v1400, 0.2
        %v1417 = vmul.f32 %v1401, 0.2
        %v1418 = vmax.f32 %v1386, %v1402
        %v1419 = vmax.f32 %v1387, %v1403
        %v1420 = vmax.f32 %v1388, %v1404
        %v1421 = vmax.f32 %v1389, %v1405
        %v1422 = vmax.f32 %v1390, %v1406
        %v1423 = vmax.f32 %v1391, %v1407
        %v1424 = vmax.f32 %v1392, %v1408
        %v1425 = vmax.f32 %v1393, %v1409
        %v1426 = vmax.f32 %v1394, %v1410
        %v1427 = vmax.f32 %v1395, %v1411
        %v1428 = vmax.f32 %v1396, %v1412
        %v1429 = vmax.f32 %v1397, %v1413
        %v1430 = vmax.f32 %v1398, %v1414
        %v1431 = vmax.f32 %v1399, %v1415
        %v1432 = vmax.f32 %v1400, %v1416
        %v1433 = vmax.f32 %v1401, %v1417
        %v1434 = vsel %vm500, %v1418, -1e+30
        %v1435 = vsel %vm501, %v1419, -1e+30
        %v1436 = vsel %vm502, %v1420, -1e+30
        %v1437 = vsel %vm503, %v1421, -1e+30
        %v1438 = vsel %vm504, %v1422, -1e+30
        %v1439 = vsel %vm505, %v1423, -1e+30
        %v1440 = vsel %vm506, %v1424, -1e+30
        %v1441 = vsel %vm507, %v1425, -1e+30
        %v1442 = vsel %vm508, %v1426, -1e+30
        %v1443 = vsel %vm509, %v1427, -1e+30
        %v1444 = vsel %vm510, %v1428, -1e+30
        %v1445 = vsel %vm511, %v1429, -1e+30
        %v1446 = vsel %vm512, %v1430, -1e+30
        %v1447 = vsel %vm513, %v1431, -1e+30
        %v1448 = vsel %vm514, %v1432, -1e+30
        %v1449 = vsel %vm515, %v1433, -1e+30
        %1450 = vmax.xlane.f32.xlu0 %v1434
        %v1451 = vpop.xlane.xlu0 %1450
        %1452 = vmax.xlane.f32.xlu0 %v1435
        %v1453 = vpop.xlane.xlu0 %1452
        %1454 = vmax.xlane.f32.xlu0 %v1436
        %v1455 = vpop.xlane.xlu0 %1454
        %1456 = vmax.xlane.f32.xlu0 %v1437
        %v1457 = vpop.xlane.xlu0 %1456
        %1458 = vmax.xlane.f32.xlu0 %v1438
        %v1459 = vpop.xlane.xlu0 %1458
        %1460 = vmax.xlane.f32.xlu0 %v1439
        %v1461 = vpop.xlane.xlu0 %1460
        %1462 = vmax.xlane.f32.xlu0 %v1440
        %v1463 = vpop.xlane.xlu0 %1462
        %1464 = vmax.xlane.f32.xlu0 %v1441
        %v1465 = vpop.xlane.xlu0 %1464
        %1466 = vmax.xlane.f32.xlu0 %v1442
        %v1467 = vpop.xlane.xlu0 %1466
        %1468 = vmax.xlane.f32.xlu0 %v1443
        %v1469 = vpop.xlane.xlu0 %1468
        %1470 = vmax.xlane.f32.xlu0 %v1444
        %v1471 = vpop.xlane.xlu0 %1470
        %1472 = vmax.xlane.f32.xlu0 %v1445
        %v1473 = vpop.xlane.xlu0 %1472
        %1474 = vmax.xlane.f32.xlu0 %v1446
        %v1475 = vpop.xlane.xlu0 %1474
        %1476 = vmax.xlane.f32.xlu0 %v1447
        %v1477 = vpop.xlane.xlu0 %1476
        %1478 = vmax.xlane.f32.xlu0 %v1448
        %v1479 = vpop.xlane.xlu0 %1478
        %1480 = vmax.xlane.f32.xlu0 %v1449
        %v1481 = vpop.xlane.xlu0 %1480
        %v1482 = vsub.f32 %v1434, %v1451
        %v1483 = vsub.f32 %v1435, %v1453
        %v1484 = vsub.f32 %v1436, %v1455
        %v1485 = vsub.f32 %v1437, %v1457
        %v1486 = vsub.f32 %v1438, %v1459
        %v1487 = vsub.f32 %v1439, %v1461
        %v1488 = vsub.f32 %v1440, %v1463
        %v1489 = vsub.f32 %v1441, %v1465
        %v1490 = vsub.f32 %v1442, %v1467
        %v1491 = vsub.f32 %v1443, %v1469
        %v1492 = vsub.f32 %v1444, %v1471
        %v1493 = vsub.f32 %v1445, %v1473
        %v1494 = vsub.f32 %v1446, %v1475
        %v1495 = vsub.f32 %v1447, %v1477
        %v1496 = vsub.f32 %v1448, %v1479
        %v1497 = vsub.f32 %v1449, %v1481
        %v1498 = vmul.f32 %v1482, 1.442695
        %v1499 = vpow.pop %v1498
        %v1500 = vmul.f32 %v1483, 1.442695
        %v1501 = vpow.pop %v1500
        %v1502 = vmul.f32 %v1484, 1.442695
        %v1503 = vpow.pop %v1502
        %v1504 = vmul.f32 %v1485, 1.442695
        %v1505 = vpow.pop %v1504
        %v1506 = vmul.f32 %v1486, 1.442695
        %v1507 = vpow.pop %v1506
        %v1508 = vmul.f32 %v1487, 1.442695
        %v1509 = vpow.pop %v1508
        %v1510 = vmul.f32 %v1488, 1.442695
        %v1511 = vpow.pop %v1510
        %v1512 = vmul.f32 %v1489, 1.442695
        %v1513 = vpow.pop %v1512
        %v1514 = vmul.f32 %v1490, 1.442695
        %v1515 = vpow.pop %v1514
        %v1516 = vmul.f32 %v1491, 1.442695
        %v1517 = vpow.pop %v1516
        %v1518 = vmul.f32 %v1492, 1.442695
        %v1519 = vpow.pop %v1518
        %v1520 = vmul.f32 %v1493, 1.442695
        %v1521 = vpow.pop %v1520
        %v1522 = vmul.f32 %v1494, 1.442695
        %v1523 = vpow.pop %v1522
        %v1524 = vmul.f32 %v1495, 1.442695
        %v1525 = vpow.pop %v1524
        %v1526 = vmul.f32 %v1496, 1.442695
        %v1527 = vpow.pop %v1526
        %v1528 = vmul.f32 %v1497, 1.442695
        %v1529 = vpow.pop %v1528
        %1530 = vadd.xlane.f32.xlu0 %v1499
        %v1531 = vpop.xlane.xlu0 %1530
        %1532 = vadd.xlane.f32.xlu0 %v1501
        %v1533 = vpop.xlane.xlu0 %1532
        %1534 = vadd.xlane.f32.xlu0 %v1503
        %v1535 = vpop.xlane.xlu0 %1534
        %1536 = vadd.xlane.f32.xlu0 %v1505
        %v1537 = vpop.xlane.xlu0 %1536
        %1538 = vadd.xlane.f32.xlu0 %v1507
        %v1539 = vpop.xlane.xlu0 %1538
        %1540 = vadd.xlane.f32.xlu0 %v1509
        %v1541 = vpop.xlane.xlu0 %1540
        %1542 = vadd.xlane.f32.xlu0 %v1511
        %v1543 = vpop.xlane.xlu0 %1542
        %1544 = vadd.xlane.f32.xlu0 %v1513
        %v1545 = vpop.xlane.xlu0 %1544
        %1546 = vadd.xlane.f32.xlu0 %v1515
        %v1547 = vpop.xlane.xlu0 %1546
        %1548 = vadd.xlane.f32.xlu0 %v1517
        %v1549 = vpop.xlane.xlu0 %1548
        %1550 = vadd.xlane.f32.xlu0 %v1519
        %v1551 = vpop.xlane.xlu0 %1550
        %1552 = vadd.xlane.f32.xlu0 %v1521
        %v1553 = vpop.xlane.xlu0 %1552
        %1554 = vadd.xlane.f32.xlu0 %v1523
        %v1555 = vpop.xlane.xlu0 %1554
        %1556 = vadd.xlane.f32.xlu0 %v1525
        %v1557 = vpop.xlane.xlu0 %1556
        %1558 = vadd.xlane.f32.xlu0 %v1527
        %v1559 = vpop.xlane.xlu0 %1558
        %1560 = vadd.xlane.f32.xlu0 %v1529
        %v1561 = vpop.xlane.xlu0 %1560
        %v1562 = vrcp.pop %v1531
        %v1563 = vrcp.pop %v1533
        %v1564 = vrcp.pop %v1535
        %v1565 = vrcp.pop %v1537
        %v1566 = vrcp.pop %v1539
        %v1567 = vrcp.pop %v1541
        %v1568 = vrcp.pop %v1543
        %v1569 = vrcp.pop %v1545
        %v1570 = vrcp.pop %v1547
        %v1571 = vrcp.pop %v1549
        %v1572 = vrcp.pop %v1551
        %v1573 = vrcp.pop %v1553
        %v1574 = vrcp.pop %v1555
        %v1575 = vrcp.pop %v1557
        %v1576 = vrcp.pop %v1559
        %v1577 = vrcp.pop %v1561
        %v1578 = vpack.c.bf16 %v1501, %v1499
        %v1579 = vpack.c.bf16 %v1505, %v1503
        %v1580 = vpack.c.bf16 %v1509, %v1507
        %v1581 = vpack.c.bf16 %v1513, %v1511
        %v1582 = vpack.c.bf16 %v1517, %v1515
        %v1583 = vpack.c.bf16 %v1521, %v1519
        %v1584 = vpack.c.bf16 %v1525, %v1523
        %v1585 = vpack.c.bf16 %v1529, %v1527
        %1594 = vrot.lane.b32.xlu0 %v703, 96
        %v1595 = vpop.permute.xlu0 %1594
        %1596 = vrot.lane.b32.xlu0 %v704, 96
        %v1597 = vpop.permute.xlu0 %1596
        %1598 = vrot.lane.b32.xlu0 %v705, 96
        %v1599 = vpop.permute.xlu0 %1598
        %1600 = vrot.lane.b32.xlu0 %v706, 96
        %v1601 = vpop.permute.xlu0 %1600
        %1602 = vrot.lane.b32.xlu0 %v707, 96
        %v1603 = vpop.permute.xlu0 %1602
        %1604 = vrot.lane.b32.xlu0 %v708, 96
        %v1605 = vpop.permute.xlu0 %1604
        %1606 = vrot.lane.b32.xlu0 %v709, 96
        %v1607 = vpop.permute.xlu0 %1606
        %1608 = vrot.lane.b32.xlu0 %v710, 96
        %v1609 = vpop.permute.xlu0 %1608
        %1618 = vmatprep.subr.bf16.mxu0 0
        %1619 = vmatpush1.bf16.msra.mxu0 %v1595
        %1620 = vmatprep.subr.bf16.mxu0 0
        %1621 = vmatpush1.bf16.msra.mxu0 %v1597
        %1622 = vmatprep.subr.bf16.mxu0 0
        %1623 = vmatpush1.bf16.msra.mxu0 %v1599
        %1624 = vmatprep.subr.bf16.mxu0 0
        %1625 = vmatpush1.bf16.msra.mxu0 %v1601
        %1626 = vmatprep.subr.bf16.mxu0 0
        %1627 = vmatpush1.bf16.msra.mxu0 %v1603
        %1628 = vmatprep.subr.bf16.mxu0 0
        %1629 = vmatpush1.bf16.msra.mxu0 %v1605
        %1630 = vmatprep.subr.bf16.mxu0 0
        %1631 = vmatpush1.bf16.msra.mxu0 %v1607
        %1632 = vmatprep.subr.bf16.mxu0 0
        %1633 = vmatpush1.bf16.msra.mxu0 %v1609
        %1634 = vmatprep.subr.bf16.mxu0 0
        %1635 = vmatpush1.bf16.msra.mxu0 0
        %1636 = vmatprep.subr.bf16.mxu0 0
        %1637 = vmatpush1.bf16.msra.mxu0 0
        %1638 = vmatprep.subr.bf16.mxu0 0
        %1639 = vmatpush1.bf16.msra.mxu0 0
        %1640 = vmatprep.subr.bf16.mxu0 0
        %1641 = vmatpush1.bf16.msra.mxu0 0
        %1642 = vmatprep.subr.bf16.mxu0 0
        %1643 = vmatpush1.bf16.msra.mxu0 0
        %1644 = vmatprep.subr.bf16.mxu0 0
        %1645 = vmatpush1.bf16.msra.mxu0 0
        %1646 = vmatprep.subr.bf16.mxu0 0
        %1647 = vmatpush1.bf16.msra.mxu0 0
        %1648 = vmatprep.subr.bf16.mxu0 0
        %1649 = vmatpush1.bf16.msra.mxu0 0
        %1650 = vmatprep.mubr.bf16.mxu0 0
        %1651 = vmatmul.mubr.bf16.gmra.mrb[0].mxu0 %v1578
        %v1652 = vpop.f32.mrb[0].mxu0
        %v1653 = vadd.f32 0.0, %v1652
        %v1654 = vpop.f32.mrb[0].mxu0
        %v1655 = vpop.f32.mrb[0].mxu0
        %v1656 = vadd.f32 0.0, %v1655
        %v1657 = vpop.f32.mrb[0].mxu0
        %1658 = vmatprep.mubr.bf16.mxu0 0
        %1659 = vmatmul.mubr.bf16.gmra.mrb[0].mxu0 %v1579
        %v1660 = vpop.f32.mrb[0].mxu0
        %v1661 = vadd.f32 0.0, %v1660
        %v1662 = vpop.f32.mrb[0].mxu0
        %v1663 = vpop.f32.mrb[0].mxu0
        %v1664 = vadd.f32 0.0, %v1663
        %v1665 = vpop.f32.mrb[0].mxu0
        %1666 = vmatprep.mubr.bf16.mxu0 0
        %1667 = vmatmul.mubr.bf16.gmra.mrb[0].mxu0 %v1580
        %v1668 = vpop.f32.mrb[0].mxu0
        %v1669 = vadd.f32 0.0, %v1668
        %v1670 = vpop.f32.mrb[0].mxu0
        %v1671 = vpop.f32.mrb[0].mxu0
        %v1672 = vadd.f32 0.0, %v1671
        %v1673 = vpop.f32.mrb[0].mxu0
        %1674 = vmatprep.mubr.bf16.mxu0 0
        %1675 = vmatmul.mubr.bf16.gmra.mrb[0].mxu0 %v1581
        %v1676 = vpop.f32.mrb[0].mxu0
        %v1677 = vadd.f32 0.0, %v1676
        %v1678 = vpop.f32.mrb[0].mxu0
        %v1679 = vpop.f32.mrb[0].mxu0
        %v1680 = vadd.f32 0.0, %v1679
        %v1681 = vpop.f32.mrb[0].mxu0
        %1682 = vmatprep.mubr.bf16.mxu0 0
        %1683 = vmatmul.mubr.bf16.gmra.mrb[0].mxu0 %v1582
        %v1684 = vpop.f32.mrb[0].mxu0
        %v1685 = vadd.f32 0.0, %v1684
        %v1686 = vpop.f32.mrb[0].mxu0
        %v1687 = vpop.f32.mrb[0].mxu0
        %v1688 = vadd.f32 0.0, %v1687
        %v1689 = vpop.f32.mrb[0].mxu0
        %1690 = vmatprep.mubr.bf16.mxu0 0
        %1691 = vmatmul.mubr.bf16.gmra.mrb[0].mxu0 %v1583
        %v1692 = vpop.f32.mrb[0].mxu0
        %v1693 = vadd.f32 0.0, %v1692
        %v1694 = vpop.f32.mrb[0].mxu0
        %v1695 = vpop.f32.mrb[0].mxu0
        %v1696 = vadd.f32 0.0, %v1695
        %v1697 = vpop.f32.mrb[0].mxu0
        %1698 = vmatprep.mubr.bf16.mxu0 0
        %1699 = vmatmul.mubr.bf16.gmra.mrb[0].mxu0 %v1584
        %v1700 = vpop.f32.mrb[0].mxu0
        %v1701 = vadd.f32 0.0, %v1700
        %v1702 = vpop.f32.mrb[0].mxu0
        %v1703 = vpop.f32.mrb[0].mxu0
        %v1704 = vadd.f32 0.0, %v1703
        %v1705 = vpop.f32.mrb[0].mxu0
        %1706 = vmatprep.mubr.bf16.mxu0 0
        %1707 = vmatmul.mubr.bf16.gmra.mrb[0].mxu0 %v1585
        %v1708 = vpop.f32.mrb[0].mxu0
        %v1709 = vadd.f32 0.0, %v1708
        %v1710 = vpop.f32.mrb[0].mxu0
        %v1711 = vpop.f32.mrb[0].mxu0
        %v1712 = vadd.f32 0.0, %v1711
        %v1713 = vpop.f32.mrb[0].mxu0
        %1714 = vdwg.mxu0
        %v1715 = vmul.f32 %v1653, %v1562
        %v1716 = vmul.f32 %v1656, %v1563
        %v1717 = vmul.f32 %v1661, %v1564
        %v1718 = vmul.f32 %v1664, %v1565
        %v1719 = vmul.f32 %v1669, %v1566
        %v1720 = vmul.f32 %v1672, %v1567
        %v1721 = vmul.f32 %v1677, %v1568
        %v1722 = vmul.f32 %v1680, %v1569
        %v1723 = vmul.f32 %v1685, %v1570
        %v1724 = vmul.f32 %v1688, %v1571
        %v1725 = vmul.f32 %v1693, %v1572
        %v1726 = vmul.f32 %v1696, %v1573
        %v1727 = vmul.f32 %v1701, %v1574
        %v1728 = vmul.f32 %v1704, %v1575
        %v1729 = vmul.f32 %v1709, %v1576
        %v1730 = vmul.f32 %v1712, %v1577
        %v1731 = vadd.f32 %v1205, %v1715
        %v1732 = vadd.f32 %v1206, %v1716
        %v1733 = vadd.f32 %v1207, %v1717
        %v1734 = vadd.f32 %v1208, %v1718
        %v1735 = vadd.f32 %v1209, %v1719
        %v1736 = vadd.f32 %v1210, %v1720
        %v1737 = vadd.f32 %v1211, %v1721
        %v1738 = vadd.f32 %v1212, %v1722
        %v1739 = vadd.f32 %v1213, %v1723
        %v1740 = vadd.f32 %v1214, %v1724
        %v1741 = vadd.f32 %v1215, %v1725
        %v1742 = vadd.f32 %v1216, %v1726
        %v1743 = vadd.f32 %v1217, %v1727
        %v1744 = vadd.f32 %v1218, %v1728
        %v1745 = vadd.f32 %v1219, %v1729
        %v1746 = vadd.f32 %v1220, %v1730
        %1747 = vset.pattern.permute.xlu0 101
        %1748 = vperm.xlu0 %1747, %v639
        %v1749 = vpop.permute.xlu0 %1748
        %1751 = vset.pattern.permute.xlu0 101
        %1752 = vperm.xlu0 %1751, %v642
        %v1753 = vpop.permute.xlu0 %1752
        %1755 = vset.pattern.permute.xlu0 101
        %1756 = vperm.xlu0 %1755, %v647
        %v1757 = vpop.permute.xlu0 %1756
        %1759 = vset.pattern.permute.xlu0 101
        %1760 = vperm.xlu0 %1759, %v650
        %v1761 = vpop.permute.xlu0 %1760
        %1763 = vset.pattern.permute.xlu0 101
        %1764 = vperm.xlu0 %1763, %v655
        %v1765 = vpop.permute.xlu0 %1764
        %1767 = vset.pattern.permute.xlu0 101
        %1768 = vperm.xlu0 %1767, %v658
        %v1769 = vpop.permute.xlu0 %1768
        %1771 = vset.pattern.permute.xlu0 101
        %1772 = vperm.xlu0 %1771, %v663
        %v1773 = vpop.permute.xlu0 %1772
        %1775 = vset.pattern.permute.xlu0 101
        %1776 = vperm.xlu0 %1775, %v666
        %v1777 = vpop.permute.xlu0 %1776
        %1779 = vset.pattern.permute.xlu0 101
        %1780 = vperm.xlu0 %1779, %v671
        %v1781 = vpop.permute.xlu0 %1780
        %1783 = vset.pattern.permute.xlu0 101
        %1784 = vperm.xlu0 %1783, %v674
        %v1785 = vpop.permute.xlu0 %1784
        %1787 = vset.pattern.permute.xlu0 101
        %1788 = vperm.xlu0 %1787, %v679
        %v1789 = vpop.permute.xlu0 %1788
        %1791 = vset.pattern.permute.xlu0 101
        %1792 = vperm.xlu0 %1791, %v682
        %v1793 = vpop.permute.xlu0 %1792
        %1795 = vset.pattern.permute.xlu0 101
        %1796 = vperm.xlu0 %1795, %v687
        %v1797 = vpop.permute.xlu0 %1796
        %1799 = vset.pattern.permute.xlu0 101
        %1800 = vperm.xlu0 %1799, %v690
        %v1801 = vpop.permute.xlu0 %1800
        %1803 = vset.pattern.permute.xlu0 101
        %1804 = vperm.xlu0 %1803, %v695
        %v1805 = vpop.permute.xlu0 %1804
        %1807 = vset.pattern.permute.xlu0 101
        %1808 = vperm.xlu0 %1807, %v698
        %v1809 = vpop.permute.xlu0 %1808
        %v1811 = vsel %vm384, %v1749, 0.0
        %v1812 = vsel %vm385, %v1753, 0.0
        %v1813 = vsel %vm386, %v1757, 0.0
        %v1814 = vsel %vm387, %v1761, 0.0
        %v1815 = vsel %vm388, %v1765, 0.0
        %v1816 = vsel %vm389, %v1769, 0.0
        %v1817 = vsel %vm390, %v1773, 0.0
        %v1818 = vsel %vm391, %v1777, 0.0
        %v1819 = vsel %vm392, %v1781, 0.0
        %v1820 = vsel %vm393, %v1785, 0.0
        %v1821 = vsel %vm394, %v1789, 0.0
        %v1822 = vsel %vm395, %v1793, 0.0
        %v1823 = vsel %vm396, %v1797, 0.0
        %v1824 = vsel %vm397, %v1801, 0.0
        %v1825 = vsel %vm398, %v1805, 0.0
        %v1826 = vsel %vm399, %v1809, 0.0
        %v1827 = vadd.f32 %v1811, %v1812
        %v1828 = vadd.f32 %v1827, %v1813
        %v1829 = vadd.f32 %v1828, %v1814
        %v1830 = vadd.f32 %v1829, %v1815
        %v1831 = vadd.f32 %v1830, %v1816
        %v1832 = vadd.f32 %v1831, %v1817
        %v1833 = vadd.f32 %v1832, %v1818
        %v1834 = vadd.f32 %v1833, %v1819
        %v1835 = vadd.f32 %v1834, %v1820
        %v1836 = vadd.f32 %v1835, %v1821
        %v1837 = vadd.f32 %v1836, %v1822
        %v1838 = vadd.f32 %v1837, %v1823
        %v1839 = vadd.f32 %v1838, %v1824
        %v1840 = vadd.f32 %v1839, %v1825
        %v1841 = vadd.f32 %v1840, %v1826
        %v1842 = vrot.slane %v1841, 4
        %v1843 = vadd.f32 %v1841, %v1842
        %v1844 = vrot.slane %v1843, 2
        %v1845 = vadd.f32 %v1843, %v1844
        %v1846 = vrot.slane %v1845, 1
        %v1847 = vadd.f32 %v1845, %v1846
        %1848 = vset.pattern.permute.xlu0 98
        %1849 = vperm.xlu0 %1848, %v639
        %v1850 = vpop.permute.xlu0 %1849
        %1852 = vset.pattern.permute.xlu0 98
        %1853 = vperm.xlu0 %1852, %v642
        %v1854 = vpop.permute.xlu0 %1853
        %1856 = vset.pattern.permute.xlu0 98
        %1857 = vperm.xlu0 %1856, %v647
        %v1858 = vpop.permute.xlu0 %1857
        %1860 = vset.pattern.permute.xlu0 98
        %1861 = vperm.xlu0 %1860, %v650
        %v1862 = vpop.permute.xlu0 %1861
        %1864 = vset.pattern.permute.xlu0 98
        %1865 = vperm.xlu0 %1864, %v655
        %v1866 = vpop.permute.xlu0 %1865
        %1868 = vset.pattern.permute.xlu0 98
        %1869 = vperm.xlu0 %1868, %v658
        %v1870 = vpop.permute.xlu0 %1869
        %1872 = vset.pattern.permute.xlu0 98
        %1873 = vperm.xlu0 %1872, %v663
        %v1874 = vpop.permute.xlu0 %1873
        %1876 = vset.pattern.permute.xlu0 98
        %1877 = vperm.xlu0 %1876, %v666
        %v1878 = vpop.permute.xlu0 %1877
        %1880 = vset.pattern.permute.xlu0 98
        %1881 = vperm.xlu0 %1880, %v671
        %v1882 = vpop.permute.xlu0 %1881
        %1884 = vset.pattern.permute.xlu0 98
        %1885 = vperm.xlu0 %1884, %v674
        %v1886 = vpop.permute.xlu0 %1885
        %1888 = vset.pattern.permute.xlu0 98
        %1889 = vperm.xlu0 %1888, %v679
        %v1890 = vpop.permute.xlu0 %1889
        %1892 = vset.pattern.permute.xlu0 98
        %1893 = vperm.xlu0 %1892, %v682
        %v1894 = vpop.permute.xlu0 %1893
        %1896 = vset.pattern.permute.xlu0 98
        %1897 = vperm.xlu0 %1896, %v687
        %v1898 = vpop.permute.xlu0 %1897
        %1900 = vset.pattern.permute.xlu0 98
        %1901 = vperm.xlu0 %1900, %v690
        %v1902 = vpop.permute.xlu0 %1901
        %1904 = vset.pattern.permute.xlu0 98
        %1905 = vperm.xlu0 %1904, %v695
        %v1906 = vpop.permute.xlu0 %1905
        %1908 = vset.pattern.permute.xlu0 98
        %1909 = vperm.xlu0 %1908, %v698
        %v1910 = vpop.permute.xlu0 %1909
        %v1912 = vadd.f32 %v1850, %v1847
        %v1913 = vadd.f32 %v1854, %v1847
        %v1914 = vadd.f32 %v1858, %v1847
        %v1915 = vadd.f32 %v1862, %v1847
        %v1916 = vadd.f32 %v1866, %v1847
        %v1917 = vadd.f32 %v1870, %v1847
        %v1918 = vadd.f32 %v1874, %v1847
        %v1919 = vadd.f32 %v1878, %v1847
        %v1920 = vadd.f32 %v1882, %v1847
        %v1921 = vadd.f32 %v1886, %v1847
        %v1922 = vadd.f32 %v1890, %v1847
        %v1923 = vadd.f32 %v1894, %v1847
        %v1924 = vadd.f32 %v1898, %v1847
        %v1925 = vadd.f32 %v1902, %v1847
        %v1926 = vadd.f32 %v1906, %v1847
        %v1927 = vadd.f32 %v1910, %v1847
        %v1928 = vmul.f32 %v1912, 0.2
        %v1929 = vmul.f32 %v1913, 0.2
        %v1930 = vmul.f32 %v1914, 0.2
        %v1931 = vmul.f32 %v1915, 0.2
        %v1932 = vmul.f32 %v1916, 0.2
        %v1933 = vmul.f32 %v1917, 0.2
        %v1934 = vmul.f32 %v1918, 0.2
        %v1935 = vmul.f32 %v1919, 0.2
        %v1936 = vmul.f32 %v1920, 0.2
        %v1937 = vmul.f32 %v1921, 0.2
        %v1938 = vmul.f32 %v1922, 0.2
        %v1939 = vmul.f32 %v1923, 0.2
        %v1940 = vmul.f32 %v1924, 0.2
        %v1941 = vmul.f32 %v1925, 0.2
        %v1942 = vmul.f32 %v1926, 0.2
        %v1943 = vmul.f32 %v1927, 0.2
        %v1944 = vmax.f32 %v1912, %v1928
        %v1945 = vmax.f32 %v1913, %v1929
        %v1946 = vmax.f32 %v1914, %v1930
        %v1947 = vmax.f32 %v1915, %v1931
        %v1948 = vmax.f32 %v1916, %v1932
        %v1949 = vmax.f32 %v1917, %v1933
        %v1950 = vmax.f32 %v1918, %v1934
        %v1951 = vmax.f32 %v1919, %v1935
        %v1952 = vmax.f32 %v1920, %v1936
        %v1953 = vmax.f32 %v1921, %v1937
        %v1954 = vmax.f32 %v1922, %v1938
        %v1955 = vmax.f32 %v1923, %v1939
        %v1956 = vmax.f32 %v1924, %v1940
        %v1957 = vmax.f32 %v1925, %v1941
        %v1958 = vmax.f32 %v1926, %v1942
        %v1959 = vmax.f32 %v1927, %v1943
        %v1960 = vsel %vm500, %v1944, -1e+30
        %v1961 = vsel %vm501, %v1945, -1e+30
        %v1962 = vsel %vm502, %v1946, -1e+30
        %v1963 = vsel %vm503, %v1947, -1e+30
        %v1964 = vsel %vm504, %v1948, -1e+30
        %v1965 = vsel %vm505, %v1949, -1e+30
        %v1966 = vsel %vm506, %v1950, -1e+30
        %v1967 = vsel %vm507, %v1951, -1e+30
        %v1968 = vsel %vm508, %v1952, -1e+30
        %v1969 = vsel %vm509, %v1953, -1e+30
        %v1970 = vsel %vm510, %v1954, -1e+30
        %v1971 = vsel %vm511, %v1955, -1e+30
        %v1972 = vsel %vm512, %v1956, -1e+30
        %v1973 = vsel %vm513, %v1957, -1e+30
        %v1974 = vsel %vm514, %v1958, -1e+30
        %v1975 = vsel %vm515, %v1959, -1e+30
        %1976 = vmax.xlane.f32.xlu0 %v1960
        %v1977 = vpop.xlane.xlu0 %1976
        %1978 = vmax.xlane.f32.xlu0 %v1961
        %v1979 = vpop.xlane.xlu0 %1978
        %1980 = vmax.xlane.f32.xlu0 %v1962
        %v1981 = vpop.xlane.xlu0 %1980
        %1982 = vmax.xlane.f32.xlu0 %v1963
        %v1983 = vpop.xlane.xlu0 %1982
        %1984 = vmax.xlane.f32.xlu0 %v1964
        %v1985 = vpop.xlane.xlu0 %1984
        %1986 = vmax.xlane.f32.xlu0 %v1965
        %v1987 = vpop.xlane.xlu0 %1986
        %1988 = vmax.xlane.f32.xlu0 %v1966
        %v1989 = vpop.xlane.xlu0 %1988
        %1990 = vmax.xlane.f32.xlu0 %v1967
        %v1991 = vpop.xlane.xlu0 %1990
        %1992 = vmax.xlane.f32.xlu0 %v1968
        %v1993 = vpop.xlane.xlu0 %1992
        %1994 = vmax.xlane.f32.xlu0 %v1969
        %v1995 = vpop.xlane.xlu0 %1994
        %1996 = vmax.xlane.f32.xlu0 %v1970
        %v1997 = vpop.xlane.xlu0 %1996
        %1998 = vmax.xlane.f32.xlu0 %v1971
        %v1999 = vpop.xlane.xlu0 %1998
        %2000 = vmax.xlane.f32.xlu0 %v1972
        %v2001 = vpop.xlane.xlu0 %2000
        %2002 = vmax.xlane.f32.xlu0 %v1973
        %v2003 = vpop.xlane.xlu0 %2002
        %2004 = vmax.xlane.f32.xlu0 %v1974
        %v2005 = vpop.xlane.xlu0 %2004
        %2006 = vmax.xlane.f32.xlu0 %v1975
        %v2007 = vpop.xlane.xlu0 %2006
        %v2008 = vsub.f32 %v1960, %v1977
        %v2009 = vsub.f32 %v1961, %v1979
        %v2010 = vsub.f32 %v1962, %v1981
        %v2011 = vsub.f32 %v1963, %v1983
        %v2012 = vsub.f32 %v1964, %v1985
        %v2013 = vsub.f32 %v1965, %v1987
        %v2014 = vsub.f32 %v1966, %v1989
        %v2015 = vsub.f32 %v1967, %v1991
        %v2016 = vsub.f32 %v1968, %v1993
        %v2017 = vsub.f32 %v1969, %v1995
        %v2018 = vsub.f32 %v1970, %v1997
        %v2019 = vsub.f32 %v1971, %v1999
        %v2020 = vsub.f32 %v1972, %v2001
        %v2021 = vsub.f32 %v1973, %v2003
        %v2022 = vsub.f32 %v1974, %v2005
        %v2023 = vsub.f32 %v1975, %v2007
        %v2024 = vmul.f32 %v2008, 1.442695
        %v2025 = vpow.pop %v2024
        %v2026 = vmul.f32 %v2009, 1.442695
        %v2027 = vpow.pop %v2026
        %v2028 = vmul.f32 %v2010, 1.442695
        %v2029 = vpow.pop %v2028
        %v2030 = vmul.f32 %v2011, 1.442695
        %v2031 = vpow.pop %v2030
        %v2032 = vmul.f32 %v2012, 1.442695
        %v2033 = vpow.pop %v2032
        %v2034 = vmul.f32 %v2013, 1.442695
        %v2035 = vpow.pop %v2034
        %v2036 = vmul.f32 %v2014, 1.442695
        %v2037 = vpow.pop %v2036
        %v2038 = vmul.f32 %v2015, 1.442695
        %v2039 = vpow.pop %v2038
        %v2040 = vmul.f32 %v2016, 1.442695
        %v2041 = vpow.pop %v2040
        %v2042 = vmul.f32 %v2017, 1.442695
        %v2043 = vpow.pop %v2042
        %v2044 = vmul.f32 %v2018, 1.442695
        %v2045 = vpow.pop %v2044
        %v2046 = vmul.f32 %v2019, 1.442695
        %v2047 = vpow.pop %v2046
        %v2048 = vmul.f32 %v2020, 1.442695
        %v2049 = vpow.pop %v2048
        %v2050 = vmul.f32 %v2021, 1.442695
        %v2051 = vpow.pop %v2050
        %v2052 = vmul.f32 %v2022, 1.442695
        %v2053 = vpow.pop %v2052
        %v2054 = vmul.f32 %v2023, 1.442695
        %v2055 = vpow.pop %v2054
        %2056 = vadd.xlane.f32.xlu0 %v2025
        %v2057 = vpop.xlane.xlu0 %2056
        %2058 = vadd.xlane.f32.xlu0 %v2027
        %v2059 = vpop.xlane.xlu0 %2058
        %2060 = vadd.xlane.f32.xlu0 %v2029
        %v2061 = vpop.xlane.xlu0 %2060
        %2062 = vadd.xlane.f32.xlu0 %v2031
        %v2063 = vpop.xlane.xlu0 %2062
        %2064 = vadd.xlane.f32.xlu0 %v2033
        %v2065 = vpop.xlane.xlu0 %2064
        %2066 = vadd.xlane.f32.xlu0 %v2035
        %v2067 = vpop.xlane.xlu0 %2066
        %2068 = vadd.xlane.f32.xlu0 %v2037
        %v2069 = vpop.xlane.xlu0 %2068
        %2070 = vadd.xlane.f32.xlu0 %v2039
        %v2071 = vpop.xlane.xlu0 %2070
        %2072 = vadd.xlane.f32.xlu0 %v2041
        %v2073 = vpop.xlane.xlu0 %2072
        %2074 = vadd.xlane.f32.xlu0 %v2043
        %v2075 = vpop.xlane.xlu0 %2074
        %2076 = vadd.xlane.f32.xlu0 %v2045
        %v2077 = vpop.xlane.xlu0 %2076
        %2078 = vadd.xlane.f32.xlu0 %v2047
        %v2079 = vpop.xlane.xlu0 %2078
        %2080 = vadd.xlane.f32.xlu0 %v2049
        %v2081 = vpop.xlane.xlu0 %2080
        %2082 = vadd.xlane.f32.xlu0 %v2051
        %v2083 = vpop.xlane.xlu0 %2082
        %2084 = vadd.xlane.f32.xlu0 %v2053
        %v2085 = vpop.xlane.xlu0 %2084
        %2086 = vadd.xlane.f32.xlu0 %v2055
        %v2087 = vpop.xlane.xlu0 %2086
        %v2088 = vrcp.pop %v2057
        %v2089 = vrcp.pop %v2059
        %v2090 = vrcp.pop %v2061
        %v2091 = vrcp.pop %v2063
        %v2092 = vrcp.pop %v2065
        %v2093 = vrcp.pop %v2067
        %v2094 = vrcp.pop %v2069
        %v2095 = vrcp.pop %v2071
        %v2096 = vrcp.pop %v2073
        %v2097 = vrcp.pop %v2075
        %v2098 = vrcp.pop %v2077
        %v2099 = vrcp.pop %v2079
        %v2100 = vrcp.pop %v2081
        %v2101 = vrcp.pop %v2083
        %v2102 = vrcp.pop %v2085
        %v2103 = vrcp.pop %v2087
        %v2104 = vpack.c.bf16 %v2027, %v2025
        %v2105 = vpack.c.bf16 %v2031, %v2029
        %v2106 = vpack.c.bf16 %v2035, %v2033
        %v2107 = vpack.c.bf16 %v2039, %v2037
        %v2108 = vpack.c.bf16 %v2043, %v2041
        %v2109 = vpack.c.bf16 %v2047, %v2045
        %v2110 = vpack.c.bf16 %v2051, %v2049
        %v2111 = vpack.c.bf16 %v2055, %v2053
        %2112 = vrot.lane.b32.xlu0 %v703, 64
        %v2113 = vpop.permute.xlu0 %2112
        %2114 = vrot.lane.b32.xlu0 %v704, 64
        %v2115 = vpop.permute.xlu0 %2114
        %2116 = vrot.lane.b32.xlu0 %v705, 64
        %v2117 = vpop.permute.xlu0 %2116
        %2118 = vrot.lane.b32.xlu0 %v706, 64
        %v2119 = vpop.permute.xlu0 %2118
        %2120 = vrot.lane.b32.xlu0 %v707, 64
        %v2121 = vpop.permute.xlu0 %2120
        %2122 = vrot.lane.b32.xlu0 %v708, 64
        %v2123 = vpop.permute.xlu0 %2122
        %2124 = vrot.lane.b32.xlu0 %v709, 64
        %v2125 = vpop.permute.xlu0 %2124
        %2126 = vrot.lane.b32.xlu0 %v710, 64
        %v2127 = vpop.permute.xlu0 %2126
        %2136 = vmatprep.subr.bf16.mxu0 0
        %2137 = vmatpush1.bf16.msra.mxu0 %v2113
        %2138 = vmatprep.subr.bf16.mxu0 0
        %2139 = vmatpush1.bf16.msra.mxu0 %v2115
        %2140 = vmatprep.subr.bf16.mxu0 0
        %2141 = vmatpush1.bf16.msra.mxu0 %v2117
        %2142 = vmatprep.subr.bf16.mxu0 0
        %2143 = vmatpush1.bf16.msra.mxu0 %v2119
        %2144 = vmatprep.subr.bf16.mxu0 0
        %2145 = vmatpush1.bf16.msra.mxu0 %v2121
        %2146 = vmatprep.subr.bf16.mxu0 0
        %2147 = vmatpush1.bf16.msra.mxu0 %v2123
        %2148 = vmatprep.subr.bf16.mxu0 0
        %2149 = vmatpush1.bf16.msra.mxu0 %v2125
        %2150 = vmatprep.subr.bf16.mxu0 0
        %2151 = vmatpush1.bf16.msra.mxu0 %v2127
        %2152 = vmatprep.subr.bf16.mxu0 0
        %2153 = vmatpush1.bf16.msra.mxu0 0
        %2154 = vmatprep.subr.bf16.mxu0 0
        %2155 = vmatpush1.bf16.msra.mxu0 0
        %2156 = vmatprep.subr.bf16.mxu0 0
        %2157 = vmatpush1.bf16.msra.mxu0 0
        %2158 = vmatprep.subr.bf16.mxu0 0
        %2159 = vmatpush1.bf16.msra.mxu0 0
        %2160 = vmatprep.subr.bf16.mxu0 0
        %2161 = vmatpush1.bf16.msra.mxu0 0
        %2162 = vmatprep.subr.bf16.mxu0 0
        %2163 = vmatpush1.bf16.msra.mxu0 0
        %2164 = vmatprep.subr.bf16.mxu0 0
        %2165 = vmatpush1.bf16.msra.mxu0 0
        %2166 = vmatprep.subr.bf16.mxu0 0
        %2167 = vmatpush1.bf16.msra.mxu0 0
        %2168 = vmatprep.mubr.bf16.mxu0 0
        %2169 = vmatmul.mubr.bf16.gmra.mrb[0].mxu0 %v2104
        %v2170 = vpop.f32.mrb[0].mxu0
        %v2171 = vadd.f32 0.0, %v2170
        %v2172 = vpop.f32.mrb[0].mxu0
        %v2173 = vpop.f32.mrb[0].mxu0
        %v2174 = vadd.f32 0.0, %v2173
        %v2175 = vpop.f32.mrb[0].mxu0
        %2176 = vmatprep.mubr.bf16.mxu0 0
        %2177 = vmatmul.mubr.bf16.gmra.mrb[0].mxu0 %v2105
        %v2178 = vpop.f32.mrb[0].mxu0
        %v2179 = vadd.f32 0.0, %v2178
        %v2180 = vpop.f32.mrb[0].mxu0
        %v2181 = vpop.f32.mrb[0].mxu0
        %v2182 = vadd.f32 0.0, %v2181
        %v2183 = vpop.f32.mrb[0].mxu0
        %2184 = vmatprep.mubr.bf16.mxu0 0
        %2185 = vmatmul.mubr.bf16.gmra.mrb[0].mxu0 %v2106
        %v2186 = vpop.f32.mrb[0].mxu0
        %v2187 = vadd.f32 0.0, %v2186
        %v2188 = vpop.f32.mrb[0].mxu0
        %v2189 = vpop.f32.mrb[0].mxu0
        %v2190 = vadd.f32 0.0, %v2189
        %v2191 = vpop.f32.mrb[0].mxu0
        %2192 = vmatprep.mubr.bf16.mxu0 0
        %2193 = vmatmul.mubr.bf16.gmra.mrb[0].mxu0 %v2107
        %v2194 = vpop.f32.mrb[0].mxu0
        %v2195 = vadd.f32 0.0, %v2194
        %v2196 = vpop.f32.mrb[0].mxu0
        %v2197 = vpop.f32.mrb[0].mxu0
        %v2198 = vadd.f32 0.0, %v2197
        %v2199 = vpop.f32.mrb[0].mxu0
        %2200 = vmatprep.mubr.bf16.mxu0 0
        %2201 = vmatmul.mubr.bf16.gmra.mrb[0].mxu0 %v2108
        %v2202 = vpop.f32.mrb[0].mxu0
        %v2203 = vadd.f32 0.0, %v2202
        %v2204 = vpop.f32.mrb[0].mxu0
        %v2205 = vpop.f32.mrb[0].mxu0
        %v2206 = vadd.f32 0.0, %v2205
        %v2207 = vpop.f32.mrb[0].mxu0
        %2208 = vmatprep.mubr.bf16.mxu0 0
        %2209 = vmatmul.mubr.bf16.gmra.mrb[0].mxu0 %v2109
        %v2210 = vpop.f32.mrb[0].mxu0
        %v2211 = vadd.f32 0.0, %v2210
        %v2212 = vpop.f32.mrb[0].mxu0
        %v2213 = vpop.f32.mrb[0].mxu0
        %v2214 = vadd.f32 0.0, %v2213
        %v2215 = vpop.f32.mrb[0].mxu0
        %2216 = vmatprep.mubr.bf16.mxu0 0
        %2217 = vmatmul.mubr.bf16.gmra.mrb[0].mxu0 %v2110
        %v2218 = vpop.f32.mrb[0].mxu0
        %v2219 = vadd.f32 0.0, %v2218
        %v2220 = vpop.f32.mrb[0].mxu0
        %v2221 = vpop.f32.mrb[0].mxu0
        %v2222 = vadd.f32 0.0, %v2221
        %v2223 = vpop.f32.mrb[0].mxu0
        %2224 = vmatprep.mubr.bf16.mxu0 0
        %2225 = vmatmul.mubr.bf16.gmra.mrb[0].mxu0 %v2111
        %v2226 = vpop.f32.mrb[0].mxu0
        %v2227 = vadd.f32 0.0, %v2226
        %v2228 = vpop.f32.mrb[0].mxu0
        %v2229 = vpop.f32.mrb[0].mxu0
        %v2230 = vadd.f32 0.0, %v2229
        %v2231 = vpop.f32.mrb[0].mxu0
        %2232 = vdwg.mxu0
        %v2233 = vmul.f32 %v2171, %v2088
        %v2234 = vmul.f32 %v2174, %v2089
        %v2235 = vmul.f32 %v2179, %v2090
        %v2236 = vmul.f32 %v2182, %v2091
        %v2237 = vmul.f32 %v2187, %v2092
        %v2238 = vmul.f32 %v2190, %v2093
        %v2239 = vmul.f32 %v2195, %v2094
        %v2240 = vmul.f32 %v2198, %v2095
        %v2241 = vmul.f32 %v2203, %v2096
        %v2242 = vmul.f32 %v2206, %v2097
        %v2243 = vmul.f32 %v2211, %v2098
        %v2244 = vmul.f32 %v2214, %v2099
        %v2245 = vmul.f32 %v2219, %v2100
        %v2246 = vmul.f32 %v2222, %v2101
        %v2247 = vmul.f32 %v2227, %v2102
        %v2248 = vmul.f32 %v2230, %v2103
        %v2249 = vadd.f32 %v1731, %v2233
        %v2250 = vadd.f32 %v1732, %v2234
        %v2251 = vadd.f32 %v1733, %v2235
        %v2252 = vadd.f32 %v1734, %v2236
        %v2253 = vadd.f32 %v1735, %v2237
        %v2254 = vadd.f32 %v1736, %v2238
        %v2255 = vadd.f32 %v1737, %v2239
        %v2256 = vadd.f32 %v1738, %v2240
        %v2257 = vadd.f32 %v1739, %v2241
        %v2258 = vadd.f32 %v1740, %v2242
        %v2259 = vadd.f32 %v1741, %v2243
        %v2260 = vadd.f32 %v1742, %v2244
        %v2261 = vadd.f32 %v1743, %v2245
        %v2262 = vadd.f32 %v1744, %v2246
        %v2263 = vadd.f32 %v1745, %v2247
        %v2264 = vadd.f32 %v1746, %v2248
        %v2265 = vmul.f32 %v2249, 0.33333334
        %v2266 = vmul.f32 %v2250, 0.33333334
        %v2267 = vmul.f32 %v2251, 0.33333334
        %v2268 = vmul.f32 %v2252, 0.33333334
        %v2269 = vmul.f32 %v2253, 0.33333334
        %v2270 = vmul.f32 %v2254, 0.33333334
        %v2271 = vmul.f32 %v2255, 0.33333334
        %v2272 = vmul.f32 %v2256, 0.33333334
        %v2273 = vmul.f32 %v2257, 0.33333334
        %v2274 = vmul.f32 %v2258, 0.33333334
        %v2275 = vmul.f32 %v2259, 0.33333334
        %v2276 = vmul.f32 %v2260, 0.33333334
        %v2277 = vmul.f32 %v2261, 0.33333334
        %v2278 = vmul.f32 %v2262, 0.33333334
        %v2279 = vmul.f32 %v2263, 0.33333334
        %v2280 = vmul.f32 %v2264, 0.33333334
        %v2282 = vlaneseq
        %v2283 = vshrl.u32 %v2282, 7
        %v2284 = vsub.s32 0, %v2283
        %v2285 = vrot.slane %v702, %v2284
        %v2287 = vadd.f32 %v2265, %v2285
        %v2288 = vadd.f32 %v2266, %v2285
        %v2289 = vadd.f32 %v2267, %v2285
        %v2290 = vadd.f32 %v2268, %v2285
        %v2291 = vadd.f32 %v2269, %v2285
        %v2292 = vadd.f32 %v2270, %v2285
        %v2293 = vadd.f32 %v2271, %v2285
        %v2294 = vadd.f32 %v2272, %v2285
        %v2295 = vadd.f32 %v2273, %v2285
        %v2296 = vadd.f32 %v2274, %v2285
        %v2297 = vadd.f32 %v2275, %v2285
        %v2298 = vadd.f32 %v2276, %v2285
        %v2299 = vadd.f32 %v2277, %v2285
        %v2300 = vadd.f32 %v2278, %v2285
        %v2301 = vadd.f32 %v2279, %v2285
        %v2302 = vadd.f32 %v2280, %v2285
        %v2303 = vstv %s701
        %v2304 = vmul.f32 %v2287, %v2303
        %v2305 = vmul.f32 %v2288, %v2303
        %v2306 = vmul.f32 %v2289, %v2303
        %v2307 = vmul.f32 %v2290, %v2303
        %v2308 = vmul.f32 %v2291, %v2303
        %v2309 = vmul.f32 %v2292, %v2303
        %v2310 = vmul.f32 %v2293, %v2303
        %v2311 = vmul.f32 %v2294, %v2303
        %v2312 = vmul.f32 %v2295, %v2303
        %v2313 = vmul.f32 %v2296, %v2303
        %v2314 = vmul.f32 %v2297, %v2303
        %v2315 = vmul.f32 %v2298, %v2303
        %v2316 = vmul.f32 %v2299, %v2303
        %v2317 = vmul.f32 %v2300, %v2303
        %v2318 = vmul.f32 %v2301, %v2303
        %v2319 = vmul.f32 %v2302, %v2303
        %v2320 = vmax.f32 %v2304, 0.0
        %v2321 = vmax.f32 %v2305, 0.0
        %v2322 = vmax.f32 %v2306, 0.0
        %v2323 = vmax.f32 %v2307, 0.0
        %v2324 = vmax.f32 %v2308, 0.0
        %v2325 = vmax.f32 %v2309, 0.0
        %v2326 = vmax.f32 %v2310, 0.0
        %v2327 = vmax.f32 %v2311, 0.0
        %v2328 = vmax.f32 %v2312, 0.0
        %v2329 = vmax.f32 %v2313, 0.0
        %v2330 = vmax.f32 %v2314, 0.0
        %v2331 = vmax.f32 %v2315, 0.0
        %v2332 = vmax.f32 %v2316, 0.0
        %v2333 = vmax.f32 %v2317, 0.0
        %v2334 = vmax.f32 %v2318, 0.0
        %v2335 = vmax.f32 %v2319, 0.0
        %v2336 = vld [vmem:[%s7] sm:$0xf]
        %v2337 = vld [vmem:[%s7 + $0x4] sm:$0xf]
        %v2338 = vld [vmem:[%s7 + $0x8] sm:$0xf]
        %v2339 = vld [vmem:[%s7 + $0xc] sm:$0xf]
        %v2340 = vld [vmem:[%s8] sm:$0x1]
        %v2342 = vlaneseq
        %v2343 = vshrl.u32 %v2342, 7
        %v2344 = vsub.s32 0, %v2343
        %v2345 = vrot.slane %v2340, %v2344
        %v2351 = vunpack.c.l.b16 %v2336
        %v2352 = vunpack.c.l.b16 %v2337
        %v2353 = vunpack.c.l.b16 %v2338
        %v2354 = vunpack.c.l.b16 %v2339
        %v2355 = vpack.c.b16 %v2352, %v2351
        %v2356 = vpack.c.b16 %v2354, %v2353
        %2359 = vmatprep.subr.bf16.mxu0 0
        %2360 = vmatpush1.bf16.msra.mxu0 %v2355
        %2361 = vmatprep.subr.bf16.mxu0 0
        %2362 = vmatpush1.bf16.msra.mxu0 %v2356
        %2363 = vmatprep.subr.bf16.mxu0 0
        %2364 = vmatpush1.bf16.msra.mxu0 0
        %2365 = vmatprep.subr.bf16.mxu0 0
        %2366 = vmatpush1.bf16.msra.mxu0 0
        %2367 = vmatprep.subr.bf16.mxu0 0
        %2368 = vmatpush1.bf16.msra.mxu0 0
        %2369 = vmatprep.subr.bf16.mxu0 0
        %2370 = vmatpush1.bf16.msra.mxu0 0
        %2371 = vmatprep.subr.bf16.mxu0 0
        %2372 = vmatpush1.bf16.msra.mxu0 0
        %2373 = vmatprep.subr.bf16.mxu0 0
        %2374 = vmatpush1.bf16.msra.mxu0 0
        %2375 = vmatprep.subr.bf16.mxu0 0
        %2376 = vmatpush1.bf16.msra.mxu0 0
        %2377 = vmatprep.subr.bf16.mxu0 0
        %2378 = vmatpush1.bf16.msra.mxu0 0
        %2379 = vmatprep.subr.bf16.mxu0 0
        %2380 = vmatpush1.bf16.msra.mxu0 0
        %2381 = vmatprep.subr.bf16.mxu0 0
        %2382 = vmatpush1.bf16.msra.mxu0 0
        %2383 = vmatprep.subr.bf16.mxu0 0
        %2384 = vmatpush1.bf16.msra.mxu0 0
        %2385 = vmatprep.subr.bf16.mxu0 0
        %2386 = vmatpush1.bf16.msra.mxu0 0
        %2387 = vmatprep.subr.bf16.mxu0 0
        %2388 = vmatpush1.bf16.msra.mxu0 0
        %2389 = vmatprep.subr.bf16.mxu0 0
        %2390 = vmatpush1.bf16.msra.mxu0 0
        %2391 = vmatprep.mubr.bf16.mxu0 0
        %2392 = vmatmul.mubr.bf16.gmra.mrb[0].mxu0 %v581
        %v2393 = vpop.f32.mrb[0].mxu0
        %v2394 = vadd.f32 %v2345, %v2393
        %v2395 = vpop.f32.mrb[0].mxu0
        %v2396 = vpop.f32.mrb[0].mxu0
        %v2397 = vadd.f32 %v2345, %v2396
        %v2398 = vpop.f32.mrb[0].mxu0
        %2399 = vmatprep.mubr.bf16.mxu0 0
        %2400 = vmatmul.mubr.bf16.gmra.mrb[0].mxu0 %v584
        %v2401 = vpop.f32.mrb[0].mxu0
        %v2402 = vadd.f32 %v2345, %v2401
        %v2403 = vpop.f32.mrb[0].mxu0
        %v2404 = vpop.f32.mrb[0].mxu0
        %v2405 = vadd.f32 %v2345, %v2404
        %v2406 = vpop.f32.mrb[0].mxu0
        %2407 = vmatprep.mubr.bf16.mxu0 0
        %2408 = vmatmul.mubr.bf16.gmra.mrb[0].mxu0 %v587
        %v2409 = vpop.f32.mrb[0].mxu0
        %v2410 = vadd.f32 %v2345, %v2409
        %v2411 = vpop.f32.mrb[0].mxu0
        %v2412 = vpop.f32.mrb[0].mxu0
        %v2413 = vadd.f32 %v2345, %v2412
        %v2414 = vpop.f32.mrb[0].mxu0
        %2415 = vmatprep.mubr.bf16.mxu0 0
        %2416 = vmatmul.mubr.bf16.gmra.mrb[0].mxu0 %v590
        %v2417 = vpop.f32.mrb[0].mxu0
        %v2418 = vadd.f32 %v2345, %v2417
        %v2419 = vpop.f32.mrb[0].mxu0
        %v2420 = vpop.f32.mrb[0].mxu0
        %v2421 = vadd.f32 %v2345, %v2420
        %v2422 = vpop.f32.mrb[0].mxu0
        %2423 = vmatprep.mubr.bf16.mxu0 0
        %2424 = vmatmul.mubr.bf16.gmra.mrb[0].mxu0 %v593
        %v2425 = vpop.f32.mrb[0].mxu0
        %v2426 = vadd.f32 %v2345, %v2425
        %v2427 = vpop.f32.mrb[0].mxu0
        %v2428 = vpop.f32.mrb[0].mxu0
        %v2429 = vadd.f32 %v2345, %v2428
        %v2430 = vpop.f32.mrb[0].mxu0
        %2431 = vmatprep.mubr.bf16.mxu0 0
        %2432 = vmatmul.mubr.bf16.gmra.mrb[0].mxu0 %v596
        %v2433 = vpop.f32.mrb[0].mxu0
        %v2434 = vadd.f32 %v2345, %v2433
        %v2435 = vpop.f32.mrb[0].mxu0
        %v2436 = vpop.f32.mrb[0].mxu0
        %v2437 = vadd.f32 %v2345, %v2436
        %v2438 = vpop.f32.mrb[0].mxu0
        %2439 = vmatprep.mubr.bf16.mxu0 0
        %2440 = vmatmul.mubr.bf16.gmra.mrb[0].mxu0 %v599
        %v2441 = vpop.f32.mrb[0].mxu0
        %v2442 = vadd.f32 %v2345, %v2441
        %v2443 = vpop.f32.mrb[0].mxu0
        %v2444 = vpop.f32.mrb[0].mxu0
        %v2445 = vadd.f32 %v2345, %v2444
        %v2446 = vpop.f32.mrb[0].mxu0
        %2447 = vmatprep.mubr.bf16.mxu0 0
        %2448 = vmatmul.mubr.bf16.gmra.mrb[0].mxu0 %v602
        %v2449 = vpop.f32.mrb[0].mxu0
        %v2450 = vadd.f32 %v2345, %v2449
        %v2451 = vpop.f32.mrb[0].mxu0
        %v2452 = vpop.f32.mrb[0].mxu0
        %v2453 = vadd.f32 %v2345, %v2452
        %v2454 = vpop.f32.mrb[0].mxu0
        %2455 = vdwg.mxu0
        %v2456 = vmax.f32 %v2394, 0.0
        %v2457 = vmax.f32 %v2397, 0.0
        %v2458 = vmax.f32 %v2402, 0.0
        %v2459 = vmax.f32 %v2405, 0.0
        %v2460 = vmax.f32 %v2410, 0.0
        %v2461 = vmax.f32 %v2413, 0.0
        %v2462 = vmax.f32 %v2418, 0.0
        %v2463 = vmax.f32 %v2421, 0.0
        %v2464 = vmax.f32 %v2426, 0.0
        %v2465 = vmax.f32 %v2429, 0.0
        %v2466 = vmax.f32 %v2434, 0.0
        %v2467 = vmax.f32 %v2437, 0.0
        %v2468 = vmax.f32 %v2442, 0.0
        %v2469 = vmax.f32 %v2445, 0.0
        %v2470 = vmax.f32 %v2450, 0.0
        %v2471 = vmax.f32 %v2453, 0.0
        %s2472 = sadd.s32 %s359, 4
        %s2473 = sld [smem:[#allocation5 + %s2472]]
        %s2474 = sadd.s32 %s359, 5
        %s2475 = sld [smem:[#allocation5 + %s2474]]
        %v2476 = vstv %s2473
        %v2477 = vmul.f32 %v2320, %v2476
        %v2478 = vmul.f32 %v2321, %v2476
        %v2479 = vmul.f32 %v2322, %v2476
        %v2480 = vmul.f32 %v2323, %v2476
        %v2481 = vmul.f32 %v2324, %v2476
        %v2482 = vmul.f32 %v2325, %v2476
        %v2483 = vmul.f32 %v2326, %v2476
        %v2484 = vmul.f32 %v2327, %v2476
        %v2485 = vmul.f32 %v2328, %v2476
        %v2486 = vmul.f32 %v2329, %v2476
        %v2487 = vmul.f32 %v2330, %v2476
        %v2488 = vmul.f32 %v2331, %v2476
        %v2489 = vmul.f32 %v2332, %v2476
        %v2490 = vmul.f32 %v2333, %v2476
        %v2491 = vmul.f32 %v2334, %v2476
        %v2492 = vmul.f32 %v2335, %v2476
        %v2493 = vstv %s2475
        %v2494 = vmul.f32 %v2456, %v2493
        %v2495 = vmul.f32 %v2457, %v2493
        %v2496 = vmul.f32 %v2458, %v2493
        %v2497 = vmul.f32 %v2459, %v2493
        %v2498 = vmul.f32 %v2460, %v2493
        %v2499 = vmul.f32 %v2461, %v2493
        %v2500 = vmul.f32 %v2462, %v2493
        %v2501 = vmul.f32 %v2463, %v2493
        %v2502 = vmul.f32 %v2464, %v2493
        %v2503 = vmul.f32 %v2465, %v2493
        %v2504 = vmul.f32 %v2466, %v2493
        %v2505 = vmul.f32 %v2467, %v2493
        %v2506 = vmul.f32 %v2468, %v2493
        %v2507 = vmul.f32 %v2469, %v2493
        %v2508 = vmul.f32 %v2470, %v2493
        %v2509 = vmul.f32 %v2471, %v2493
        %v2510 = vadd.f32 %v2477, %v2494
        %v2511 = vadd.f32 %v2478, %v2495
        %v2512 = vadd.f32 %v2479, %v2496
        %v2513 = vadd.f32 %v2480, %v2497
        %v2514 = vadd.f32 %v2481, %v2498
        %v2515 = vadd.f32 %v2482, %v2499
        %v2516 = vadd.f32 %v2483, %v2500
        %v2517 = vadd.f32 %v2484, %v2501
        %v2518 = vadd.f32 %v2485, %v2502
        %v2519 = vadd.f32 %v2486, %v2503
        %v2520 = vadd.f32 %v2487, %v2504
        %v2521 = vadd.f32 %v2488, %v2505
        %v2522 = vadd.f32 %v2489, %v2506
        %v2523 = vadd.f32 %v2490, %v2507
        %v2524 = vadd.f32 %v2491, %v2508
        %v2525 = vadd.f32 %v2492, %v2509
        %v2526 = vpack.c.bf16 %v2511, %v2510
        %v2527 = vpack.c.bf16 %v2513, %v2512
        %v2528 = vpack.c.bf16 %v2515, %v2514
        %v2529 = vpack.c.bf16 %v2517, %v2516
        %v2530 = vpack.c.bf16 %v2519, %v2518
        %v2531 = vpack.c.bf16 %v2521, %v2520
        %v2532 = vpack.c.bf16 %v2523, %v2522
        %v2533 = vpack.c.bf16 %v2525, %v2524
        %v2534 = vld [vmem:[%s5] sm:$0xf]
        %v2535 = vld [vmem:[%s5 + $0xc] sm:$0xf]
        %v2536 = vld [vmem:[%s5 + $0x18] sm:$0xf]
        %v2537 = vld [vmem:[%s5 + $0x24] sm:$0xf]
        %v2542 = vunpack.c.l.b16 %v2534
        %v2543 = vunpack.c.l.b16 %v2535
        %v2544 = vunpack.c.l.b16 %v2536
        %v2545 = vunpack.c.l.b16 %v2537
        %v2546 = vpack.c.b16 %v2543, %v2542
        %v2547 = vpack.c.b16 %v2545, %v2544
        %v2551 = vsel %vm579, %v2526, 0
        %v2554 = vsel %vm579, %v2527, 0
        %v2557 = vsel %vm579, %v2528, 0
        %v2560 = vsel %vm579, %v2529, 0
        %v2563 = vsel %vm579, %v2530, 0
        %v2566 = vsel %vm579, %v2531, 0
        %v2569 = vsel %vm579, %v2532, 0
        %v2572 = vsel %vm579, %v2533, 0
        %2574 = vmatprep.subr.bf16.mxu0 0
        %2575 = vmatpush1.bf16.msra.mxu0 %v2546
        %2576 = vmatprep.subr.bf16.mxu0 0
        %2577 = vmatpush1.bf16.msra.mxu0 %v2547
        %2578 = vmatprep.subr.bf16.mxu0 0
        %2579 = vmatpush1.bf16.msra.mxu0 0
        %2580 = vmatprep.subr.bf16.mxu0 0
        %2581 = vmatpush1.bf16.msra.mxu0 0
        %2582 = vmatprep.subr.bf16.mxu0 0
        %2583 = vmatpush1.bf16.msra.mxu0 0
        %2584 = vmatprep.subr.bf16.mxu0 0
        %2585 = vmatpush1.bf16.msra.mxu0 0
        %2586 = vmatprep.subr.bf16.mxu0 0
        %2587 = vmatpush1.bf16.msra.mxu0 0
        %2588 = vmatprep.subr.bf16.mxu0 0
        %2589 = vmatpush1.bf16.msra.mxu0 0
        %2590 = vmatprep.subr.bf16.mxu0 0
        %2591 = vmatpush1.bf16.msra.mxu0 0
        %2592 = vmatprep.subr.bf16.mxu0 0
        %2593 = vmatpush1.bf16.msra.mxu0 0
        %2594 = vmatprep.subr.bf16.mxu0 0
        %2595 = vmatpush1.bf16.msra.mxu0 0
        %2596 = vmatprep.subr.bf16.mxu0 0
        %2597 = vmatpush1.bf16.msra.mxu0 0
        %2598 = vmatprep.subr.bf16.mxu0 0
        %2599 = vmatpush1.bf16.msra.mxu0 0
        %2600 = vmatprep.subr.bf16.mxu0 0
        %2601 = vmatpush1.bf16.msra.mxu0 0
        %2602 = vmatprep.subr.bf16.mxu0 0
        %2603 = vmatpush1.bf16.msra.mxu0 0
        %2604 = vmatprep.subr.bf16.mxu0 0
        %2605 = vmatpush1.bf16.msra.mxu0 0
        %2606 = vmatprep.mubr.bf16.mxu0 0
        %2607 = vmatmul.mubr.bf16.gmra.mrb[0].mxu0 %v2551
        %v2608 = vpop.f32.mrb[0].mxu0
        %v2609 = vadd.f32 0.0, %v2608
        %v2610 = vpop.f32.mrb[0].mxu0
        %v2611 = vpop.f32.mrb[0].mxu0
        %v2612 = vadd.f32 0.0, %v2611
        %v2613 = vpop.f32.mrb[0].mxu0
        %2614 = vmatprep.mubr.bf16.mxu0 0
        %2615 = vmatmul.mubr.bf16.gmra.mrb[0].mxu0 %v2554
        %v2616 = vpop.f32.mrb[0].mxu0
        %v2617 = vadd.f32 0.0, %v2616
        %v2618 = vpop.f32.mrb[0].mxu0
        %v2619 = vpop.f32.mrb[0].mxu0
        %v2620 = vadd.f32 0.0, %v2619
        %v2621 = vpop.f32.mrb[0].mxu0
        %2622 = vmatprep.mubr.bf16.mxu0 0
        %2623 = vmatmul.mubr.bf16.gmra.mrb[0].mxu0 %v2557
        %v2624 = vpop.f32.mrb[0].mxu0
        %v2625 = vadd.f32 0.0, %v2624
        %v2626 = vpop.f32.mrb[0].mxu0
        %v2627 = vpop.f32.mrb[0].mxu0
        %v2628 = vadd.f32 0.0, %v2627
        %v2629 = vpop.f32.mrb[0].mxu0
        %2630 = vmatprep.mubr.bf16.mxu0 0
        %2631 = vmatmul.mubr.bf16.gmra.mrb[0].mxu0 %v2560
        %v2632 = vpop.f32.mrb[0].mxu0
        %v2633 = vadd.f32 0.0, %v2632
        %v2634 = vpop.f32.mrb[0].mxu0
        %v2635 = vpop.f32.mrb[0].mxu0
        %v2636 = vadd.f32 0.0, %v2635
        %v2637 = vpop.f32.mrb[0].mxu0
        %2638 = vmatprep.mubr.bf16.mxu0 0
        %2639 = vmatmul.mubr.bf16.gmra.mrb[0].mxu0 %v2563
        %v2640 = vpop.f32.mrb[0].mxu0
        %v2641 = vadd.f32 0.0, %v2640
        %v2642 = vpop.f32.mrb[0].mxu0
        %v2643 = vpop.f32.mrb[0].mxu0
        %v2644 = vadd.f32 0.0, %v2643
        %v2645 = vpop.f32.mrb[0].mxu0
        %2646 = vmatprep.mubr.bf16.mxu0 0
        %2647 = vmatmul.mubr.bf16.gmra.mrb[0].mxu0 %v2566
        %v2648 = vpop.f32.mrb[0].mxu0
        %v2649 = vadd.f32 0.0, %v2648
        %v2650 = vpop.f32.mrb[0].mxu0
        %v2651 = vpop.f32.mrb[0].mxu0
        %v2652 = vadd.f32 0.0, %v2651
        %v2653 = vpop.f32.mrb[0].mxu0
        %2654 = vmatprep.mubr.bf16.mxu0 0
        %2655 = vmatmul.mubr.bf16.gmra.mrb[0].mxu0 %v2569
        %v2656 = vpop.f32.mrb[0].mxu0
        %v2657 = vadd.f32 0.0, %v2656
        %v2658 = vpop.f32.mrb[0].mxu0
        %v2659 = vpop.f32.mrb[0].mxu0
        %v2660 = vadd.f32 0.0, %v2659
        %v2661 = vpop.f32.mrb[0].mxu0
        %2662 = vmatprep.mubr.bf16.mxu0 0
        %2663 = vmatmul.mubr.bf16.gmra.mrb[0].mxu0 %v2572
        %v2664 = vpop.f32.mrb[0].mxu0
        %v2665 = vadd.f32 0.0, %v2664
        %v2666 = vpop.f32.mrb[0].mxu0
        %v2667 = vpop.f32.mrb[0].mxu0
        %v2668 = vadd.f32 0.0, %v2667
        %v2669 = vpop.f32.mrb[0].mxu0
        %2670 = vdwg.mxu0
        %v2671 = vstv %s360
        %vm2672 = vcmp.lt.s32.totalorder %v366, %v2671
        %vm2673 = vcmp.lt.s32.totalorder %v367, %v2671
        %vm2674 = vcmp.lt.s32.totalorder %v368, %v2671
        %vm2675 = vcmp.lt.s32.totalorder %v369, %v2671
        %vm2676 = vcmp.lt.s32.totalorder %v370, %v2671
        %vm2677 = vcmp.lt.s32.totalorder %v371, %v2671
        %vm2678 = vcmp.lt.s32.totalorder %v372, %v2671
        %vm2679 = vcmp.lt.s32.totalorder %v373, %v2671
        %vm2680 = vcmp.lt.s32.totalorder %v374, %v2671
        %vm2681 = vcmp.lt.s32.totalorder %v375, %v2671
        %vm2682 = vcmp.lt.s32.totalorder %v376, %v2671
        %vm2683 = vcmp.lt.s32.totalorder %v377, %v2671
        %vm2684 = vcmp.lt.s32.totalorder %v378, %v2671
        %vm2685 = vcmp.lt.s32.totalorder %v379, %v2671
        %vm2686 = vcmp.lt.s32.totalorder %v380, %v2671
        %vm2687 = vcmp.lt.s32.totalorder %v381, %v2671
        %vm2688 = vmand %vm2672, %vm466
        %vm2689 = vmand %vm2673, %vm466
        %vm2690 = vmand %vm2674, %vm466
        %vm2691 = vmand %vm2675, %vm466
        %vm2692 = vmand %vm2676, %vm466
        %vm2693 = vmand %vm2677, %vm466
        %vm2694 = vmand %vm2678, %vm466
        %vm2695 = vmand %vm2679, %vm466
        %vm2696 = vmand %vm2680, %vm466
        %vm2697 = vmand %vm2681, %vm466
        %vm2698 = vmand %vm2682, %vm466
        %vm2699 = vmand %vm2683, %vm466
        %vm2700 = vmand %vm2684, %vm466
        %vm2701 = vmand %vm2685, %vm466
        %vm2702 = vmand %vm2686, %vm466
        %vm2703 = vmand %vm2687, %vm466
        %vm2704 = vmand %vm2688, %vm483
        %vm2705 = vmand %vm2689, %vm483
        %vm2706 = vmand %vm2690, %vm483
        %vm2707 = vmand %vm2691, %vm483
        %vm2708 = vmand %vm2692, %vm483
        %vm2709 = vmand %vm2693, %vm483
        %vm2710 = vmand %vm2694, %vm483
        %vm2711 = vmand %vm2695, %vm483
        %vm2712 = vmand %vm2696, %vm483
        %vm2713 = vmand %vm2697, %vm483
        %vm2714 = vmand %vm2698, %vm483
        %vm2715 = vmand %vm2699, %vm483
        %vm2716 = vmand %vm2700, %vm483
        %vm2717 = vmand %vm2701, %vm483
        %vm2718 = vmand %vm2702, %vm483
        %vm2719 = vmand %vm2703, %vm483
        %vm2720 = vmor %vm2704, %vm384
        %vm2721 = vmor %vm2705, %vm385
        %vm2722 = vmor %vm2706, %vm386
        %vm2723 = vmor %vm2707, %vm387
        %vm2724 = vmor %vm2708, %vm388
        %vm2725 = vmor %vm2709, %vm389
        %vm2726 = vmor %vm2710, %vm390
        %vm2727 = vmor %vm2711, %vm391
        %vm2728 = vmor %vm2712, %vm392
        %vm2729 = vmor %vm2713, %vm393
        %vm2730 = vmor %vm2714, %vm394
        %vm2731 = vmor %vm2715, %vm395
        %vm2732 = vmor %vm2716, %vm396
        %vm2733 = vmor %vm2717, %vm397
        %vm2734 = vmor %vm2718, %vm398
        %vm2735 = vmor %vm2719, %vm399
        %s2736 = sld [smem:[#allocation5 + %s361]]
        %s2737 = scalar_lea.vmem %s6, 1
        %v2738 = vld [vmem:[%s2737] sm:$0x1]
        %v2739 = vpack.c.bf16 %v2612, %v2609
        %v2740 = vpack.c.bf16 %v2620, %v2617
        %v2741 = vpack.c.bf16 %v2628, %v2625
        %v2742 = vpack.c.bf16 %v2636, %v2633
        %v2743 = vpack.c.bf16 %v2644, %v2641
        %v2744 = vpack.c.bf16 %v2652, %v2649
        %v2745 = vpack.c.bf16 %v2660, %v2657
        %v2746 = vpack.c.bf16 %v2668, %v2665
        %2748 = vset.pattern.permute.xlu0 99
        %2749 = vperm.xlu0 %2748, %v2609
        %v2750 = vpop.permute.xlu0 %2749
        %2753 = vset.pattern.permute.xlu0 99
        %2754 = vperm.xlu0 %2753, %v2612
        %v2755 = vpop.permute.xlu0 %2754
        %2758 = vset.pattern.permute.xlu0 99
        %2759 = vperm.xlu0 %2758, %v2617
        %v2760 = vpop.permute.xlu0 %2759
        %2763 = vset.pattern.permute.xlu0 99
        %2764 = vperm.xlu0 %2763, %v2620
        %v2765 = vpop.permute.xlu0 %2764
        %2768 = vset.pattern.permute.xlu0 99
        %2769 = vperm.xlu0 %2768, %v2625
        %v2770 = vpop.permute.xlu0 %2769
        %2773 = vset.pattern.permute.xlu0 99
        %2774 = vperm.xlu0 %2773, %v2628
        %v2775 = vpop.permute.xlu0 %2774
        %2778 = vset.pattern.permute.xlu0 99
        %2779 = vperm.xlu0 %2778, %v2633
        %v2780 = vpop.permute.xlu0 %2779
        %2783 = vset.pattern.permute.xlu0 99
        %2784 = vperm.xlu0 %2783, %v2636
        %v2785 = vpop.permute.xlu0 %2784
        %2788 = vset.pattern.permute.xlu0 99
        %2789 = vperm.xlu0 %2788, %v2641
        %v2790 = vpop.permute.xlu0 %2789
        %2793 = vset.pattern.permute.xlu0 99
        %2794 = vperm.xlu0 %2793, %v2644
        %v2795 = vpop.permute.xlu0 %2794
        %2798 = vset.pattern.permute.xlu0 99
        %2799 = vperm.xlu0 %2798, %v2649
        %v2800 = vpop.permute.xlu0 %2799
        %2803 = vset.pattern.permute.xlu0 99
        %2804 = vperm.xlu0 %2803, %v2652
        %v2805 = vpop.permute.xlu0 %2804
        %2808 = vset.pattern.permute.xlu0 99
        %2809 = vperm.xlu0 %2808, %v2657
        %v2810 = vpop.permute.xlu0 %2809
        %2813 = vset.pattern.permute.xlu0 99
        %2814 = vperm.xlu0 %2813, %v2660
        %v2815 = vpop.permute.xlu0 %2814
        %2818 = vset.pattern.permute.xlu0 99
        %2819 = vperm.xlu0 %2818, %v2665
        %v2820 = vpop.permute.xlu0 %2819
        %2823 = vset.pattern.permute.xlu0 99
        %2824 = vperm.xlu0 %2823, %v2668
        %v2825 = vpop.permute.xlu0 %2824
        %v2827 = vsel %vm384, %v2750, 0.0
        %v2828 = vsel %vm385, %v2755, 0.0
        %v2829 = vsel %vm386, %v2760, 0.0
        %v2830 = vsel %vm387, %v2765, 0.0
        %v2831 = vsel %vm388, %v2770, 0.0
        %v2832 = vsel %vm389, %v2775, 0.0
        %v2833 = vsel %vm390, %v2780, 0.0
        %v2834 = vsel %vm391, %v2785, 0.0
        %v2835 = vsel %vm392, %v2790, 0.0
        %v2836 = vsel %vm393, %v2795, 0.0
        %v2837 = vsel %vm394, %v2800, 0.0
        %v2838 = vsel %vm395, %v2805, 0.0
        %v2839 = vsel %vm396, %v2810, 0.0
        %v2840 = vsel %vm397, %v2815, 0.0
        %v2841 = vsel %vm398, %v2820, 0.0
        %v2842 = vsel %vm399, %v2825, 0.0
        %v2843 = vadd.f32 %v2827, %v2828
        %v2844 = vadd.f32 %v2843, %v2829
        %v2845 = vadd.f32 %v2844, %v2830
        %v2846 = vadd.f32 %v2845, %v2831
        %v2847 = vadd.f32 %v2846, %v2832
        %v2848 = vadd.f32 %v2847, %v2833
        %v2849 = vadd.f32 %v2848, %v2834
        %v2850 = vadd.f32 %v2849, %v2835
        %v2851 = vadd.f32 %v2850, %v2836
        %v2852 = vadd.f32 %v2851, %v2837
        %v2853 = vadd.f32 %v2852, %v2838
        %v2854 = vadd.f32 %v2853, %v2839
        %v2855 = vadd.f32 %v2854, %v2840
        %v2856 = vadd.f32 %v2855, %v2841
        %v2857 = vadd.f32 %v2856, %v2842
        %v2858 = vrot.slane %v2857, 4
        %v2859 = vadd.f32 %v2857, %v2858
        %v2860 = vrot.slane %v2859, 2
        %v2861 = vadd.f32 %v2859, %v2860
        %v2862 = vrot.slane %v2861, 1
        %v2863 = vadd.f32 %v2861, %v2862
        %2864 = vset.pattern.permute.xlu0 96
        %2865 = vperm.xlu0 %2864, %v2609
        %v2866 = vpop.permute.xlu0 %2865
        %2868 = vset.pattern.permute.xlu0 96
        %2869 = vperm.xlu0 %2868, %v2612
        %v2870 = vpop.permute.xlu0 %2869
        %2872 = vset.pattern.permute.xlu0 96
        %2873 = vperm.xlu0 %2872, %v2617
        %v2874 = vpop.permute.xlu0 %2873
        %2876 = vset.pattern.permute.xlu0 96
        %2877 = vperm.xlu0 %2876, %v2620
        %v2878 = vpop.permute.xlu0 %2877
        %2880 = vset.pattern.permute.xlu0 96
        %2881 = vperm.xlu0 %2880, %v2625
        %v2882 = vpop.permute.xlu0 %2881
        %2884 = vset.pattern.permute.xlu0 96
        %2885 = vperm.xlu0 %2884, %v2628
        %v2886 = vpop.permute.xlu0 %2885
        %2888 = vset.pattern.permute.xlu0 96
        %2889 = vperm.xlu0 %2888, %v2633
        %v2890 = vpop.permute.xlu0 %2889
        %2892 = vset.pattern.permute.xlu0 96
        %2893 = vperm.xlu0 %2892, %v2636
        %v2894 = vpop.permute.xlu0 %2893
        %2896 = vset.pattern.permute.xlu0 96
        %2897 = vperm.xlu0 %2896, %v2641
        %v2898 = vpop.permute.xlu0 %2897
        %2900 = vset.pattern.permute.xlu0 96
        %2901 = vperm.xlu0 %2900, %v2644
        %v2902 = vpop.permute.xlu0 %2901
        %2904 = vset.pattern.permute.xlu0 96
        %2905 = vperm.xlu0 %2904, %v2649
        %v2906 = vpop.permute.xlu0 %2905
        %2908 = vset.pattern.permute.xlu0 96
        %2909 = vperm.xlu0 %2908, %v2652
        %v2910 = vpop.permute.xlu0 %2909
        %2912 = vset.pattern.permute.xlu0 96
        %2913 = vperm.xlu0 %2912, %v2657
        %v2914 = vpop.permute.xlu0 %2913
        %2916 = vset.pattern.permute.xlu0 96
        %2917 = vperm.xlu0 %2916, %v2660
        %v2918 = vpop.permute.xlu0 %2917
        %2920 = vset.pattern.permute.xlu0 96
        %2921 = vperm.xlu0 %2920, %v2665
        %v2922 = vpop.permute.xlu0 %2921
        %2924 = vset.pattern.permute.xlu0 96
        %2925 = vperm.xlu0 %2924, %v2668
        %v2926 = vpop.permute.xlu0 %2925
        %v2928 = vadd.f32 %v2866, %v2863
        %v2929 = vadd.f32 %v2870, %v2863
        %v2930 = vadd.f32 %v2874, %v2863
        %v2931 = vadd.f32 %v2878, %v2863
        %v2932 = vadd.f32 %v2882, %v2863
        %v2933 = vadd.f32 %v2886, %v2863
        %v2934 = vadd.f32 %v2890, %v2863
        %v2935 = vadd.f32 %v2894, %v2863
        %v2936 = vadd.f32 %v2898, %v2863
        %v2937 = vadd.f32 %v2902, %v2863
        %v2938 = vadd.f32 %v2906, %v2863
        %v2939 = vadd.f32 %v2910, %v2863
        %v2940 = vadd.f32 %v2914, %v2863
        %v2941 = vadd.f32 %v2918, %v2863
        %v2942 = vadd.f32 %v2922, %v2863
        %v2943 = vadd.f32 %v2926, %v2863
        %v2944 = vmul.f32 %v2928, 0.2
        %v2945 = vmul.f32 %v2929, 0.2
        %v2946 = vmul.f32 %v2930, 0.2
        %v2947 = vmul.f32 %v2931, 0.2
        %v2948 = vmul.f32 %v2932, 0.2
        %v2949 = vmul.f32 %v2933, 0.2
        %v2950 = vmul.f32 %v2934, 0.2
        %v2951 = vmul.f32 %v2935, 0.2
        %v2952 = vmul.f32 %v2936, 0.2
        %v2953 = vmul.f32 %v2937, 0.2
        %v2954 = vmul.f32 %v2938, 0.2
        %v2955 = vmul.f32 %v2939, 0.2
        %v2956 = vmul.f32 %v2940, 0.2
        %v2957 = vmul.f32 %v2941, 0.2
        %v2958 = vmul.f32 %v2942, 0.2
        %v2959 = vmul.f32 %v2943, 0.2
        %v2960 = vmax.f32 %v2928, %v2944
        %v2961 = vmax.f32 %v2929, %v2945
        %v2962 = vmax.f32 %v2930, %v2946
        %v2963 = vmax.f32 %v2931, %v2947
        %v2964 = vmax.f32 %v2932, %v2948
        %v2965 = vmax.f32 %v2933, %v2949
        %v2966 = vmax.f32 %v2934, %v2950
        %v2967 = vmax.f32 %v2935, %v2951
        %v2968 = vmax.f32 %v2936, %v2952
        %v2969 = vmax.f32 %v2937, %v2953
        %v2970 = vmax.f32 %v2938, %v2954
        %v2971 = vmax.f32 %v2939, %v2955
        %v2972 = vmax.f32 %v2940, %v2956
        %v2973 = vmax.f32 %v2941, %v2957
        %v2974 = vmax.f32 %v2942, %v2958
        %v2975 = vmax.f32 %v2943, %v2959
        %v2976 = vsel %vm2720, %v2960, -1e+30
        %v2977 = vsel %vm2721, %v2961, -1e+30
        %v2978 = vsel %vm2722, %v2962, -1e+30
        %v2979 = vsel %vm2723, %v2963, -1e+30
        %v2980 = vsel %vm2724, %v2964, -1e+30
        %v2981 = vsel %vm2725, %v2965, -1e+30
        %v2982 = vsel %vm2726, %v2966, -1e+30
        %v2983 = vsel %vm2727, %v2967, -1e+30
        %v2984 = vsel %vm2728, %v2968, -1e+30
        %v2985 = vsel %vm2729, %v2969, -1e+30
        %v2986 = vsel %vm2730, %v2970, -1e+30
        %v2987 = vsel %vm2731, %v2971, -1e+30
        %v2988 = vsel %vm2732, %v2972, -1e+30
        %v2989 = vsel %vm2733, %v2973, -1e+30
        %v2990 = vsel %vm2734, %v2974, -1e+30
        %v2991 = vsel %vm2735, %v2975, -1e+30
        %2992 = vmax.xlane.f32.xlu0 %v2976
        %v2993 = vpop.xlane.xlu0 %2992
        %2994 = vmax.xlane.f32.xlu0 %v2977
        %v2995 = vpop.xlane.xlu0 %2994
        %2996 = vmax.xlane.f32.xlu0 %v2978
        %v2997 = vpop.xlane.xlu0 %2996
        %2998 = vmax.xlane.f32.xlu0 %v2979
        %v2999 = vpop.xlane.xlu0 %2998
        %3000 = vmax.xlane.f32.xlu0 %v2980
        %v3001 = vpop.xlane.xlu0 %3000
        %3002 = vmax.xlane.f32.xlu0 %v2981
        %v3003 = vpop.xlane.xlu0 %3002
        %3004 = vmax.xlane.f32.xlu0 %v2982
        %v3005 = vpop.xlane.xlu0 %3004
        %3006 = vmax.xlane.f32.xlu0 %v2983
        %v3007 = vpop.xlane.xlu0 %3006
        %3008 = vmax.xlane.f32.xlu0 %v2984
        %v3009 = vpop.xlane.xlu0 %3008
        %3010 = vmax.xlane.f32.xlu0 %v2985
        %v3011 = vpop.xlane.xlu0 %3010
        %3012 = vmax.xlane.f32.xlu0 %v2986
        %v3013 = vpop.xlane.xlu0 %3012
        %3014 = vmax.xlane.f32.xlu0 %v2987
        %v3015 = vpop.xlane.xlu0 %3014
        %3016 = vmax.xlane.f32.xlu0 %v2988
        %v3017 = vpop.xlane.xlu0 %3016
        %3018 = vmax.xlane.f32.xlu0 %v2989
        %v3019 = vpop.xlane.xlu0 %3018
        %3020 = vmax.xlane.f32.xlu0 %v2990
        %v3021 = vpop.xlane.xlu0 %3020
        %3022 = vmax.xlane.f32.xlu0 %v2991
        %v3023 = vpop.xlane.xlu0 %3022
        %v3024 = vsub.f32 %v2976, %v2993
        %v3025 = vsub.f32 %v2977, %v2995
        %v3026 = vsub.f32 %v2978, %v2997
        %v3027 = vsub.f32 %v2979, %v2999
        %v3028 = vsub.f32 %v2980, %v3001
        %v3029 = vsub.f32 %v2981, %v3003
        %v3030 = vsub.f32 %v2982, %v3005
        %v3031 = vsub.f32 %v2983, %v3007
        %v3032 = vsub.f32 %v2984, %v3009
        %v3033 = vsub.f32 %v2985, %v3011
        %v3034 = vsub.f32 %v2986, %v3013
        %v3035 = vsub.f32 %v2987, %v3015
        %v3036 = vsub.f32 %v2988, %v3017
        %v3037 = vsub.f32 %v2989, %v3019
        %v3038 = vsub.f32 %v2990, %v3021
        %v3039 = vsub.f32 %v2991, %v3023
        %v3040 = vmul.f32 %v3024, 1.442695
        %v3041 = vpow.pop %v3040
        %v3042 = vmul.f32 %v3025, 1.442695
        %v3043 = vpow.pop %v3042
        %v3044 = vmul.f32 %v3026, 1.442695
        %v3045 = vpow.pop %v3044
        %v3046 = vmul.f32 %v3027, 1.442695
        %v3047 = vpow.pop %v3046
        %v3048 = vmul.f32 %v3028, 1.442695
        %v3049 = vpow.pop %v3048
        %v3050 = vmul.f32 %v3029, 1.442695
        %v3051 = vpow.pop %v3050
        %v3052 = vmul.f32 %v3030, 1.442695
        %v3053 = vpow.pop %v3052
        %v3054 = vmul.f32 %v3031, 1.442695
        %v3055 = vpow.pop %v3054
        %v3056 = vmul.f32 %v3032, 1.442695
        %v3057 = vpow.pop %v3056
        %v3058 = vmul.f32 %v3033, 1.442695
        %v3059 = vpow.pop %v3058
        %v3060 = vmul.f32 %v3034, 1.442695
        %v3061 = vpow.pop %v3060
        %v3062 = vmul.f32 %v3035, 1.442695
        %v3063 = vpow.pop %v3062
        %v3064 = vmul.f32 %v3036, 1.442695
        %v3065 = vpow.pop %v3064
        %v3066 = vmul.f32 %v3037, 1.442695
        %v3067 = vpow.pop %v3066
        %v3068 = vmul.f32 %v3038, 1.442695
        %v3069 = vpow.pop %v3068
        %v3070 = vmul.f32 %v3039, 1.442695
        %v3071 = vpow.pop %v3070
        %3072 = vadd.xlane.f32.xlu0 %v3041
        %v3073 = vpop.xlane.xlu0 %3072
        %3074 = vadd.xlane.f32.xlu0 %v3043
        %v3075 = vpop.xlane.xlu0 %3074
        %3076 = vadd.xlane.f32.xlu0 %v3045
        %v3077 = vpop.xlane.xlu0 %3076
        %3078 = vadd.xlane.f32.xlu0 %v3047
        %v3079 = vpop.xlane.xlu0 %3078
        %3080 = vadd.xlane.f32.xlu0 %v3049
        %v3081 = vpop.xlane.xlu0 %3080
        %3082 = vadd.xlane.f32.xlu0 %v3051
        %v3083 = vpop.xlane.xlu0 %3082
        %3084 = vadd.xlane.f32.xlu0 %v3053
        %v3085 = vpop.xlane.xlu0 %3084
        %3086 = vadd.xlane.f32.xlu0 %v3055
        %v3087 = vpop.xlane.xlu0 %3086
        %3088 = vadd.xlane.f32.xlu0 %v3057
        %v3089 = vpop.xlane.xlu0 %3088
        %3090 = vadd.xlane.f32.xlu0 %v3059
        %v3091 = vpop.xlane.xlu0 %3090
        %3092 = vadd.xlane.f32.xlu0 %v3061
        %v3093 = vpop.xlane.xlu0 %3092
        %3094 = vadd.xlane.f32.xlu0 %v3063
        %v3095 = vpop.xlane.xlu0 %3094
        %3096 = vadd.xlane.f32.xlu0 %v3065
        %v3097 = vpop.xlane.xlu0 %3096
        %3098 = vadd.xlane.f32.xlu0 %v3067
        %v3099 = vpop.xlane.xlu0 %3098
        %3100 = vadd.xlane.f32.xlu0 %v3069
        %v3101 = vpop.xlane.xlu0 %3100
        %3102 = vadd.xlane.f32.xlu0 %v3071
        %v3103 = vpop.xlane.xlu0 %3102
        %v3104 = vrcp.pop %v3073
        %v3105 = vrcp.pop %v3075
        %v3106 = vrcp.pop %v3077
        %v3107 = vrcp.pop %v3079
        %v3108 = vrcp.pop %v3081
        %v3109 = vrcp.pop %v3083
        %v3110 = vrcp.pop %v3085
        %v3111 = vrcp.pop %v3087
        %v3112 = vrcp.pop %v3089
        %v3113 = vrcp.pop %v3091
        %v3114 = vrcp.pop %v3093
        %v3115 = vrcp.pop %v3095
        %v3116 = vrcp.pop %v3097
        %v3117 = vrcp.pop %v3099
        %v3118 = vrcp.pop %v3101
        %v3119 = vrcp.pop %v3103
        %v3120 = vpack.c.bf16 %v3043, %v3041
        %v3121 = vpack.c.bf16 %v3047, %v3045
        %v3122 = vpack.c.bf16 %v3051, %v3049
        %v3123 = vpack.c.bf16 %v3055, %v3053
        %v3124 = vpack.c.bf16 %v3059, %v3057
        %v3125 = vpack.c.bf16 %v3063, %v3061
        %v3126 = vpack.c.bf16 %v3067, %v3065
        %v3127 = vpack.c.bf16 %v3071, %v3069
        %3128 = vmatprep.subr.bf16.mxu0 0
        %3129 = vmatpush1.bf16.msra.mxu0 %v2739
        %3130 = vmatprep.subr.bf16.mxu0 0
        %3131 = vmatpush1.bf16.msra.mxu0 %v2740
        %3132 = vmatprep.subr.bf16.mxu0 0
        %3133 = vmatpush1.bf16.msra.mxu0 %v2741
        %3134 = vmatprep.subr.bf16.mxu0 0
        %3135 = vmatpush1.bf16.msra.mxu0 %v2742
        %3136 = vmatprep.subr.bf16.mxu0 0
        %3137 = vmatpush1.bf16.msra.mxu0 %v2743
        %3138 = vmatprep.subr.bf16.mxu0 0
        %3139 = vmatpush1.bf16.msra.mxu0 %v2744
        %3140 = vmatprep.subr.bf16.mxu0 0
        %3141 = vmatpush1.bf16.msra.mxu0 %v2745
        %3142 = vmatprep.subr.bf16.mxu0 0
        %3143 = vmatpush1.bf16.msra.mxu0 %v2746
        %3144 = vmatprep.subr.bf16.mxu0 0
        %3145 = vmatpush1.bf16.msra.mxu0 0
        %3146 = vmatprep.subr.bf16.mxu0 0
        %3147 = vmatpush1.bf16.msra.mxu0 0
        %3148 = vmatprep.subr.bf16.mxu0 0
        %3149 = vmatpush1.bf16.msra.mxu0 0
        %3150 = vmatprep.subr.bf16.mxu0 0
        %3151 = vmatpush1.bf16.msra.mxu0 0
        %3152 = vmatprep.subr.bf16.mxu0 0
        %3153 = vmatpush1.bf16.msra.mxu0 0
        %3154 = vmatprep.subr.bf16.mxu0 0
        %3155 = vmatpush1.bf16.msra.mxu0 0
        %3156 = vmatprep.subr.bf16.mxu0 0
        %3157 = vmatpush1.bf16.msra.mxu0 0
        %3158 = vmatprep.subr.bf16.mxu0 0
        %3159 = vmatpush1.bf16.msra.mxu0 0
        %3160 = vmatprep.mubr.bf16.mxu0 0
        %3161 = vmatmul.mubr.bf16.gmra.mrb[0].mxu0 %v3120
        %v3162 = vpop.f32.mrb[0].mxu0
        %v3163 = vadd.f32 0.0, %v3162
        %v3164 = vpop.f32.mrb[0].mxu0
        %v3165 = vpop.f32.mrb[0].mxu0
        %v3166 = vadd.f32 0.0, %v3165
        %v3167 = vpop.f32.mrb[0].mxu0
        %3168 = vmatprep.mubr.bf16.mxu0 0
        %3169 = vmatmul.mubr.bf16.gmra.mrb[0].mxu0 %v3121
        %v3170 = vpop.f32.mrb[0].mxu0
        %v3171 = vadd.f32 0.0, %v3170
        %v3172 = vpop.f32.mrb[0].mxu0
        %v3173 = vpop.f32.mrb[0].mxu0
        %v3174 = vadd.f32 0.0, %v3173
        %v3175 = vpop.f32.mrb[0].mxu0
        %3176 = vmatprep.mubr.bf16.mxu0 0
        %3177 = vmatmul.mubr.bf16.gmra.mrb[0].mxu0 %v3122
        %v3178 = vpop.f32.mrb[0].mxu0
        %v3179 = vadd.f32 0.0, %v3178
        %v3180 = vpop.f32.mrb[0].mxu0
        %v3181 = vpop.f32.mrb[0].mxu0
        %v3182 = vadd.f32 0.0, %v3181
        %v3183 = vpop.f32.mrb[0].mxu0
        %3184 = vmatprep.mubr.bf16.mxu0 0
        %3185 = vmatmul.mubr.bf16.gmra.mrb[0].mxu0 %v3123
        %v3186 = vpop.f32.mrb[0].mxu0
        %v3187 = vadd.f32 0.0, %v3186
        %v3188 = vpop.f32.mrb[0].mxu0
        %v3189 = vpop.f32.mrb[0].mxu0
        %v3190 = vadd.f32 0.0, %v3189
        %v3191 = vpop.f32.mrb[0].mxu0
        %3192 = vmatprep.mubr.bf16.mxu0 0
        %3193 = vmatmul.mubr.bf16.gmra.mrb[0].mxu0 %v3124
        %v3194 = vpop.f32.mrb[0].mxu0
        %v3195 = vadd.f32 0.0, %v3194
        %v3196 = vpop.f32.mrb[0].mxu0
        %v3197 = vpop.f32.mrb[0].mxu0
        %v3198 = vadd.f32 0.0, %v3197
        %v3199 = vpop.f32.mrb[0].mxu0
        %3200 = vmatprep.mubr.bf16.mxu0 0
        %3201 = vmatmul.mubr.bf16.gmra.mrb[0].mxu0 %v3125
        %v3202 = vpop.f32.mrb[0].mxu0
        %v3203 = vadd.f32 0.0, %v3202
        %v3204 = vpop.f32.mrb[0].mxu0
        %v3205 = vpop.f32.mrb[0].mxu0
        %v3206 = vadd.f32 0.0, %v3205
        %v3207 = vpop.f32.mrb[0].mxu0
        %3208 = vmatprep.mubr.bf16.mxu0 0
        %3209 = vmatmul.mubr.bf16.gmra.mrb[0].mxu0 %v3126
        %v3210 = vpop.f32.mrb[0].mxu0
        %v3211 = vadd.f32 0.0, %v3210
        %v3212 = vpop.f32.mrb[0].mxu0
        %v3213 = vpop.f32.mrb[0].mxu0
        %v3214 = vadd.f32 0.0, %v3213
        %v3215 = vpop.f32.mrb[0].mxu0
        %3216 = vmatprep.mubr.bf16.mxu0 0
        %3217 = vmatmul.mubr.bf16.gmra.mrb[0].mxu0 %v3127
        %v3218 = vpop.f32.mrb[0].mxu0
        %v3219 = vadd.f32 0.0, %v3218
        %v3220 = vpop.f32.mrb[0].mxu0
        %v3221 = vpop.f32.mrb[0].mxu0
        %v3222 = vadd.f32 0.0, %v3221
        %v3223 = vpop.f32.mrb[0].mxu0
        %3224 = vdwg.mxu0
        %v3225 = vmul.f32 %v3163, %v3104
        %v3226 = vmul.f32 %v3166, %v3105
        %v3227 = vmul.f32 %v3171, %v3106
        %v3228 = vmul.f32 %v3174, %v3107
        %v3229 = vmul.f32 %v3179, %v3108
        %v3230 = vmul.f32 %v3182, %v3109
        %v3231 = vmul.f32 %v3187, %v3110
        %v3232 = vmul.f32 %v3190, %v3111
        %v3233 = vmul.f32 %v3195, %v3112
        %v3234 = vmul.f32 %v3198, %v3113
        %v3235 = vmul.f32 %v3203, %v3114
        %v3236 = vmul.f32 %v3206, %v3115
        %v3237 = vmul.f32 %v3211, %v3116
        %v3238 = vmul.f32 %v3214, %v3117
        %v3239 = vmul.f32 %v3219, %v3118
        %v3240 = vmul.f32 %v3222, %v3119
        %v3241 = vadd.f32 %v3225, 0.0
        %v3242 = vadd.f32 %v3226, 0.0
        %v3243 = vadd.f32 %v3227, 0.0
        %v3244 = vadd.f32 %v3228, 0.0
        %v3245 = vadd.f32 %v3229, 0.0
        %v3246 = vadd.f32 %v3230, 0.0
        %v3247 = vadd.f32 %v3231, 0.0
        %v3248 = vadd.f32 %v3232, 0.0
        %v3249 = vadd.f32 %v3233, 0.0
        %v3250 = vadd.f32 %v3234, 0.0
        %v3251 = vadd.f32 %v3235, 0.0
        %v3252 = vadd.f32 %v3236, 0.0
        %v3253 = vadd.f32 %v3237, 0.0
        %v3254 = vadd.f32 %v3238, 0.0
        %v3255 = vadd.f32 %v3239, 0.0
        %v3256 = vadd.f32 %v3240, 0.0
        %3257 = vset.pattern.permute.xlu0 100
        %3258 = vperm.xlu0 %3257, %v2609
        %v3259 = vpop.permute.xlu0 %3258
        %3261 = vset.pattern.permute.xlu0 100
        %3262 = vperm.xlu0 %3261, %v2612
        %v3263 = vpop.permute.xlu0 %3262
        %3265 = vset.pattern.permute.xlu0 100
        %3266 = vperm.xlu0 %3265, %v2617
        %v3267 = vpop.permute.xlu0 %3266
        %3269 = vset.pattern.permute.xlu0 100
        %3270 = vperm.xlu0 %3269, %v2620
        %v3271 = vpop.permute.xlu0 %3270
        %3273 = vset.pattern.permute.xlu0 100
        %3274 = vperm.xlu0 %3273, %v2625
        %v3275 = vpop.permute.xlu0 %3274
        %3277 = vset.pattern.permute.xlu0 100
        %3278 = vperm.xlu0 %3277, %v2628
        %v3279 = vpop.permute.xlu0 %3278
        %3281 = vset.pattern.permute.xlu0 100
        %3282 = vperm.xlu0 %3281, %v2633
        %v3283 = vpop.permute.xlu0 %3282
        %3285 = vset.pattern.permute.xlu0 100
        %3286 = vperm.xlu0 %3285, %v2636
        %v3287 = vpop.permute.xlu0 %3286
        %3289 = vset.pattern.permute.xlu0 100
        %3290 = vperm.xlu0 %3289, %v2641
        %v3291 = vpop.permute.xlu0 %3290
        %3293 = vset.pattern.permute.xlu0 100
        %3294 = vperm.xlu0 %3293, %v2644
        %v3295 = vpop.permute.xlu0 %3294
        %3297 = vset.pattern.permute.xlu0 100
        %3298 = vperm.xlu0 %3297, %v2649
        %v3299 = vpop.permute.xlu0 %3298
        %3301 = vset.pattern.permute.xlu0 100
        %3302 = vperm.xlu0 %3301, %v2652
        %v3303 = vpop.permute.xlu0 %3302
        %3305 = vset.pattern.permute.xlu0 100
        %3306 = vperm.xlu0 %3305, %v2657
        %v3307 = vpop.permute.xlu0 %3306
        %3309 = vset.pattern.permute.xlu0 100
        %3310 = vperm.xlu0 %3309, %v2660
        %v3311 = vpop.permute.xlu0 %3310
        %3313 = vset.pattern.permute.xlu0 100
        %3314 = vperm.xlu0 %3313, %v2665
        %v3315 = vpop.permute.xlu0 %3314
        %3317 = vset.pattern.permute.xlu0 100
        %3318 = vperm.xlu0 %3317, %v2668
        %v3319 = vpop.permute.xlu0 %3318
        %v3321 = vsel %vm384, %v3259, 0.0
        %v3322 = vsel %vm385, %v3263, 0.0
        %v3323 = vsel %vm386, %v3267, 0.0
        %v3324 = vsel %vm387, %v3271, 0.0
        %v3325 = vsel %vm388, %v3275, 0.0
        %v3326 = vsel %vm389, %v3279, 0.0
        %v3327 = vsel %vm390, %v3283, 0.0
        %v3328 = vsel %vm391, %v3287, 0.0
        %v3329 = vsel %vm392, %v3291, 0.0
        %v3330 = vsel %vm393, %v3295, 0.0
        %v3331 = vsel %vm394, %v3299, 0.0
        %v3332 = vsel %vm395, %v3303, 0.0
        %v3333 = vsel %vm396, %v3307, 0.0
        %v3334 = vsel %vm397, %v3311, 0.0
        %v3335 = vsel %vm398, %v3315, 0.0
        %v3336 = vsel %vm399, %v3319, 0.0
        %v3337 = vadd.f32 %v3321, %v3322
        %v3338 = vadd.f32 %v3337, %v3323
        %v3339 = vadd.f32 %v3338, %v3324
        %v3340 = vadd.f32 %v3339, %v3325
        %v3341 = vadd.f32 %v3340, %v3326
        %v3342 = vadd.f32 %v3341, %v3327
        %v3343 = vadd.f32 %v3342, %v3328
        %v3344 = vadd.f32 %v3343, %v3329
        %v3345 = vadd.f32 %v3344, %v3330
        %v3346 = vadd.f32 %v3345, %v3331
        %v3347 = vadd.f32 %v3346, %v3332
        %v3348 = vadd.f32 %v3347, %v3333
        %v3349 = vadd.f32 %v3348, %v3334
        %v3350 = vadd.f32 %v3349, %v3335
        %v3351 = vadd.f32 %v3350, %v3336
        %v3352 = vrot.slane %v3351, 4
        %v3353 = vadd.f32 %v3351, %v3352
        %v3354 = vrot.slane %v3353, 2
        %v3355 = vadd.f32 %v3353, %v3354
        %v3356 = vrot.slane %v3355, 1
        %v3357 = vadd.f32 %v3355, %v3356
        %3358 = vset.pattern.permute.xlu0 97
        %3359 = vperm.xlu0 %3358, %v2609
        %v3360 = vpop.permute.xlu0 %3359
        %3362 = vset.pattern.permute.xlu0 97
        %3363 = vperm.xlu0 %3362, %v2612
        %v3364 = vpop.permute.xlu0 %3363
        %3366 = vset.pattern.permute.xlu0 97
        %3367 = vperm.xlu0 %3366, %v2617
        %v3368 = vpop.permute.xlu0 %3367
        %3370 = vset.pattern.permute.xlu0 97
        %3371 = vperm.xlu0 %3370, %v2620
        %v3372 = vpop.permute.xlu0 %3371
        %3374 = vset.pattern.permute.xlu0 97
        %3375 = vperm.xlu0 %3374, %v2625
        %v3376 = vpop.permute.xlu0 %3375
        %3378 = vset.pattern.permute.xlu0 97
        %3379 = vperm.xlu0 %3378, %v2628
        %v3380 = vpop.permute.xlu0 %3379
        %3382 = vset.pattern.permute.xlu0 97
        %3383 = vperm.xlu0 %3382, %v2633
        %v3384 = vpop.permute.xlu0 %3383
        %3386 = vset.pattern.permute.xlu0 97
        %3387 = vperm.xlu0 %3386, %v2636
        %v3388 = vpop.permute.xlu0 %3387
        %3390 = vset.pattern.permute.xlu0 97
        %3391 = vperm.xlu0 %3390, %v2641
        %v3392 = vpop.permute.xlu0 %3391
        %3394 = vset.pattern.permute.xlu0 97
        %3395 = vperm.xlu0 %3394, %v2644
        %v3396 = vpop.permute.xlu0 %3395
        %3398 = vset.pattern.permute.xlu0 97
        %3399 = vperm.xlu0 %3398, %v2649
        %v3400 = vpop.permute.xlu0 %3399
        %3402 = vset.pattern.permute.xlu0 97
        %3403 = vperm.xlu0 %3402, %v2652
        %v3404 = vpop.permute.xlu0 %3403
        %3406 = vset.pattern.permute.xlu0 97
        %3407 = vperm.xlu0 %3406, %v2657
        %v3408 = vpop.permute.xlu0 %3407
        %3410 = vset.pattern.permute.xlu0 97
        %3411 = vperm.xlu0 %3410, %v2660
        %v3412 = vpop.permute.xlu0 %3411
        %3414 = vset.pattern.permute.xlu0 97
        %3415 = vperm.xlu0 %3414, %v2665
        %v3416 = vpop.permute.xlu0 %3415
        %3418 = vset.pattern.permute.xlu0 97
        %3419 = vperm.xlu0 %3418, %v2668
        %v3420 = vpop.permute.xlu0 %3419
        %v3422 = vadd.f32 %v3360, %v3357
        %v3423 = vadd.f32 %v3364, %v3357
        %v3424 = vadd.f32 %v3368, %v3357
        %v3425 = vadd.f32 %v3372, %v3357
        %v3426 = vadd.f32 %v3376, %v3357
        %v3427 = vadd.f32 %v3380, %v3357
        %v3428 = vadd.f32 %v3384, %v3357
        %v3429 = vadd.f32 %v3388, %v3357
        %v3430 = vadd.f32 %v3392, %v3357
        %v3431 = vadd.f32 %v3396, %v3357
        %v3432 = vadd.f32 %v3400, %v3357
        %v3433 = vadd.f32 %v3404, %v3357
        %v3434 = vadd.f32 %v3408, %v3357
        %v3435 = vadd.f32 %v3412, %v3357
        %v3436 = vadd.f32 %v3416, %v3357
        %v3437 = vadd.f32 %v3420, %v3357
        %v3438 = vmul.f32 %v3422, 0.2
        %v3439 = vmul.f32 %v3423, 0.2
        %v3440 = vmul.f32 %v3424, 0.2
        %v3441 = vmul.f32 %v3425, 0.2
        %v3442 = vmul.f32 %v3426, 0.2
        %v3443 = vmul.f32 %v3427, 0.2
        %v3444 = vmul.f32 %v3428, 0.2
        %v3445 = vmul.f32 %v3429, 0.2
        %v3446 = vmul.f32 %v3430, 0.2
        %v3447 = vmul.f32 %v3431, 0.2
        %v3448 = vmul.f32 %v3432, 0.2
        %v3449 = vmul.f32 %v3433, 0.2
        %v3450 = vmul.f32 %v3434, 0.2
        %v3451 = vmul.f32 %v3435, 0.2
        %v3452 = vmul.f32 %v3436, 0.2
        %v3453 = vmul.f32 %v3437, 0.2
        %v3454 = vmax.f32 %v3422, %v3438
        %v3455 = vmax.f32 %v3423, %v3439
        %v3456 = vmax.f32 %v3424, %v3440
        %v3457 = vmax.f32 %v3425, %v3441
        %v3458 = vmax.f32 %v3426, %v3442
        %v3459 = vmax.f32 %v3427, %v3443
        %v3460 = vmax.f32 %v3428, %v3444
        %v3461 = vmax.f32 %v3429, %v3445
        %v3462 = vmax.f32 %v3430, %v3446
        %v3463 = vmax.f32 %v3431, %v3447
        %v3464 = vmax.f32 %v3432, %v3448
        %v3465 = vmax.f32 %v3433, %v3449
        %v3466 = vmax.f32 %v3434, %v3450
        %v3467 = vmax.f32 %v3435, %v3451
        %v3468 = vmax.f32 %v3436, %v3452
        %v3469 = vmax.f32 %v3437, %v3453
        %v3470 = vsel %vm2720, %v3454, -1e+30
        %v3471 = vsel %vm2721, %v3455, -1e+30
        %v3472 = vsel %vm2722, %v3456, -1e+30
        %v3473 = vsel %vm2723, %v3457, -1e+30
        %v3474 = vsel %vm2724, %v3458, -1e+30
        %v3475 = vsel %vm2725, %v3459, -1e+30
        %v3476 = vsel %vm2726, %v3460, -1e+30
        %v3477 = vsel %vm2727, %v3461, -1e+30
        %v3478 = vsel %vm2728, %v3462, -1e+30
        %v3479 = vsel %vm2729, %v3463, -1e+30
        %v3480 = vsel %vm2730, %v3464, -1e+30
        %v3481 = vsel %vm2731, %v3465, -1e+30
        %v3482 = vsel %vm2732, %v3466, -1e+30
        %v3483 = vsel %vm2733, %v3467, -1e+30
        %v3484 = vsel %vm2734, %v3468, -1e+30
        %v3485 = vsel %vm2735, %v3469, -1e+30
        %3486 = vmax.xlane.f32.xlu0 %v3470
        %v3487 = vpop.xlane.xlu0 %3486
        %3488 = vmax.xlane.f32.xlu0 %v3471
        %v3489 = vpop.xlane.xlu0 %3488
        %3490 = vmax.xlane.f32.xlu0 %v3472
        %v3491 = vpop.xlane.xlu0 %3490
        %3492 = vmax.xlane.f32.xlu0 %v3473
        %v3493 = vpop.xlane.xlu0 %3492
        %3494 = vmax.xlane.f32.xlu0 %v3474
        %v3495 = vpop.xlane.xlu0 %3494
        %3496 = vmax.xlane.f32.xlu0 %v3475
        %v3497 = vpop.xlane.xlu0 %3496
        %3498 = vmax.xlane.f32.xlu0 %v3476
        %v3499 = vpop.xlane.xlu0 %3498
        %3500 = vmax.xlane.f32.xlu0 %v3477
        %v3501 = vpop.xlane.xlu0 %3500
        %3502 = vmax.xlane.f32.xlu0 %v3478
        %v3503 = vpop.xlane.xlu0 %3502
        %3504 = vmax.xlane.f32.xlu0 %v3479
        %v3505 = vpop.xlane.xlu0 %3504
        %3506 = vmax.xlane.f32.xlu0 %v3480
        %v3507 = vpop.xlane.xlu0 %3506
        %3508 = vmax.xlane.f32.xlu0 %v3481
        %v3509 = vpop.xlane.xlu0 %3508
        %3510 = vmax.xlane.f32.xlu0 %v3482
        %v3511 = vpop.xlane.xlu0 %3510
        %3512 = vmax.xlane.f32.xlu0 %v3483
        %v3513 = vpop.xlane.xlu0 %3512
        %3514 = vmax.xlane.f32.xlu0 %v3484
        %v3515 = vpop.xlane.xlu0 %3514
        %3516 = vmax.xlane.f32.xlu0 %v3485
        %v3517 = vpop.xlane.xlu0 %3516
        %v3518 = vsub.f32 %v3470, %v3487
        %v3519 = vsub.f32 %v3471, %v3489
        %v3520 = vsub.f32 %v3472, %v3491
        %v3521 = vsub.f32 %v3473, %v3493
        %v3522 = vsub.f32 %v3474, %v3495
        %v3523 = vsub.f32 %v3475, %v3497
        %v3524 = vsub.f32 %v3476, %v3499
        %v3525 = vsub.f32 %v3477, %v3501
        %v3526 = vsub.f32 %v3478, %v3503
        %v3527 = vsub.f32 %v3479, %v3505
        %v3528 = vsub.f32 %v3480, %v3507
        %v3529 = vsub.f32 %v3481, %v3509
        %v3530 = vsub.f32 %v3482, %v3511
        %v3531 = vsub.f32 %v3483, %v3513
        %v3532 = vsub.f32 %v3484, %v3515
        %v3533 = vsub.f32 %v3485, %v3517
        %v3534 = vmul.f32 %v3518, 1.442695
        %v3535 = vpow.pop %v3534
        %v3536 = vmul.f32 %v3519, 1.442695
        %v3537 = vpow.pop %v3536
        %v3538 = vmul.f32 %v3520, 1.442695
        %v3539 = vpow.pop %v3538
        %v3540 = vmul.f32 %v3521, 1.442695
        %v3541 = vpow.pop %v3540
        %v3542 = vmul.f32 %v3522, 1.442695
        %v3543 = vpow.pop %v3542
        %v3544 = vmul.f32 %v3523, 1.442695
        %v3545 = vpow.pop %v3544
        %v3546 = vmul.f32 %v3524, 1.442695
        %v3547 = vpow.pop %v3546
        %v3548 = vmul.f32 %v3525, 1.442695
        %v3549 = vpow.pop %v3548
        %v3550 = vmul.f32 %v3526, 1.442695
        %v3551 = vpow.pop %v3550
        %v3552 = vmul.f32 %v3527, 1.442695
        %v3553 = vpow.pop %v3552
        %v3554 = vmul.f32 %v3528, 1.442695
        %v3555 = vpow.pop %v3554
        %v3556 = vmul.f32 %v3529, 1.442695
        %v3557 = vpow.pop %v3556
        %v3558 = vmul.f32 %v3530, 1.442695
        %v3559 = vpow.pop %v3558
        %v3560 = vmul.f32 %v3531, 1.442695
        %v3561 = vpow.pop %v3560
        %v3562 = vmul.f32 %v3532, 1.442695
        %v3563 = vpow.pop %v3562
        %v3564 = vmul.f32 %v3533, 1.442695
        %v3565 = vpow.pop %v3564
        %3566 = vadd.xlane.f32.xlu0 %v3535
        %v3567 = vpop.xlane.xlu0 %3566
        %3568 = vadd.xlane.f32.xlu0 %v3537
        %v3569 = vpop.xlane.xlu0 %3568
        %3570 = vadd.xlane.f32.xlu0 %v3539
        %v3571 = vpop.xlane.xlu0 %3570
        %3572 = vadd.xlane.f32.xlu0 %v3541
        %v3573 = vpop.xlane.xlu0 %3572
        %3574 = vadd.xlane.f32.xlu0 %v3543
        %v3575 = vpop.xlane.xlu0 %3574
        %3576 = vadd.xlane.f32.xlu0 %v3545
        %v3577 = vpop.xlane.xlu0 %3576
        %3578 = vadd.xlane.f32.xlu0 %v3547
        %v3579 = vpop.xlane.xlu0 %3578
        %3580 = vadd.xlane.f32.xlu0 %v3549
        %v3581 = vpop.xlane.xlu0 %3580
        %3582 = vadd.xlane.f32.xlu0 %v3551
        %v3583 = vpop.xlane.xlu0 %3582
        %3584 = vadd.xlane.f32.xlu0 %v3553
        %v3585 = vpop.xlane.xlu0 %3584
        %3586 = vadd.xlane.f32.xlu0 %v3555
        %v3587 = vpop.xlane.xlu0 %3586
        %3588 = vadd.xlane.f32.xlu0 %v3557
        %v3589 = vpop.xlane.xlu0 %3588
        %3590 = vadd.xlane.f32.xlu0 %v3559
        %v3591 = vpop.xlane.xlu0 %3590
        %3592 = vadd.xlane.f32.xlu0 %v3561
        %v3593 = vpop.xlane.xlu0 %3592
        %3594 = vadd.xlane.f32.xlu0 %v3563
        %v3595 = vpop.xlane.xlu0 %3594
        %3596 = vadd.xlane.f32.xlu0 %v3565
        %v3597 = vpop.xlane.xlu0 %3596
        %v3598 = vrcp.pop %v3567
        %v3599 = vrcp.pop %v3569
        %v3600 = vrcp.pop %v3571
        %v3601 = vrcp.pop %v3573
        %v3602 = vrcp.pop %v3575
        %v3603 = vrcp.pop %v3577
        %v3604 = vrcp.pop %v3579
        %v3605 = vrcp.pop %v3581
        %v3606 = vrcp.pop %v3583
        %v3607 = vrcp.pop %v3585
        %v3608 = vrcp.pop %v3587
        %v3609 = vrcp.pop %v3589
        %v3610 = vrcp.pop %v3591
        %v3611 = vrcp.pop %v3593
        %v3612 = vrcp.pop %v3595
        %v3613 = vrcp.pop %v3597
        %v3614 = vpack.c.bf16 %v3537, %v3535
        %v3615 = vpack.c.bf16 %v3541, %v3539
        %v3616 = vpack.c.bf16 %v3545, %v3543
        %v3617 = vpack.c.bf16 %v3549, %v3547
        %v3618 = vpack.c.bf16 %v3553, %v3551
        %v3619 = vpack.c.bf16 %v3557, %v3555
        %v3620 = vpack.c.bf16 %v3561, %v3559
        %v3621 = vpack.c.bf16 %v3565, %v3563
        %3630 = vrot.lane.b32.xlu0 %v2739, 96
        %v3631 = vpop.permute.xlu0 %3630
        %3632 = vrot.lane.b32.xlu0 %v2740, 96
        %v3633 = vpop.permute.xlu0 %3632
        %3634 = vrot.lane.b32.xlu0 %v2741, 96
        %v3635 = vpop.permute.xlu0 %3634
        %3636 = vrot.lane.b32.xlu0 %v2742, 96
        %v3637 = vpop.permute.xlu0 %3636
        %3638 = vrot.lane.b32.xlu0 %v2743, 96
        %v3639 = vpop.permute.xlu0 %3638
        %3640 = vrot.lane.b32.xlu0 %v2744, 96
        %v3641 = vpop.permute.xlu0 %3640
        %3642 = vrot.lane.b32.xlu0 %v2745, 96
        %v3643 = vpop.permute.xlu0 %3642
        %3644 = vrot.lane.b32.xlu0 %v2746, 96
        %v3645 = vpop.permute.xlu0 %3644
        %3654 = vmatprep.subr.bf16.mxu0 0
        %3655 = vmatpush1.bf16.msra.mxu0 %v3631
        %3656 = vmatprep.subr.bf16.mxu0 0
        %3657 = vmatpush1.bf16.msra.mxu0 %v3633
        %3658 = vmatprep.subr.bf16.mxu0 0
        %3659 = vmatpush1.bf16.msra.mxu0 %v3635
        %3660 = vmatprep.subr.bf16.mxu0 0
        %3661 = vmatpush1.bf16.msra.mxu0 %v3637
        %3662 = vmatprep.subr.bf16.mxu0 0
        %3663 = vmatpush1.bf16.msra.mxu0 %v3639
        %3664 = vmatprep.subr.bf16.mxu0 0
        %3665 = vmatpush1.bf16.msra.mxu0 %v3641
        %3666 = vmatprep.subr.bf16.mxu0 0
        %3667 = vmatpush1.bf16.msra.mxu0 %v3643
        %3668 = vmatprep.subr.bf16.mxu0 0
        %3669 = vmatpush1.bf16.msra.mxu0 %v3645
        %3670 = vmatprep.subr.bf16.mxu0 0
        %3671 = vmatpush1.bf16.msra.mxu0 0
        %3672 = vmatprep.subr.bf16.mxu0 0
        %3673 = vmatpush1.bf16.msra.mxu0 0
        %3674 = vmatprep.subr.bf16.mxu0 0
        %3675 = vmatpush1.bf16.msra.mxu0 0
        %3676 = vmatprep.subr.bf16.mxu0 0
        %3677 = vmatpush1.bf16.msra.mxu0 0
        %3678 = vmatprep.subr.bf16.mxu0 0
        %3679 = vmatpush1.bf16.msra.mxu0 0
        %3680 = vmatprep.subr.bf16.mxu0 0
        %3681 = vmatpush1.bf16.msra.mxu0 0
        %3682 = vmatprep.subr.bf16.mxu0 0
        %3683 = vmatpush1.bf16.msra.mxu0 0
        %3684 = vmatprep.subr.bf16.mxu0 0
        %3685 = vmatpush1.bf16.msra.mxu0 0
        %3686 = vmatprep.mubr.bf16.mxu0 0
        %3687 = vmatmul.mubr.bf16.gmra.mrb[0].mxu0 %v3614
        %v3688 = vpop.f32.mrb[0].mxu0
        %v3689 = vadd.f32 0.0, %v3688
        %v3690 = vpop.f32.mrb[0].mxu0
        %v3691 = vpop.f32.mrb[0].mxu0
        %v3692 = vadd.f32 0.0, %v3691
        %v3693 = vpop.f32.mrb[0].mxu0
        %3694 = vmatprep.mubr.bf16.mxu0 0
        %3695 = vmatmul.mubr.bf16.gmra.mrb[0].mxu0 %v3615
        %v3696 = vpop.f32.mrb[0].mxu0
        %v3697 = vadd.f32 0.0, %v3696
        %v3698 = vpop.f32.mrb[0].mxu0
        %v3699 = vpop.f32.mrb[0].mxu0
        %v3700 = vadd.f32 0.0, %v3699
        %v3701 = vpop.f32.mrb[0].mxu0
        %3702 = vmatprep.mubr.bf16.mxu0 0
        %3703 = vmatmul.mubr.bf16.gmra.mrb[0].mxu0 %v3616
        %v3704 = vpop.f32.mrb[0].mxu0
        %v3705 = vadd.f32 0.0, %v3704
        %v3706 = vpop.f32.mrb[0].mxu0
        %v3707 = vpop.f32.mrb[0].mxu0
        %v3708 = vadd.f32 0.0, %v3707
        %v3709 = vpop.f32.mrb[0].mxu0
        %3710 = vmatprep.mubr.bf16.mxu0 0
        %3711 = vmatmul.mubr.bf16.gmra.mrb[0].mxu0 %v3617
        %v3712 = vpop.f32.mrb[0].mxu0
        %v3713 = vadd.f32 0.0, %v3712
        %v3714 = vpop.f32.mrb[0].mxu0
        %v3715 = vpop.f32.mrb[0].mxu0
        %v3716 = vadd.f32 0.0, %v3715
        %v3717 = vpop.f32.mrb[0].mxu0
        %3718 = vmatprep.mubr.bf16.mxu0 0
        %3719 = vmatmul.mubr.bf16.gmra.mrb[0].mxu0 %v3618
        %v3720 = vpop.f32.mrb[0].mxu0
        %v3721 = vadd.f32 0.0, %v3720
        %v3722 = vpop.f32.mrb[0].mxu0
        %v3723 = vpop.f32.mrb[0].mxu0
        %v3724 = vadd.f32 0.0, %v3723
        %v3725 = vpop.f32.mrb[0].mxu0
        %3726 = vmatprep.mubr.bf16.mxu0 0
        %3727 = vmatmul.mubr.bf16.gmra.mrb[0].mxu0 %v3619
        %v3728 = vpop.f32.mrb[0].mxu0
        %v3729 = vadd.f32 0.0, %v3728
        %v3730 = vpop.f32.mrb[0].mxu0
        %v3731 = vpop.f32.mrb[0].mxu0
        %v3732 = vadd.f32 0.0, %v3731
        %v3733 = vpop.f32.mrb[0].mxu0
        %3734 = vmatprep.mubr.bf16.mxu0 0
        %3735 = vmatmul.mubr.bf16.gmra.mrb[0].mxu0 %v3620
        %v3736 = vpop.f32.mrb[0].mxu0
        %v3737 = vadd.f32 0.0, %v3736
        %v3738 = vpop.f32.mrb[0].mxu0
        %v3739 = vpop.f32.mrb[0].mxu0
        %v3740 = vadd.f32 0.0, %v3739
        %v3741 = vpop.f32.mrb[0].mxu0
        %3742 = vmatprep.mubr.bf16.mxu0 0
        %3743 = vmatmul.mubr.bf16.gmra.mrb[0].mxu0 %v3621
        %v3744 = vpop.f32.mrb[0].mxu0
        %v3745 = vadd.f32 0.0, %v3744
        %v3746 = vpop.f32.mrb[0].mxu0
        %v3747 = vpop.f32.mrb[0].mxu0
        %v3748 = vadd.f32 0.0, %v3747
        %v3749 = vpop.f32.mrb[0].mxu0
        %3750 = vdwg.mxu0
        %v3751 = vmul.f32 %v3689, %v3598
        %v3752 = vmul.f32 %v3692, %v3599
        %v3753 = vmul.f32 %v3697, %v3600
        %v3754 = vmul.f32 %v3700, %v3601
        %v3755 = vmul.f32 %v3705, %v3602
        %v3756 = vmul.f32 %v3708, %v3603
        %v3757 = vmul.f32 %v3713, %v3604
        %v3758 = vmul.f32 %v3716, %v3605
        %v3759 = vmul.f32 %v3721, %v3606
        %v3760 = vmul.f32 %v3724, %v3607
        %v3761 = vmul.f32 %v3729, %v3608
        %v3762 = vmul.f32 %v3732, %v3609
        %v3763 = vmul.f32 %v3737, %v3610
        %v3764 = vmul.f32 %v3740, %v3611
        %v3765 = vmul.f32 %v3745, %v3612
        %v3766 = vmul.f32 %v3748, %v3613
        %v3767 = vadd.f32 %v3241, %v3751
        %v3768 = vadd.f32 %v3242, %v3752
        %v3769 = vadd.f32 %v3243, %v3753
        %v3770 = vadd.f32 %v3244, %v3754
        %v3771 = vadd.f32 %v3245, %v3755
        %v3772 = vadd.f32 %v3246, %v3756
        %v3773 = vadd.f32 %v3247, %v3757
        %v3774 = vadd.f32 %v3248, %v3758
        %v3775 = vadd.f32 %v3249, %v3759
        %v3776 = vadd.f32 %v3250, %v3760
        %v3777 = vadd.f32 %v3251, %v3761
        %v3778 = vadd.f32 %v3252, %v3762
        %v3779 = vadd.f32 %v3253, %v3763
        %v3780 = vadd.f32 %v3254, %v3764
        %v3781 = vadd.f32 %v3255, %v3765
        %v3782 = vadd.f32 %v3256, %v3766
        %3783 = vset.pattern.permute.xlu0 101
        %3784 = vperm.xlu0 %3783, %v2609
        %v3785 = vpop.permute.xlu0 %3784
        %3787 = vset.pattern.permute.xlu0 101
        %3788 = vperm.xlu0 %3787, %v2612
        %v3789 = vpop.permute.xlu0 %3788
        %3791 = vset.pattern.permute.xlu0 101
        %3792 = vperm.xlu0 %3791, %v2617
        %v3793 = vpop.permute.xlu0 %3792
        %3795 = vset.pattern.permute.xlu0 101
        %3796 = vperm.xlu0 %3795, %v2620
        %v3797 = vpop.permute.xlu0 %3796
        %3799 = vset.pattern.permute.xlu0 101
        %3800 = vperm.xlu0 %3799, %v2625
        %v3801 = vpop.permute.xlu0 %3800
        %3803 = vset.pattern.permute.xlu0 101
        %3804 = vperm.xlu0 %3803, %v2628
        %v3805 = vpop.permute.xlu0 %3804
        %3807 = vset.pattern.permute.xlu0 101
        %3808 = vperm.xlu0 %3807, %v2633
        %v3809 = vpop.permute.xlu0 %3808
        %3811 = vset.pattern.permute.xlu0 101
        %3812 = vperm.xlu0 %3811, %v2636
        %v3813 = vpop.permute.xlu0 %3812
        %3815 = vset.pattern.permute.xlu0 101
        %3816 = vperm.xlu0 %3815, %v2641
        %v3817 = vpop.permute.xlu0 %3816
        %3819 = vset.pattern.permute.xlu0 101
        %3820 = vperm.xlu0 %3819, %v2644
        %v3821 = vpop.permute.xlu0 %3820
        %3823 = vset.pattern.permute.xlu0 101
        %3824 = vperm.xlu0 %3823, %v2649
        %v3825 = vpop.permute.xlu0 %3824
        %3827 = vset.pattern.permute.xlu0 101
        %3828 = vperm.xlu0 %3827, %v2652
        %v3829 = vpop.permute.xlu0 %3828
        %3831 = vset.pattern.permute.xlu0 101
        %3832 = vperm.xlu0 %3831, %v2657
        %v3833 = vpop.permute.xlu0 %3832
        %3835 = vset.pattern.permute.xlu0 101
        %3836 = vperm.xlu0 %3835, %v2660
        %v3837 = vpop.permute.xlu0 %3836
        %3839 = vset.pattern.permute.xlu0 101
        %3840 = vperm.xlu0 %3839, %v2665
        %v3841 = vpop.permute.xlu0 %3840
        %3843 = vset.pattern.permute.xlu0 101
        %3844 = vperm.xlu0 %3843, %v2668
        %v3845 = vpop.permute.xlu0 %3844
        %v3847 = vsel %vm384, %v3785, 0.0
        %v3848 = vsel %vm385, %v3789, 0.0
        %v3849 = vsel %vm386, %v3793, 0.0
        %v3850 = vsel %vm387, %v3797, 0.0
        %v3851 = vsel %vm388, %v3801, 0.0
        %v3852 = vsel %vm389, %v3805, 0.0
        %v3853 = vsel %vm390, %v3809, 0.0
        %v3854 = vsel %vm391, %v3813, 0.0
        %v3855 = vsel %vm392, %v3817, 0.0
        %v3856 = vsel %vm393, %v3821, 0.0
        %v3857 = vsel %vm394, %v3825, 0.0
        %v3858 = vsel %vm395, %v3829, 0.0
        %v3859 = vsel %vm396, %v3833, 0.0
        %v3860 = vsel %vm397, %v3837, 0.0
        %v3861 = vsel %vm398, %v3841, 0.0
        %v3862 = vsel %vm399, %v3845, 0.0
        %v3863 = vadd.f32 %v3847, %v3848
        %v3864 = vadd.f32 %v3863, %v3849
        %v3865 = vadd.f32 %v3864, %v3850
        %v3866 = vadd.f32 %v3865, %v3851
        %v3867 = vadd.f32 %v3866, %v3852
        %v3868 = vadd.f32 %v3867, %v3853
        %v3869 = vadd.f32 %v3868, %v3854
        %v3870 = vadd.f32 %v3869, %v3855
        %v3871 = vadd.f32 %v3870, %v3856
        %v3872 = vadd.f32 %v3871, %v3857
        %v3873 = vadd.f32 %v3872, %v3858
        %v3874 = vadd.f32 %v3873, %v3859
        %v3875 = vadd.f32 %v3874, %v3860
        %v3876 = vadd.f32 %v3875, %v3861
        %v3877 = vadd.f32 %v3876, %v3862
        %v3878 = vrot.slane %v3877, 4
        %v3879 = vadd.f32 %v3877, %v3878
        %v3880 = vrot.slane %v3879, 2
        %v3881 = vadd.f32 %v3879, %v3880
        %v3882 = vrot.slane %v3881, 1
        %v3883 = vadd.f32 %v3881, %v3882
        %3884 = vset.pattern.permute.xlu0 98
        %3885 = vperm.xlu0 %3884, %v2609
        %v3886 = vpop.permute.xlu0 %3885
        %3888 = vset.pattern.permute.xlu0 98
        %3889 = vperm.xlu0 %3888, %v2612
        %v3890 = vpop.permute.xlu0 %3889
        %3892 = vset.pattern.permute.xlu0 98
        %3893 = vperm.xlu0 %3892, %v2617
        %v3894 = vpop.permute.xlu0 %3893
        %3896 = vset.pattern.permute.xlu0 98
        %3897 = vperm.xlu0 %3896, %v2620
        %v3898 = vpop.permute.xlu0 %3897
        %3900 = vset.pattern.permute.xlu0 98
        %3901 = vperm.xlu0 %3900, %v2625
        %v3902 = vpop.permute.xlu0 %3901
        %3904 = vset.pattern.permute.xlu0 98
        %3905 = vperm.xlu0 %3904, %v2628
        %v3906 = vpop.permute.xlu0 %3905
        %3908 = vset.pattern.permute.xlu0 98
        %3909 = vperm.xlu0 %3908, %v2633
        %v3910 = vpop.permute.xlu0 %3909
        %3912 = vset.pattern.permute.xlu0 98
        %3913 = vperm.xlu0 %3912, %v2636
        %v3914 = vpop.permute.xlu0 %3913
        %3916 = vset.pattern.permute.xlu0 98
        %3917 = vperm.xlu0 %3916, %v2641
        %v3918 = vpop.permute.xlu0 %3917
        %3920 = vset.pattern.permute.xlu0 98
        %3921 = vperm.xlu0 %3920, %v2644
        %v3922 = vpop.permute.xlu0 %3921
        %3924 = vset.pattern.permute.xlu0 98
        %3925 = vperm.xlu0 %3924, %v2649
        %v3926 = vpop.permute.xlu0 %3925
        %3928 = vset.pattern.permute.xlu0 98
        %3929 = vperm.xlu0 %3928, %v2652
        %v3930 = vpop.permute.xlu0 %3929
        %3932 = vset.pattern.permute.xlu0 98
        %3933 = vperm.xlu0 %3932, %v2657
        %v3934 = vpop.permute.xlu0 %3933
        %3936 = vset.pattern.permute.xlu0 98
        %3937 = vperm.xlu0 %3936, %v2660
        %v3938 = vpop.permute.xlu0 %3937
        %3940 = vset.pattern.permute.xlu0 98
        %3941 = vperm.xlu0 %3940, %v2665
        %v3942 = vpop.permute.xlu0 %3941
        %3944 = vset.pattern.permute.xlu0 98
        %3945 = vperm.xlu0 %3944, %v2668
        %v3946 = vpop.permute.xlu0 %3945
        %v3948 = vadd.f32 %v3886, %v3883
        %v3949 = vadd.f32 %v3890, %v3883
        %v3950 = vadd.f32 %v3894, %v3883
        %v3951 = vadd.f32 %v3898, %v3883
        %v3952 = vadd.f32 %v3902, %v3883
        %v3953 = vadd.f32 %v3906, %v3883
        %v3954 = vadd.f32 %v3910, %v3883
        %v3955 = vadd.f32 %v3914, %v3883
        %v3956 = vadd.f32 %v3918, %v3883
        %v3957 = vadd.f32 %v3922, %v3883
        %v3958 = vadd.f32 %v3926, %v3883
        %v3959 = vadd.f32 %v3930, %v3883
        %v3960 = vadd.f32 %v3934, %v3883
        %v3961 = vadd.f32 %v3938, %v3883
        %v3962 = vadd.f32 %v3942, %v3883
        %v3963 = vadd.f32 %v3946, %v3883
        %v3964 = vmul.f32 %v3948, 0.2
        %v3965 = vmul.f32 %v3949, 0.2
        %v3966 = vmul.f32 %v3950, 0.2
        %v3967 = vmul.f32 %v3951, 0.2
        %v3968 = vmul.f32 %v3952, 0.2
        %v3969 = vmul.f32 %v3953, 0.2
        %v3970 = vmul.f32 %v3954, 0.2
        %v3971 = vmul.f32 %v3955, 0.2
        %v3972 = vmul.f32 %v3956, 0.2
        %v3973 = vmul.f32 %v3957, 0.2
        %v3974 = vmul.f32 %v3958, 0.2
        %v3975 = vmul.f32 %v3959, 0.2
        %v3976 = vmul.f32 %v3960, 0.2
        %v3977 = vmul.f32 %v3961, 0.2
        %v3978 = vmul.f32 %v3962, 0.2
        %v3979 = vmul.f32 %v3963, 0.2
        %v3980 = vmax.f32 %v3948, %v3964
        %v3981 = vmax.f32 %v3949, %v3965
        %v3982 = vmax.f32 %v3950, %v3966
        %v3983 = vmax.f32 %v3951, %v3967
        %v3984 = vmax.f32 %v3952, %v3968
        %v3985 = vmax.f32 %v3953, %v3969
        %v3986 = vmax.f32 %v3954, %v3970
        %v3987 = vmax.f32 %v3955, %v3971
        %v3988 = vmax.f32 %v3956, %v3972
        %v3989 = vmax.f32 %v3957, %v3973
        %v3990 = vmax.f32 %v3958, %v3974
        %v3991 = vmax.f32 %v3959, %v3975
        %v3992 = vmax.f32 %v3960, %v3976
        %v3993 = vmax.f32 %v3961, %v3977
        %v3994 = vmax.f32 %v3962, %v3978
        %v3995 = vmax.f32 %v3963, %v3979
        %v3996 = vsel %vm2720, %v3980, -1e+30
        %v3997 = vsel %vm2721, %v3981, -1e+30
        %v3998 = vsel %vm2722, %v3982, -1e+30
        %v3999 = vsel %vm2723, %v3983, -1e+30
        %v4000 = vsel %vm2724, %v3984, -1e+30
        %v4001 = vsel %vm2725, %v3985, -1e+30
        %v4002 = vsel %vm2726, %v3986, -1e+30
        %v4003 = vsel %vm2727, %v3987, -1e+30
        %v4004 = vsel %vm2728, %v3988, -1e+30
        %v4005 = vsel %vm2729, %v3989, -1e+30
        %v4006 = vsel %vm2730, %v3990, -1e+30
        %v4007 = vsel %vm2731, %v3991, -1e+30
        %v4008 = vsel %vm2732, %v3992, -1e+30
        %v4009 = vsel %vm2733, %v3993, -1e+30
        %v4010 = vsel %vm2734, %v3994, -1e+30
        %v4011 = vsel %vm2735, %v3995, -1e+30
        %4012 = vmax.xlane.f32.xlu0 %v3996
        %v4013 = vpop.xlane.xlu0 %4012
        %4014 = vmax.xlane.f32.xlu0 %v3997
        %v4015 = vpop.xlane.xlu0 %4014
        %4016 = vmax.xlane.f32.xlu0 %v3998
        %v4017 = vpop.xlane.xlu0 %4016
        %4018 = vmax.xlane.f32.xlu0 %v3999
        %v4019 = vpop.xlane.xlu0 %4018
        %4020 = vmax.xlane.f32.xlu0 %v4000
        %v4021 = vpop.xlane.xlu0 %4020
        %4022 = vmax.xlane.f32.xlu0 %v4001
        %v4023 = vpop.xlane.xlu0 %4022
        %4024 = vmax.xlane.f32.xlu0 %v4002
        %v4025 = vpop.xlane.xlu0 %4024
        %4026 = vmax.xlane.f32.xlu0 %v4003
        %v4027 = vpop.xlane.xlu0 %4026
        %4028 = vmax.xlane.f32.xlu0 %v4004
        %v4029 = vpop.xlane.xlu0 %4028
        %4030 = vmax.xlane.f32.xlu0 %v4005
        %v4031 = vpop.xlane.xlu0 %4030
        %4032 = vmax.xlane.f32.xlu0 %v4006
        %v4033 = vpop.xlane.xlu0 %4032
        %4034 = vmax.xlane.f32.xlu0 %v4007
        %v4035 = vpop.xlane.xlu0 %4034
        %4036 = vmax.xlane.f32.xlu0 %v4008
        %v4037 = vpop.xlane.xlu0 %4036
        %4038 = vmax.xlane.f32.xlu0 %v4009
        %v4039 = vpop.xlane.xlu0 %4038
        %4040 = vmax.xlane.f32.xlu0 %v4010
        %v4041 = vpop.xlane.xlu0 %4040
        %4042 = vmax.xlane.f32.xlu0 %v4011
        %v4043 = vpop.xlane.xlu0 %4042
        %v4044 = vsub.f32 %v3996, %v4013
        %v4045 = vsub.f32 %v3997, %v4015
        %v4046 = vsub.f32 %v3998, %v4017
        %v4047 = vsub.f32 %v3999, %v4019
        %v4048 = vsub.f32 %v4000, %v4021
        %v4049 = vsub.f32 %v4001, %v4023
        %v4050 = vsub.f32 %v4002, %v4025
        %v4051 = vsub.f32 %v4003, %v4027
        %v4052 = vsub.f32 %v4004, %v4029
        %v4053 = vsub.f32 %v4005, %v4031
        %v4054 = vsub.f32 %v4006, %v4033
        %v4055 = vsub.f32 %v4007, %v4035
        %v4056 = vsub.f32 %v4008, %v4037
        %v4057 = vsub.f32 %v4009, %v4039
        %v4058 = vsub.f32 %v4010, %v4041
        %v4059 = vsub.f32 %v4011, %v4043
        %v4060 = vmul.f32 %v4044, 1.442695
        %v4061 = vpow.pop %v4060
        %v4062 = vmul.f32 %v4045, 1.442695
        %v4063 = vpow.pop %v4062
        %v4064 = vmul.f32 %v4046, 1.442695
        %v4065 = vpow.pop %v4064
        %v4066 = vmul.f32 %v4047, 1.442695
        %v4067 = vpow.pop %v4066
        %v4068 = vmul.f32 %v4048, 1.442695
        %v4069 = vpow.pop %v4068
        %v4070 = vmul.f32 %v4049, 1.442695
        %v4071 = vpow.pop %v4070
        %v4072 = vmul.f32 %v4050, 1.442695
        %v4073 = vpow.pop %v4072
        %v4074 = vmul.f32 %v4051, 1.442695
        %v4075 = vpow.pop %v4074
        %v4076 = vmul.f32 %v4052, 1.442695
        %v4077 = vpow.pop %v4076
        %v4078 = vmul.f32 %v4053, 1.442695
        %v4079 = vpow.pop %v4078
        %v4080 = vmul.f32 %v4054, 1.442695
        %v4081 = vpow.pop %v4080
        %v4082 = vmul.f32 %v4055, 1.442695
        %v4083 = vpow.pop %v4082
        %v4084 = vmul.f32 %v4056, 1.442695
        %v4085 = vpow.pop %v4084
        %v4086 = vmul.f32 %v4057, 1.442695
        %v4087 = vpow.pop %v4086
        %v4088 = vmul.f32 %v4058, 1.442695
        %v4089 = vpow.pop %v4088
        %v4090 = vmul.f32 %v4059, 1.442695
        %v4091 = vpow.pop %v4090
        %4092 = vadd.xlane.f32.xlu0 %v4061
        %v4093 = vpop.xlane.xlu0 %4092
        %4094 = vadd.xlane.f32.xlu0 %v4063
        %v4095 = vpop.xlane.xlu0 %4094
        %4096 = vadd.xlane.f32.xlu0 %v4065
        %v4097 = vpop.xlane.xlu0 %4096
        %4098 = vadd.xlane.f32.xlu0 %v4067
        %v4099 = vpop.xlane.xlu0 %4098
        %4100 = vadd.xlane.f32.xlu0 %v4069
        %v4101 = vpop.xlane.xlu0 %4100
        %4102 = vadd.xlane.f32.xlu0 %v4071
        %v4103 = vpop.xlane.xlu0 %4102
        %4104 = vadd.xlane.f32.xlu0 %v4073
        %v4105 = vpop.xlane.xlu0 %4104
        %4106 = vadd.xlane.f32.xlu0 %v4075
        %v4107 = vpop.xlane.xlu0 %4106
        %4108 = vadd.xlane.f32.xlu0 %v4077
        %v4109 = vpop.xlane.xlu0 %4108
        %4110 = vadd.xlane.f32.xlu0 %v4079
        %v4111 = vpop.xlane.xlu0 %4110
        %4112 = vadd.xlane.f32.xlu0 %v4081
        %v4113 = vpop.xlane.xlu0 %4112
        %4114 = vadd.xlane.f32.xlu0 %v4083
        %v4115 = vpop.xlane.xlu0 %4114
        %4116 = vadd.xlane.f32.xlu0 %v4085
        %v4117 = vpop.xlane.xlu0 %4116
        %4118 = vadd.xlane.f32.xlu0 %v4087
        %v4119 = vpop.xlane.xlu0 %4118
        %4120 = vadd.xlane.f32.xlu0 %v4089
        %v4121 = vpop.xlane.xlu0 %4120
        %4122 = vadd.xlane.f32.xlu0 %v4091
        %v4123 = vpop.xlane.xlu0 %4122
        %v4124 = vrcp.pop %v4093
        %v4125 = vrcp.pop %v4095
        %v4126 = vrcp.pop %v4097
        %v4127 = vrcp.pop %v4099
        %v4128 = vrcp.pop %v4101
        %v4129 = vrcp.pop %v4103
        %v4130 = vrcp.pop %v4105
        %v4131 = vrcp.pop %v4107
        %v4132 = vrcp.pop %v4109
        %v4133 = vrcp.pop %v4111
        %v4134 = vrcp.pop %v4113
        %v4135 = vrcp.pop %v4115
        %v4136 = vrcp.pop %v4117
        %v4137 = vrcp.pop %v4119
        %v4138 = vrcp.pop %v4121
        %v4139 = vrcp.pop %v4123
        %v4140 = vpack.c.bf16 %v4063, %v4061
        %v4141 = vpack.c.bf16 %v4067, %v4065
        %v4142 = vpack.c.bf16 %v4071, %v4069
        %v4143 = vpack.c.bf16 %v4075, %v4073
        %v4144 = vpack.c.bf16 %v4079, %v4077
        %v4145 = vpack.c.bf16 %v4083, %v4081
        %v4146 = vpack.c.bf16 %v4087, %v4085
        %v4147 = vpack.c.bf16 %v4091, %v4089
        %4148 = vrot.lane.b32.xlu0 %v2739, 64
        %v4149 = vpop.permute.xlu0 %4148
        %4150 = vrot.lane.b32.xlu0 %v2740, 64
        %v4151 = vpop.permute.xlu0 %4150
        %4152 = vrot.lane.b32.xlu0 %v2741, 64
        %v4153 = vpop.permute.xlu0 %4152
        %4154 = vrot.lane.b32.xlu0 %v2742, 64
        %v4155 = vpop.permute.xlu0 %4154
        %4156 = vrot.lane.b32.xlu0 %v2743, 64
        %v4157 = vpop.permute.xlu0 %4156
        %4158 = vrot.lane.b32.xlu0 %v2744, 64
        %v4159 = vpop.permute.xlu0 %4158
        %4160 = vrot.lane.b32.xlu0 %v2745, 64
        %v4161 = vpop.permute.xlu0 %4160
        %4162 = vrot.lane.b32.xlu0 %v2746, 64
        %v4163 = vpop.permute.xlu0 %4162
        %4172 = vmatprep.subr.bf16.mxu0 0
        %4173 = vmatpush1.bf16.msra.mxu0 %v4149
        %4174 = vmatprep.subr.bf16.mxu0 0
        %4175 = vmatpush1.bf16.msra.mxu0 %v4151
        %4176 = vmatprep.subr.bf16.mxu0 0
        %4177 = vmatpush1.bf16.msra.mxu0 %v4153
        %4178 = vmatprep.subr.bf16.mxu0 0
        %4179 = vmatpush1.bf16.msra.mxu0 %v4155
        %4180 = vmatprep.subr.bf16.mxu0 0
        %4181 = vmatpush1.bf16.msra.mxu0 %v4157
        %4182 = vmatprep.subr.bf16.mxu0 0
        %4183 = vmatpush1.bf16.msra.mxu0 %v4159
        %4184 = vmatprep.subr.bf16.mxu0 0
        %4185 = vmatpush1.bf16.msra.mxu0 %v4161
        %4186 = vmatprep.subr.bf16.mxu0 0
        %4187 = vmatpush1.bf16.msra.mxu0 %v4163
        %4188 = vmatprep.subr.bf16.mxu0 0
        %4189 = vmatpush1.bf16.msra.mxu0 0
        %4190 = vmatprep.subr.bf16.mxu0 0
        %4191 = vmatpush1.bf16.msra.mxu0 0
        %4192 = vmatprep.subr.bf16.mxu0 0
        %4193 = vmatpush1.bf16.msra.mxu0 0
        %4194 = vmatprep.subr.bf16.mxu0 0
        %4195 = vmatpush1.bf16.msra.mxu0 0
        %4196 = vmatprep.subr.bf16.mxu0 0
        %4197 = vmatpush1.bf16.msra.mxu0 0
        %4198 = vmatprep.subr.bf16.mxu0 0
        %4199 = vmatpush1.bf16.msra.mxu0 0
        %4200 = vmatprep.subr.bf16.mxu0 0
        %4201 = vmatpush1.bf16.msra.mxu0 0
        %4202 = vmatprep.subr.bf16.mxu0 0
        %4203 = vmatpush1.bf16.msra.mxu0 0
        %4204 = vmatprep.mubr.bf16.mxu0 0
        %4205 = vmatmul.mubr.bf16.gmra.mrb[0].mxu0 %v4140
        %v4206 = vpop.f32.mrb[0].mxu0
        %v4207 = vadd.f32 0.0, %v4206
        %v4208 = vpop.f32.mrb[0].mxu0
        %v4209 = vpop.f32.mrb[0].mxu0
        %v4210 = vadd.f32 0.0, %v4209
        %v4211 = vpop.f32.mrb[0].mxu0
        %4212 = vmatprep.mubr.bf16.mxu0 0
        %4213 = vmatmul.mubr.bf16.gmra.mrb[0].mxu0 %v4141
        %v4214 = vpop.f32.mrb[0].mxu0
        %v4215 = vadd.f32 0.0, %v4214
        %v4216 = vpop.f32.mrb[0].mxu0
        %v4217 = vpop.f32.mrb[0].mxu0
        %v4218 = vadd.f32 0.0, %v4217
        %v4219 = vpop.f32.mrb[0].mxu0
        %4220 = vmatprep.mubr.bf16.mxu0 0
        %4221 = vmatmul.mubr.bf16.gmra.mrb[0].mxu0 %v4142
        %v4222 = vpop.f32.mrb[0].mxu0
        %v4223 = vadd.f32 0.0, %v4222
        %v4224 = vpop.f32.mrb[0].mxu0
        %v4225 = vpop.f32.mrb[0].mxu0
        %v4226 = vadd.f32 0.0, %v4225
        %v4227 = vpop.f32.mrb[0].mxu0
        %4228 = vmatprep.mubr.bf16.mxu0 0
        %4229 = vmatmul.mubr.bf16.gmra.mrb[0].mxu0 %v4143
        %v4230 = vpop.f32.mrb[0].mxu0
        %v4231 = vadd.f32 0.0, %v4230
        %v4232 = vpop.f32.mrb[0].mxu0
        %v4233 = vpop.f32.mrb[0].mxu0
        %v4234 = vadd.f32 0.0, %v4233
        %v4235 = vpop.f32.mrb[0].mxu0
        %4236 = vmatprep.mubr.bf16.mxu0 0
        %4237 = vmatmul.mubr.bf16.gmra.mrb[0].mxu0 %v4144
        %v4238 = vpop.f32.mrb[0].mxu0
        %v4239 = vadd.f32 0.0, %v4238
        %v4240 = vpop.f32.mrb[0].mxu0
        %v4241 = vpop.f32.mrb[0].mxu0
        %v4242 = vadd.f32 0.0, %v4241
        %v4243 = vpop.f32.mrb[0].mxu0
        %4244 = vmatprep.mubr.bf16.mxu0 0
        %4245 = vmatmul.mubr.bf16.gmra.mrb[0].mxu0 %v4145
        %v4246 = vpop.f32.mrb[0].mxu0
        %v4247 = vadd.f32 0.0, %v4246
        %v4248 = vpop.f32.mrb[0].mxu0
        %v4249 = vpop.f32.mrb[0].mxu0
        %v4250 = vadd.f32 0.0, %v4249
        %v4251 = vpop.f32.mrb[0].mxu0
        %4252 = vmatprep.mubr.bf16.mxu0 0
        %4253 = vmatmul.mubr.bf16.gmra.mrb[0].mxu0 %v4146
        %v4254 = vpop.f32.mrb[0].mxu0
        %v4255 = vadd.f32 0.0, %v4254
        %v4256 = vpop.f32.mrb[0].mxu0
        %v4257 = vpop.f32.mrb[0].mxu0
        %v4258 = vadd.f32 0.0, %v4257
        %v4259 = vpop.f32.mrb[0].mxu0
        %4260 = vmatprep.mubr.bf16.mxu0 0
        %4261 = vmatmul.mubr.bf16.gmra.mrb[0].mxu0 %v4147
        %v4262 = vpop.f32.mrb[0].mxu0
        %v4263 = vadd.f32 0.0, %v4262
        %v4264 = vpop.f32.mrb[0].mxu0
        %v4265 = vpop.f32.mrb[0].mxu0
        %v4266 = vadd.f32 0.0, %v4265
        %v4267 = vpop.f32.mrb[0].mxu0
        %4268 = vdwg.mxu0
        %v4269 = vmul.f32 %v4207, %v4124
        %v4270 = vmul.f32 %v4210, %v4125
        %v4271 = vmul.f32 %v4215, %v4126
        %v4272 = vmul.f32 %v4218, %v4127
        %v4273 = vmul.f32 %v4223, %v4128
        %v4274 = vmul.f32 %v4226, %v4129
        %v4275 = vmul.f32 %v4231, %v4130
        %v4276 = vmul.f32 %v4234, %v4131
        %v4277 = vmul.f32 %v4239, %v4132
        %v4278 = vmul.f32 %v4242, %v4133
        %v4279 = vmul.f32 %v4247, %v4134
        %v4280 = vmul.f32 %v4250, %v4135
        %v4281 = vmul.f32 %v4255, %v4136
        %v4282 = vmul.f32 %v4258, %v4137
        %v4283 = vmul.f32 %v4263, %v4138
        %v4284 = vmul.f32 %v4266, %v4139
        %v4285 = vadd.f32 %v3767, %v4269
        %v4286 = vadd.f32 %v3768, %v4270
        %v4287 = vadd.f32 %v3769, %v4271
        %v4288 = vadd.f32 %v3770, %v4272
        %v4289 = vadd.f32 %v3771, %v4273
        %v4290 = vadd.f32 %v3772, %v4274
        %v4291 = vadd.f32 %v3773, %v4275
        %v4292 = vadd.f32 %v3774, %v4276
        %v4293 = vadd.f32 %v3775, %v4277
        %v4294 = vadd.f32 %v3776, %v4278
        %v4295 = vadd.f32 %v3777, %v4279
        %v4296 = vadd.f32 %v3778, %v4280
        %v4297 = vadd.f32 %v3779, %v4281
        %v4298 = vadd.f32 %v3780, %v4282
        %v4299 = vadd.f32 %v3781, %v4283
        %v4300 = vadd.f32 %v3782, %v4284
        %v4301 = vmul.f32 %v4285, 0.33333334
        %v4302 = vmul.f32 %v4286, 0.33333334
        %v4303 = vmul.f32 %v4287, 0.33333334
        %v4304 = vmul.f32 %v4288, 0.33333334
        %v4305 = vmul.f32 %v4289, 0.33333334
        %v4306 = vmul.f32 %v4290, 0.33333334
        %v4307 = vmul.f32 %v4291, 0.33333334
        %v4308 = vmul.f32 %v4292, 0.33333334
        %v4309 = vmul.f32 %v4293, 0.33333334
        %v4310 = vmul.f32 %v4294, 0.33333334
        %v4311 = vmul.f32 %v4295, 0.33333334
        %v4312 = vmul.f32 %v4296, 0.33333334
        %v4313 = vmul.f32 %v4297, 0.33333334
        %v4314 = vmul.f32 %v4298, 0.33333334
        %v4315 = vmul.f32 %v4299, 0.33333334
        %v4316 = vmul.f32 %v4300, 0.33333334
        %v4318 = vlaneseq
        %v4319 = vshrl.u32 %v4318, 7
        %v4320 = vsub.s32 0, %v4319
        %v4321 = vrot.slane %v2738, %v4320
        %v4323 = vadd.f32 %v4301, %v4321
        %v4324 = vadd.f32 %v4302, %v4321
        %v4325 = vadd.f32 %v4303, %v4321
        %v4326 = vadd.f32 %v4304, %v4321
        %v4327 = vadd.f32 %v4305, %v4321
        %v4328 = vadd.f32 %v4306, %v4321
        %v4329 = vadd.f32 %v4307, %v4321
        %v4330 = vadd.f32 %v4308, %v4321
        %v4331 = vadd.f32 %v4309, %v4321
        %v4332 = vadd.f32 %v4310, %v4321
        %v4333 = vadd.f32 %v4311, %v4321
        %v4334 = vadd.f32 %v4312, %v4321
        %v4335 = vadd.f32 %v4313, %v4321
        %v4336 = vadd.f32 %v4314, %v4321
        %v4337 = vadd.f32 %v4315, %v4321
        %v4338 = vadd.f32 %v4316, %v4321
        %v4339 = vstv %s2736
        %v4340 = vmul.f32 %v4323, %v4339
        %v4341 = vmul.f32 %v4324, %v4339
        %v4342 = vmul.f32 %v4325, %v4339
        %v4343 = vmul.f32 %v4326, %v4339
        %v4344 = vmul.f32 %v4327, %v4339
        %v4345 = vmul.f32 %v4328, %v4339
        %v4346 = vmul.f32 %v4329, %v4339
        %v4347 = vmul.f32 %v4330, %v4339
        %v4348 = vmul.f32 %v4331, %v4339
        %v4349 = vmul.f32 %v4332, %v4339
        %v4350 = vmul.f32 %v4333, %v4339
        %v4351 = vmul.f32 %v4334, %v4339
        %v4352 = vmul.f32 %v4335, %v4339
        %v4353 = vmul.f32 %v4336, %v4339
        %v4354 = vmul.f32 %v4337, %v4339
        %v4355 = vmul.f32 %v4338, %v4339
        %v4356 = vmax.f32 %v4340, 0.0
        %v4357 = vmax.f32 %v4341, 0.0
        %v4358 = vmax.f32 %v4342, 0.0
        %v4359 = vmax.f32 %v4343, 0.0
        %v4360 = vmax.f32 %v4344, 0.0
        %v4361 = vmax.f32 %v4345, 0.0
        %v4362 = vmax.f32 %v4346, 0.0
        %v4363 = vmax.f32 %v4347, 0.0
        %v4364 = vmax.f32 %v4348, 0.0
        %v4365 = vmax.f32 %v4349, 0.0
        %v4366 = vmax.f32 %v4350, 0.0
        %v4367 = vmax.f32 %v4351, 0.0
        %v4368 = vmax.f32 %v4352, 0.0
        %v4369 = vmax.f32 %v4353, 0.0
        %v4370 = vmax.f32 %v4354, 0.0
        %v4371 = vmax.f32 %v4355, 0.0
        %v4372 = vadd.f32 %v2510, %v4356
        %v4373 = vadd.f32 %v2511, %v4357
        %v4374 = vadd.f32 %v2512, %v4358
        %v4375 = vadd.f32 %v2513, %v4359
        %v4376 = vadd.f32 %v2514, %v4360
        %v4377 = vadd.f32 %v2515, %v4361
        %v4378 = vadd.f32 %v2516, %v4362
        %v4379 = vadd.f32 %v2517, %v4363
        %v4380 = vadd.f32 %v2518, %v4364
        %v4381 = vadd.f32 %v2519, %v4365
        %v4382 = vadd.f32 %v2520, %v4366
        %v4383 = vadd.f32 %v2521, %v4367
        %v4384 = vadd.f32 %v2522, %v4368
        %v4385 = vadd.f32 %v2523, %v4369
        %v4386 = vadd.f32 %v2524, %v4370
        %v4387 = vadd.f32 %v2525, %v4371
        %v4388 = vld [vmem:[%s5 + $0x4] sm:$0xf]
        %v4389 = vld [vmem:[%s5 + $0x10] sm:$0xf]
        %v4390 = vld [vmem:[%s5 + $0x1c] sm:$0xf]
        %v4391 = vld [vmem:[%s5 + $0x28] sm:$0xf]
        %v4396 = vunpack.c.l.b16 %v4388
        %v4397 = vunpack.c.l.b16 %v4389
        %v4398 = vunpack.c.l.b16 %v4390
        %v4399 = vunpack.c.l.b16 %v4391
        %v4400 = vpack.c.b16 %v4397, %v4396
        %v4401 = vpack.c.b16 %v4399, %v4398
        %4404 = vmatprep.subr.bf16.mxu0 0
        %4405 = vmatpush1.bf16.msra.mxu0 %v4400
        %4406 = vmatprep.subr.bf16.mxu0 0
        %4407 = vmatpush1.bf16.msra.mxu0 %v4401
        %4408 = vmatprep.subr.bf16.mxu0 0
        %4409 = vmatpush1.bf16.msra.mxu0 0
        %4410 = vmatprep.subr.bf16.mxu0 0
        %4411 = vmatpush1.bf16.msra.mxu0 0
        %4412 = vmatprep.subr.bf16.mxu0 0
        %4413 = vmatpush1.bf16.msra.mxu0 0
        %4414 = vmatprep.subr.bf16.mxu0 0
        %4415 = vmatpush1.bf16.msra.mxu0 0
        %4416 = vmatprep.subr.bf16.mxu0 0
        %4417 = vmatpush1.bf16.msra.mxu0 0
        %4418 = vmatprep.subr.bf16.mxu0 0
        %4419 = vmatpush1.bf16.msra.mxu0 0
        %4420 = vmatprep.subr.bf16.mxu0 0
        %4421 = vmatpush1.bf16.msra.mxu0 0
        %4422 = vmatprep.subr.bf16.mxu0 0
        %4423 = vmatpush1.bf16.msra.mxu0 0
        %4424 = vmatprep.subr.bf16.mxu0 0
        %4425 = vmatpush1.bf16.msra.mxu0 0
        %4426 = vmatprep.subr.bf16.mxu0 0
        %4427 = vmatpush1.bf16.msra.mxu0 0
        %4428 = vmatprep.subr.bf16.mxu0 0
        %4429 = vmatpush1.bf16.msra.mxu0 0
        %4430 = vmatprep.subr.bf16.mxu0 0
        %4431 = vmatpush1.bf16.msra.mxu0 0
        %4432 = vmatprep.subr.bf16.mxu0 0
        %4433 = vmatpush1.bf16.msra.mxu0 0
        %4434 = vmatprep.subr.bf16.mxu0 0
        %4435 = vmatpush1.bf16.msra.mxu0 0
        %4436 = vmatprep.mubr.bf16.mxu0 0
        %4437 = vmatmul.mubr.bf16.gmra.mrb[0].mxu0 %v2551
        %v4438 = vpop.f32.mrb[0].mxu0
        %v4439 = vadd.f32 0.0, %v4438
        %v4440 = vpop.f32.mrb[0].mxu0
        %v4441 = vpop.f32.mrb[0].mxu0
        %v4442 = vadd.f32 0.0, %v4441
        %v4443 = vpop.f32.mrb[0].mxu0
        %4444 = vmatprep.mubr.bf16.mxu0 0
        %4445 = vmatmul.mubr.bf16.gmra.mrb[0].mxu0 %v2554
        %v4446 = vpop.f32.mrb[0].mxu0
        %v4447 = vadd.f32 0.0, %v4446
        %v4448 = vpop.f32.mrb[0].mxu0
        %v4449 = vpop.f32.mrb[0].mxu0
        %v4450 = vadd.f32 0.0, %v4449
        %v4451 = vpop.f32.mrb[0].mxu0
        %4452 = vmatprep.mubr.bf16.mxu0 0
        %4453 = vmatmul.mubr.bf16.gmra.mrb[0].mxu0 %v2557
        %v4454 = vpop.f32.mrb[0].mxu0
        %v4455 = vadd.f32 0.0, %v4454
        %v4456 = vpop.f32.mrb[0].mxu0
        %v4457 = vpop.f32.mrb[0].mxu0
        %v4458 = vadd.f32 0.0, %v4457
        %v4459 = vpop.f32.mrb[0].mxu0
        %4460 = vmatprep.mubr.bf16.mxu0 0
        %4461 = vmatmul.mubr.bf16.gmra.mrb[0].mxu0 %v2560
        %v4462 = vpop.f32.mrb[0].mxu0
        %v4463 = vadd.f32 0.0, %v4462
        %v4464 = vpop.f32.mrb[0].mxu0
        %v4465 = vpop.f32.mrb[0].mxu0
        %v4466 = vadd.f32 0.0, %v4465
        %v4467 = vpop.f32.mrb[0].mxu0
        %4468 = vmatprep.mubr.bf16.mxu0 0
        %4469 = vmatmul.mubr.bf16.gmra.mrb[0].mxu0 %v2563
        %v4470 = vpop.f32.mrb[0].mxu0
        %v4471 = vadd.f32 0.0, %v4470
        %v4472 = vpop.f32.mrb[0].mxu0
        %v4473 = vpop.f32.mrb[0].mxu0
        %v4474 = vadd.f32 0.0, %v4473
        %v4475 = vpop.f32.mrb[0].mxu0
        %4476 = vmatprep.mubr.bf16.mxu0 0
        %4477 = vmatmul.mubr.bf16.gmra.mrb[0].mxu0 %v2566
        %v4478 = vpop.f32.mrb[0].mxu0
        %v4479 = vadd.f32 0.0, %v4478
        %v4480 = vpop.f32.mrb[0].mxu0
        %v4481 = vpop.f32.mrb[0].mxu0
        %v4482 = vadd.f32 0.0, %v4481
        %v4483 = vpop.f32.mrb[0].mxu0
        %4484 = vmatprep.mubr.bf16.mxu0 0
        %4485 = vmatmul.mubr.bf16.gmra.mrb[0].mxu0 %v2569
        %v4486 = vpop.f32.mrb[0].mxu0
        %v4487 = vadd.f32 0.0, %v4486
        %v4488 = vpop.f32.mrb[0].mxu0
        %v4489 = vpop.f32.mrb[0].mxu0
        %v4490 = vadd.f32 0.0, %v4489
        %v4491 = vpop.f32.mrb[0].mxu0
        %4492 = vmatprep.mubr.bf16.mxu0 0
        %4493 = vmatmul.mubr.bf16.gmra.mrb[0].mxu0 %v2572
        %v4494 = vpop.f32.mrb[0].mxu0
        %v4495 = vadd.f32 0.0, %v4494
        %v4496 = vpop.f32.mrb[0].mxu0
        %v4497 = vpop.f32.mrb[0].mxu0
        %v4498 = vadd.f32 0.0, %v4497
        %v4499 = vpop.f32.mrb[0].mxu0
        %4500 = vdwg.mxu0
        %vm4501 = vcmp.ge.s32.totalorder %v366, %v2671
        %vm4502 = vcmp.ge.s32.totalorder %v367, %v2671
        %vm4503 = vcmp.ge.s32.totalorder %v368, %v2671
        %vm4504 = vcmp.ge.s32.totalorder %v369, %v2671
        %vm4505 = vcmp.ge.s32.totalorder %v370, %v2671
        %vm4506 = vcmp.ge.s32.totalorder %v371, %v2671
        %vm4507 = vcmp.ge.s32.totalorder %v372, %v2671
        %vm4508 = vcmp.ge.s32.totalorder %v373, %v2671
        %vm4509 = vcmp.ge.s32.totalorder %v374, %v2671
        %vm4510 = vcmp.ge.s32.totalorder %v375, %v2671
        %vm4511 = vcmp.ge.s32.totalorder %v376, %v2671
        %vm4512 = vcmp.ge.s32.totalorder %v377, %v2671
        %vm4513 = vcmp.ge.s32.totalorder %v378, %v2671
        %vm4514 = vcmp.ge.s32.totalorder %v379, %v2671
        %vm4515 = vcmp.ge.s32.totalorder %v380, %v2671
        %vm4516 = vcmp.ge.s32.totalorder %v381, %v2671
        %vm4517 = vcmp.lt.s32.totalorder %v366, %v416
        %vm4518 = vcmp.lt.s32.totalorder %v367, %v416
        %vm4519 = vcmp.lt.s32.totalorder %v368, %v416
        %vm4520 = vcmp.lt.s32.totalorder %v369, %v416
        %vm4521 = vcmp.lt.s32.totalorder %v370, %v416
        %vm4522 = vcmp.lt.s32.totalorder %v371, %v416
        %vm4523 = vcmp.lt.s32.totalorder %v372, %v416
        %vm4524 = vcmp.lt.s32.totalorder %v373, %v416
        %vm4525 = vcmp.lt.s32.totalorder %v374, %v416
        %vm4526 = vcmp.lt.s32.totalorder %v375, %v416
        %vm4527 = vcmp.lt.s32.totalorder %v376, %v416
        %vm4528 = vcmp.lt.s32.totalorder %v377, %v416
        %vm4529 = vcmp.lt.s32.totalorder %v378, %v416
        %vm4530 = vcmp.lt.s32.totalorder %v379, %v416
        %vm4531 = vcmp.lt.s32.totalorder %v380, %v416
        %vm4532 = vcmp.lt.s32.totalorder %v381, %v416
        %vm4533 = vmand %vm4501, %vm4517
        %vm4534 = vmand %vm4502, %vm4518
        %vm4535 = vmand %vm4503, %vm4519
        %vm4536 = vmand %vm4504, %vm4520
        %vm4537 = vmand %vm4505, %vm4521
        %vm4538 = vmand %vm4506, %vm4522
        %vm4539 = vmand %vm4507, %vm4523
        %vm4540 = vmand %vm4508, %vm4524
        %vm4541 = vmand %vm4509, %vm4525
        %vm4542 = vmand %vm4510, %vm4526
        %vm4543 = vmand %vm4511, %vm4527
        %vm4544 = vmand %vm4512, %vm4528
        %vm4545 = vmand %vm4513, %vm4529
        %vm4546 = vmand %vm4514, %vm4530
        %vm4547 = vmand %vm4515, %vm4531
        %vm4548 = vmand %vm4516, %vm4532
        %vm4549 = vmand %vm4533, %vm466
        %vm4550 = vmand %vm4534, %vm466
        %vm4551 = vmand %vm4535, %vm466
        %vm4552 = vmand %vm4536, %vm466
        %vm4553 = vmand %vm4537, %vm466
        %vm4554 = vmand %vm4538, %vm466
        %vm4555 = vmand %vm4539, %vm466
        %vm4556 = vmand %vm4540, %vm466
        %vm4557 = vmand %vm4541, %vm466
        %vm4558 = vmand %vm4542, %vm466
        %vm4559 = vmand %vm4543, %vm466
        %vm4560 = vmand %vm4544, %vm466
        %vm4561 = vmand %vm4545, %vm466
        %vm4562 = vmand %vm4546, %vm466
        %vm4563 = vmand %vm4547, %vm466
        %vm4564 = vmand %vm4548, %vm466
        %vm4565 = vmand %vm4549, %vm483
        %vm4566 = vmand %vm4550, %vm483
        %vm4567 = vmand %vm4551, %vm483
        %vm4568 = vmand %vm4552, %vm483
        %vm4569 = vmand %vm4553, %vm483
        %vm4570 = vmand %vm4554, %vm483
        %vm4571 = vmand %vm4555, %vm483
        %vm4572 = vmand %vm4556, %vm483
        %vm4573 = vmand %vm4557, %vm483
        %vm4574 = vmand %vm4558, %vm483
        %vm4575 = vmand %vm4559, %vm483
        %vm4576 = vmand %vm4560, %vm483
        %vm4577 = vmand %vm4561, %vm483
        %vm4578 = vmand %vm4562, %vm483
        %vm4579 = vmand %vm4563, %vm483
        %vm4580 = vmand %vm4564, %vm483
        %vm4581 = vmor %vm4565, %vm384
        %vm4582 = vmor %vm4566, %vm385
        %vm4583 = vmor %vm4567, %vm386
        %vm4584 = vmor %vm4568, %vm387
        %vm4585 = vmor %vm4569, %vm388
        %vm4586 = vmor %vm4570, %vm389
        %vm4587 = vmor %vm4571, %vm390
        %vm4588 = vmor %vm4572, %vm391
        %vm4589 = vmor %vm4573, %vm392
        %vm4590 = vmor %vm4574, %vm393
        %vm4591 = vmor %vm4575, %vm394
        %vm4592 = vmor %vm4576, %vm395
        %vm4593 = vmor %vm4577, %vm396
        %vm4594 = vmor %vm4578, %vm397
        %vm4595 = vmor %vm4579, %vm398
        %vm4596 = vmor %vm4580, %vm399
        %s4597 = sld [smem:[#allocation5 + %s363]]
        %s4598 = scalar_lea.vmem %s6, 2
        %v4599 = vld [vmem:[%s4598] sm:$0x1]
        %v4600 = vpack.c.bf16 %v4442, %v4439
        %v4601 = vpack.c.bf16 %v4450, %v4447
        %v4602 = vpack.c.bf16 %v4458, %v4455
        %v4603 = vpack.c.bf16 %v4466, %v4463
        %v4604 = vpack.c.bf16 %v4474, %v4471
        %v4605 = vpack.c.bf16 %v4482, %v4479
        %v4606 = vpack.c.bf16 %v4490, %v4487
        %v4607 = vpack.c.bf16 %v4498, %v4495
        %4609 = vset.pattern.permute.xlu0 99
        %4610 = vperm.xlu0 %4609, %v4439
        %v4611 = vpop.permute.xlu0 %4610
        %4614 = vset.pattern.permute.xlu0 99
        %4615 = vperm.xlu0 %4614, %v4442
        %v4616 = vpop.permute.xlu0 %4615
        %4619 = vset.pattern.permute.xlu0 99
        %4620 = vperm.xlu0 %4619, %v4447
        %v4621 = vpop.permute.xlu0 %4620
        %4624 = vset.pattern.permute.xlu0 99
        %4625 = vperm.xlu0 %4624, %v4450
        %v4626 = vpop.permute.xlu0 %4625
        %4629 = vset.pattern.permute.xlu0 99
        %4630 = vperm.xlu0 %4629, %v4455
        %v4631 = vpop.permute.xlu0 %4630
        %4634 = vset.pattern.permute.xlu0 99
        %4635 = vperm.xlu0 %4634, %v4458
        %v4636 = vpop.permute.xlu0 %4635
        %4639 = vset.pattern.permute.xlu0 99
        %4640 = vperm.xlu0 %4639, %v4463
        %v4641 = vpop.permute.xlu0 %4640
        %4644 = vset.pattern.permute.xlu0 99
        %4645 = vperm.xlu0 %4644, %v4466
        %v4646 = vpop.permute.xlu0 %4645
        %4649 = vset.pattern.permute.xlu0 99
        %4650 = vperm.xlu0 %4649, %v4471
        %v4651 = vpop.permute.xlu0 %4650
        %4654 = vset.pattern.permute.xlu0 99
        %4655 = vperm.xlu0 %4654, %v4474
        %v4656 = vpop.permute.xlu0 %4655
        %4659 = vset.pattern.permute.xlu0 99
        %4660 = vperm.xlu0 %4659, %v4479
        %v4661 = vpop.permute.xlu0 %4660
        %4664 = vset.pattern.permute.xlu0 99
        %4665 = vperm.xlu0 %4664, %v4482
        %v4666 = vpop.permute.xlu0 %4665
        %4669 = vset.pattern.permute.xlu0 99
        %4670 = vperm.xlu0 %4669, %v4487
        %v4671 = vpop.permute.xlu0 %4670
        %4674 = vset.pattern.permute.xlu0 99
        %4675 = vperm.xlu0 %4674, %v4490
        %v4676 = vpop.permute.xlu0 %4675
        %4679 = vset.pattern.permute.xlu0 99
        %4680 = vperm.xlu0 %4679, %v4495
        %v4681 = vpop.permute.xlu0 %4680
        %4684 = vset.pattern.permute.xlu0 99
        %4685 = vperm.xlu0 %4684, %v4498
        %v4686 = vpop.permute.xlu0 %4685
        %v4688 = vsel %vm384, %v4611, 0.0
        %v4689 = vsel %vm385, %v4616, 0.0
        %v4690 = vsel %vm386, %v4621, 0.0
        %v4691 = vsel %vm387, %v4626, 0.0
        %v4692 = vsel %vm388, %v4631, 0.0
        %v4693 = vsel %vm389, %v4636, 0.0
        %v4694 = vsel %vm390, %v4641, 0.0
        %v4695 = vsel %vm391, %v4646, 0.0
        %v4696 = vsel %vm392, %v4651, 0.0
        %v4697 = vsel %vm393, %v4656, 0.0
        %v4698 = vsel %vm394, %v4661, 0.0
        %v4699 = vsel %vm395, %v4666, 0.0
        %v4700 = vsel %vm396, %v4671, 0.0
        %v4701 = vsel %vm397, %v4676, 0.0
        %v4702 = vsel %vm398, %v4681, 0.0
        %v4703 = vsel %vm399, %v4686, 0.0
        %v4704 = vadd.f32 %v4688, %v4689
        %v4705 = vadd.f32 %v4704, %v4690
        %v4706 = vadd.f32 %v4705, %v4691
        %v4707 = vadd.f32 %v4706, %v4692
        %v4708 = vadd.f32 %v4707, %v4693
        %v4709 = vadd.f32 %v4708, %v4694
        %v4710 = vadd.f32 %v4709, %v4695
        %v4711 = vadd.f32 %v4710, %v4696
        %v4712 = vadd.f32 %v4711, %v4697
        %v4713 = vadd.f32 %v4712, %v4698
        %v4714 = vadd.f32 %v4713, %v4699
        %v4715 = vadd.f32 %v4714, %v4700
        %v4716 = vadd.f32 %v4715, %v4701
        %v4717 = vadd.f32 %v4716, %v4702
        %v4718 = vadd.f32 %v4717, %v4703
        %v4719 = vrot.slane %v4718, 4
        %v4720 = vadd.f32 %v4718, %v4719
        %v4721 = vrot.slane %v4720, 2
        %v4722 = vadd.f32 %v4720, %v4721
        %v4723 = vrot.slane %v4722, 1
        %v4724 = vadd.f32 %v4722, %v4723
        %4725 = vset.pattern.permute.xlu0 96
        %4726 = vperm.xlu0 %4725, %v4439
        %v4727 = vpop.permute.xlu0 %4726
        %4729 = vset.pattern.permute.xlu0 96
        %4730 = vperm.xlu0 %4729, %v4442
        %v4731 = vpop.permute.xlu0 %4730
        %4733 = vset.pattern.permute.xlu0 96
        %4734 = vperm.xlu0 %4733, %v4447
        %v4735 = vpop.permute.xlu0 %4734
        %4737 = vset.pattern.permute.xlu0 96
        %4738 = vperm.xlu0 %4737, %v4450
        %v4739 = vpop.permute.xlu0 %4738
        %4741 = vset.pattern.permute.xlu0 96
        %4742 = vperm.xlu0 %4741, %v4455
        %v4743 = vpop.permute.xlu0 %4742
        %4745 = vset.pattern.permute.xlu0 96
        %4746 = vperm.xlu0 %4745, %v4458
        %v4747 = vpop.permute.xlu0 %4746
        %4749 = vset.pattern.permute.xlu0 96
        %4750 = vperm.xlu0 %4749, %v4463
        %v4751 = vpop.permute.xlu0 %4750
        %4753 = vset.pattern.permute.xlu0 96
        %4754 = vperm.xlu0 %4753, %v4466
        %v4755 = vpop.permute.xlu0 %4754
        %4757 = vset.pattern.permute.xlu0 96
        %4758 = vperm.xlu0 %4757, %v4471
        %v4759 = vpop.permute.xlu0 %4758
        %4761 = vset.pattern.permute.xlu0 96
        %4762 = vperm.xlu0 %4761, %v4474
        %v4763 = vpop.permute.xlu0 %4762
        %4765 = vset.pattern.permute.xlu0 96
        %4766 = vperm.xlu0 %4765, %v4479
        %v4767 = vpop.permute.xlu0 %4766
        %4769 = vset.pattern.permute.xlu0 96
        %4770 = vperm.xlu0 %4769, %v4482
        %v4771 = vpop.permute.xlu0 %4770
        %4773 = vset.pattern.permute.xlu0 96
        %4774 = vperm.xlu0 %4773, %v4487
        %v4775 = vpop.permute.xlu0 %4774
        %4777 = vset.pattern.permute.xlu0 96
        %4778 = vperm.xlu0 %4777, %v4490
        %v4779 = vpop.permute.xlu0 %4778
        %4781 = vset.pattern.permute.xlu0 96
        %4782 = vperm.xlu0 %4781, %v4495
        %v4783 = vpop.permute.xlu0 %4782
        %4785 = vset.pattern.permute.xlu0 96
        %4786 = vperm.xlu0 %4785, %v4498
        %v4787 = vpop.permute.xlu0 %4786
        %v4789 = vadd.f32 %v4727, %v4724
        %v4790 = vadd.f32 %v4731, %v4724
        %v4791 = vadd.f32 %v4735, %v4724
        %v4792 = vadd.f32 %v4739, %v4724
        %v4793 = vadd.f32 %v4743, %v4724
        %v4794 = vadd.f32 %v4747, %v4724
        %v4795 = vadd.f32 %v4751, %v4724
        %v4796 = vadd.f32 %v4755, %v4724
        %v4797 = vadd.f32 %v4759, %v4724
        %v4798 = vadd.f32 %v4763, %v4724
        %v4799 = vadd.f32 %v4767, %v4724
        %v4800 = vadd.f32 %v4771, %v4724
        %v4801 = vadd.f32 %v4775, %v4724
        %v4802 = vadd.f32 %v4779, %v4724
        %v4803 = vadd.f32 %v4783, %v4724
        %v4804 = vadd.f32 %v4787, %v4724
        %v4805 = vmul.f32 %v4789, 0.2
        %v4806 = vmul.f32 %v4790, 0.2
        %v4807 = vmul.f32 %v4791, 0.2
        %v4808 = vmul.f32 %v4792, 0.2
        %v4809 = vmul.f32 %v4793, 0.2
        %v4810 = vmul.f32 %v4794, 0.2
        %v4811 = vmul.f32 %v4795, 0.2
        %v4812 = vmul.f32 %v4796, 0.2
        %v4813 = vmul.f32 %v4797, 0.2
        %v4814 = vmul.f32 %v4798, 0.2
        %v4815 = vmul.f32 %v4799, 0.2
        %v4816 = vmul.f32 %v4800, 0.2
        %v4817 = vmul.f32 %v4801, 0.2
        %v4818 = vmul.f32 %v4802, 0.2
        %v4819 = vmul.f32 %v4803, 0.2
        %v4820 = vmul.f32 %v4804, 0.2
        %v4821 = vmax.f32 %v4789, %v4805
        %v4822 = vmax.f32 %v4790, %v4806
        %v4823 = vmax.f32 %v4791, %v4807
        %v4824 = vmax.f32 %v4792, %v4808
        %v4825 = vmax.f32 %v4793, %v4809
        %v4826 = vmax.f32 %v4794, %v4810
        %v4827 = vmax.f32 %v4795, %v4811
        %v4828 = vmax.f32 %v4796, %v4812
        %v4829 = vmax.f32 %v4797, %v4813
        %v4830 = vmax.f32 %v4798, %v4814
        %v4831 = vmax.f32 %v4799, %v4815
        %v4832 = vmax.f32 %v4800, %v4816
        %v4833 = vmax.f32 %v4801, %v4817
        %v4834 = vmax.f32 %v4802, %v4818
        %v4835 = vmax.f32 %v4803, %v4819
        %v4836 = vmax.f32 %v4804, %v4820
        %v4837 = vsel %vm4581, %v4821, -1e+30
        %v4838 = vsel %vm4582, %v4822, -1e+30
        %v4839 = vsel %vm4583, %v4823, -1e+30
        %v4840 = vsel %vm4584, %v4824, -1e+30
        %v4841 = vsel %vm4585, %v4825, -1e+30
        %v4842 = vsel %vm4586, %v4826, -1e+30
        %v4843 = vsel %vm4587, %v4827, -1e+30
        %v4844 = vsel %vm4588, %v4828, -1e+30
        %v4845 = vsel %vm4589, %v4829, -1e+30
        %v4846 = vsel %vm4590, %v4830, -1e+30
        %v4847 = vsel %vm4591, %v4831, -1e+30
        %v4848 = vsel %vm4592, %v4832, -1e+30
        %v4849 = vsel %vm4593, %v4833, -1e+30
        %v4850 = vsel %vm4594, %v4834, -1e+30
        %v4851 = vsel %vm4595, %v4835, -1e+30
        %v4852 = vsel %vm4596, %v4836, -1e+30
        %4853 = vmax.xlane.f32.xlu0 %v4837
        %v4854 = vpop.xlane.xlu0 %4853
        %4855 = vmax.xlane.f32.xlu0 %v4838
        %v4856 = vpop.xlane.xlu0 %4855
        %4857 = vmax.xlane.f32.xlu0 %v4839
        %v4858 = vpop.xlane.xlu0 %4857
        %4859 = vmax.xlane.f32.xlu0 %v4840
        %v4860 = vpop.xlane.xlu0 %4859
        %4861 = vmax.xlane.f32.xlu0 %v4841
        %v4862 = vpop.xlane.xlu0 %4861
        %4863 = vmax.xlane.f32.xlu0 %v4842
        %v4864 = vpop.xlane.xlu0 %4863
        %4865 = vmax.xlane.f32.xlu0 %v4843
        %v4866 = vpop.xlane.xlu0 %4865
        %4867 = vmax.xlane.f32.xlu0 %v4844
        %v4868 = vpop.xlane.xlu0 %4867
        %4869 = vmax.xlane.f32.xlu0 %v4845
        %v4870 = vpop.xlane.xlu0 %4869
        %4871 = vmax.xlane.f32.xlu0 %v4846
        %v4872 = vpop.xlane.xlu0 %4871
        %4873 = vmax.xlane.f32.xlu0 %v4847
        %v4874 = vpop.xlane.xlu0 %4873
        %4875 = vmax.xlane.f32.xlu0 %v4848
        %v4876 = vpop.xlane.xlu0 %4875
        %4877 = vmax.xlane.f32.xlu0 %v4849
        %v4878 = vpop.xlane.xlu0 %4877
        %4879 = vmax.xlane.f32.xlu0 %v4850
        %v4880 = vpop.xlane.xlu0 %4879
        %4881 = vmax.xlane.f32.xlu0 %v4851
        %v4882 = vpop.xlane.xlu0 %4881
        %4883 = vmax.xlane.f32.xlu0 %v4852
        %v4884 = vpop.xlane.xlu0 %4883
        %v4885 = vsub.f32 %v4837, %v4854
        %v4886 = vsub.f32 %v4838, %v4856
        %v4887 = vsub.f32 %v4839, %v4858
        %v4888 = vsub.f32 %v4840, %v4860
        %v4889 = vsub.f32 %v4841, %v4862
        %v4890 = vsub.f32 %v4842, %v4864
        %v4891 = vsub.f32 %v4843, %v4866
        %v4892 = vsub.f32 %v4844, %v4868
        %v4893 = vsub.f32 %v4845, %v4870
        %v4894 = vsub.f32 %v4846, %v4872
        %v4895 = vsub.f32 %v4847, %v4874
        %v4896 = vsub.f32 %v4848, %v4876
        %v4897 = vsub.f32 %v4849, %v4878
        %v4898 = vsub.f32 %v4850, %v4880
        %v4899 = vsub.f32 %v4851, %v4882
        %v4900 = vsub.f32 %v4852, %v4884
        %v4901 = vmul.f32 %v4885, 1.442695
        %v4902 = vpow.pop %v4901
        %v4903 = vmul.f32 %v4886, 1.442695
        %v4904 = vpow.pop %v4903
        %v4905 = vmul.f32 %v4887, 1.442695
        %v4906 = vpow.pop %v4905
        %v4907 = vmul.f32 %v4888, 1.442695
        %v4908 = vpow.pop %v4907
        %v4909 = vmul.f32 %v4889, 1.442695
        %v4910 = vpow.pop %v4909
        %v4911 = vmul.f32 %v4890, 1.442695
        %v4912 = vpow.pop %v4911
        %v4913 = vmul.f32 %v4891, 1.442695
        %v4914 = vpow.pop %v4913
        %v4915 = vmul.f32 %v4892, 1.442695
        %v4916 = vpow.pop %v4915
        %v4917 = vmul.f32 %v4893, 1.442695
        %v4918 = vpow.pop %v4917
        %v4919 = vmul.f32 %v4894, 1.442695
        %v4920 = vpow.pop %v4919
        %v4921 = vmul.f32 %v4895, 1.442695
        %v4922 = vpow.pop %v4921
        %v4923 = vmul.f32 %v4896, 1.442695
        %v4924 = vpow.pop %v4923
        %v4925 = vmul.f32 %v4897, 1.442695
        %v4926 = vpow.pop %v4925
        %v4927 = vmul.f32 %v4898, 1.442695
        %v4928 = vpow.pop %v4927
        %v4929 = vmul.f32 %v4899, 1.442695
        %v4930 = vpow.pop %v4929
        %v4931 = vmul.f32 %v4900, 1.442695
        %v4932 = vpow.pop %v4931
        %4933 = vadd.xlane.f32.xlu0 %v4902
        %v4934 = vpop.xlane.xlu0 %4933
        %4935 = vadd.xlane.f32.xlu0 %v4904
        %v4936 = vpop.xlane.xlu0 %4935
        %4937 = vadd.xlane.f32.xlu0 %v4906
        %v4938 = vpop.xlane.xlu0 %4937
        %4939 = vadd.xlane.f32.xlu0 %v4908
        %v4940 = vpop.xlane.xlu0 %4939
        %4941 = vadd.xlane.f32.xlu0 %v4910
        %v4942 = vpop.xlane.xlu0 %4941
        %4943 = vadd.xlane.f32.xlu0 %v4912
        %v4944 = vpop.xlane.xlu0 %4943
        %4945 = vadd.xlane.f32.xlu0 %v4914
        %v4946 = vpop.xlane.xlu0 %4945
        %4947 = vadd.xlane.f32.xlu0 %v4916
        %v4948 = vpop.xlane.xlu0 %4947
        %4949 = vadd.xlane.f32.xlu0 %v4918
        %v4950 = vpop.xlane.xlu0 %4949
        %4951 = vadd.xlane.f32.xlu0 %v4920
        %v4952 = vpop.xlane.xlu0 %4951
        %4953 = vadd.xlane.f32.xlu0 %v4922
        %v4954 = vpop.xlane.xlu0 %4953
        %4955 = vadd.xlane.f32.xlu0 %v4924
        %v4956 = vpop.xlane.xlu0 %4955
        %4957 = vadd.xlane.f32.xlu0 %v4926
        %v4958 = vpop.xlane.xlu0 %4957
        %4959 = vadd.xlane.f32.xlu0 %v4928
        %v4960 = vpop.xlane.xlu0 %4959
        %4961 = vadd.xlane.f32.xlu0 %v4930
        %v4962 = vpop.xlane.xlu0 %4961
        %4963 = vadd.xlane.f32.xlu0 %v4932
        %v4964 = vpop.xlane.xlu0 %4963
        %v4965 = vrcp.pop %v4934
        %v4966 = vrcp.pop %v4936
        %v4967 = vrcp.pop %v4938
        %v4968 = vrcp.pop %v4940
        %v4969 = vrcp.pop %v4942
        %v4970 = vrcp.pop %v4944
        %v4971 = vrcp.pop %v4946
        %v4972 = vrcp.pop %v4948
        %v4973 = vrcp.pop %v4950
        %v4974 = vrcp.pop %v4952
        %v4975 = vrcp.pop %v4954
        %v4976 = vrcp.pop %v4956
        %v4977 = vrcp.pop %v4958
        %v4978 = vrcp.pop %v4960
        %v4979 = vrcp.pop %v4962
        %v4980 = vrcp.pop %v4964
        %v4981 = vpack.c.bf16 %v4904, %v4902
        %v4982 = vpack.c.bf16 %v4908, %v4906
        %v4983 = vpack.c.bf16 %v4912, %v4910
        %v4984 = vpack.c.bf16 %v4916, %v4914
        %v4985 = vpack.c.bf16 %v4920, %v4918
        %v4986 = vpack.c.bf16 %v4924, %v4922
        %v4987 = vpack.c.bf16 %v4928, %v4926
        %v4988 = vpack.c.bf16 %v4932, %v4930
        %4989 = vmatprep.subr.bf16.mxu0 0
        %4990 = vmatpush1.bf16.msra.mxu0 %v4600
        %4991 = vmatprep.subr.bf16.mxu0 0
        %4992 = vmatpush1.bf16.msra.mxu0 %v4601
        %4993 = vmatprep.subr.bf16.mxu0 0
        %4994 = vmatpush1.bf16.msra.mxu0 %v4602
        %4995 = vmatprep.subr.bf16.mxu0 0
        %4996 = vmatpush1.bf16.msra.mxu0 %v4603
        %4997 = vmatprep.subr.bf16.mxu0 0
        %4998 = vmatpush1.bf16.msra.mxu0 %v4604
        %4999 = vmatprep.subr.bf16.mxu0 0
        %5000 = vmatpush1.bf16.msra.mxu0 %v4605
        %5001 = vmatprep.subr.bf16.mxu0 0
        %5002 = vmatpush1.bf16.msra.mxu0 %v4606
        %5003 = vmatprep.subr.bf16.mxu0 0
        %5004 = vmatpush1.bf16.msra.mxu0 %v4607
        %5005 = vmatprep.subr.bf16.mxu0 0
        %5006 = vmatpush1.bf16.msra.mxu0 0
        %5007 = vmatprep.subr.bf16.mxu0 0
        %5008 = vmatpush1.bf16.msra.mxu0 0
        %5009 = vmatprep.subr.bf16.mxu0 0
        %5010 = vmatpush1.bf16.msra.mxu0 0
        %5011 = vmatprep.subr.bf16.mxu0 0
        %5012 = vmatpush1.bf16.msra.mxu0 0
        %5013 = vmatprep.subr.bf16.mxu0 0
        %5014 = vmatpush1.bf16.msra.mxu0 0
        %5015 = vmatprep.subr.bf16.mxu0 0
        %5016 = vmatpush1.bf16.msra.mxu0 0
        %5017 = vmatprep.subr.bf16.mxu0 0
        %5018 = vmatpush1.bf16.msra.mxu0 0
        %5019 = vmatprep.subr.bf16.mxu0 0
        %5020 = vmatpush1.bf16.msra.mxu0 0
        %5021 = vmatprep.mubr.bf16.mxu0 0
        %5022 = vmatmul.mubr.bf16.gmra.mrb[0].mxu0 %v4981
        %v5023 = vpop.f32.mrb[0].mxu0
        %v5024 = vadd.f32 0.0, %v5023
        %v5025 = vpop.f32.mrb[0].mxu0
        %v5026 = vpop.f32.mrb[0].mxu0
        %v5027 = vadd.f32 0.0, %v5026
        %v5028 = vpop.f32.mrb[0].mxu0
        %5029 = vmatprep.mubr.bf16.mxu0 0
        %5030 = vmatmul.mubr.bf16.gmra.mrb[0].mxu0 %v4982
        %v5031 = vpop.f32.mrb[0].mxu0
        %v5032 = vadd.f32 0.0, %v5031
        %v5033 = vpop.f32.mrb[0].mxu0
        %v5034 = vpop.f32.mrb[0].mxu0
        %v5035 = vadd.f32 0.0, %v5034
        %v5036 = vpop.f32.mrb[0].mxu0
        %5037 = vmatprep.mubr.bf16.mxu0 0
        %5038 = vmatmul.mubr.bf16.gmra.mrb[0].mxu0 %v4983
        %v5039 = vpop.f32.mrb[0].mxu0
        %v5040 = vadd.f32 0.0, %v5039
        %v5041 = vpop.f32.mrb[0].mxu0
        %v5042 = vpop.f32.mrb[0].mxu0
        %v5043 = vadd.f32 0.0, %v5042
        %v5044 = vpop.f32.mrb[0].mxu0
        %5045 = vmatprep.mubr.bf16.mxu0 0
        %5046 = vmatmul.mubr.bf16.gmra.mrb[0].mxu0 %v4984
        %v5047 = vpop.f32.mrb[0].mxu0
        %v5048 = vadd.f32 0.0, %v5047
        %v5049 = vpop.f32.mrb[0].mxu0
        %v5050 = vpop.f32.mrb[0].mxu0
        %v5051 = vadd.f32 0.0, %v5050
        %v5052 = vpop.f32.mrb[0].mxu0
        %5053 = vmatprep.mubr.bf16.mxu0 0
        %5054 = vmatmul.mubr.bf16.gmra.mrb[0].mxu0 %v4985
        %v5055 = vpop.f32.mrb[0].mxu0
        %v5056 = vadd.f32 0.0, %v5055
        %v5057 = vpop.f32.mrb[0].mxu0
        %v5058 = vpop.f32.mrb[0].mxu0
        %v5059 = vadd.f32 0.0, %v5058
        %v5060 = vpop.f32.mrb[0].mxu0
        %5061 = vmatprep.mubr.bf16.mxu0 0
        %5062 = vmatmul.mubr.bf16.gmra.mrb[0].mxu0 %v4986
        %v5063 = vpop.f32.mrb[0].mxu0
        %v5064 = vadd.f32 0.0, %v5063
        %v5065 = vpop.f32.mrb[0].mxu0
        %v5066 = vpop.f32.mrb[0].mxu0
        %v5067 = vadd.f32 0.0, %v5066
        %v5068 = vpop.f32.mrb[0].mxu0
        %5069 = vmatprep.mubr.bf16.mxu0 0
        %5070 = vmatmul.mubr.bf16.gmra.mrb[0].mxu0 %v4987
        %v5071 = vpop.f32.mrb[0].mxu0
        %v5072 = vadd.f32 0.0, %v5071
        %v5073 = vpop.f32.mrb[0].mxu0
        %v5074 = vpop.f32.mrb[0].mxu0
        %v5075 = vadd.f32 0.0, %v5074
        %v5076 = vpop.f32.mrb[0].mxu0
        %5077 = vmatprep.mubr.bf16.mxu0 0
        %5078 = vmatmul.mubr.bf16.gmra.mrb[0].mxu0 %v4988
        %v5079 = vpop.f32.mrb[0].mxu0
        %v5080 = vadd.f32 0.0, %v5079
        %v5081 = vpop.f32.mrb[0].mxu0
        %v5082 = vpop.f32.mrb[0].mxu0
        %v5083 = vadd.f32 0.0, %v5082
        %v5084 = vpop.f32.mrb[0].mxu0
        %5085 = vdwg.mxu0
        %v5086 = vmul.f32 %v5024, %v4965
        %v5087 = vmul.f32 %v5027, %v4966
        %v5088 = vmul.f32 %v5032, %v4967
        %v5089 = vmul.f32 %v5035, %v4968
        %v5090 = vmul.f32 %v5040, %v4969
        %v5091 = vmul.f32 %v5043, %v4970
        %v5092 = vmul.f32 %v5048, %v4971
        %v5093 = vmul.f32 %v5051, %v4972
        %v5094 = vmul.f32 %v5056, %v4973
        %v5095 = vmul.f32 %v5059, %v4974
        %v5096 = vmul.f32 %v5064, %v4975
        %v5097 = vmul.f32 %v5067, %v4976
        %v5098 = vmul.f32 %v5072, %v4977
        %v5099 = vmul.f32 %v5075, %v4978
        %v5100 = vmul.f32 %v5080, %v4979
        %v5101 = vmul.f32 %v5083, %v4980
        %v5102 = vadd.f32 %v5086, 0.0
        %v5103 = vadd.f32 %v5087, 0.0
        %v5104 = vadd.f32 %v5088, 0.0
        %v5105 = vadd.f32 %v5089, 0.0
        %v5106 = vadd.f32 %v5090, 0.0
        %v5107 = vadd.f32 %v5091, 0.0
        %v5108 = vadd.f32 %v5092, 0.0
        %v5109 = vadd.f32 %v5093, 0.0
        %v5110 = vadd.f32 %v5094, 0.0
        %v5111 = vadd.f32 %v5095, 0.0
        %v5112 = vadd.f32 %v5096, 0.0
        %v5113 = vadd.f32 %v5097, 0.0
        %v5114 = vadd.f32 %v5098, 0.0
        %v5115 = vadd.f32 %v5099, 0.0
        %v5116 = vadd.f32 %v5100, 0.0
        %v5117 = vadd.f32 %v5101, 0.0
        %5118 = vset.pattern.permute.xlu0 100
        %5119 = vperm.xlu0 %5118, %v4439
        %v5120 = vpop.permute.xlu0 %5119
        %5122 = vset.pattern.permute.xlu0 100
        %5123 = vperm.xlu0 %5122, %v4442
        %v5124 = vpop.permute.xlu0 %5123
        %5126 = vset.pattern.permute.xlu0 100
        %5127 = vperm.xlu0 %5126, %v4447
        %v5128 = vpop.permute.xlu0 %5127
        %5130 = vset.pattern.permute.xlu0 100
        %5131 = vperm.xlu0 %5130, %v4450
        %v5132 = vpop.permute.xlu0 %5131
        %5134 = vset.pattern.permute.xlu0 100
        %5135 = vperm.xlu0 %5134, %v4455
        %v5136 = vpop.permute.xlu0 %5135
        %5138 = vset.pattern.permute.xlu0 100
        %5139 = vperm.xlu0 %5138, %v4458
        %v5140 = vpop.permute.xlu0 %5139
        %5142 = vset.pattern.permute.xlu0 100
        %5143 = vperm.xlu0 %5142, %v4463
        %v5144 = vpop.permute.xlu0 %5143
        %5146 = vset.pattern.permute.xlu0 100
        %5147 = vperm.xlu0 %5146, %v4466
        %v5148 = vpop.permute.xlu0 %5147
        %5150 = vset.pattern.permute.xlu0 100
        %5151 = vperm.xlu0 %5150, %v4471
        %v5152 = vpop.permute.xlu0 %5151
        %5154 = vset.pattern.permute.xlu0 100
        %5155 = vperm.xlu0 %5154, %v4474
        %v5156 = vpop.permute.xlu0 %5155
        %5158 = vset.pattern.permute.xlu0 100
        %5159 = vperm.xlu0 %5158, %v4479
        %v5160 = vpop.permute.xlu0 %5159
        %5162 = vset.pattern.permute.xlu0 100
        %5163 = vperm.xlu0 %5162, %v4482
        %v5164 = vpop.permute.xlu0 %5163
        %5166 = vset.pattern.permute.xlu0 100
        %5167 = vperm.xlu0 %5166, %v4487
        %v5168 = vpop.permute.xlu0 %5167
        %5170 = vset.pattern.permute.xlu0 100
        %5171 = vperm.xlu0 %5170, %v4490
        %v5172 = vpop.permute.xlu0 %5171
        %5174 = vset.pattern.permute.xlu0 100
        %5175 = vperm.xlu0 %5174, %v4495
        %v5176 = vpop.permute.xlu0 %5175
        %5178 = vset.pattern.permute.xlu0 100
        %5179 = vperm.xlu0 %5178, %v4498
        %v5180 = vpop.permute.xlu0 %5179
        %v5182 = vsel %vm384, %v5120, 0.0
        %v5183 = vsel %vm385, %v5124, 0.0
        %v5184 = vsel %vm386, %v5128, 0.0
        %v5185 = vsel %vm387, %v5132, 0.0
        %v5186 = vsel %vm388, %v5136, 0.0
        %v5187 = vsel %vm389, %v5140, 0.0
        %v5188 = vsel %vm390, %v5144, 0.0
        %v5189 = vsel %vm391, %v5148, 0.0
        %v5190 = vsel %vm392, %v5152, 0.0
        %v5191 = vsel %vm393, %v5156, 0.0
        %v5192 = vsel %vm394, %v5160, 0.0
        %v5193 = vsel %vm395, %v5164, 0.0
        %v5194 = vsel %vm396, %v5168, 0.0
        %v5195 = vsel %vm397, %v5172, 0.0
        %v5196 = vsel %vm398, %v5176, 0.0
        %v5197 = vsel %vm399, %v5180, 0.0
        %v5198 = vadd.f32 %v5182, %v5183
        %v5199 = vadd.f32 %v5198, %v5184
        %v5200 = vadd.f32 %v5199, %v5185
        %v5201 = vadd.f32 %v5200, %v5186
        %v5202 = vadd.f32 %v5201, %v5187
        %v5203 = vadd.f32 %v5202, %v5188
        %v5204 = vadd.f32 %v5203, %v5189
        %v5205 = vadd.f32 %v5204, %v5190
        %v5206 = vadd.f32 %v5205, %v5191
        %v5207 = vadd.f32 %v5206, %v5192
        %v5208 = vadd.f32 %v5207, %v5193
        %v5209 = vadd.f32 %v5208, %v5194
        %v5210 = vadd.f32 %v5209, %v5195
        %v5211 = vadd.f32 %v5210, %v5196
        %v5212 = vadd.f32 %v5211, %v5197
        %v5213 = vrot.slane %v5212, 4
        %v5214 = vadd.f32 %v5212, %v5213
        %v5215 = vrot.slane %v5214, 2
        %v5216 = vadd.f32 %v5214, %v5215
        %v5217 = vrot.slane %v5216, 1
        %v5218 = vadd.f32 %v5216, %v5217
        %5219 = vset.pattern.permute.xlu0 97
        %5220 = vperm.xlu0 %5219, %v4439
        %v5221 = vpop.permute.xlu0 %5220
        %5223 = vset.pattern.permute.xlu0 97
        %5224 = vperm.xlu0 %5223, %v4442
        %v5225 = vpop.permute.xlu0 %5224
        %5227 = vset.pattern.permute.xlu0 97
        %5228 = vperm.xlu0 %5227, %v4447
        %v5229 = vpop.permute.xlu0 %5228
        %5231 = vset.pattern.permute.xlu0 97
        %5232 = vperm.xlu0 %5231, %v4450
        %v5233 = vpop.permute.xlu0 %5232
        %5235 = vset.pattern.permute.xlu0 97
        %5236 = vperm.xlu0 %5235, %v4455
        %v5237 = vpop.permute.xlu0 %5236
        %5239 = vset.pattern.permute.xlu0 97
        %5240 = vperm.xlu0 %5239, %v4458
        %v5241 = vpop.permute.xlu0 %5240
        %5243 = vset.pattern.permute.xlu0 97
        %5244 = vperm.xlu0 %5243, %v4463
        %v5245 = vpop.permute.xlu0 %5244
        %5247 = vset.pattern.permute.xlu0 97
        %5248 = vperm.xlu0 %5247, %v4466
        %v5249 = vpop.permute.xlu0 %5248
        %5251 = vset.pattern.permute.xlu0 97
        %5252 = vperm.xlu0 %5251, %v4471
        %v5253 = vpop.permute.xlu0 %5252
        %5255 = vset.pattern.permute.xlu0 97
        %5256 = vperm.xlu0 %5255, %v4474
        %v5257 = vpop.permute.xlu0 %5256
        %5259 = vset.pattern.permute.xlu0 97
        %5260 = vperm.xlu0 %5259, %v4479
        %v5261 = vpop.permute.xlu0 %5260
        %5263 = vset.pattern.permute.xlu0 97
        %5264 = vperm.xlu0 %5263, %v4482
        %v5265 = vpop.permute.xlu0 %5264
        %5267 = vset.pattern.permute.xlu0 97
        %5268 = vperm.xlu0 %5267, %v4487
        %v5269 = vpop.permute.xlu0 %5268
        %5271 = vset.pattern.permute.xlu0 97
        %5272 = vperm.xlu0 %5271, %v4490
        %v5273 = vpop.permute.xlu0 %5272
        %5275 = vset.pattern.permute.xlu0 97
        %5276 = vperm.xlu0 %5275, %v4495
        %v5277 = vpop.permute.xlu0 %5276
        %5279 = vset.pattern.permute.xlu0 97
        %5280 = vperm.xlu0 %5279, %v4498
        %v5281 = vpop.permute.xlu0 %5280
        %v5283 = vadd.f32 %v5221, %v5218
        %v5284 = vadd.f32 %v5225, %v5218
        %v5285 = vadd.f32 %v5229, %v5218
        %v5286 = vadd.f32 %v5233, %v5218
        %v5287 = vadd.f32 %v5237, %v5218
        %v5288 = vadd.f32 %v5241, %v5218
        %v5289 = vadd.f32 %v5245, %v5218
        %v5290 = vadd.f32 %v5249, %v5218
        %v5291 = vadd.f32 %v5253, %v5218
        %v5292 = vadd.f32 %v5257, %v5218
        %v5293 = vadd.f32 %v5261, %v5218
        %v5294 = vadd.f32 %v5265, %v5218
        %v5295 = vadd.f32 %v5269, %v5218
        %v5296 = vadd.f32 %v5273, %v5218
        %v5297 = vadd.f32 %v5277, %v5218
        %v5298 = vadd.f32 %v5281, %v5218
        %v5299 = vmul.f32 %v5283, 0.2
        %v5300 = vmul.f32 %v5284, 0.2
        %v5301 = vmul.f32 %v5285, 0.2
        %v5302 = vmul.f32 %v5286, 0.2
        %v5303 = vmul.f32 %v5287, 0.2
        %v5304 = vmul.f32 %v5288, 0.2
        %v5305 = vmul.f32 %v5289, 0.2
        %v5306 = vmul.f32 %v5290, 0.2
        %v5307 = vmul.f32 %v5291, 0.2
        %v5308 = vmul.f32 %v5292, 0.2
        %v5309 = vmul.f32 %v5293, 0.2
        %v5310 = vmul.f32 %v5294, 0.2
        %v5311 = vmul.f32 %v5295, 0.2
        %v5312 = vmul.f32 %v5296, 0.2
        %v5313 = vmul.f32 %v5297, 0.2
        %v5314 = vmul.f32 %v5298, 0.2
        %v5315 = vmax.f32 %v5283, %v5299
        %v5316 = vmax.f32 %v5284, %v5300
        %v5317 = vmax.f32 %v5285, %v5301
        %v5318 = vmax.f32 %v5286, %v5302
        %v5319 = vmax.f32 %v5287, %v5303
        %v5320 = vmax.f32 %v5288, %v5304
        %v5321 = vmax.f32 %v5289, %v5305
        %v5322 = vmax.f32 %v5290, %v5306
        %v5323 = vmax.f32 %v5291, %v5307
        %v5324 = vmax.f32 %v5292, %v5308
        %v5325 = vmax.f32 %v5293, %v5309
        %v5326 = vmax.f32 %v5294, %v5310
        %v5327 = vmax.f32 %v5295, %v5311
        %v5328 = vmax.f32 %v5296, %v5312
        %v5329 = vmax.f32 %v5297, %v5313
        %v5330 = vmax.f32 %v5298, %v5314
        %v5331 = vsel %vm4581, %v5315, -1e+30
        %v5332 = vsel %vm4582, %v5316, -1e+30
        %v5333 = vsel %vm4583, %v5317, -1e+30
        %v5334 = vsel %vm4584, %v5318, -1e+30
        %v5335 = vsel %vm4585, %v5319, -1e+30
        %v5336 = vsel %vm4586, %v5320, -1e+30
        %v5337 = vsel %vm4587, %v5321, -1e+30
        %v5338 = vsel %vm4588, %v5322, -1e+30
        %v5339 = vsel %vm4589, %v5323, -1e+30
        %v5340 = vsel %vm4590, %v5324, -1e+30
        %v5341 = vsel %vm4591, %v5325, -1e+30
        %v5342 = vsel %vm4592, %v5326, -1e+30
        %v5343 = vsel %vm4593, %v5327, -1e+30
        %v5344 = vsel %vm4594, %v5328, -1e+30
        %v5345 = vsel %vm4595, %v5329, -1e+30
        %v5346 = vsel %vm4596, %v5330, -1e+30
        %5347 = vmax.xlane.f32.xlu0 %v5331
        %v5348 = vpop.xlane.xlu0 %5347
        %5349 = vmax.xlane.f32.xlu0 %v5332
        %v5350 = vpop.xlane.xlu0 %5349
        %5351 = vmax.xlane.f32.xlu0 %v5333
        %v5352 = vpop.xlane.xlu0 %5351
        %5353 = vmax.xlane.f32.xlu0 %v5334
        %v5354 = vpop.xlane.xlu0 %5353
        %5355 = vmax.xlane.f32.xlu0 %v5335
        %v5356 = vpop.xlane.xlu0 %5355
        %5357 = vmax.xlane.f32.xlu0 %v5336
        %v5358 = vpop.xlane.xlu0 %5357
        %5359 = vmax.xlane.f32.xlu0 %v5337
        %v5360 = vpop.xlane.xlu0 %5359
        %5361 = vmax.xlane.f32.xlu0 %v5338
        %v5362 = vpop.xlane.xlu0 %5361
        %5363 = vmax.xlane.f32.xlu0 %v5339
        %v5364 = vpop.xlane.xlu0 %5363
        %5365 = vmax.xlane.f32.xlu0 %v5340
        %v5366 = vpop.xlane.xlu0 %5365
        %5367 = vmax.xlane.f32.xlu0 %v5341
        %v5368 = vpop.xlane.xlu0 %5367
        %5369 = vmax.xlane.f32.xlu0 %v5342
        %v5370 = vpop.xlane.xlu0 %5369
        %5371 = vmax.xlane.f32.xlu0 %v5343
        %v5372 = vpop.xlane.xlu0 %5371
        %5373 = vmax.xlane.f32.xlu0 %v5344
        %v5374 = vpop.xlane.xlu0 %5373
        %5375 = vmax.xlane.f32.xlu0 %v5345
        %v5376 = vpop.xlane.xlu0 %5375
        %5377 = vmax.xlane.f32.xlu0 %v5346
        %v5378 = vpop.xlane.xlu0 %5377
        %v5379 = vsub.f32 %v5331, %v5348
        %v5380 = vsub.f32 %v5332, %v5350
        %v5381 = vsub.f32 %v5333, %v5352
        %v5382 = vsub.f32 %v5334, %v5354
        %v5383 = vsub.f32 %v5335, %v5356
        %v5384 = vsub.f32 %v5336, %v5358
        %v5385 = vsub.f32 %v5337, %v5360
        %v5386 = vsub.f32 %v5338, %v5362
        %v5387 = vsub.f32 %v5339, %v5364
        %v5388 = vsub.f32 %v5340, %v5366
        %v5389 = vsub.f32 %v5341, %v5368
        %v5390 = vsub.f32 %v5342, %v5370
        %v5391 = vsub.f32 %v5343, %v5372
        %v5392 = vsub.f32 %v5344, %v5374
        %v5393 = vsub.f32 %v5345, %v5376
        %v5394 = vsub.f32 %v5346, %v5378
        %v5395 = vmul.f32 %v5379, 1.442695
        %v5396 = vpow.pop %v5395
        %v5397 = vmul.f32 %v5380, 1.442695
        %v5398 = vpow.pop %v5397
        %v5399 = vmul.f32 %v5381, 1.442695
        %v5400 = vpow.pop %v5399
        %v5401 = vmul.f32 %v5382, 1.442695
        %v5402 = vpow.pop %v5401
        %v5403 = vmul.f32 %v5383, 1.442695
        %v5404 = vpow.pop %v5403
        %v5405 = vmul.f32 %v5384, 1.442695
        %v5406 = vpow.pop %v5405
        %v5407 = vmul.f32 %v5385, 1.442695
        %v5408 = vpow.pop %v5407
        %v5409 = vmul.f32 %v5386, 1.442695
        %v5410 = vpow.pop %v5409
        %v5411 = vmul.f32 %v5387, 1.442695
        %v5412 = vpow.pop %v5411
        %v5413 = vmul.f32 %v5388, 1.442695
        %v5414 = vpow.pop %v5413
        %v5415 = vmul.f32 %v5389, 1.442695
        %v5416 = vpow.pop %v5415
        %v5417 = vmul.f32 %v5390, 1.442695
        %v5418 = vpow.pop %v5417
        %v5419 = vmul.f32 %v5391, 1.442695
        %v5420 = vpow.pop %v5419
        %v5421 = vmul.f32 %v5392, 1.442695
        %v5422 = vpow.pop %v5421
        %v5423 = vmul.f32 %v5393, 1.442695
        %v5424 = vpow.pop %v5423
        %v5425 = vmul.f32 %v5394, 1.442695
        %v5426 = vpow.pop %v5425
        %5427 = vadd.xlane.f32.xlu0 %v5396
        %v5428 = vpop.xlane.xlu0 %5427
        %5429 = vadd.xlane.f32.xlu0 %v5398
        %v5430 = vpop.xlane.xlu0 %5429
        %5431 = vadd.xlane.f32.xlu0 %v5400
        %v5432 = vpop.xlane.xlu0 %5431
        %5433 = vadd.xlane.f32.xlu0 %v5402
        %v5434 = vpop.xlane.xlu0 %5433
        %5435 = vadd.xlane.f32.xlu0 %v5404
        %v5436 = vpop.xlane.xlu0 %5435
        %5437 = vadd.xlane.f32.xlu0 %v5406
        %v5438 = vpop.xlane.xlu0 %5437
        %5439 = vadd.xlane.f32.xlu0 %v5408
        %v5440 = vpop.xlane.xlu0 %5439
        %5441 = vadd.xlane.f32.xlu0 %v5410
        %v5442 = vpop.xlane.xlu0 %5441
        %5443 = vadd.xlane.f32.xlu0 %v5412
        %v5444 = vpop.xlane.xlu0 %5443
        %5445 = vadd.xlane.f32.xlu0 %v5414
        %v5446 = vpop.xlane.xlu0 %5445
        %5447 = vadd.xlane.f32.xlu0 %v5416
        %v5448 = vpop.xlane.xlu0 %5447
        %5449 = vadd.xlane.f32.xlu0 %v5418
        %v5450 = vpop.xlane.xlu0 %5449
        %5451 = vadd.xlane.f32.xlu0 %v5420
        %v5452 = vpop.xlane.xlu0 %5451
        %5453 = vadd.xlane.f32.xlu0 %v5422
        %v5454 = vpop.xlane.xlu0 %5453
        %5455 = vadd.xlane.f32.xlu0 %v5424
        %v5456 = vpop.xlane.xlu0 %5455
        %5457 = vadd.xlane.f32.xlu0 %v5426
        %v5458 = vpop.xlane.xlu0 %5457
        %v5459 = vrcp.pop %v5428
        %v5460 = vrcp.pop %v5430
        %v5461 = vrcp.pop %v5432
        %v5462 = vrcp.pop %v5434
        %v5463 = vrcp.pop %v5436
        %v5464 = vrcp.pop %v5438
        %v5465 = vrcp.pop %v5440
        %v5466 = vrcp.pop %v5442
        %v5467 = vrcp.pop %v5444
        %v5468 = vrcp.pop %v5446
        %v5469 = vrcp.pop %v5448
        %v5470 = vrcp.pop %v5450
        %v5471 = vrcp.pop %v5452
        %v5472 = vrcp.pop %v5454
        %v5473 = vrcp.pop %v5456
        %v5474 = vrcp.pop %v5458
        %v5475 = vpack.c.bf16 %v5398, %v5396
        %v5476 = vpack.c.bf16 %v5402, %v5400
        %v5477 = vpack.c.bf16 %v5406, %v5404
        %v5478 = vpack.c.bf16 %v5410, %v5408
        %v5479 = vpack.c.bf16 %v5414, %v5412
        %v5480 = vpack.c.bf16 %v5418, %v5416
        %v5481 = vpack.c.bf16 %v5422, %v5420
        %v5482 = vpack.c.bf16 %v5426, %v5424
        %5491 = vrot.lane.b32.xlu0 %v4600, 96
        %v5492 = vpop.permute.xlu0 %5491
        %5493 = vrot.lane.b32.xlu0 %v4601, 96
        %v5494 = vpop.permute.xlu0 %5493
        %5495 = vrot.lane.b32.xlu0 %v4602, 96
        %v5496 = vpop.permute.xlu0 %5495
        %5497 = vrot.lane.b32.xlu0 %v4603, 96
        %v5498 = vpop.permute.xlu0 %5497
        %5499 = vrot.lane.b32.xlu0 %v4604, 96
        %v5500 = vpop.permute.xlu0 %5499
        %5501 = vrot.lane.b32.xlu0 %v4605, 96
        %v5502 = vpop.permute.xlu0 %5501
        %5503 = vrot.lane.b32.xlu0 %v4606, 96
        %v5504 = vpop.permute.xlu0 %5503
        %5505 = vrot.lane.b32.xlu0 %v4607, 96
        %v5506 = vpop.permute.xlu0 %5505
        %5515 = vmatprep.subr.bf16.mxu0 0
        %5516 = vmatpush1.bf16.msra.mxu0 %v5492
        %5517 = vmatprep.subr.bf16.mxu0 0
        %5518 = vmatpush1.bf16.msra.mxu0 %v5494
        %5519 = vmatprep.subr.bf16.mxu0 0
        %5520 = vmatpush1.bf16.msra.mxu0 %v5496
        %5521 = vmatprep.subr.bf16.mxu0 0
        %5522 = vmatpush1.bf16.msra.mxu0 %v5498
        %5523 = vmatprep.subr.bf16.mxu0 0
        %5524 = vmatpush1.bf16.msra.mxu0 %v5500
        %5525 = vmatprep.subr.bf16.mxu0 0
        %5526 = vmatpush1.bf16.msra.mxu0 %v5502
        %5527 = vmatprep.subr.bf16.mxu0 0
        %5528 = vmatpush1.bf16.msra.mxu0 %v5504
        %5529 = vmatprep.subr.bf16.mxu0 0
        %5530 = vmatpush1.bf16.msra.mxu0 %v5506
        %5531 = vmatprep.subr.bf16.mxu0 0
        %5532 = vmatpush1.bf16.msra.mxu0 0
        %5533 = vmatprep.subr.bf16.mxu0 0
        %5534 = vmatpush1.bf16.msra.mxu0 0
        %5535 = vmatprep.subr.bf16.mxu0 0
        %5536 = vmatpush1.bf16.msra.mxu0 0
        %5537 = vmatprep.subr.bf16.mxu0 0
        %5538 = vmatpush1.bf16.msra.mxu0 0
        %5539 = vmatprep.subr.bf16.mxu0 0
        %5540 = vmatpush1.bf16.msra.mxu0 0
        %5541 = vmatprep.subr.bf16.mxu0 0
        %5542 = vmatpush1.bf16.msra.mxu0 0
        %5543 = vmatprep.subr.bf16.mxu0 0
        %5544 = vmatpush1.bf16.msra.mxu0 0
        %5545 = vmatprep.subr.bf16.mxu0 0
        %5546 = vmatpush1.bf16.msra.mxu0 0
        %5547 = vmatprep.mubr.bf16.mxu0 0
        %5548 = vmatmul.mubr.bf16.gmra.mrb[0].mxu0 %v5475
        %v5549 = vpop.f32.mrb[0].mxu0
        %v5550 = vadd.f32 0.0, %v5549
        %v5551 = vpop.f32.mrb[0].mxu0
        %v5552 = vpop.f32.mrb[0].mxu0
        %v5553 = vadd.f32 0.0, %v5552
        %v5554 = vpop.f32.mrb[0].mxu0
        %5555 = vmatprep.mubr.bf16.mxu0 0
        %5556 = vmatmul.mubr.bf16.gmra.mrb[0].mxu0 %v5476
        %v5557 = vpop.f32.mrb[0].mxu0
        %v5558 = vadd.f32 0.0, %v5557
        %v5559 = vpop.f32.mrb[0].mxu0
        %v5560 = vpop.f32.mrb[0].mxu0
        %v5561 = vadd.f32 0.0, %v5560
        %v5562 = vpop.f32.mrb[0].mxu0
        %5563 = vmatprep.mubr.bf16.mxu0 0
        %5564 = vmatmul.mubr.bf16.gmra.mrb[0].mxu0 %v5477
        %v5565 = vpop.f32.mrb[0].mxu0
        %v5566 = vadd.f32 0.0, %v5565
        %v5567 = vpop.f32.mrb[0].mxu0
        %v5568 = vpop.f32.mrb[0].mxu0
        %v5569 = vadd.f32 0.0, %v5568
        %v5570 = vpop.f32.mrb[0].mxu0
        %5571 = vmatprep.mubr.bf16.mxu0 0
        %5572 = vmatmul.mubr.bf16.gmra.mrb[0].mxu0 %v5478
        %v5573 = vpop.f32.mrb[0].mxu0
        %v5574 = vadd.f32 0.0, %v5573
        %v5575 = vpop.f32.mrb[0].mxu0
        %v5576 = vpop.f32.mrb[0].mxu0
        %v5577 = vadd.f32 0.0, %v5576
        %v5578 = vpop.f32.mrb[0].mxu0
        %5579 = vmatprep.mubr.bf16.mxu0 0
        %5580 = vmatmul.mubr.bf16.gmra.mrb[0].mxu0 %v5479
        %v5581 = vpop.f32.mrb[0].mxu0
        %v5582 = vadd.f32 0.0, %v5581
        %v5583 = vpop.f32.mrb[0].mxu0
        %v5584 = vpop.f32.mrb[0].mxu0
        %v5585 = vadd.f32 0.0, %v5584
        %v5586 = vpop.f32.mrb[0].mxu0
        %5587 = vmatprep.mubr.bf16.mxu0 0
        %5588 = vmatmul.mubr.bf16.gmra.mrb[0].mxu0 %v5480
        %v5589 = vpop.f32.mrb[0].mxu0
        %v5590 = vadd.f32 0.0, %v5589
        %v5591 = vpop.f32.mrb[0].mxu0
        %v5592 = vpop.f32.mrb[0].mxu0
        %v5593 = vadd.f32 0.0, %v5592
        %v5594 = vpop.f32.mrb[0].mxu0
        %5595 = vmatprep.mubr.bf16.mxu0 0
        %5596 = vmatmul.mubr.bf16.gmra.mrb[0].mxu0 %v5481
        %v5597 = vpop.f32.mrb[0].mxu0
        %v5598 = vadd.f32 0.0, %v5597
        %v5599 = vpop.f32.mrb[0].mxu0
        %v5600 = vpop.f32.mrb[0].mxu0
        %v5601 = vadd.f32 0.0, %v5600
        %v5602 = vpop.f32.mrb[0].mxu0
        %5603 = vmatprep.mubr.bf16.mxu0 0
        %5604 = vmatmul.mubr.bf16.gmra.mrb[0].mxu0 %v5482
        %v5605 = vpop.f32.mrb[0].mxu0
        %v5606 = vadd.f32 0.0, %v5605
        %v5607 = vpop.f32.mrb[0].mxu0
        %v5608 = vpop.f32.mrb[0].mxu0
        %v5609 = vadd.f32 0.0, %v5608
        %v5610 = vpop.f32.mrb[0].mxu0
        %5611 = vdwg.mxu0
        %v5612 = vmul.f32 %v5550, %v5459
        %v5613 = vmul.f32 %v5553, %v5460
        %v5614 = vmul.f32 %v5558, %v5461
        %v5615 = vmul.f32 %v5561, %v5462
        %v5616 = vmul.f32 %v5566, %v5463
        %v5617 = vmul.f32 %v5569, %v5464
        %v5618 = vmul.f32 %v5574, %v5465
        %v5619 = vmul.f32 %v5577, %v5466
        %v5620 = vmul.f32 %v5582, %v5467
        %v5621 = vmul.f32 %v5585, %v5468
        %v5622 = vmul.f32 %v5590, %v5469
        %v5623 = vmul.f32 %v5593, %v5470
        %v5624 = vmul.f32 %v5598, %v5471
        %v5625 = vmul.f32 %v5601, %v5472
        %v5626 = vmul.f32 %v5606, %v5473
        %v5627 = vmul.f32 %v5609, %v5474
        %v5628 = vadd.f32 %v5102, %v5612
        %v5629 = vadd.f32 %v5103, %v5613
        %v5630 = vadd.f32 %v5104, %v5614
        %v5631 = vadd.f32 %v5105, %v5615
        %v5632 = vadd.f32 %v5106, %v5616
        %v5633 = vadd.f32 %v5107, %v5617
        %v5634 = vadd.f32 %v5108, %v5618
        %v5635 = vadd.f32 %v5109, %v5619
        %v5636 = vadd.f32 %v5110, %v5620
        %v5637 = vadd.f32 %v5111, %v5621
        %v5638 = vadd.f32 %v5112, %v5622
        %v5639 = vadd.f32 %v5113, %v5623
        %v5640 = vadd.f32 %v5114, %v5624
        %v5641 = vadd.f32 %v5115, %v5625
        %v5642 = vadd.f32 %v5116, %v5626
        %v5643 = vadd.f32 %v5117, %v5627
        %5644 = vset.pattern.permute.xlu0 101
        %5645 = vperm.xlu0 %5644, %v4439
        %v5646 = vpop.permute.xlu0 %5645
        %5648 = vset.pattern.permute.xlu0 101
        %5649 = vperm.xlu0 %5648, %v4442
        %v5650 = vpop.permute.xlu0 %5649
        %5652 = vset.pattern.permute.xlu0 101
        %5653 = vperm.xlu0 %5652, %v4447
        %v5654 = vpop.permute.xlu0 %5653
        %5656 = vset.pattern.permute.xlu0 101
        %5657 = vperm.xlu0 %5656, %v4450
        %v5658 = vpop.permute.xlu0 %5657
        %5660 = vset.pattern.permute.xlu0 101
        %5661 = vperm.xlu0 %5660, %v4455
        %v5662 = vpop.permute.xlu0 %5661
        %5664 = vset.pattern.permute.xlu0 101
        %5665 = vperm.xlu0 %5664, %v4458
        %v5666 = vpop.permute.xlu0 %5665
        %5668 = vset.pattern.permute.xlu0 101
        %5669 = vperm.xlu0 %5668, %v4463
        %v5670 = vpop.permute.xlu0 %5669
        %5672 = vset.pattern.permute.xlu0 101
        %5673 = vperm.xlu0 %5672, %v4466
        %v5674 = vpop.permute.xlu0 %5673
        %5676 = vset.pattern.permute.xlu0 101
        %5677 = vperm.xlu0 %5676, %v4471
        %v5678 = vpop.permute.xlu0 %5677
        %5680 = vset.pattern.permute.xlu0 101
        %5681 = vperm.xlu0 %5680, %v4474
        %v5682 = vpop.permute.xlu0 %5681
        %5684 = vset.pattern.permute.xlu0 101
        %5685 = vperm.xlu0 %5684, %v4479
        %v5686 = vpop.permute.xlu0 %5685
        %5688 = vset.pattern.permute.xlu0 101
        %5689 = vperm.xlu0 %5688, %v4482
        %v5690 = vpop.permute.xlu0 %5689
        %5692 = vset.pattern.permute.xlu0 101
        %5693 = vperm.xlu0 %5692, %v4487
        %v5694 = vpop.permute.xlu0 %5693
        %5696 = vset.pattern.permute.xlu0 101
        %5697 = vperm.xlu0 %5696, %v4490
        %v5698 = vpop.permute.xlu0 %5697
        %5700 = vset.pattern.permute.xlu0 101
        %5701 = vperm.xlu0 %5700, %v4495
        %v5702 = vpop.permute.xlu0 %5701
        %5704 = vset.pattern.permute.xlu0 101
        %5705 = vperm.xlu0 %5704, %v4498
        %v5706 = vpop.permute.xlu0 %5705
        %v5708 = vsel %vm384, %v5646, 0.0
        %v5709 = vsel %vm385, %v5650, 0.0
        %v5710 = vsel %vm386, %v5654, 0.0
        %v5711 = vsel %vm387, %v5658, 0.0
        %v5712 = vsel %vm388, %v5662, 0.0
        %v5713 = vsel %vm389, %v5666, 0.0
        %v5714 = vsel %vm390, %v5670, 0.0
        %v5715 = vsel %vm391, %v5674, 0.0
        %v5716 = vsel %vm392, %v5678, 0.0
        %v5717 = vsel %vm393, %v5682, 0.0
        %v5718 = vsel %vm394, %v5686, 0.0
        %v5719 = vsel %vm395, %v5690, 0.0
        %v5720 = vsel %vm396, %v5694, 0.0
        %v5721 = vsel %vm397, %v5698, 0.0
        %v5722 = vsel %vm398, %v5702, 0.0
        %v5723 = vsel %vm399, %v5706, 0.0
        %v5724 = vadd.f32 %v5708, %v5709
        %v5725 = vadd.f32 %v5724, %v5710
        %v5726 = vadd.f32 %v5725, %v5711
        %v5727 = vadd.f32 %v5726, %v5712
        %v5728 = vadd.f32 %v5727, %v5713
        %v5729 = vadd.f32 %v5728, %v5714
        %v5730 = vadd.f32 %v5729, %v5715
        %v5731 = vadd.f32 %v5730, %v5716
        %v5732 = vadd.f32 %v5731, %v5717
        %v5733 = vadd.f32 %v5732, %v5718
        %v5734 = vadd.f32 %v5733, %v5719
        %v5735 = vadd.f32 %v5734, %v5720
        %v5736 = vadd.f32 %v5735, %v5721
        %v5737 = vadd.f32 %v5736, %v5722
        %v5738 = vadd.f32 %v5737, %v5723
        %v5739 = vrot.slane %v5738, 4
        %v5740 = vadd.f32 %v5738, %v5739
        %v5741 = vrot.slane %v5740, 2
        %v5742 = vadd.f32 %v5740, %v5741
        %v5743 = vrot.slane %v5742, 1
        %v5744 = vadd.f32 %v5742, %v5743
        %5745 = vset.pattern.permute.xlu0 98
        %5746 = vperm.xlu0 %5745, %v4439
        %v5747 = vpop.permute.xlu0 %5746
        %5749 = vset.pattern.permute.xlu0 98
        %5750 = vperm.xlu0 %5749, %v4442
        %v5751 = vpop.permute.xlu0 %5750
        %5753 = vset.pattern.permute.xlu0 98
        %5754 = vperm.xlu0 %5753, %v4447
        %v5755 = vpop.permute.xlu0 %5754
        %5757 = vset.pattern.permute.xlu0 98
        %5758 = vperm.xlu0 %5757, %v4450
        %v5759 = vpop.permute.xlu0 %5758
        %5761 = vset.pattern.permute.xlu0 98
        %5762 = vperm.xlu0 %5761, %v4455
        %v5763 = vpop.permute.xlu0 %5762
        %5765 = vset.pattern.permute.xlu0 98
        %5766 = vperm.xlu0 %5765, %v4458
        %v5767 = vpop.permute.xlu0 %5766
        %5769 = vset.pattern.permute.xlu0 98
        %5770 = vperm.xlu0 %5769, %v4463
        %v5771 = vpop.permute.xlu0 %5770
        %5773 = vset.pattern.permute.xlu0 98
        %5774 = vperm.xlu0 %5773, %v4466
        %v5775 = vpop.permute.xlu0 %5774
        %5777 = vset.pattern.permute.xlu0 98
        %5778 = vperm.xlu0 %5777, %v4471
        %v5779 = vpop.permute.xlu0 %5778
        %5781 = vset.pattern.permute.xlu0 98
        %5782 = vperm.xlu0 %5781, %v4474
        %v5783 = vpop.permute.xlu0 %5782
        %5785 = vset.pattern.permute.xlu0 98
        %5786 = vperm.xlu0 %5785, %v4479
        %v5787 = vpop.permute.xlu0 %5786
        %5789 = vset.pattern.permute.xlu0 98
        %5790 = vperm.xlu0 %5789, %v4482
        %v5791 = vpop.permute.xlu0 %5790
        %5793 = vset.pattern.permute.xlu0 98
        %5794 = vperm.xlu0 %5793, %v4487
        %v5795 = vpop.permute.xlu0 %5794
        %5797 = vset.pattern.permute.xlu0 98
        %5798 = vperm.xlu0 %5797, %v4490
        %v5799 = vpop.permute.xlu0 %5798
        %5801 = vset.pattern.permute.xlu0 98
        %5802 = vperm.xlu0 %5801, %v4495
        %v5803 = vpop.permute.xlu0 %5802
        %5805 = vset.pattern.permute.xlu0 98
        %5806 = vperm.xlu0 %5805, %v4498
        %v5807 = vpop.permute.xlu0 %5806
        %v5809 = vadd.f32 %v5747, %v5744
        %v5810 = vadd.f32 %v5751, %v5744
        %v5811 = vadd.f32 %v5755, %v5744
        %v5812 = vadd.f32 %v5759, %v5744
        %v5813 = vadd.f32 %v5763, %v5744
        %v5814 = vadd.f32 %v5767, %v5744
        %v5815 = vadd.f32 %v5771, %v5744
        %v5816 = vadd.f32 %v5775, %v5744
        %v5817 = vadd.f32 %v5779, %v5744
        %v5818 = vadd.f32 %v5783, %v5744
        %v5819 = vadd.f32 %v5787, %v5744
        %v5820 = vadd.f32 %v5791, %v5744
        %v5821 = vadd.f32 %v5795, %v5744
        %v5822 = vadd.f32 %v5799, %v5744
        %v5823 = vadd.f32 %v5803, %v5744
        %v5824 = vadd.f32 %v5807, %v5744
        %v5825 = vmul.f32 %v5809, 0.2
        %v5826 = vmul.f32 %v5810, 0.2
        %v5827 = vmul.f32 %v5811, 0.2
        %v5828 = vmul.f32 %v5812, 0.2
        %v5829 = vmul.f32 %v5813, 0.2
        %v5830 = vmul.f32 %v5814, 0.2
        %v5831 = vmul.f32 %v5815, 0.2
        %v5832 = vmul.f32 %v5816, 0.2
        %v5833 = vmul.f32 %v5817, 0.2
        %v5834 = vmul.f32 %v5818, 0.2
        %v5835 = vmul.f32 %v5819, 0.2
        %v5836 = vmul.f32 %v5820, 0.2
        %v5837 = vmul.f32 %v5821, 0.2
        %v5838 = vmul.f32 %v5822, 0.2
        %v5839 = vmul.f32 %v5823, 0.2
        %v5840 = vmul.f32 %v5824, 0.2
        %v5841 = vmax.f32 %v5809, %v5825
        %v5842 = vmax.f32 %v5810, %v5826
        %v5843 = vmax.f32 %v5811, %v5827
        %v5844 = vmax.f32 %v5812, %v5828
        %v5845 = vmax.f32 %v5813, %v5829
        %v5846 = vmax.f32 %v5814, %v5830
        %v5847 = vmax.f32 %v5815, %v5831
        %v5848 = vmax.f32 %v5816, %v5832
        %v5849 = vmax.f32 %v5817, %v5833
        %v5850 = vmax.f32 %v5818, %v5834
        %v5851 = vmax.f32 %v5819, %v5835
        %v5852 = vmax.f32 %v5820, %v5836
        %v5853 = vmax.f32 %v5821, %v5837
        %v5854 = vmax.f32 %v5822, %v5838
        %v5855 = vmax.f32 %v5823, %v5839
        %v5856 = vmax.f32 %v5824, %v5840
        %v5857 = vsel %vm4581, %v5841, -1e+30
        %v5858 = vsel %vm4582, %v5842, -1e+30
        %v5859 = vsel %vm4583, %v5843, -1e+30
        %v5860 = vsel %vm4584, %v5844, -1e+30
        %v5861 = vsel %vm4585, %v5845, -1e+30
        %v5862 = vsel %vm4586, %v5846, -1e+30
        %v5863 = vsel %vm4587, %v5847, -1e+30
        %v5864 = vsel %vm4588, %v5848, -1e+30
        %v5865 = vsel %vm4589, %v5849, -1e+30
        %v5866 = vsel %vm4590, %v5850, -1e+30
        %v5867 = vsel %vm4591, %v5851, -1e+30
        %v5868 = vsel %vm4592, %v5852, -1e+30
        %v5869 = vsel %vm4593, %v5853, -1e+30
        %v5870 = vsel %vm4594, %v5854, -1e+30
        %v5871 = vsel %vm4595, %v5855, -1e+30
        %v5872 = vsel %vm4596, %v5856, -1e+30
        %5873 = vmax.xlane.f32.xlu0 %v5857
        %v5874 = vpop.xlane.xlu0 %5873
        %5875 = vmax.xlane.f32.xlu0 %v5858
        %v5876 = vpop.xlane.xlu0 %5875
        %5877 = vmax.xlane.f32.xlu0 %v5859
        %v5878 = vpop.xlane.xlu0 %5877
        %5879 = vmax.xlane.f32.xlu0 %v5860
        %v5880 = vpop.xlane.xlu0 %5879
        %5881 = vmax.xlane.f32.xlu0 %v5861
        %v5882 = vpop.xlane.xlu0 %5881
        %5883 = vmax.xlane.f32.xlu0 %v5862
        %v5884 = vpop.xlane.xlu0 %5883
        %5885 = vmax.xlane.f32.xlu0 %v5863
        %v5886 = vpop.xlane.xlu0 %5885
        %5887 = vmax.xlane.f32.xlu0 %v5864
        %v5888 = vpop.xlane.xlu0 %5887
        %5889 = vmax.xlane.f32.xlu0 %v5865
        %v5890 = vpop.xlane.xlu0 %5889
        %5891 = vmax.xlane.f32.xlu0 %v5866
        %v5892 = vpop.xlane.xlu0 %5891
        %5893 = vmax.xlane.f32.xlu0 %v5867
        %v5894 = vpop.xlane.xlu0 %5893
        %5895 = vmax.xlane.f32.xlu0 %v5868
        %v5896 = vpop.xlane.xlu0 %5895
        %5897 = vmax.xlane.f32.xlu0 %v5869
        %v5898 = vpop.xlane.xlu0 %5897
        %5899 = vmax.xlane.f32.xlu0 %v5870
        %v5900 = vpop.xlane.xlu0 %5899
        %5901 = vmax.xlane.f32.xlu0 %v5871
        %v5902 = vpop.xlane.xlu0 %5901
        %5903 = vmax.xlane.f32.xlu0 %v5872
        %v5904 = vpop.xlane.xlu0 %5903
        %v5905 = vsub.f32 %v5857, %v5874
        %v5906 = vsub.f32 %v5858, %v5876
        %v5907 = vsub.f32 %v5859, %v5878
        %v5908 = vsub.f32 %v5860, %v5880
        %v5909 = vsub.f32 %v5861, %v5882
        %v5910 = vsub.f32 %v5862, %v5884
        %v5911 = vsub.f32 %v5863, %v5886
        %v5912 = vsub.f32 %v5864, %v5888
        %v5913 = vsub.f32 %v5865, %v5890
        %v5914 = vsub.f32 %v5866, %v5892
        %v5915 = vsub.f32 %v5867, %v5894
        %v5916 = vsub.f32 %v5868, %v5896
        %v5917 = vsub.f32 %v5869, %v5898
        %v5918 = vsub.f32 %v5870, %v5900
        %v5919 = vsub.f32 %v5871, %v5902
        %v5920 = vsub.f32 %v5872, %v5904
        %v5921 = vmul.f32 %v5905, 1.442695
        %v5922 = vpow.pop %v5921
        %v5923 = vmul.f32 %v5906, 1.442695
        %v5924 = vpow.pop %v5923
        %v5925 = vmul.f32 %v5907, 1.442695
        %v5926 = vpow.pop %v5925
        %v5927 = vmul.f32 %v5908, 1.442695
        %v5928 = vpow.pop %v5927
        %v5929 = vmul.f32 %v5909, 1.442695
        %v5930 = vpow.pop %v5929
        %v5931 = vmul.f32 %v5910, 1.442695
        %v5932 = vpow.pop %v5931
        %v5933 = vmul.f32 %v5911, 1.442695
        %v5934 = vpow.pop %v5933
        %v5935 = vmul.f32 %v5912, 1.442695
        %v5936 = vpow.pop %v5935
        %v5937 = vmul.f32 %v5913, 1.442695
        %v5938 = vpow.pop %v5937
        %v5939 = vmul.f32 %v5914, 1.442695
        %v5940 = vpow.pop %v5939
        %v5941 = vmul.f32 %v5915, 1.442695
        %v5942 = vpow.pop %v5941
        %v5943 = vmul.f32 %v5916, 1.442695
        %v5944 = vpow.pop %v5943
        %v5945 = vmul.f32 %v5917, 1.442695
        %v5946 = vpow.pop %v5945
        %v5947 = vmul.f32 %v5918, 1.442695
        %v5948 = vpow.pop %v5947
        %v5949 = vmul.f32 %v5919, 1.442695
        %v5950 = vpow.pop %v5949
        %v5951 = vmul.f32 %v5920, 1.442695
        %v5952 = vpow.pop %v5951
        %5953 = vadd.xlane.f32.xlu0 %v5922
        %v5954 = vpop.xlane.xlu0 %5953
        %5955 = vadd.xlane.f32.xlu0 %v5924
        %v5956 = vpop.xlane.xlu0 %5955
        %5957 = vadd.xlane.f32.xlu0 %v5926
        %v5958 = vpop.xlane.xlu0 %5957
        %5959 = vadd.xlane.f32.xlu0 %v5928
        %v5960 = vpop.xlane.xlu0 %5959
        %5961 = vadd.xlane.f32.xlu0 %v5930
        %v5962 = vpop.xlane.xlu0 %5961
        %5963 = vadd.xlane.f32.xlu0 %v5932
        %v5964 = vpop.xlane.xlu0 %5963
        %5965 = vadd.xlane.f32.xlu0 %v5934
        %v5966 = vpop.xlane.xlu0 %5965
        %5967 = vadd.xlane.f32.xlu0 %v5936
        %v5968 = vpop.xlane.xlu0 %5967
        %5969 = vadd.xlane.f32.xlu0 %v5938
        %v5970 = vpop.xlane.xlu0 %5969
        %5971 = vadd.xlane.f32.xlu0 %v5940
        %v5972 = vpop.xlane.xlu0 %5971
        %5973 = vadd.xlane.f32.xlu0 %v5942
        %v5974 = vpop.xlane.xlu0 %5973
        %5975 = vadd.xlane.f32.xlu0 %v5944
        %v5976 = vpop.xlane.xlu0 %5975
        %5977 = vadd.xlane.f32.xlu0 %v5946
        %v5978 = vpop.xlane.xlu0 %5977
        %5979 = vadd.xlane.f32.xlu0 %v5948
        %v5980 = vpop.xlane.xlu0 %5979
        %5981 = vadd.xlane.f32.xlu0 %v5950
        %v5982 = vpop.xlane.xlu0 %5981
        %5983 = vadd.xlane.f32.xlu0 %v5952
        %v5984 = vpop.xlane.xlu0 %5983
        %v5985 = vrcp.pop %v5954
        %v5986 = vrcp.pop %v5956
        %v5987 = vrcp.pop %v5958
        %v5988 = vrcp.pop %v5960
        %v5989 = vrcp.pop %v5962
        %v5990 = vrcp.pop %v5964
        %v5991 = vrcp.pop %v5966
        %v5992 = vrcp.pop %v5968
        %v5993 = vrcp.pop %v5970
        %v5994 = vrcp.pop %v5972
        %v5995 = vrcp.pop %v5974
        %v5996 = vrcp.pop %v5976
        %v5997 = vrcp.pop %v5978
        %v5998 = vrcp.pop %v5980
        %v5999 = vrcp.pop %v5982
        %v6000 = vrcp.pop %v5984
        %v6001 = vpack.c.bf16 %v5924, %v5922
        %v6002 = vpack.c.bf16 %v5928, %v5926
        %v6003 = vpack.c.bf16 %v5932, %v5930
        %v6004 = vpack.c.bf16 %v5936, %v5934
        %v6005 = vpack.c.bf16 %v5940, %v5938
        %v6006 = vpack.c.bf16 %v5944, %v5942
        %v6007 = vpack.c.bf16 %v5948, %v5946
        %v6008 = vpack.c.bf16 %v5952, %v5950
        %6009 = vrot.lane.b32.xlu0 %v4600, 64
        %v6010 = vpop.permute.xlu0 %6009
        %6011 = vrot.lane.b32.xlu0 %v4601, 64
        %v6012 = vpop.permute.xlu0 %6011
        %6013 = vrot.lane.b32.xlu0 %v4602, 64
        %v6014 = vpop.permute.xlu0 %6013
        %6015 = vrot.lane.b32.xlu0 %v4603, 64
        %v6016 = vpop.permute.xlu0 %6015
        %6017 = vrot.lane.b32.xlu0 %v4604, 64
        %v6018 = vpop.permute.xlu0 %6017
        %6019 = vrot.lane.b32.xlu0 %v4605, 64
        %v6020 = vpop.permute.xlu0 %6019
        %6021 = vrot.lane.b32.xlu0 %v4606, 64
        %v6022 = vpop.permute.xlu0 %6021
        %6023 = vrot.lane.b32.xlu0 %v4607, 64
        %v6024 = vpop.permute.xlu0 %6023
        %6033 = vmatprep.subr.bf16.mxu0 0
        %6034 = vmatpush1.bf16.msra.mxu0 %v6010
        %6035 = vmatprep.subr.bf16.mxu0 0
        %6036 = vmatpush1.bf16.msra.mxu0 %v6012
        %6037 = vmatprep.subr.bf16.mxu0 0
        %6038 = vmatpush1.bf16.msra.mxu0 %v6014
        %6039 = vmatprep.subr.bf16.mxu0 0
        %6040 = vmatpush1.bf16.msra.mxu0 %v6016
        %6041 = vmatprep.subr.bf16.mxu0 0
        %6042 = vmatpush1.bf16.msra.mxu0 %v6018
        %6043 = vmatprep.subr.bf16.mxu0 0
        %6044 = vmatpush1.bf16.msra.mxu0 %v6020
        %6045 = vmatprep.subr.bf16.mxu0 0
        %6046 = vmatpush1.bf16.msra.mxu0 %v6022
        %6047 = vmatprep.subr.bf16.mxu0 0
        %6048 = vmatpush1.bf16.msra.mxu0 %v6024
        %6049 = vmatprep.subr.bf16.mxu0 0
        %6050 = vmatpush1.bf16.msra.mxu0 0
        %6051 = vmatprep.subr.bf16.mxu0 0
        %6052 = vmatpush1.bf16.msra.mxu0 0
        %6053 = vmatprep.subr.bf16.mxu0 0
        %6054 = vmatpush1.bf16.msra.mxu0 0
        %6055 = vmatprep.subr.bf16.mxu0 0
        %6056 = vmatpush1.bf16.msra.mxu0 0
        %6057 = vmatprep.subr.bf16.mxu0 0
        %6058 = vmatpush1.bf16.msra.mxu0 0
        %6059 = vmatprep.subr.bf16.mxu0 0
        %6060 = vmatpush1.bf16.msra.mxu0 0
        %6061 = vmatprep.subr.bf16.mxu0 0
        %6062 = vmatpush1.bf16.msra.mxu0 0
        %6063 = vmatprep.subr.bf16.mxu0 0
        %6064 = vmatpush1.bf16.msra.mxu0 0
        %6065 = vmatprep.mubr.bf16.mxu0 0
        %6066 = vmatmul.mubr.bf16.gmra.mrb[0].mxu0 %v6001
        %v6067 = vpop.f32.mrb[0].mxu0
        %v6068 = vadd.f32 0.0, %v6067
        %v6069 = vpop.f32.mrb[0].mxu0
        %v6070 = vpop.f32.mrb[0].mxu0
        %v6071 = vadd.f32 0.0, %v6070
        %v6072 = vpop.f32.mrb[0].mxu0
        %6073 = vmatprep.mubr.bf16.mxu0 0
        %6074 = vmatmul.mubr.bf16.gmra.mrb[0].mxu0 %v6002
        %v6075 = vpop.f32.mrb[0].mxu0
        %v6076 = vadd.f32 0.0, %v6075
        %v6077 = vpop.f32.mrb[0].mxu0
        %v6078 = vpop.f32.mrb[0].mxu0
        %v6079 = vadd.f32 0.0, %v6078
        %v6080 = vpop.f32.mrb[0].mxu0
        %6081 = vmatprep.mubr.bf16.mxu0 0
        %6082 = vmatmul.mubr.bf16.gmra.mrb[0].mxu0 %v6003
        %v6083 = vpop.f32.mrb[0].mxu0
        %v6084 = vadd.f32 0.0, %v6083
        %v6085 = vpop.f32.mrb[0].mxu0
        %v6086 = vpop.f32.mrb[0].mxu0
        %v6087 = vadd.f32 0.0, %v6086
        %v6088 = vpop.f32.mrb[0].mxu0
        %6089 = vmatprep.mubr.bf16.mxu0 0
        %6090 = vmatmul.mubr.bf16.gmra.mrb[0].mxu0 %v6004
        %v6091 = vpop.f32.mrb[0].mxu0
        %v6092 = vadd.f32 0.0, %v6091
        %v6093 = vpop.f32.mrb[0].mxu0
        %v6094 = vpop.f32.mrb[0].mxu0
        %v6095 = vadd.f32 0.0, %v6094
        %v6096 = vpop.f32.mrb[0].mxu0
        %6097 = vmatprep.mubr.bf16.mxu0 0
        %6098 = vmatmul.mubr.bf16.gmra.mrb[0].mxu0 %v6005
        %v6099 = vpop.f32.mrb[0].mxu0
        %v6100 = vadd.f32 0.0, %v6099
        %v6101 = vpop.f32.mrb[0].mxu0
        %v6102 = vpop.f32.mrb[0].mxu0
        %v6103 = vadd.f32 0.0, %v6102
        %v6104 = vpop.f32.mrb[0].mxu0
        %6105 = vmatprep.mubr.bf16.mxu0 0
        %6106 = vmatmul.mubr.bf16.gmra.mrb[0].mxu0 %v6006
        %v6107 = vpop.f32.mrb[0].mxu0
        %v6108 = vadd.f32 0.0, %v6107
        %v6109 = vpop.f32.mrb[0].mxu0
        %v6110 = vpop.f32.mrb[0].mxu0
        %v6111 = vadd.f32 0.0, %v6110
        %v6112 = vpop.f32.mrb[0].mxu0
        %6113 = vmatprep.mubr.bf16.mxu0 0
        %6114 = vmatmul.mubr.bf16.gmra.mrb[0].mxu0 %v6007
        %v6115 = vpop.f32.mrb[0].mxu0
        %v6116 = vadd.f32 0.0, %v6115
        %v6117 = vpop.f32.mrb[0].mxu0
        %v6118 = vpop.f32.mrb[0].mxu0
        %v6119 = vadd.f32 0.0, %v6118
        %v6120 = vpop.f32.mrb[0].mxu0
        %6121 = vmatprep.mubr.bf16.mxu0 0
        %6122 = vmatmul.mubr.bf16.gmra.mrb[0].mxu0 %v6008
        %v6123 = vpop.f32.mrb[0].mxu0
        %v6124 = vadd.f32 0.0, %v6123
        %v6125 = vpop.f32.mrb[0].mxu0
        %v6126 = vpop.f32.mrb[0].mxu0
        %v6127 = vadd.f32 0.0, %v6126
        %v6128 = vpop.f32.mrb[0].mxu0
        %6129 = vdwg.mxu0
        %v6130 = vmul.f32 %v6068, %v5985
        %v6131 = vmul.f32 %v6071, %v5986
        %v6132 = vmul.f32 %v6076, %v5987
        %v6133 = vmul.f32 %v6079, %v5988
        %v6134 = vmul.f32 %v6084, %v5989
        %v6135 = vmul.f32 %v6087, %v5990
        %v6136 = vmul.f32 %v6092, %v5991
        %v6137 = vmul.f32 %v6095, %v5992
        %v6138 = vmul.f32 %v6100, %v5993
        %v6139 = vmul.f32 %v6103, %v5994
        %v6140 = vmul.f32 %v6108, %v5995
        %v6141 = vmul.f32 %v6111, %v5996
        %v6142 = vmul.f32 %v6116, %v5997
        %v6143 = vmul.f32 %v6119, %v5998
        %v6144 = vmul.f32 %v6124, %v5999
        %v6145 = vmul.f32 %v6127, %v6000
        %v6146 = vadd.f32 %v5628, %v6130
        %v6147 = vadd.f32 %v5629, %v6131
        %v6148 = vadd.f32 %v5630, %v6132
        %v6149 = vadd.f32 %v5631, %v6133
        %v6150 = vadd.f32 %v5632, %v6134
        %v6151 = vadd.f32 %v5633, %v6135
        %v6152 = vadd.f32 %v5634, %v6136
        %v6153 = vadd.f32 %v5635, %v6137
        %v6154 = vadd.f32 %v5636, %v6138
        %v6155 = vadd.f32 %v5637, %v6139
        %v6156 = vadd.f32 %v5638, %v6140
        %v6157 = vadd.f32 %v5639, %v6141
        %v6158 = vadd.f32 %v5640, %v6142
        %v6159 = vadd.f32 %v5641, %v6143
        %v6160 = vadd.f32 %v5642, %v6144
        %v6161 = vadd.f32 %v5643, %v6145
        %v6162 = vmul.f32 %v6146, 0.33333334
        %v6163 = vmul.f32 %v6147, 0.33333334
        %v6164 = vmul.f32 %v6148, 0.33333334
        %v6165 = vmul.f32 %v6149, 0.33333334
        %v6166 = vmul.f32 %v6150, 0.33333334
        %v6167 = vmul.f32 %v6151, 0.33333334
        %v6168 = vmul.f32 %v6152, 0.33333334
        %v6169 = vmul.f32 %v6153, 0.33333334
        %v6170 = vmul.f32 %v6154, 0.33333334
        %v6171 = vmul.f32 %v6155, 0.33333334
        %v6172 = vmul.f32 %v6156, 0.33333334
        %v6173 = vmul.f32 %v6157, 0.33333334
        %v6174 = vmul.f32 %v6158, 0.33333334
        %v6175 = vmul.f32 %v6159, 0.33333334
        %v6176 = vmul.f32 %v6160, 0.33333334
        %v6177 = vmul.f32 %v6161, 0.33333334
        %v6179 = vlaneseq
        %v6180 = vshrl.u32 %v6179, 7
        %v6181 = vsub.s32 0, %v6180
        %v6182 = vrot.slane %v4599, %v6181
        %v6184 = vadd.f32 %v6162, %v6182
        %v6185 = vadd.f32 %v6163, %v6182
        %v6186 = vadd.f32 %v6164, %v6182
        %v6187 = vadd.f32 %v6165, %v6182
        %v6188 = vadd.f32 %v6166, %v6182
        %v6189 = vadd.f32 %v6167, %v6182
        %v6190 = vadd.f32 %v6168, %v6182
        %v6191 = vadd.f32 %v6169, %v6182
        %v6192 = vadd.f32 %v6170, %v6182
        %v6193 = vadd.f32 %v6171, %v6182
        %v6194 = vadd.f32 %v6172, %v6182
        %v6195 = vadd.f32 %v6173, %v6182
        %v6196 = vadd.f32 %v6174, %v6182
        %v6197 = vadd.f32 %v6175, %v6182
        %v6198 = vadd.f32 %v6176, %v6182
        %v6199 = vadd.f32 %v6177, %v6182
        %v6200 = vstv %s4597
        %v6201 = vmul.f32 %v6184, %v6200
        %v6202 = vmul.f32 %v6185, %v6200
        %v6203 = vmul.f32 %v6186, %v6200
        %v6204 = vmul.f32 %v6187, %v6200
        %v6205 = vmul.f32 %v6188, %v6200
        %v6206 = vmul.f32 %v6189, %v6200
        %v6207 = vmul.f32 %v6190, %v6200
        %v6208 = vmul.f32 %v6191, %v6200
        %v6209 = vmul.f32 %v6192, %v6200
        %v6210 = vmul.f32 %v6193, %v6200
        %v6211 = vmul.f32 %v6194, %v6200
        %v6212 = vmul.f32 %v6195, %v6200
        %v6213 = vmul.f32 %v6196, %v6200
        %v6214 = vmul.f32 %v6197, %v6200
        %v6215 = vmul.f32 %v6198, %v6200
        %v6216 = vmul.f32 %v6199, %v6200
        %v6217 = vmax.f32 %v6201, 0.0
        %v6218 = vmax.f32 %v6202, 0.0
        %v6219 = vmax.f32 %v6203, 0.0
        %v6220 = vmax.f32 %v6204, 0.0
        %v6221 = vmax.f32 %v6205, 0.0
        %v6222 = vmax.f32 %v6206, 0.0
        %v6223 = vmax.f32 %v6207, 0.0
        %v6224 = vmax.f32 %v6208, 0.0
        %v6225 = vmax.f32 %v6209, 0.0
        %v6226 = vmax.f32 %v6210, 0.0
        %v6227 = vmax.f32 %v6211, 0.0
        %v6228 = vmax.f32 %v6212, 0.0
        %v6229 = vmax.f32 %v6213, 0.0
        %v6230 = vmax.f32 %v6214, 0.0
        %v6231 = vmax.f32 %v6215, 0.0
        %v6232 = vmax.f32 %v6216, 0.0
        %v6233 = vadd.f32 %v4372, %v6217
        %v6234 = vadd.f32 %v4373, %v6218
        %v6235 = vadd.f32 %v4374, %v6219
        %v6236 = vadd.f32 %v4375, %v6220
        %v6237 = vadd.f32 %v4376, %v6221
        %v6238 = vadd.f32 %v4377, %v6222
        %v6239 = vadd.f32 %v4378, %v6223
        %v6240 = vadd.f32 %v4379, %v6224
        %v6241 = vadd.f32 %v4380, %v6225
        %v6242 = vadd.f32 %v4381, %v6226
        %v6243 = vadd.f32 %v4382, %v6227
        %v6244 = vadd.f32 %v4383, %v6228
        %v6245 = vadd.f32 %v4384, %v6229
        %v6246 = vadd.f32 %v4385, %v6230
        %v6247 = vadd.f32 %v4386, %v6231
        %v6248 = vadd.f32 %v4387, %v6232
        %v6249 = vld [vmem:[%s5 + $0x8] sm:$0xf]
        %v6250 = vld [vmem:[%s5 + $0x14] sm:$0xf]
        %v6251 = vld [vmem:[%s5 + $0x20] sm:$0xf]
        %v6252 = vld [vmem:[%s5 + $0x2c] sm:$0xf]
        %v6257 = vunpack.c.l.b16 %v6249
        %v6258 = vunpack.c.l.b16 %v6250
        %v6259 = vunpack.c.l.b16 %v6251
        %v6260 = vunpack.c.l.b16 %v6252
        %v6261 = vpack.c.b16 %v6258, %v6257
        %v6262 = vpack.c.b16 %v6260, %v6259
        %6265 = vmatprep.subr.bf16.mxu0 0
        %6266 = vmatpush1.bf16.msra.mxu0 %v6261
        %6267 = vmatprep.subr.bf16.mxu0 0
        %6268 = vmatpush1.bf16.msra.mxu0 %v6262
        %6269 = vmatprep.subr.bf16.mxu0 0
        %6270 = vmatpush1.bf16.msra.mxu0 0
        %6271 = vmatprep.subr.bf16.mxu0 0
        %6272 = vmatpush1.bf16.msra.mxu0 0
        %6273 = vmatprep.subr.bf16.mxu0 0
        %6274 = vmatpush1.bf16.msra.mxu0 0
        %6275 = vmatprep.subr.bf16.mxu0 0
        %6276 = vmatpush1.bf16.msra.mxu0 0
        %6277 = vmatprep.subr.bf16.mxu0 0
        %6278 = vmatpush1.bf16.msra.mxu0 0
        %6279 = vmatprep.subr.bf16.mxu0 0
        %6280 = vmatpush1.bf16.msra.mxu0 0
        %6281 = vmatprep.subr.bf16.mxu0 0
        %6282 = vmatpush1.bf16.msra.mxu0 0
        %6283 = vmatprep.subr.bf16.mxu0 0
        %6284 = vmatpush1.bf16.msra.mxu0 0
        %6285 = vmatprep.subr.bf16.mxu0 0
        %6286 = vmatpush1.bf16.msra.mxu0 0
        %6287 = vmatprep.subr.bf16.mxu0 0
        %6288 = vmatpush1.bf16.msra.mxu0 0
        %6289 = vmatprep.subr.bf16.mxu0 0
        %6290 = vmatpush1.bf16.msra.mxu0 0
        %6291 = vmatprep.subr.bf16.mxu0 0
        %6292 = vmatpush1.bf16.msra.mxu0 0
        %6293 = vmatprep.subr.bf16.mxu0 0
        %6294 = vmatpush1.bf16.msra.mxu0 0
        %6295 = vmatprep.subr.bf16.mxu0 0
        %6296 = vmatpush1.bf16.msra.mxu0 0
        %6297 = vmatprep.mubr.bf16.mxu0 0
        %6298 = vmatmul.mubr.bf16.gmra.mrb[0].mxu0 %v2551
        %v6299 = vpop.f32.mrb[0].mxu0
        %v6300 = vadd.f32 0.0, %v6299
        %v6301 = vpop.f32.mrb[0].mxu0
        %v6302 = vpop.f32.mrb[0].mxu0
        %v6303 = vadd.f32 0.0, %v6302
        %v6304 = vpop.f32.mrb[0].mxu0
        %6305 = vmatprep.mubr.bf16.mxu0 0
        %6306 = vmatmul.mubr.bf16.gmra.mrb[0].mxu0 %v2554
        %v6307 = vpop.f32.mrb[0].mxu0
        %v6308 = vadd.f32 0.0, %v6307
        %v6309 = vpop.f32.mrb[0].mxu0
        %v6310 = vpop.f32.mrb[0].mxu0
        %v6311 = vadd.f32 0.0, %v6310
        %v6312 = vpop.f32.mrb[0].mxu0
        %6313 = vmatprep.mubr.bf16.mxu0 0
        %6314 = vmatmul.mubr.bf16.gmra.mrb[0].mxu0 %v2557
        %v6315 = vpop.f32.mrb[0].mxu0
        %v6316 = vadd.f32 0.0, %v6315
        %v6317 = vpop.f32.mrb[0].mxu0
        %v6318 = vpop.f32.mrb[0].mxu0
        %v6319 = vadd.f32 0.0, %v6318
        %v6320 = vpop.f32.mrb[0].mxu0
        %6321 = vmatprep.mubr.bf16.mxu0 0
        %6322 = vmatmul.mubr.bf16.gmra.mrb[0].mxu0 %v2560
        %v6323 = vpop.f32.mrb[0].mxu0
        %v6324 = vadd.f32 0.0, %v6323
        %v6325 = vpop.f32.mrb[0].mxu0
        %v6326 = vpop.f32.mrb[0].mxu0
        %v6327 = vadd.f32 0.0, %v6326
        %v6328 = vpop.f32.mrb[0].mxu0
        %6329 = vmatprep.mubr.bf16.mxu0 0
        %6330 = vmatmul.mubr.bf16.gmra.mrb[0].mxu0 %v2563
        %v6331 = vpop.f32.mrb[0].mxu0
        %v6332 = vadd.f32 0.0, %v6331
        %v6333 = vpop.f32.mrb[0].mxu0
        %v6334 = vpop.f32.mrb[0].mxu0
        %v6335 = vadd.f32 0.0, %v6334
        %v6336 = vpop.f32.mrb[0].mxu0
        %6337 = vmatprep.mubr.bf16.mxu0 0
        %6338 = vmatmul.mubr.bf16.gmra.mrb[0].mxu0 %v2566
        %v6339 = vpop.f32.mrb[0].mxu0
        %v6340 = vadd.f32 0.0, %v6339
        %v6341 = vpop.f32.mrb[0].mxu0
        %v6342 = vpop.f32.mrb[0].mxu0
        %v6343 = vadd.f32 0.0, %v6342
        %v6344 = vpop.f32.mrb[0].mxu0
        %6345 = vmatprep.mubr.bf16.mxu0 0
        %6346 = vmatmul.mubr.bf16.gmra.mrb[0].mxu0 %v2569
        %v6347 = vpop.f32.mrb[0].mxu0
        %v6348 = vadd.f32 0.0, %v6347
        %v6349 = vpop.f32.mrb[0].mxu0
        %v6350 = vpop.f32.mrb[0].mxu0
        %v6351 = vadd.f32 0.0, %v6350
        %v6352 = vpop.f32.mrb[0].mxu0
        %6353 = vmatprep.mubr.bf16.mxu0 0
        %6354 = vmatmul.mubr.bf16.gmra.mrb[0].mxu0 %v2572
        %v6355 = vpop.f32.mrb[0].mxu0
        %v6356 = vadd.f32 0.0, %v6355
        %v6357 = vpop.f32.mrb[0].mxu0
        %v6358 = vpop.f32.mrb[0].mxu0
        %v6359 = vadd.f32 0.0, %v6358
        %v6360 = vpop.f32.mrb[0].mxu0
        %6361 = vdwg.mxu0
        %vm6362 = vcmp.lt.s32.totalorder %v383, %v2671
        %vm6363 = vmand %vm4533, %vm6362
        %vm6364 = vmand %vm4534, %vm6362
        %vm6365 = vmand %vm4535, %vm6362
        %vm6366 = vmand %vm4536, %vm6362
        %vm6367 = vmand %vm4537, %vm6362
        %vm6368 = vmand %vm4538, %vm6362
        %vm6369 = vmand %vm4539, %vm6362
        %vm6370 = vmand %vm4540, %vm6362
        %vm6371 = vmand %vm4541, %vm6362
        %vm6372 = vmand %vm4542, %vm6362
        %vm6373 = vmand %vm4543, %vm6362
        %vm6374 = vmand %vm4544, %vm6362
        %vm6375 = vmand %vm4545, %vm6362
        %vm6376 = vmand %vm4546, %vm6362
        %vm6377 = vmand %vm4547, %vm6362
        %vm6378 = vmand %vm4548, %vm6362
        %vm6379 = vmor %vm6363, %vm384
        %vm6380 = vmor %vm6364, %vm385
        %vm6381 = vmor %vm6365, %vm386
        %vm6382 = vmor %vm6366, %vm387
        %vm6383 = vmor %vm6367, %vm388
        %vm6384 = vmor %vm6368, %vm389
        %vm6385 = vmor %vm6369, %vm390
        %vm6386 = vmor %vm6370, %vm391
        %vm6387 = vmor %vm6371, %vm392
        %vm6388 = vmor %vm6372, %vm393
        %vm6389 = vmor %vm6373, %vm394
        %vm6390 = vmor %vm6374, %vm395
        %vm6391 = vmor %vm6375, %vm396
        %vm6392 = vmor %vm6376, %vm397
        %vm6393 = vmor %vm6377, %vm398
        %vm6394 = vmor %vm6378, %vm399
        %s6395 = sadd.s32 %s359, 3
        %s6396 = sld [smem:[#allocation5 + %s6395]]
        %s6397 = scalar_lea.vmem %s6, 3
        %v6398 = vld [vmem:[%s6397] sm:$0x1]
        %v6399 = vpack.c.bf16 %v6303, %v6300
        %v6400 = vpack.c.bf16 %v6311, %v6308
        %v6401 = vpack.c.bf16 %v6319, %v6316
        %v6402 = vpack.c.bf16 %v6327, %v6324
        %v6403 = vpack.c.bf16 %v6335, %v6332
        %v6404 = vpack.c.bf16 %v6343, %v6340
        %v6405 = vpack.c.bf16 %v6351, %v6348
        %v6406 = vpack.c.bf16 %v6359, %v6356
        %6408 = vset.pattern.permute.xlu0 99
        %6409 = vperm.xlu0 %6408, %v6300
        %v6410 = vpop.permute.xlu0 %6409
        %6413 = vset.pattern.permute.xlu0 99
        %6414 = vperm.xlu0 %6413, %v6303
        %v6415 = vpop.permute.xlu0 %6414
        %6418 = vset.pattern.permute.xlu0 99
        %6419 = vperm.xlu0 %6418, %v6308
        %v6420 = vpop.permute.xlu0 %6419
        %6423 = vset.pattern.permute.xlu0 99
        %6424 = vperm.xlu0 %6423, %v6311
        %v6425 = vpop.permute.xlu0 %6424
        %6428 = vset.pattern.permute.xlu0 99
        %6429 = vperm.xlu0 %6428, %v6316
        %v6430 = vpop.permute.xlu0 %6429
        %6433 = vset.pattern.permute.xlu0 99
        %6434 = vperm.xlu0 %6433, %v6319
        %v6435 = vpop.permute.xlu0 %6434
        %6438 = vset.pattern.permute.xlu0 99
        %6439 = vperm.xlu0 %6438, %v6324
        %v6440 = vpop.permute.xlu0 %6439
        %6443 = vset.pattern.permute.xlu0 99
        %6444 = vperm.xlu0 %6443, %v6327
        %v6445 = vpop.permute.xlu0 %6444
        %6448 = vset.pattern.permute.xlu0 99
        %6449 = vperm.xlu0 %6448, %v6332
        %v6450 = vpop.permute.xlu0 %6449
        %6453 = vset.pattern.permute.xlu0 99
        %6454 = vperm.xlu0 %6453, %v6335
        %v6455 = vpop.permute.xlu0 %6454
        %6458 = vset.pattern.permute.xlu0 99
        %6459 = vperm.xlu0 %6458, %v6340
        %v6460 = vpop.permute.xlu0 %6459
        %6463 = vset.pattern.permute.xlu0 99
        %6464 = vperm.xlu0 %6463, %v6343
        %v6465 = vpop.permute.xlu0 %6464
        %6468 = vset.pattern.permute.xlu0 99
        %6469 = vperm.xlu0 %6468, %v6348
        %v6470 = vpop.permute.xlu0 %6469
        %6473 = vset.pattern.permute.xlu0 99
        %6474 = vperm.xlu0 %6473, %v6351
        %v6475 = vpop.permute.xlu0 %6474
        %6478 = vset.pattern.permute.xlu0 99
        %6479 = vperm.xlu0 %6478, %v6356
        %v6480 = vpop.permute.xlu0 %6479
        %6483 = vset.pattern.permute.xlu0 99
        %6484 = vperm.xlu0 %6483, %v6359
        %v6485 = vpop.permute.xlu0 %6484
        %v6487 = vsel %vm384, %v6410, 0.0
        %v6488 = vsel %vm385, %v6415, 0.0
        %v6489 = vsel %vm386, %v6420, 0.0
        %v6490 = vsel %vm387, %v6425, 0.0
        %v6491 = vsel %vm388, %v6430, 0.0
        %v6492 = vsel %vm389, %v6435, 0.0
        %v6493 = vsel %vm390, %v6440, 0.0
        %v6494 = vsel %vm391, %v6445, 0.0
        %v6495 = vsel %vm392, %v6450, 0.0
        %v6496 = vsel %vm393, %v6455, 0.0
        %v6497 = vsel %vm394, %v6460, 0.0
        %v6498 = vsel %vm395, %v6465, 0.0
        %v6499 = vsel %vm396, %v6470, 0.0
        %v6500 = vsel %vm397, %v6475, 0.0
        %v6501 = vsel %vm398, %v6480, 0.0
        %v6502 = vsel %vm399, %v6485, 0.0
        %v6503 = vadd.f32 %v6487, %v6488
        %v6504 = vadd.f32 %v6503, %v6489
        %v6505 = vadd.f32 %v6504, %v6490
        %v6506 = vadd.f32 %v6505, %v6491
        %v6507 = vadd.f32 %v6506, %v6492
        %v6508 = vadd.f32 %v6507, %v6493
        %v6509 = vadd.f32 %v6508, %v6494
        %v6510 = vadd.f32 %v6509, %v6495
        %v6511 = vadd.f32 %v6510, %v6496
        %v6512 = vadd.f32 %v6511, %v6497
        %v6513 = vadd.f32 %v6512, %v6498
        %v6514 = vadd.f32 %v6513, %v6499
        %v6515 = vadd.f32 %v6514, %v6500
        %v6516 = vadd.f32 %v6515, %v6501
        %v6517 = vadd.f32 %v6516, %v6502
        %v6518 = vrot.slane %v6517, 4
        %v6519 = vadd.f32 %v6517, %v6518
        %v6520 = vrot.slane %v6519, 2
        %v6521 = vadd.f32 %v6519, %v6520
        %v6522 = vrot.slane %v6521, 1
        %v6523 = vadd.f32 %v6521, %v6522
        %6524 = vset.pattern.permute.xlu0 96
        %6525 = vperm.xlu0 %6524, %v6300
        %v6526 = vpop.permute.xlu0 %6525
        %6528 = vset.pattern.permute.xlu0 96
        %6529 = vperm.xlu0 %6528, %v6303
        %v6530 = vpop.permute.xlu0 %6529
        %6532 = vset.pattern.permute.xlu0 96
        %6533 = vperm.xlu0 %6532, %v6308
        %v6534 = vpop.permute.xlu0 %6533
        %6536 = vset.pattern.permute.xlu0 96
        %6537 = vperm.xlu0 %6536, %v6311
        %v6538 = vpop.permute.xlu0 %6537
        %6540 = vset.pattern.permute.xlu0 96
        %6541 = vperm.xlu0 %6540, %v6316
        %v6542 = vpop.permute.xlu0 %6541
        %6544 = vset.pattern.permute.xlu0 96
        %6545 = vperm.xlu0 %6544, %v6319
        %v6546 = vpop.permute.xlu0 %6545
        %6548 = vset.pattern.permute.xlu0 96
        %6549 = vperm.xlu0 %6548, %v6324
        %v6550 = vpop.permute.xlu0 %6549
        %6552 = vset.pattern.permute.xlu0 96
        %6553 = vperm.xlu0 %6552, %v6327
        %v6554 = vpop.permute.xlu0 %6553
        %6556 = vset.pattern.permute.xlu0 96
        %6557 = vperm.xlu0 %6556, %v6332
        %v6558 = vpop.permute.xlu0 %6557
        %6560 = vset.pattern.permute.xlu0 96
        %6561 = vperm.xlu0 %6560, %v6335
        %v6562 = vpop.permute.xlu0 %6561
        %6564 = vset.pattern.permute.xlu0 96
        %6565 = vperm.xlu0 %6564, %v6340
        %v6566 = vpop.permute.xlu0 %6565
        %6568 = vset.pattern.permute.xlu0 96
        %6569 = vperm.xlu0 %6568, %v6343
        %v6570 = vpop.permute.xlu0 %6569
        %6572 = vset.pattern.permute.xlu0 96
        %6573 = vperm.xlu0 %6572, %v6348
        %v6574 = vpop.permute.xlu0 %6573
        %6576 = vset.pattern.permute.xlu0 96
        %6577 = vperm.xlu0 %6576, %v6351
        %v6578 = vpop.permute.xlu0 %6577
        %6580 = vset.pattern.permute.xlu0 96
        %6581 = vperm.xlu0 %6580, %v6356
        %v6582 = vpop.permute.xlu0 %6581
        %6584 = vset.pattern.permute.xlu0 96
        %6585 = vperm.xlu0 %6584, %v6359
        %v6586 = vpop.permute.xlu0 %6585
        %v6588 = vadd.f32 %v6526, %v6523
        %v6589 = vadd.f32 %v6530, %v6523
        %v6590 = vadd.f32 %v6534, %v6523
        %v6591 = vadd.f32 %v6538, %v6523
        %v6592 = vadd.f32 %v6542, %v6523
        %v6593 = vadd.f32 %v6546, %v6523
        %v6594 = vadd.f32 %v6550, %v6523
        %v6595 = vadd.f32 %v6554, %v6523
        %v6596 = vadd.f32 %v6558, %v6523
        %v6597 = vadd.f32 %v6562, %v6523
        %v6598 = vadd.f32 %v6566, %v6523
        %v6599 = vadd.f32 %v6570, %v6523
        %v6600 = vadd.f32 %v6574, %v6523
        %v6601 = vadd.f32 %v6578, %v6523
        %v6602 = vadd.f32 %v6582, %v6523
        %v6603 = vadd.f32 %v6586, %v6523
        %v6604 = vmul.f32 %v6588, 0.2
        %v6605 = vmul.f32 %v6589, 0.2
        %v6606 = vmul.f32 %v6590, 0.2
        %v6607 = vmul.f32 %v6591, 0.2
        %v6608 = vmul.f32 %v6592, 0.2
        %v6609 = vmul.f32 %v6593, 0.2
        %v6610 = vmul.f32 %v6594, 0.2
        %v6611 = vmul.f32 %v6595, 0.2
        %v6612 = vmul.f32 %v6596, 0.2
        %v6613 = vmul.f32 %v6597, 0.2
        %v6614 = vmul.f32 %v6598, 0.2
        %v6615 = vmul.f32 %v6599, 0.2
        %v6616 = vmul.f32 %v6600, 0.2
        %v6617 = vmul.f32 %v6601, 0.2
        %v6618 = vmul.f32 %v6602, 0.2
        %v6619 = vmul.f32 %v6603, 0.2
        %v6620 = vmax.f32 %v6588, %v6604
        %v6621 = vmax.f32 %v6589, %v6605
        %v6622 = vmax.f32 %v6590, %v6606
        %v6623 = vmax.f32 %v6591, %v6607
        %v6624 = vmax.f32 %v6592, %v6608
        %v6625 = vmax.f32 %v6593, %v6609
        %v6626 = vmax.f32 %v6594, %v6610
        %v6627 = vmax.f32 %v6595, %v6611
        %v6628 = vmax.f32 %v6596, %v6612
        %v6629 = vmax.f32 %v6597, %v6613
        %v6630 = vmax.f32 %v6598, %v6614
        %v6631 = vmax.f32 %v6599, %v6615
        %v6632 = vmax.f32 %v6600, %v6616
        %v6633 = vmax.f32 %v6601, %v6617
        %v6634 = vmax.f32 %v6602, %v6618
        %v6635 = vmax.f32 %v6603, %v6619
        %v6636 = vsel %vm6379, %v6620, -1e+30
        %v6637 = vsel %vm6380, %v6621, -1e+30
        %v6638 = vsel %vm6381, %v6622, -1e+30
        %v6639 = vsel %vm6382, %v6623, -1e+30
        %v6640 = vsel %vm6383, %v6624, -1e+30
        %v6641 = vsel %vm6384, %v6625, -1e+30
        %v6642 = vsel %vm6385, %v6626, -1e+30
        %v6643 = vsel %vm6386, %v6627, -1e+30
        %v6644 = vsel %vm6387, %v6628, -1e+30
        %v6645 = vsel %vm6388, %v6629, -1e+30
        %v6646 = vsel %vm6389, %v6630, -1e+30
        %v6647 = vsel %vm6390, %v6631, -1e+30
        %v6648 = vsel %vm6391, %v6632, -1e+30
        %v6649 = vsel %vm6392, %v6633, -1e+30
        %v6650 = vsel %vm6393, %v6634, -1e+30
        %v6651 = vsel %vm6394, %v6635, -1e+30
        %6652 = vmax.xlane.f32.xlu0 %v6636
        %v6653 = vpop.xlane.xlu0 %6652
        %6654 = vmax.xlane.f32.xlu0 %v6637
        %v6655 = vpop.xlane.xlu0 %6654
        %6656 = vmax.xlane.f32.xlu0 %v6638
        %v6657 = vpop.xlane.xlu0 %6656
        %6658 = vmax.xlane.f32.xlu0 %v6639
        %v6659 = vpop.xlane.xlu0 %6658
        %6660 = vmax.xlane.f32.xlu0 %v6640
        %v6661 = vpop.xlane.xlu0 %6660
        %6662 = vmax.xlane.f32.xlu0 %v6641
        %v6663 = vpop.xlane.xlu0 %6662
        %6664 = vmax.xlane.f32.xlu0 %v6642
        %v6665 = vpop.xlane.xlu0 %6664
        %6666 = vmax.xlane.f32.xlu0 %v6643
        %v6667 = vpop.xlane.xlu0 %6666
        %6668 = vmax.xlane.f32.xlu0 %v6644
        %v6669 = vpop.xlane.xlu0 %6668
        %6670 = vmax.xlane.f32.xlu0 %v6645
        %v6671 = vpop.xlane.xlu0 %6670
        %6672 = vmax.xlane.f32.xlu0 %v6646
        %v6673 = vpop.xlane.xlu0 %6672
        %6674 = vmax.xlane.f32.xlu0 %v6647
        %v6675 = vpop.xlane.xlu0 %6674
        %6676 = vmax.xlane.f32.xlu0 %v6648
        %v6677 = vpop.xlane.xlu0 %6676
        %6678 = vmax.xlane.f32.xlu0 %v6649
        %v6679 = vpop.xlane.xlu0 %6678
        %6680 = vmax.xlane.f32.xlu0 %v6650
        %v6681 = vpop.xlane.xlu0 %6680
        %6682 = vmax.xlane.f32.xlu0 %v6651
        %v6683 = vpop.xlane.xlu0 %6682
        %v6684 = vsub.f32 %v6636, %v6653
        %v6685 = vsub.f32 %v6637, %v6655
        %v6686 = vsub.f32 %v6638, %v6657
        %v6687 = vsub.f32 %v6639, %v6659
        %v6688 = vsub.f32 %v6640, %v6661
        %v6689 = vsub.f32 %v6641, %v6663
        %v6690 = vsub.f32 %v6642, %v6665
        %v6691 = vsub.f32 %v6643, %v6667
        %v6692 = vsub.f32 %v6644, %v6669
        %v6693 = vsub.f32 %v6645, %v6671
        %v6694 = vsub.f32 %v6646, %v6673
        %v6695 = vsub.f32 %v6647, %v6675
        %v6696 = vsub.f32 %v6648, %v6677
        %v6697 = vsub.f32 %v6649, %v6679
        %v6698 = vsub.f32 %v6650, %v6681
        %v6699 = vsub.f32 %v6651, %v6683
        %v6700 = vmul.f32 %v6684, 1.442695
        %v6701 = vpow.pop %v6700
        %v6702 = vmul.f32 %v6685, 1.442695
        %v6703 = vpow.pop %v6702
        %v6704 = vmul.f32 %v6686, 1.442695
        %v6705 = vpow.pop %v6704
        %v6706 = vmul.f32 %v6687, 1.442695
        %v6707 = vpow.pop %v6706
        %v6708 = vmul.f32 %v6688, 1.442695
        %v6709 = vpow.pop %v6708
        %v6710 = vmul.f32 %v6689, 1.442695
        %v6711 = vpow.pop %v6710
        %v6712 = vmul.f32 %v6690, 1.442695
        %v6713 = vpow.pop %v6712
        %v6714 = vmul.f32 %v6691, 1.442695
        %v6715 = vpow.pop %v6714
        %v6716 = vmul.f32 %v6692, 1.442695
        %v6717 = vpow.pop %v6716
        %v6718 = vmul.f32 %v6693, 1.442695
        %v6719 = vpow.pop %v6718
        %v6720 = vmul.f32 %v6694, 1.442695
        %v6721 = vpow.pop %v6720
        %v6722 = vmul.f32 %v6695, 1.442695
        %v6723 = vpow.pop %v6722
        %v6724 = vmul.f32 %v6696, 1.442695
        %v6725 = vpow.pop %v6724
        %v6726 = vmul.f32 %v6697, 1.442695
        %v6727 = vpow.pop %v6726
        %v6728 = vmul.f32 %v6698, 1.442695
        %v6729 = vpow.pop %v6728
        %v6730 = vmul.f32 %v6699, 1.442695
        %v6731 = vpow.pop %v6730
        %6732 = vadd.xlane.f32.xlu0 %v6701
        %v6733 = vpop.xlane.xlu0 %6732
        %6734 = vadd.xlane.f32.xlu0 %v6703
        %v6735 = vpop.xlane.xlu0 %6734
        %6736 = vadd.xlane.f32.xlu0 %v6705
        %v6737 = vpop.xlane.xlu0 %6736
        %6738 = vadd.xlane.f32.xlu0 %v6707
        %v6739 = vpop.xlane.xlu0 %6738
        %6740 = vadd.xlane.f32.xlu0 %v6709
        %v6741 = vpop.xlane.xlu0 %6740
        %6742 = vadd.xlane.f32.xlu0 %v6711
        %v6743 = vpop.xlane.xlu0 %6742
        %6744 = vadd.xlane.f32.xlu0 %v6713
        %v6745 = vpop.xlane.xlu0 %6744
        %6746 = vadd.xlane.f32.xlu0 %v6715
        %v6747 = vpop.xlane.xlu0 %6746
        %6748 = vadd.xlane.f32.xlu0 %v6717
        %v6749 = vpop.xlane.xlu0 %6748
        %6750 = vadd.xlane.f32.xlu0 %v6719
        %v6751 = vpop.xlane.xlu0 %6750
        %6752 = vadd.xlane.f32.xlu0 %v6721
        %v6753 = vpop.xlane.xlu0 %6752
        %6754 = vadd.xlane.f32.xlu0 %v6723
        %v6755 = vpop.xlane.xlu0 %6754
        %6756 = vadd.xlane.f32.xlu0 %v6725
        %v6757 = vpop.xlane.xlu0 %6756
        %6758 = vadd.xlane.f32.xlu0 %v6727
        %v6759 = vpop.xlane.xlu0 %6758
        %6760 = vadd.xlane.f32.xlu0 %v6729
        %v6761 = vpop.xlane.xlu0 %6760
        %6762 = vadd.xlane.f32.xlu0 %v6731
        %v6763 = vpop.xlane.xlu0 %6762
        %v6764 = vrcp.pop %v6733
        %v6765 = vrcp.pop %v6735
        %v6766 = vrcp.pop %v6737
        %v6767 = vrcp.pop %v6739
        %v6768 = vrcp.pop %v6741
        %v6769 = vrcp.pop %v6743
        %v6770 = vrcp.pop %v6745
        %v6771 = vrcp.pop %v6747
        %v6772 = vrcp.pop %v6749
        %v6773 = vrcp.pop %v6751
        %v6774 = vrcp.pop %v6753
        %v6775 = vrcp.pop %v6755
        %v6776 = vrcp.pop %v6757
        %v6777 = vrcp.pop %v6759
        %v6778 = vrcp.pop %v6761
        %v6779 = vrcp.pop %v6763
        %v6780 = vpack.c.bf16 %v6703, %v6701
        %v6781 = vpack.c.bf16 %v6707, %v6705
        %v6782 = vpack.c.bf16 %v6711, %v6709
        %v6783 = vpack.c.bf16 %v6715, %v6713
        %v6784 = vpack.c.bf16 %v6719, %v6717
        %v6785 = vpack.c.bf16 %v6723, %v6721
        %v6786 = vpack.c.bf16 %v6727, %v6725
        %v6787 = vpack.c.bf16 %v6731, %v6729
        %6788 = vmatprep.subr.bf16.mxu0 0
        %6789 = vmatpush1.bf16.msra.mxu0 %v6399
        %6790 = vmatprep.subr.bf16.mxu0 0
        %6791 = vmatpush1.bf16.msra.mxu0 %v6400
        %6792 = vmatprep.subr.bf16.mxu0 0
        %6793 = vmatpush1.bf16.msra.mxu0 %v6401
        %6794 = vmatprep.subr.bf16.mxu0 0
        %6795 = vmatpush1.bf16.msra.mxu0 %v6402
        %6796 = vmatprep.subr.bf16.mxu0 0
        %6797 = vmatpush1.bf16.msra.mxu0 %v6403
        %6798 = vmatprep.subr.bf16.mxu0 0
        %6799 = vmatpush1.bf16.msra.mxu0 %v6404
        %6800 = vmatprep.subr.bf16.mxu0 0
        %6801 = vmatpush1.bf16.msra.mxu0 %v6405
        %6802 = vmatprep.subr.bf16.mxu0 0
        %6803 = vmatpush1.bf16.msra.mxu0 %v6406
        %6804 = vmatprep.subr.bf16.mxu0 0
        %6805 = vmatpush1.bf16.msra.mxu0 0
        %6806 = vmatprep.subr.bf16.mxu0 0
        %6807 = vmatpush1.bf16.msra.mxu0 0
        %6808 = vmatprep.subr.bf16.mxu0 0
        %6809 = vmatpush1.bf16.msra.mxu0 0
        %6810 = vmatprep.subr.bf16.mxu0 0
        %6811 = vmatpush1.bf16.msra.mxu0 0
        %6812 = vmatprep.subr.bf16.mxu0 0
        %6813 = vmatpush1.bf16.msra.mxu0 0
        %6814 = vmatprep.subr.bf16.mxu0 0
        %6815 = vmatpush1.bf16.msra.mxu0 0
        %6816 = vmatprep.subr.bf16.mxu0 0
        %6817 = vmatpush1.bf16.msra.mxu0 0
        %6818 = vmatprep.subr.bf16.mxu0 0
        %6819 = vmatpush1.bf16.msra.mxu0 0
        %6820 = vmatprep.mubr.bf16.mxu0 0
        %6821 = vmatmul.mubr.bf16.gmra.mrb[0].mxu0 %v6780
        %v6822 = vpop.f32.mrb[0].mxu0
        %v6823 = vadd.f32 0.0, %v6822
        %v6824 = vpop.f32.mrb[0].mxu0
        %v6825 = vpop.f32.mrb[0].mxu0
        %v6826 = vadd.f32 0.0, %v6825
        %v6827 = vpop.f32.mrb[0].mxu0
        %6828 = vmatprep.mubr.bf16.mxu0 0
        %6829 = vmatmul.mubr.bf16.gmra.mrb[0].mxu0 %v6781
        %v6830 = vpop.f32.mrb[0].mxu0
        %v6831 = vadd.f32 0.0, %v6830
        %v6832 = vpop.f32.mrb[0].mxu0
        %v6833 = vpop.f32.mrb[0].mxu0
        %v6834 = vadd.f32 0.0, %v6833
        %v6835 = vpop.f32.mrb[0].mxu0
        %6836 = vmatprep.mubr.bf16.mxu0 0
        %6837 = vmatmul.mubr.bf16.gmra.mrb[0].mxu0 %v6782
        %v6838 = vpop.f32.mrb[0].mxu0
        %v6839 = vadd.f32 0.0, %v6838
        %v6840 = vpop.f32.mrb[0].mxu0
        %v6841 = vpop.f32.mrb[0].mxu0
        %v6842 = vadd.f32 0.0, %v6841
        %v6843 = vpop.f32.mrb[0].mxu0
        %6844 = vmatprep.mubr.bf16.mxu0 0
        %6845 = vmatmul.mubr.bf16.gmra.mrb[0].mxu0 %v6783
        %v6846 = vpop.f32.mrb[0].mxu0
        %v6847 = vadd.f32 0.0, %v6846
        %v6848 = vpop.f32.mrb[0].mxu0
        %v6849 = vpop.f32.mrb[0].mxu0
        %v6850 = vadd.f32 0.0, %v6849
        %v6851 = vpop.f32.mrb[0].mxu0
        %6852 = vmatprep.mubr.bf16.mxu0 0
        %6853 = vmatmul.mubr.bf16.gmra.mrb[0].mxu0 %v6784
        %v6854 = vpop.f32.mrb[0].mxu0
        %v6855 = vadd.f32 0.0, %v6854
        %v6856 = vpop.f32.mrb[0].mxu0
        %v6857 = vpop.f32.mrb[0].mxu0
        %v6858 = vadd.f32 0.0, %v6857
        %v6859 = vpop.f32.mrb[0].mxu0
        %6860 = vmatprep.mubr.bf16.mxu0 0
        %6861 = vmatmul.mubr.bf16.gmra.mrb[0].mxu0 %v6785
        %v6862 = vpop.f32.mrb[0].mxu0
        %v6863 = vadd.f32 0.0, %v6862
        %v6864 = vpop.f32.mrb[0].mxu0
        %v6865 = vpop.f32.mrb[0].mxu0
        %v6866 = vadd.f32 0.0, %v6865
        %v6867 = vpop.f32.mrb[0].mxu0
        %6868 = vmatprep.mubr.bf16.mxu0 0
        %6869 = vmatmul.mubr.bf16.gmra.mrb[0].mxu0 %v6786
        %v6870 = vpop.f32.mrb[0].mxu0
        %v6871 = vadd.f32 0.0, %v6870
        %v6872 = vpop.f32.mrb[0].mxu0
        %v6873 = vpop.f32.mrb[0].mxu0
        %v6874 = vadd.f32 0.0, %v6873
        %v6875 = vpop.f32.mrb[0].mxu0
        %6876 = vmatprep.mubr.bf16.mxu0 0
        %6877 = vmatmul.mubr.bf16.gmra.mrb[0].mxu0 %v6787
        %v6878 = vpop.f32.mrb[0].mxu0
        %v6879 = vadd.f32 0.0, %v6878
        %v6880 = vpop.f32.mrb[0].mxu0
        %v6881 = vpop.f32.mrb[0].mxu0
        %v6882 = vadd.f32 0.0, %v6881
        %v6883 = vpop.f32.mrb[0].mxu0
        %6884 = vdwg.mxu0
        %v6885 = vmul.f32 %v6823, %v6764
        %v6886 = vmul.f32 %v6826, %v6765
        %v6887 = vmul.f32 %v6831, %v6766
        %v6888 = vmul.f32 %v6834, %v6767
        %v6889 = vmul.f32 %v6839, %v6768
        %v6890 = vmul.f32 %v6842, %v6769
        %v6891 = vmul.f32 %v6847, %v6770
        %v6892 = vmul.f32 %v6850, %v6771
        %v6893 = vmul.f32 %v6855, %v6772
        %v6894 = vmul.f32 %v6858, %v6773
        %v6895 = vmul.f32 %v6863, %v6774
        %v6896 = vmul.f32 %v6866, %v6775
        %v6897 = vmul.f32 %v6871, %v6776
        %v6898 = vmul.f32 %v6874, %v6777
        %v6899 = vmul.f32 %v6879, %v6778
        %v6900 = vmul.f32 %v6882, %v6779
        %v6901 = vadd.f32 %v6885, 0.0
        %v6902 = vadd.f32 %v6886, 0.0
        %v6903 = vadd.f32 %v6887, 0.0
        %v6904 = vadd.f32 %v6888, 0.0
        %v6905 = vadd.f32 %v6889, 0.0
        %v6906 = vadd.f32 %v6890, 0.0
        %v6907 = vadd.f32 %v6891, 0.0
        %v6908 = vadd.f32 %v6892, 0.0
        %v6909 = vadd.f32 %v6893, 0.0
        %v6910 = vadd.f32 %v6894, 0.0
        %v6911 = vadd.f32 %v6895, 0.0
        %v6912 = vadd.f32 %v6896, 0.0
        %v6913 = vadd.f32 %v6897, 0.0
        %v6914 = vadd.f32 %v6898, 0.0
        %v6915 = vadd.f32 %v6899, 0.0
        %v6916 = vadd.f32 %v6900, 0.0
        %6917 = vset.pattern.permute.xlu0 100
        %6918 = vperm.xlu0 %6917, %v6300
        %v6919 = vpop.permute.xlu0 %6918
        %6921 = vset.pattern.permute.xlu0 100
        %6922 = vperm.xlu0 %6921, %v6303
        %v6923 = vpop.permute.xlu0 %6922
        %6925 = vset.pattern.permute.xlu0 100
        %6926 = vperm.xlu0 %6925, %v6308
        %v6927 = vpop.permute.xlu0 %6926
        %6929 = vset.pattern.permute.xlu0 100
        %6930 = vperm.xlu0 %6929, %v6311
        %v6931 = vpop.permute.xlu0 %6930
        %6933 = vset.pattern.permute.xlu0 100
        %6934 = vperm.xlu0 %6933, %v6316
        %v6935 = vpop.permute.xlu0 %6934
        %6937 = vset.pattern.permute.xlu0 100
        %6938 = vperm.xlu0 %6937, %v6319
        %v6939 = vpop.permute.xlu0 %6938
        %6941 = vset.pattern.permute.xlu0 100
        %6942 = vperm.xlu0 %6941, %v6324
        %v6943 = vpop.permute.xlu0 %6942
        %6945 = vset.pattern.permute.xlu0 100
        %6946 = vperm.xlu0 %6945, %v6327
        %v6947 = vpop.permute.xlu0 %6946
        %6949 = vset.pattern.permute.xlu0 100
        %6950 = vperm.xlu0 %6949, %v6332
        %v6951 = vpop.permute.xlu0 %6950
        %6953 = vset.pattern.permute.xlu0 100
        %6954 = vperm.xlu0 %6953, %v6335
        %v6955 = vpop.permute.xlu0 %6954
        %6957 = vset.pattern.permute.xlu0 100
        %6958 = vperm.xlu0 %6957, %v6340
        %v6959 = vpop.permute.xlu0 %6958
        %6961 = vset.pattern.permute.xlu0 100
        %6962 = vperm.xlu0 %6961, %v6343
        %v6963 = vpop.permute.xlu0 %6962
        %6965 = vset.pattern.permute.xlu0 100
        %6966 = vperm.xlu0 %6965, %v6348
        %v6967 = vpop.permute.xlu0 %6966
        %6969 = vset.pattern.permute.xlu0 100
        %6970 = vperm.xlu0 %6969, %v6351
        %v6971 = vpop.permute.xlu0 %6970
        %6973 = vset.pattern.permute.xlu0 100
        %6974 = vperm.xlu0 %6973, %v6356
        %v6975 = vpop.permute.xlu0 %6974
        %6977 = vset.pattern.permute.xlu0 100
        %6978 = vperm.xlu0 %6977, %v6359
        %v6979 = vpop.permute.xlu0 %6978
        %v6981 = vsel %vm384, %v6919, 0.0
        %v6982 = vsel %vm385, %v6923, 0.0
        %v6983 = vsel %vm386, %v6927, 0.0
        %v6984 = vsel %vm387, %v6931, 0.0
        %v6985 = vsel %vm388, %v6935, 0.0
        %v6986 = vsel %vm389, %v6939, 0.0
        %v6987 = vsel %vm390, %v6943, 0.0
        %v6988 = vsel %vm391, %v6947, 0.0
        %v6989 = vsel %vm392, %v6951, 0.0
        %v6990 = vsel %vm393, %v6955, 0.0
        %v6991 = vsel %vm394, %v6959, 0.0
        %v6992 = vsel %vm395, %v6963, 0.0
        %v6993 = vsel %vm396, %v6967, 0.0
        %v6994 = vsel %vm397, %v6971, 0.0
        %v6995 = vsel %vm398, %v6975, 0.0
        %v6996 = vsel %vm399, %v6979, 0.0
        %v6997 = vadd.f32 %v6981, %v6982
        %v6998 = vadd.f32 %v6997, %v6983
        %v6999 = vadd.f32 %v6998, %v6984
        %v7000 = vadd.f32 %v6999, %v6985
        %v7001 = vadd.f32 %v7000, %v6986
        %v7002 = vadd.f32 %v7001, %v6987
        %v7003 = vadd.f32 %v7002, %v6988
        %v7004 = vadd.f32 %v7003, %v6989
        %v7005 = vadd.f32 %v7004, %v6990
        %v7006 = vadd.f32 %v7005, %v6991
        %v7007 = vadd.f32 %v7006, %v6992
        %v7008 = vadd.f32 %v7007, %v6993
        %v7009 = vadd.f32 %v7008, %v6994
        %v7010 = vadd.f32 %v7009, %v6995
        %v7011 = vadd.f32 %v7010, %v6996
        %v7012 = vrot.slane %v7011, 4
        %v7013 = vadd.f32 %v7011, %v7012
        %v7014 = vrot.slane %v7013, 2
        %v7015 = vadd.f32 %v7013, %v7014
        %v7016 = vrot.slane %v7015, 1
        %v7017 = vadd.f32 %v7015, %v7016
        %7018 = vset.pattern.permute.xlu0 97
        %7019 = vperm.xlu0 %7018, %v6300
        %v7020 = vpop.permute.xlu0 %7019
        %7022 = vset.pattern.permute.xlu0 97
        %7023 = vperm.xlu0 %7022, %v6303
        %v7024 = vpop.permute.xlu0 %7023
        %7026 = vset.pattern.permute.xlu0 97
        %7027 = vperm.xlu0 %7026, %v6308
        %v7028 = vpop.permute.xlu0 %7027
        %7030 = vset.pattern.permute.xlu0 97
        %7031 = vperm.xlu0 %7030, %v6311
        %v7032 = vpop.permute.xlu0 %7031
        %7034 = vset.pattern.permute.xlu0 97
        %7035 = vperm.xlu0 %7034, %v6316
        %v7036 = vpop.permute.xlu0 %7035
        %7038 = vset.pattern.permute.xlu0 97
        %7039 = vperm.xlu0 %7038, %v6319
        %v7040 = vpop.permute.xlu0 %7039
        %7042 = vset.pattern.permute.xlu0 97
        %7043 = vperm.xlu0 %7042, %v6324
        %v7044 = vpop.permute.xlu0 %7043
        %7046 = vset.pattern.permute.xlu0 97
        %7047 = vperm.xlu0 %7046, %v6327
        %v7048 = vpop.permute.xlu0 %7047
        %7050 = vset.pattern.permute.xlu0 97
        %7051 = vperm.xlu0 %7050, %v6332
        %v7052 = vpop.permute.xlu0 %7051
        %7054 = vset.pattern.permute.xlu0 97
        %7055 = vperm.xlu0 %7054, %v6335
        %v7056 = vpop.permute.xlu0 %7055
        %7058 = vset.pattern.permute.xlu0 97
        %7059 = vperm.xlu0 %7058, %v6340
        %v7060 = vpop.permute.xlu0 %7059
        %7062 = vset.pattern.permute.xlu0 97
        %7063 = vperm.xlu0 %7062, %v6343
        %v7064 = vpop.permute.xlu0 %7063
        %7066 = vset.pattern.permute.xlu0 97
        %7067 = vperm.xlu0 %7066, %v6348
        %v7068 = vpop.permute.xlu0 %7067
        %7070 = vset.pattern.permute.xlu0 97
        %7071 = vperm.xlu0 %7070, %v6351
        %v7072 = vpop.permute.xlu0 %7071
        %7074 = vset.pattern.permute.xlu0 97
        %7075 = vperm.xlu0 %7074, %v6356
        %v7076 = vpop.permute.xlu0 %7075
        %7078 = vset.pattern.permute.xlu0 97
        %7079 = vperm.xlu0 %7078, %v6359
        %v7080 = vpop.permute.xlu0 %7079
        %v7082 = vadd.f32 %v7020, %v7017
        %v7083 = vadd.f32 %v7024, %v7017
        %v7084 = vadd.f32 %v7028, %v7017
        %v7085 = vadd.f32 %v7032, %v7017
        %v7086 = vadd.f32 %v7036, %v7017
        %v7087 = vadd.f32 %v7040, %v7017
        %v7088 = vadd.f32 %v7044, %v7017
        %v7089 = vadd.f32 %v7048, %v7017
        %v7090 = vadd.f32 %v7052, %v7017
        %v7091 = vadd.f32 %v7056, %v7017
        %v7092 = vadd.f32 %v7060, %v7017
        %v7093 = vadd.f32 %v7064, %v7017
        %v7094 = vadd.f32 %v7068, %v7017
        %v7095 = vadd.f32 %v7072, %v7017
        %v7096 = vadd.f32 %v7076, %v7017
        %v7097 = vadd.f32 %v7080, %v7017
        %v7098 = vmul.f32 %v7082, 0.2
        %v7099 = vmul.f32 %v7083, 0.2
        %v7100 = vmul.f32 %v7084, 0.2
        %v7101 = vmul.f32 %v7085, 0.2
        %v7102 = vmul.f32 %v7086, 0.2
        %v7103 = vmul.f32 %v7087, 0.2
        %v7104 = vmul.f32 %v7088, 0.2
        %v7105 = vmul.f32 %v7089, 0.2
        %v7106 = vmul.f32 %v7090, 0.2
        %v7107 = vmul.f32 %v7091, 0.2
        %v7108 = vmul.f32 %v7092, 0.2
        %v7109 = vmul.f32 %v7093, 0.2
        %v7110 = vmul.f32 %v7094, 0.2
        %v7111 = vmul.f32 %v7095, 0.2
        %v7112 = vmul.f32 %v7096, 0.2
        %v7113 = vmul.f32 %v7097, 0.2
        %v7114 = vmax.f32 %v7082, %v7098
        %v7115 = vmax.f32 %v7083, %v7099
        %v7116 = vmax.f32 %v7084, %v7100
        %v7117 = vmax.f32 %v7085, %v7101
        %v7118 = vmax.f32 %v7086, %v7102
        %v7119 = vmax.f32 %v7087, %v7103
        %v7120 = vmax.f32 %v7088, %v7104
        %v7121 = vmax.f32 %v7089, %v7105
        %v7122 = vmax.f32 %v7090, %v7106
        %v7123 = vmax.f32 %v7091, %v7107
        %v7124 = vmax.f32 %v7092, %v7108
        %v7125 = vmax.f32 %v7093, %v7109
        %v7126 = vmax.f32 %v7094, %v7110
        %v7127 = vmax.f32 %v7095, %v7111
        %v7128 = vmax.f32 %v7096, %v7112
        %v7129 = vmax.f32 %v7097, %v7113
        %v7130 = vsel %vm6379, %v7114, -1e+30
        %v7131 = vsel %vm6380, %v7115, -1e+30
        %v7132 = vsel %vm6381, %v7116, -1e+30
        %v7133 = vsel %vm6382, %v7117, -1e+30
        %v7134 = vsel %vm6383, %v7118, -1e+30
        %v7135 = vsel %vm6384, %v7119, -1e+30
        %v7136 = vsel %vm6385, %v7120, -1e+30
        %v7137 = vsel %vm6386, %v7121, -1e+30
        %v7138 = vsel %vm6387, %v7122, -1e+30
        %v7139 = vsel %vm6388, %v7123, -1e+30
        %v7140 = vsel %vm6389, %v7124, -1e+30
        %v7141 = vsel %vm6390, %v7125, -1e+30
        %v7142 = vsel %vm6391, %v7126, -1e+30
        %v7143 = vsel %vm6392, %v7127, -1e+30
        %v7144 = vsel %vm6393, %v7128, -1e+30
        %v7145 = vsel %vm6394, %v7129, -1e+30
        %7146 = vmax.xlane.f32.xlu0 %v7130
        %v7147 = vpop.xlane.xlu0 %7146
        %7148 = vmax.xlane.f32.xlu0 %v7131
        %v7149 = vpop.xlane.xlu0 %7148
        %7150 = vmax.xlane.f32.xlu0 %v7132
        %v7151 = vpop.xlane.xlu0 %7150
        %7152 = vmax.xlane.f32.xlu0 %v7133
        %v7153 = vpop.xlane.xlu0 %7152
        %7154 = vmax.xlane.f32.xlu0 %v7134
        %v7155 = vpop.xlane.xlu0 %7154
        %7156 = vmax.xlane.f32.xlu0 %v7135
        %v7157 = vpop.xlane.xlu0 %7156
        %7158 = vmax.xlane.f32.xlu0 %v7136
        %v7159 = vpop.xlane.xlu0 %7158
        %7160 = vmax.xlane.f32.xlu0 %v7137
        %v7161 = vpop.xlane.xlu0 %7160
        %7162 = vmax.xlane.f32.xlu0 %v7138
        %v7163 = vpop.xlane.xlu0 %7162
        %7164 = vmax.xlane.f32.xlu0 %v7139
        %v7165 = vpop.xlane.xlu0 %7164
        %7166 = vmax.xlane.f32.xlu0 %v7140
        %v7167 = vpop.xlane.xlu0 %7166
        %7168 = vmax.xlane.f32.xlu0 %v7141
        %v7169 = vpop.xlane.xlu0 %7168
        %7170 = vmax.xlane.f32.xlu0 %v7142
        %v7171 = vpop.xlane.xlu0 %7170
        %7172 = vmax.xlane.f32.xlu0 %v7143
        %v7173 = vpop.xlane.xlu0 %7172
        %7174 = vmax.xlane.f32.xlu0 %v7144
        %v7175 = vpop.xlane.xlu0 %7174
        %7176 = vmax.xlane.f32.xlu0 %v7145
        %v7177 = vpop.xlane.xlu0 %7176
        %v7178 = vsub.f32 %v7130, %v7147
        %v7179 = vsub.f32 %v7131, %v7149
        %v7180 = vsub.f32 %v7132, %v7151
        %v7181 = vsub.f32 %v7133, %v7153
        %v7182 = vsub.f32 %v7134, %v7155
        %v7183 = vsub.f32 %v7135, %v7157
        %v7184 = vsub.f32 %v7136, %v7159
        %v7185 = vsub.f32 %v7137, %v7161
        %v7186 = vsub.f32 %v7138, %v7163
        %v7187 = vsub.f32 %v7139, %v7165
        %v7188 = vsub.f32 %v7140, %v7167
        %v7189 = vsub.f32 %v7141, %v7169
        %v7190 = vsub.f32 %v7142, %v7171
        %v7191 = vsub.f32 %v7143, %v7173
        %v7192 = vsub.f32 %v7144, %v7175
        %v7193 = vsub.f32 %v7145, %v7177
        %v7194 = vmul.f32 %v7178, 1.442695
        %v7195 = vpow.pop %v7194
        %v7196 = vmul.f32 %v7179, 1.442695
        %v7197 = vpow.pop %v7196
        %v7198 = vmul.f32 %v7180, 1.442695
        %v7199 = vpow.pop %v7198
        %v7200 = vmul.f32 %v7181, 1.442695
        %v7201 = vpow.pop %v7200
        %v7202 = vmul.f32 %v7182, 1.442695
        %v7203 = vpow.pop %v7202
        %v7204 = vmul.f32 %v7183, 1.442695
        %v7205 = vpow.pop %v7204
        %v7206 = vmul.f32 %v7184, 1.442695
        %v7207 = vpow.pop %v7206
        %v7208 = vmul.f32 %v7185, 1.442695
        %v7209 = vpow.pop %v7208
        %v7210 = vmul.f32 %v7186, 1.442695
        %v7211 = vpow.pop %v7210
        %v7212 = vmul.f32 %v7187, 1.442695
        %v7213 = vpow.pop %v7212
        %v7214 = vmul.f32 %v7188, 1.442695
        %v7215 = vpow.pop %v7214
        %v7216 = vmul.f32 %v7189, 1.442695
        %v7217 = vpow.pop %v7216
        %v7218 = vmul.f32 %v7190, 1.442695
        %v7219 = vpow.pop %v7218
        %v7220 = vmul.f32 %v7191, 1.442695
        %v7221 = vpow.pop %v7220
        %v7222 = vmul.f32 %v7192, 1.442695
        %v7223 = vpow.pop %v7222
        %v7224 = vmul.f32 %v7193, 1.442695
        %v7225 = vpow.pop %v7224
        %7226 = vadd.xlane.f32.xlu0 %v7195
        %v7227 = vpop.xlane.xlu0 %7226
        %7228 = vadd.xlane.f32.xlu0 %v7197
        %v7229 = vpop.xlane.xlu0 %7228
        %7230 = vadd.xlane.f32.xlu0 %v7199
        %v7231 = vpop.xlane.xlu0 %7230
        %7232 = vadd.xlane.f32.xlu0 %v7201
        %v7233 = vpop.xlane.xlu0 %7232
        %7234 = vadd.xlane.f32.xlu0 %v7203
        %v7235 = vpop.xlane.xlu0 %7234
        %7236 = vadd.xlane.f32.xlu0 %v7205
        %v7237 = vpop.xlane.xlu0 %7236
        %7238 = vadd.xlane.f32.xlu0 %v7207
        %v7239 = vpop.xlane.xlu0 %7238
        %7240 = vadd.xlane.f32.xlu0 %v7209
        %v7241 = vpop.xlane.xlu0 %7240
        %7242 = vadd.xlane.f32.xlu0 %v7211
        %v7243 = vpop.xlane.xlu0 %7242
        %7244 = vadd.xlane.f32.xlu0 %v7213
        %v7245 = vpop.xlane.xlu0 %7244
        %7246 = vadd.xlane.f32.xlu0 %v7215
        %v7247 = vpop.xlane.xlu0 %7246
        %7248 = vadd.xlane.f32.xlu0 %v7217
        %v7249 = vpop.xlane.xlu0 %7248
        %7250 = vadd.xlane.f32.xlu0 %v7219
        %v7251 = vpop.xlane.xlu0 %7250
        %7252 = vadd.xlane.f32.xlu0 %v7221
        %v7253 = vpop.xlane.xlu0 %7252
        %7254 = vadd.xlane.f32.xlu0 %v7223
        %v7255 = vpop.xlane.xlu0 %7254
        %7256 = vadd.xlane.f32.xlu0 %v7225
        %v7257 = vpop.xlane.xlu0 %7256
        %v7258 = vrcp.pop %v7227
        %v7259 = vrcp.pop %v7229
        %v7260 = vrcp.pop %v7231
        %v7261 = vrcp.pop %v7233
        %v7262 = vrcp.pop %v7235
        %v7263 = vrcp.pop %v7237
        %v7264 = vrcp.pop %v7239
        %v7265 = vrcp.pop %v7241
        %v7266 = vrcp.pop %v7243
        %v7267 = vrcp.pop %v7245
        %v7268 = vrcp.pop %v7247
        %v7269 = vrcp.pop %v7249
        %v7270 = vrcp.pop %v7251
        %v7271 = vrcp.pop %v7253
        %v7272 = vrcp.pop %v7255
        %v7273 = vrcp.pop %v7257
        %v7274 = vpack.c.bf16 %v7197, %v7195
        %v7275 = vpack.c.bf16 %v7201, %v7199
        %v7276 = vpack.c.bf16 %v7205, %v7203
        %v7277 = vpack.c.bf16 %v7209, %v7207
        %v7278 = vpack.c.bf16 %v7213, %v7211
        %v7279 = vpack.c.bf16 %v7217, %v7215
        %v7280 = vpack.c.bf16 %v7221, %v7219
        %v7281 = vpack.c.bf16 %v7225, %v7223
        %7290 = vrot.lane.b32.xlu0 %v6399, 96
        %v7291 = vpop.permute.xlu0 %7290
        %7292 = vrot.lane.b32.xlu0 %v6400, 96
        %v7293 = vpop.permute.xlu0 %7292
        %7294 = vrot.lane.b32.xlu0 %v6401, 96
        %v7295 = vpop.permute.xlu0 %7294
        %7296 = vrot.lane.b32.xlu0 %v6402, 96
        %v7297 = vpop.permute.xlu0 %7296
        %7298 = vrot.lane.b32.xlu0 %v6403, 96
        %v7299 = vpop.permute.xlu0 %7298
        %7300 = vrot.lane.b32.xlu0 %v6404, 96
        %v7301 = vpop.permute.xlu0 %7300
        %7302 = vrot.lane.b32.xlu0 %v6405, 96
        %v7303 = vpop.permute.xlu0 %7302
        %7304 = vrot.lane.b32.xlu0 %v6406, 96
        %v7305 = vpop.permute.xlu0 %7304
        %7314 = vmatprep.subr.bf16.mxu0 0
        %7315 = vmatpush1.bf16.msra.mxu0 %v7291
        %7316 = vmatprep.subr.bf16.mxu0 0
        %7317 = vmatpush1.bf16.msra.mxu0 %v7293
        %7318 = vmatprep.subr.bf16.mxu0 0
        %7319 = vmatpush1.bf16.msra.mxu0 %v7295
        %7320 = vmatprep.subr.bf16.mxu0 0
        %7321 = vmatpush1.bf16.msra.mxu0 %v7297
        %7322 = vmatprep.subr.bf16.mxu0 0
        %7323 = vmatpush1.bf16.msra.mxu0 %v7299
        %7324 = vmatprep.subr.bf16.mxu0 0
        %7325 = vmatpush1.bf16.msra.mxu0 %v7301
        %7326 = vmatprep.subr.bf16.mxu0 0
        %7327 = vmatpush1.bf16.msra.mxu0 %v7303
        %7328 = vmatprep.subr.bf16.mxu0 0
        %7329 = vmatpush1.bf16.msra.mxu0 %v7305
        %7330 = vmatprep.subr.bf16.mxu0 0
        %7331 = vmatpush1.bf16.msra.mxu0 0
        %7332 = vmatprep.subr.bf16.mxu0 0
        %7333 = vmatpush1.bf16.msra.mxu0 0
        %7334 = vmatprep.subr.bf16.mxu0 0
        %7335 = vmatpush1.bf16.msra.mxu0 0
        %7336 = vmatprep.subr.bf16.mxu0 0
        %7337 = vmatpush1.bf16.msra.mxu0 0
        %7338 = vmatprep.subr.bf16.mxu0 0
        %7339 = vmatpush1.bf16.msra.mxu0 0
        %7340 = vmatprep.subr.bf16.mxu0 0
        %7341 = vmatpush1.bf16.msra.mxu0 0
        %7342 = vmatprep.subr.bf16.mxu0 0
        %7343 = vmatpush1.bf16.msra.mxu0 0
        %7344 = vmatprep.subr.bf16.mxu0 0
        %7345 = vmatpush1.bf16.msra.mxu0 0
        %7346 = vmatprep.mubr.bf16.mxu0 0
        %7347 = vmatmul.mubr.bf16.gmra.mrb[0].mxu0 %v7274
        %v7348 = vpop.f32.mrb[0].mxu0
        %v7349 = vadd.f32 0.0, %v7348
        %v7350 = vpop.f32.mrb[0].mxu0
        %v7351 = vpop.f32.mrb[0].mxu0
        %v7352 = vadd.f32 0.0, %v7351
        %v7353 = vpop.f32.mrb[0].mxu0
        %7354 = vmatprep.mubr.bf16.mxu0 0
        %7355 = vmatmul.mubr.bf16.gmra.mrb[0].mxu0 %v7275
        %v7356 = vpop.f32.mrb[0].mxu0
        %v7357 = vadd.f32 0.0, %v7356
        %v7358 = vpop.f32.mrb[0].mxu0
        %v7359 = vpop.f32.mrb[0].mxu0
        %v7360 = vadd.f32 0.0, %v7359
        %v7361 = vpop.f32.mrb[0].mxu0
        %7362 = vmatprep.mubr.bf16.mxu0 0
        %7363 = vmatmul.mubr.bf16.gmra.mrb[0].mxu0 %v7276
        %v7364 = vpop.f32.mrb[0].mxu0
        %v7365 = vadd.f32 0.0, %v7364
        %v7366 = vpop.f32.mrb[0].mxu0
        %v7367 = vpop.f32.mrb[0].mxu0
        %v7368 = vadd.f32 0.0, %v7367
        %v7369 = vpop.f32.mrb[0].mxu0
        %7370 = vmatprep.mubr.bf16.mxu0 0
        %7371 = vmatmul.mubr.bf16.gmra.mrb[0].mxu0 %v7277
        %v7372 = vpop.f32.mrb[0].mxu0
        %v7373 = vadd.f32 0.0, %v7372
        %v7374 = vpop.f32.mrb[0].mxu0
        %v7375 = vpop.f32.mrb[0].mxu0
        %v7376 = vadd.f32 0.0, %v7375
        %v7377 = vpop.f32.mrb[0].mxu0
        %7378 = vmatprep.mubr.bf16.mxu0 0
        %7379 = vmatmul.mubr.bf16.gmra.mrb[0].mxu0 %v7278
        %v7380 = vpop.f32.mrb[0].mxu0
        %v7381 = vadd.f32 0.0, %v7380
        %v7382 = vpop.f32.mrb[0].mxu0
        %v7383 = vpop.f32.mrb[0].mxu0
        %v7384 = vadd.f32 0.0, %v7383
        %v7385 = vpop.f32.mrb[0].mxu0
        %7386 = vmatprep.mubr.bf16.mxu0 0
        %7387 = vmatmul.mubr.bf16.gmra.mrb[0].mxu0 %v7279
        %v7388 = vpop.f32.mrb[0].mxu0
        %v7389 = vadd.f32 0.0, %v7388
        %v7390 = vpop.f32.mrb[0].mxu0
        %v7391 = vpop.f32.mrb[0].mxu0
        %v7392 = vadd.f32 0.0, %v7391
        %v7393 = vpop.f32.mrb[0].mxu0
        %7394 = vmatprep.mubr.bf16.mxu0 0
        %7395 = vmatmul.mubr.bf16.gmra.mrb[0].mxu0 %v7280
        %v7396 = vpop.f32.mrb[0].mxu0
        %v7397 = vadd.f32 0.0, %v7396
        %v7398 = vpop.f32.mrb[0].mxu0
        %v7399 = vpop.f32.mrb[0].mxu0
        %v7400 = vadd.f32 0.0, %v7399
        %v7401 = vpop.f32.mrb[0].mxu0
        %7402 = vmatprep.mubr.bf16.mxu0 0
        %7403 = vmatmul.mubr.bf16.gmra.mrb[0].mxu0 %v7281
        %v7404 = vpop.f32.mrb[0].mxu0
        %v7405 = vadd.f32 0.0, %v7404
        %v7406 = vpop.f32.mrb[0].mxu0
        %v7407 = vpop.f32.mrb[0].mxu0
        %v7408 = vadd.f32 0.0, %v7407
        %v7409 = vpop.f32.mrb[0].mxu0
        %7410 = vdwg.mxu0
        %v7411 = vmul.f32 %v7349, %v7258
        %v7412 = vmul.f32 %v7352, %v7259
        %v7413 = vmul.f32 %v7357, %v7260
        %v7414 = vmul.f32 %v7360, %v7261
        %v7415 = vmul.f32 %v7365, %v7262
        %v7416 = vmul.f32 %v7368, %v7263
        %v7417 = vmul.f32 %v7373, %v7264
        %v7418 = vmul.f32 %v7376, %v7265
        %v7419 = vmul.f32 %v7381, %v7266
        %v7420 = vmul.f32 %v7384, %v7267
        %v7421 = vmul.f32 %v7389, %v7268
        %v7422 = vmul.f32 %v7392, %v7269
        %v7423 = vmul.f32 %v7397, %v7270
        %v7424 = vmul.f32 %v7400, %v7271
        %v7425 = vmul.f32 %v7405, %v7272
        %v7426 = vmul.f32 %v7408, %v7273
        %v7427 = vadd.f32 %v6901, %v7411
        %v7428 = vadd.f32 %v6902, %v7412
        %v7429 = vadd.f32 %v6903, %v7413
        %v7430 = vadd.f32 %v6904, %v7414
        %v7431 = vadd.f32 %v6905, %v7415
        %v7432 = vadd.f32 %v6906, %v7416
        %v7433 = vadd.f32 %v6907, %v7417
        %v7434 = vadd.f32 %v6908, %v7418
        %v7435 = vadd.f32 %v6909, %v7419
        %v7436 = vadd.f32 %v6910, %v7420
        %v7437 = vadd.f32 %v6911, %v7421
        %v7438 = vadd.f32 %v6912, %v7422
        %v7439 = vadd.f32 %v6913, %v7423
        %v7440 = vadd.f32 %v6914, %v7424
        %v7441 = vadd.f32 %v6915, %v7425
        %v7442 = vadd.f32 %v6916, %v7426
        %7443 = vset.pattern.permute.xlu0 101
        %7444 = vperm.xlu0 %7443, %v6300
        %v7445 = vpop.permute.xlu0 %7444
        %7447 = vset.pattern.permute.xlu0 101
        %7448 = vperm.xlu0 %7447, %v6303
        %v7449 = vpop.permute.xlu0 %7448
        %7451 = vset.pattern.permute.xlu0 101
        %7452 = vperm.xlu0 %7451, %v6308
        %v7453 = vpop.permute.xlu0 %7452
        %7455 = vset.pattern.permute.xlu0 101
        %7456 = vperm.xlu0 %7455, %v6311
        %v7457 = vpop.permute.xlu0 %7456
        %7459 = vset.pattern.permute.xlu0 101
        %7460 = vperm.xlu0 %7459, %v6316
        %v7461 = vpop.permute.xlu0 %7460
        %7463 = vset.pattern.permute.xlu0 101
        %7464 = vperm.xlu0 %7463, %v6319
        %v7465 = vpop.permute.xlu0 %7464
        %7467 = vset.pattern.permute.xlu0 101
        %7468 = vperm.xlu0 %7467, %v6324
        %v7469 = vpop.permute.xlu0 %7468
        %7471 = vset.pattern.permute.xlu0 101
        %7472 = vperm.xlu0 %7471, %v6327
        %v7473 = vpop.permute.xlu0 %7472
        %7475 = vset.pattern.permute.xlu0 101
        %7476 = vperm.xlu0 %7475, %v6332
        %v7477 = vpop.permute.xlu0 %7476
        %7479 = vset.pattern.permute.xlu0 101
        %7480 = vperm.xlu0 %7479, %v6335
        %v7481 = vpop.permute.xlu0 %7480
        %7483 = vset.pattern.permute.xlu0 101
        %7484 = vperm.xlu0 %7483, %v6340
        %v7485 = vpop.permute.xlu0 %7484
        %7487 = vset.pattern.permute.xlu0 101
        %7488 = vperm.xlu0 %7487, %v6343
        %v7489 = vpop.permute.xlu0 %7488
        %7491 = vset.pattern.permute.xlu0 101
        %7492 = vperm.xlu0 %7491, %v6348
        %v7493 = vpop.permute.xlu0 %7492
        %7495 = vset.pattern.permute.xlu0 101
        %7496 = vperm.xlu0 %7495, %v6351
        %v7497 = vpop.permute.xlu0 %7496
        %7499 = vset.pattern.permute.xlu0 101
        %7500 = vperm.xlu0 %7499, %v6356
        %v7501 = vpop.permute.xlu0 %7500
        %7503 = vset.pattern.permute.xlu0 101
        %7504 = vperm.xlu0 %7503, %v6359
        %v7505 = vpop.permute.xlu0 %7504
        %v7507 = vsel %vm384, %v7445, 0.0
        %v7508 = vsel %vm385, %v7449, 0.0
        %v7509 = vsel %vm386, %v7453, 0.0
        %v7510 = vsel %vm387, %v7457, 0.0
        %v7511 = vsel %vm388, %v7461, 0.0
        %v7512 = vsel %vm389, %v7465, 0.0
        %v7513 = vsel %vm390, %v7469, 0.0
        %v7514 = vsel %vm391, %v7473, 0.0
        %v7515 = vsel %vm392, %v7477, 0.0
        %v7516 = vsel %vm393, %v7481, 0.0
        %v7517 = vsel %vm394, %v7485, 0.0
        %v7518 = vsel %vm395, %v7489, 0.0
        %v7519 = vsel %vm396, %v7493, 0.0
        %v7520 = vsel %vm397, %v7497, 0.0
        %v7521 = vsel %vm398, %v7501, 0.0
        %v7522 = vsel %vm399, %v7505, 0.0
        %v7523 = vadd.f32 %v7507, %v7508
        %v7524 = vadd.f32 %v7523, %v7509
        %v7525 = vadd.f32 %v7524, %v7510
        %v7526 = vadd.f32 %v7525, %v7511
        %v7527 = vadd.f32 %v7526, %v7512
        %v7528 = vadd.f32 %v7527, %v7513
        %v7529 = vadd.f32 %v7528, %v7514
        %v7530 = vadd.f32 %v7529, %v7515
        %v7531 = vadd.f32 %v7530, %v7516
        %v7532 = vadd.f32 %v7531, %v7517
        %v7533 = vadd.f32 %v7532, %v7518
        %v7534 = vadd.f32 %v7533, %v7519
        %v7535 = vadd.f32 %v7534, %v7520
        %v7536 = vadd.f32 %v7535, %v7521
        %v7537 = vadd.f32 %v7536, %v7522
        %v7538 = vrot.slane %v7537, 4
        %v7539 = vadd.f32 %v7537, %v7538
        %v7540 = vrot.slane %v7539, 2
        %v7541 = vadd.f32 %v7539, %v7540
        %v7542 = vrot.slane %v7541, 1
        %v7543 = vadd.f32 %v7541, %v7542
        %7544 = vset.pattern.permute.xlu0 98
        %7545 = vperm.xlu0 %7544, %v6300
        %v7546 = vpop.permute.xlu0 %7545
        %7548 = vset.pattern.permute.xlu0 98
        %7549 = vperm.xlu0 %7548, %v6303
        %v7550 = vpop.permute.xlu0 %7549
        %7552 = vset.pattern.permute.xlu0 98
        %7553 = vperm.xlu0 %7552, %v6308
        %v7554 = vpop.permute.xlu0 %7553
        %7556 = vset.pattern.permute.xlu0 98
        %7557 = vperm.xlu0 %7556, %v6311
        %v7558 = vpop.permute.xlu0 %7557
        %7560 = vset.pattern.permute.xlu0 98
        %7561 = vperm.xlu0 %7560, %v6316
        %v7562 = vpop.permute.xlu0 %7561
        %7564 = vset.pattern.permute.xlu0 98
        %7565 = vperm.xlu0 %7564, %v6319
        %v7566 = vpop.permute.xlu0 %7565
        %7568 = vset.pattern.permute.xlu0 98
        %7569 = vperm.xlu0 %7568, %v6324
        %v7570 = vpop.permute.xlu0 %7569
        %7572 = vset.pattern.permute.xlu0 98
        %7573 = vperm.xlu0 %7572, %v6327
        %v7574 = vpop.permute.xlu0 %7573
        %7576 = vset.pattern.permute.xlu0 98
        %7577 = vperm.xlu0 %7576, %v6332
        %v7578 = vpop.permute.xlu0 %7577
        %7580 = vset.pattern.permute.xlu0 98
        %7581 = vperm.xlu0 %7580, %v6335
        %v7582 = vpop.permute.xlu0 %7581
        %7584 = vset.pattern.permute.xlu0 98
        %7585 = vperm.xlu0 %7584, %v6340
        %v7586 = vpop.permute.xlu0 %7585
        %7588 = vset.pattern.permute.xlu0 98
        %7589 = vperm.xlu0 %7588, %v6343
        %v7590 = vpop.permute.xlu0 %7589
        %7592 = vset.pattern.permute.xlu0 98
        %7593 = vperm.xlu0 %7592, %v6348
        %v7594 = vpop.permute.xlu0 %7593
        %7596 = vset.pattern.permute.xlu0 98
        %7597 = vperm.xlu0 %7596, %v6351
        %v7598 = vpop.permute.xlu0 %7597
        %7600 = vset.pattern.permute.xlu0 98
        %7601 = vperm.xlu0 %7600, %v6356
        %v7602 = vpop.permute.xlu0 %7601
        %7604 = vset.pattern.permute.xlu0 98
        %7605 = vperm.xlu0 %7604, %v6359
        %v7606 = vpop.permute.xlu0 %7605
        %v7608 = vadd.f32 %v7546, %v7543
        %v7609 = vadd.f32 %v7550, %v7543
        %v7610 = vadd.f32 %v7554, %v7543
        %v7611 = vadd.f32 %v7558, %v7543
        %v7612 = vadd.f32 %v7562, %v7543
        %v7613 = vadd.f32 %v7566, %v7543
        %v7614 = vadd.f32 %v7570, %v7543
        %v7615 = vadd.f32 %v7574, %v7543
        %v7616 = vadd.f32 %v7578, %v7543
        %v7617 = vadd.f32 %v7582, %v7543
        %v7618 = vadd.f32 %v7586, %v7543
        %v7619 = vadd.f32 %v7590, %v7543
        %v7620 = vadd.f32 %v7594, %v7543
        %v7621 = vadd.f32 %v7598, %v7543
        %v7622 = vadd.f32 %v7602, %v7543
        %v7623 = vadd.f32 %v7606, %v7543
        %v7624 = vmul.f32 %v7608, 0.2
        %v7625 = vmul.f32 %v7609, 0.2
        %v7626 = vmul.f32 %v7610, 0.2
        %v7627 = vmul.f32 %v7611, 0.2
        %v7628 = vmul.f32 %v7612, 0.2
        %v7629 = vmul.f32 %v7613, 0.2
        %v7630 = vmul.f32 %v7614, 0.2
        %v7631 = vmul.f32 %v7615, 0.2
        %v7632 = vmul.f32 %v7616, 0.2
        %v7633 = vmul.f32 %v7617, 0.2
        %v7634 = vmul.f32 %v7618, 0.2
        %v7635 = vmul.f32 %v7619, 0.2
        %v7636 = vmul.f32 %v7620, 0.2
        %v7637 = vmul.f32 %v7621, 0.2
        %v7638 = vmul.f32 %v7622, 0.2
        %v7639 = vmul.f32 %v7623, 0.2
        %v7640 = vmax.f32 %v7608, %v7624
        %v7641 = vmax.f32 %v7609, %v7625
        %v7642 = vmax.f32 %v7610, %v7626
        %v7643 = vmax.f32 %v7611, %v7627
        %v7644 = vmax.f32 %v7612, %v7628
        %v7645 = vmax.f32 %v7613, %v7629
        %v7646 = vmax.f32 %v7614, %v7630
        %v7647 = vmax.f32 %v7615, %v7631
        %v7648 = vmax.f32 %v7616, %v7632
        %v7649 = vmax.f32 %v7617, %v7633
        %v7650 = vmax.f32 %v7618, %v7634
        %v7651 = vmax.f32 %v7619, %v7635
        %v7652 = vmax.f32 %v7620, %v7636
        %v7653 = vmax.f32 %v7621, %v7637
        %v7654 = vmax.f32 %v7622, %v7638
        %v7655 = vmax.f32 %v7623, %v7639
        %v7656 = vsel %vm6379, %v7640, -1e+30
        %v7657 = vsel %vm6380, %v7641, -1e+30
        %v7658 = vsel %vm6381, %v7642, -1e+30
        %v7659 = vsel %vm6382, %v7643, -1e+30
        %v7660 = vsel %vm6383, %v7644, -1e+30
        %v7661 = vsel %vm6384, %v7645, -1e+30
        %v7662 = vsel %vm6385, %v7646, -1e+30
        %v7663 = vsel %vm6386, %v7647, -1e+30
        %v7664 = vsel %vm6387, %v7648, -1e+30
        %v7665 = vsel %vm6388, %v7649, -1e+30
        %v7666 = vsel %vm6389, %v7650, -1e+30
        %v7667 = vsel %vm6390, %v7651, -1e+30
        %v7668 = vsel %vm6391, %v7652, -1e+30
        %v7669 = vsel %vm6392, %v7653, -1e+30
        %v7670 = vsel %vm6393, %v7654, -1e+30
        %v7671 = vsel %vm6394, %v7655, -1e+30
        %7672 = vmax.xlane.f32.xlu0 %v7656
        %v7673 = vpop.xlane.xlu0 %7672
        %7674 = vmax.xlane.f32.xlu0 %v7657
        %v7675 = vpop.xlane.xlu0 %7674
        %7676 = vmax.xlane.f32.xlu0 %v7658
        %v7677 = vpop.xlane.xlu0 %7676
        %7678 = vmax.xlane.f32.xlu0 %v7659
        %v7679 = vpop.xlane.xlu0 %7678
        %7680 = vmax.xlane.f32.xlu0 %v7660
        %v7681 = vpop.xlane.xlu0 %7680
        %7682 = vmax.xlane.f32.xlu0 %v7661
        %v7683 = vpop.xlane.xlu0 %7682
        %7684 = vmax.xlane.f32.xlu0 %v7662
        %v7685 = vpop.xlane.xlu0 %7684
        %7686 = vmax.xlane.f32.xlu0 %v7663
        %v7687 = vpop.xlane.xlu0 %7686
        %7688 = vmax.xlane.f32.xlu0 %v7664
        %v7689 = vpop.xlane.xlu0 %7688
        %7690 = vmax.xlane.f32.xlu0 %v7665
        %v7691 = vpop.xlane.xlu0 %7690
        %7692 = vmax.xlane.f32.xlu0 %v7666
        %v7693 = vpop.xlane.xlu0 %7692
        %7694 = vmax.xlane.f32.xlu0 %v7667
        %v7695 = vpop.xlane.xlu0 %7694
        %7696 = vmax.xlane.f32.xlu0 %v7668
        %v7697 = vpop.xlane.xlu0 %7696
        %7698 = vmax.xlane.f32.xlu0 %v7669
        %v7699 = vpop.xlane.xlu0 %7698
        %7700 = vmax.xlane.f32.xlu0 %v7670
        %v7701 = vpop.xlane.xlu0 %7700
        %7702 = vmax.xlane.f32.xlu0 %v7671
        %v7703 = vpop.xlane.xlu0 %7702
        %v7704 = vsub.f32 %v7656, %v7673
        %v7705 = vsub.f32 %v7657, %v7675
        %v7706 = vsub.f32 %v7658, %v7677
        %v7707 = vsub.f32 %v7659, %v7679
        %v7708 = vsub.f32 %v7660, %v7681
        %v7709 = vsub.f32 %v7661, %v7683
        %v7710 = vsub.f32 %v7662, %v7685
        %v7711 = vsub.f32 %v7663, %v7687
        %v7712 = vsub.f32 %v7664, %v7689
        %v7713 = vsub.f32 %v7665, %v7691
        %v7714 = vsub.f32 %v7666, %v7693
        %v7715 = vsub.f32 %v7667, %v7695
        %v7716 = vsub.f32 %v7668, %v7697
        %v7717 = vsub.f32 %v7669, %v7699
        %v7718 = vsub.f32 %v7670, %v7701
        %v7719 = vsub.f32 %v7671, %v7703
        %v7720 = vmul.f32 %v7704, 1.442695
        %v7721 = vpow.pop %v7720
        %v7722 = vmul.f32 %v7705, 1.442695
        %v7723 = vpow.pop %v7722
        %v7724 = vmul.f32 %v7706, 1.442695
        %v7725 = vpow.pop %v7724
        %v7726 = vmul.f32 %v7707, 1.442695
        %v7727 = vpow.pop %v7726
        %v7728 = vmul.f32 %v7708, 1.442695
        %v7729 = vpow.pop %v7728
        %v7730 = vmul.f32 %v7709, 1.442695
        %v7731 = vpow.pop %v7730
        %v7732 = vmul.f32 %v7710, 1.442695
        %v7733 = vpow.pop %v7732
        %v7734 = vmul.f32 %v7711, 1.442695
        %v7735 = vpow.pop %v7734
        %v7736 = vmul.f32 %v7712, 1.442695
        %v7737 = vpow.pop %v7736
        %v7738 = vmul.f32 %v7713, 1.442695
        %v7739 = vpow.pop %v7738
        %v7740 = vmul.f32 %v7714, 1.442695
        %v7741 = vpow.pop %v7740
        %v7742 = vmul.f32 %v7715, 1.442695
        %v7743 = vpow.pop %v7742
        %v7744 = vmul.f32 %v7716, 1.442695
        %v7745 = vpow.pop %v7744
        %v7746 = vmul.f32 %v7717, 1.442695
        %v7747 = vpow.pop %v7746
        %v7748 = vmul.f32 %v7718, 1.442695
        %v7749 = vpow.pop %v7748
        %v7750 = vmul.f32 %v7719, 1.442695
        %v7751 = vpow.pop %v7750
        %7752 = vadd.xlane.f32.xlu0 %v7721
        %v7753 = vpop.xlane.xlu0 %7752
        %7754 = vadd.xlane.f32.xlu0 %v7723
        %v7755 = vpop.xlane.xlu0 %7754
        %7756 = vadd.xlane.f32.xlu0 %v7725
        %v7757 = vpop.xlane.xlu0 %7756
        %7758 = vadd.xlane.f32.xlu0 %v7727
        %v7759 = vpop.xlane.xlu0 %7758
        %7760 = vadd.xlane.f32.xlu0 %v7729
        %v7761 = vpop.xlane.xlu0 %7760
        %7762 = vadd.xlane.f32.xlu0 %v7731
        %v7763 = vpop.xlane.xlu0 %7762
        %7764 = vadd.xlane.f32.xlu0 %v7733
        %v7765 = vpop.xlane.xlu0 %7764
        %7766 = vadd.xlane.f32.xlu0 %v7735
        %v7767 = vpop.xlane.xlu0 %7766
        %7768 = vadd.xlane.f32.xlu0 %v7737
        %v7769 = vpop.xlane.xlu0 %7768
        %7770 = vadd.xlane.f32.xlu0 %v7739
        %v7771 = vpop.xlane.xlu0 %7770
        %7772 = vadd.xlane.f32.xlu0 %v7741
        %v7773 = vpop.xlane.xlu0 %7772
        %7774 = vadd.xlane.f32.xlu0 %v7743
        %v7775 = vpop.xlane.xlu0 %7774
        %7776 = vadd.xlane.f32.xlu0 %v7745
        %v7777 = vpop.xlane.xlu0 %7776
        %7778 = vadd.xlane.f32.xlu0 %v7747
        %v7779 = vpop.xlane.xlu0 %7778
        %7780 = vadd.xlane.f32.xlu0 %v7749
        %v7781 = vpop.xlane.xlu0 %7780
        %7782 = vadd.xlane.f32.xlu0 %v7751
        %v7783 = vpop.xlane.xlu0 %7782
        %v7784 = vrcp.pop %v7753
        %v7785 = vrcp.pop %v7755
        %v7786 = vrcp.pop %v7757
        %v7787 = vrcp.pop %v7759
        %v7788 = vrcp.pop %v7761
        %v7789 = vrcp.pop %v7763
        %v7790 = vrcp.pop %v7765
        %v7791 = vrcp.pop %v7767
        %v7792 = vrcp.pop %v7769
        %v7793 = vrcp.pop %v7771
        %v7794 = vrcp.pop %v7773
        %v7795 = vrcp.pop %v7775
        %v7796 = vrcp.pop %v7777
        %v7797 = vrcp.pop %v7779
        %v7798 = vrcp.pop %v7781
        %v7799 = vrcp.pop %v7783
        %v7800 = vpack.c.bf16 %v7723, %v7721
        %v7801 = vpack.c.bf16 %v7727, %v7725
        %v7802 = vpack.c.bf16 %v7731, %v7729
        %v7803 = vpack.c.bf16 %v7735, %v7733
        %v7804 = vpack.c.bf16 %v7739, %v7737
        %v7805 = vpack.c.bf16 %v7743, %v7741
        %v7806 = vpack.c.bf16 %v7747, %v7745
        %v7807 = vpack.c.bf16 %v7751, %v7749
        %7808 = vrot.lane.b32.xlu0 %v6399, 64
        %v7809 = vpop.permute.xlu0 %7808
        %7810 = vrot.lane.b32.xlu0 %v6400, 64
        %v7811 = vpop.permute.xlu0 %7810
        %7812 = vrot.lane.b32.xlu0 %v6401, 64
        %v7813 = vpop.permute.xlu0 %7812
        %7814 = vrot.lane.b32.xlu0 %v6402, 64
        %v7815 = vpop.permute.xlu0 %7814
        %7816 = vrot.lane.b32.xlu0 %v6403, 64
        %v7817 = vpop.permute.xlu0 %7816
        %7818 = vrot.lane.b32.xlu0 %v6404, 64
        %v7819 = vpop.permute.xlu0 %7818
        %7820 = vrot.lane.b32.xlu0 %v6405, 64
        %v7821 = vpop.permute.xlu0 %7820
        %7822 = vrot.lane.b32.xlu0 %v6406, 64
        %v7823 = vpop.permute.xlu0 %7822
        %7832 = vmatprep.subr.bf16.mxu0 0
        %7833 = vmatpush1.bf16.msra.mxu0 %v7809
        %7834 = vmatprep.subr.bf16.mxu0 0
        %7835 = vmatpush1.bf16.msra.mxu0 %v7811
        %7836 = vmatprep.subr.bf16.mxu0 0
        %7837 = vmatpush1.bf16.msra.mxu0 %v7813
        %7838 = vmatprep.subr.bf16.mxu0 0
        %7839 = vmatpush1.bf16.msra.mxu0 %v7815
        %7840 = vmatprep.subr.bf16.mxu0 0
        %7841 = vmatpush1.bf16.msra.mxu0 %v7817
        %7842 = vmatprep.subr.bf16.mxu0 0
        %7843 = vmatpush1.bf16.msra.mxu0 %v7819
        %7844 = vmatprep.subr.bf16.mxu0 0
        %7845 = vmatpush1.bf16.msra.mxu0 %v7821
        %7846 = vmatprep.subr.bf16.mxu0 0
        %7847 = vmatpush1.bf16.msra.mxu0 %v7823
        %7848 = vmatprep.subr.bf16.mxu0 0
        %7849 = vmatpush1.bf16.msra.mxu0 0
        %7850 = vmatprep.subr.bf16.mxu0 0
        %7851 = vmatpush1.bf16.msra.mxu0 0
        %7852 = vmatprep.subr.bf16.mxu0 0
        %7853 = vmatpush1.bf16.msra.mxu0 0
        %7854 = vmatprep.subr.bf16.mxu0 0
        %7855 = vmatpush1.bf16.msra.mxu0 0
        %7856 = vmatprep.subr.bf16.mxu0 0
        %7857 = vmatpush1.bf16.msra.mxu0 0
        %7858 = vmatprep.subr.bf16.mxu0 0
        %7859 = vmatpush1.bf16.msra.mxu0 0
        %7860 = vmatprep.subr.bf16.mxu0 0
        %7861 = vmatpush1.bf16.msra.mxu0 0
        %7862 = vmatprep.subr.bf16.mxu0 0
        %7863 = vmatpush1.bf16.msra.mxu0 0
        %7864 = vmatprep.mubr.bf16.mxu0 0
        %7865 = vmatmul.mubr.bf16.gmra.mrb[0].mxu0 %v7800
        %v7866 = vpop.f32.mrb[0].mxu0
        %v7867 = vadd.f32 0.0, %v7866
        %v7868 = vpop.f32.mrb[0].mxu0
        %v7869 = vpop.f32.mrb[0].mxu0
        %v7870 = vadd.f32 0.0, %v7869
        %v7871 = vpop.f32.mrb[0].mxu0
        %7872 = vmatprep.mubr.bf16.mxu0 0
        %7873 = vmatmul.mubr.bf16.gmra.mrb[0].mxu0 %v7801
        %v7874 = vpop.f32.mrb[0].mxu0
        %v7875 = vadd.f32 0.0, %v7874
        %v7876 = vpop.f32.mrb[0].mxu0
        %v7877 = vpop.f32.mrb[0].mxu0
        %v7878 = vadd.f32 0.0, %v7877
        %v7879 = vpop.f32.mrb[0].mxu0
        %7880 = vmatprep.mubr.bf16.mxu0 0
        %7881 = vmatmul.mubr.bf16.gmra.mrb[0].mxu0 %v7802
        %v7882 = vpop.f32.mrb[0].mxu0
        %v7883 = vadd.f32 0.0, %v7882
        %v7884 = vpop.f32.mrb[0].mxu0
        %v7885 = vpop.f32.mrb[0].mxu0
        %v7886 = vadd.f32 0.0, %v7885
        %v7887 = vpop.f32.mrb[0].mxu0
        %7888 = vmatprep.mubr.bf16.mxu0 0
        %7889 = vmatmul.mubr.bf16.gmra.mrb[0].mxu0 %v7803
        %v7890 = vpop.f32.mrb[0].mxu0
        %v7891 = vadd.f32 0.0, %v7890
        %v7892 = vpop.f32.mrb[0].mxu0
        %v7893 = vpop.f32.mrb[0].mxu0
        %v7894 = vadd.f32 0.0, %v7893
        %v7895 = vpop.f32.mrb[0].mxu0
        %7896 = vmatprep.mubr.bf16.mxu0 0
        %7897 = vmatmul.mubr.bf16.gmra.mrb[0].mxu0 %v7804
        %v7898 = vpop.f32.mrb[0].mxu0
        %v7899 = vadd.f32 0.0, %v7898
        %v7900 = vpop.f32.mrb[0].mxu0
        %v7901 = vpop.f32.mrb[0].mxu0
        %v7902 = vadd.f32 0.0, %v7901
        %v7903 = vpop.f32.mrb[0].mxu0
        %7904 = vmatprep.mubr.bf16.mxu0 0
        %7905 = vmatmul.mubr.bf16.gmra.mrb[0].mxu0 %v7805
        %v7906 = vpop.f32.mrb[0].mxu0
        %v7907 = vadd.f32 0.0, %v7906
        %v7908 = vpop.f32.mrb[0].mxu0
        %v7909 = vpop.f32.mrb[0].mxu0
        %v7910 = vadd.f32 0.0, %v7909
        %v7911 = vpop.f32.mrb[0].mxu0
        %7912 = vmatprep.mubr.bf16.mxu0 0
        %7913 = vmatmul.mubr.bf16.gmra.mrb[0].mxu0 %v7806
        %v7914 = vpop.f32.mrb[0].mxu0
        %v7915 = vadd.f32 0.0, %v7914
        %v7916 = vpop.f32.mrb[0].mxu0
        %v7917 = vpop.f32.mrb[0].mxu0
        %v7918 = vadd.f32 0.0, %v7917
        %v7919 = vpop.f32.mrb[0].mxu0
        %7920 = vmatprep.mubr.bf16.mxu0 0
        %7921 = vmatmul.mubr.bf16.gmra.mrb[0].mxu0 %v7807
        %v7922 = vpop.f32.mrb[0].mxu0
        %v7923 = vadd.f32 0.0, %v7922
        %v7924 = vpop.f32.mrb[0].mxu0
        %v7925 = vpop.f32.mrb[0].mxu0
        %v7926 = vadd.f32 0.0, %v7925
        %v7927 = vpop.f32.mrb[0].mxu0
        %7928 = vdwg.mxu0
        %v7929 = vmul.f32 %v7867, %v7784
        %v7930 = vmul.f32 %v7870, %v7785
        %v7931 = vmul.f32 %v7875, %v7786
        %v7932 = vmul.f32 %v7878, %v7787
        %v7933 = vmul.f32 %v7883, %v7788
        %v7934 = vmul.f32 %v7886, %v7789
        %v7935 = vmul.f32 %v7891, %v7790
        %v7936 = vmul.f32 %v7894, %v7791
        %v7937 = vmul.f32 %v7899, %v7792
        %v7938 = vmul.f32 %v7902, %v7793
        %v7939 = vmul.f32 %v7907, %v7794
        %v7940 = vmul.f32 %v7910, %v7795
        %v7941 = vmul.f32 %v7915, %v7796
        %v7942 = vmul.f32 %v7918, %v7797
        %v7943 = vmul.f32 %v7923, %v7798
        %v7944 = vmul.f32 %v7926, %v7799
        %v7945 = vadd.f32 %v7427, %v7929
        %v7946 = vadd.f32 %v7428, %v7930
        %v7947 = vadd.f32 %v7429, %v7931
        %v7948 = vadd.f32 %v7430, %v7932
        %v7949 = vadd.f32 %v7431, %v7933
        %v7950 = vadd.f32 %v7432, %v7934
        %v7951 = vadd.f32 %v7433, %v7935
        %v7952 = vadd.f32 %v7434, %v7936
        %v7953 = vadd.f32 %v7435, %v7937
        %v7954 = vadd.f32 %v7436, %v7938
        %v7955 = vadd.f32 %v7437, %v7939
        %v7956 = vadd.f32 %v7438, %v7940
        %v7957 = vadd.f32 %v7439, %v7941
        %v7958 = vadd.f32 %v7440, %v7942
        %v7959 = vadd.f32 %v7441, %v7943
        %v7960 = vadd.f32 %v7442, %v7944
        %v7961 = vmul.f32 %v7945, 0.33333334
        %v7962 = vmul.f32 %v7946, 0.33333334
        %v7963 = vmul.f32 %v7947, 0.33333334
        %v7964 = vmul.f32 %v7948, 0.33333334
        %v7965 = vmul.f32 %v7949, 0.33333334
        %v7966 = vmul.f32 %v7950, 0.33333334
        %v7967 = vmul.f32 %v7951, 0.33333334
        %v7968 = vmul.f32 %v7952, 0.33333334
        %v7969 = vmul.f32 %v7953, 0.33333334
        %v7970 = vmul.f32 %v7954, 0.33333334
        %v7971 = vmul.f32 %v7955, 0.33333334
        %v7972 = vmul.f32 %v7956, 0.33333334
        %v7973 = vmul.f32 %v7957, 0.33333334
        %v7974 = vmul.f32 %v7958, 0.33333334
        %v7975 = vmul.f32 %v7959, 0.33333334
        %v7976 = vmul.f32 %v7960, 0.33333334
        %v7978 = vlaneseq
        %v7979 = vshrl.u32 %v7978, 7
        %v7980 = vsub.s32 0, %v7979
        %v7981 = vrot.slane %v6398, %v7980
        %v7983 = vadd.f32 %v7961, %v7981
        %v7984 = vadd.f32 %v7962, %v7981
        %v7985 = vadd.f32 %v7963, %v7981
        %v7986 = vadd.f32 %v7964, %v7981
        %v7987 = vadd.f32 %v7965, %v7981
        %v7988 = vadd.f32 %v7966, %v7981
        %v7989 = vadd.f32 %v7967, %v7981
        %v7990 = vadd.f32 %v7968, %v7981
        %v7991 = vadd.f32 %v7969, %v7981
        %v7992 = vadd.f32 %v7970, %v7981
        %v7993 = vadd.f32 %v7971, %v7981
        %v7994 = vadd.f32 %v7972, %v7981
        %v7995 = vadd.f32 %v7973, %v7981
        %v7996 = vadd.f32 %v7974, %v7981
        %v7997 = vadd.f32 %v7975, %v7981
        %v7998 = vadd.f32 %v7976, %v7981
        %v7999 = vstv %s6396
        %v8000 = vmul.f32 %v7983, %v7999
        %v8001 = vmul.f32 %v7984, %v7999
        %v8002 = vmul.f32 %v7985, %v7999
        %v8003 = vmul.f32 %v7986, %v7999
        %v8004 = vmul.f32 %v7987, %v7999
        %v8005 = vmul.f32 %v7988, %v7999
        %v8006 = vmul.f32 %v7989, %v7999
        %v8007 = vmul.f32 %v7990, %v7999
        %v8008 = vmul.f32 %v7991, %v7999
        %v8009 = vmul.f32 %v7992, %v7999
        %v8010 = vmul.f32 %v7993, %v7999
        %v8011 = vmul.f32 %v7994, %v7999
        %v8012 = vmul.f32 %v7995, %v7999
        %v8013 = vmul.f32 %v7996, %v7999
        %v8014 = vmul.f32 %v7997, %v7999
        %v8015 = vmul.f32 %v7998, %v7999
        %v8016 = vmax.f32 %v8000, 0.0
        %v8017 = vmax.f32 %v8001, 0.0
        %v8018 = vmax.f32 %v8002, 0.0
        %v8019 = vmax.f32 %v8003, 0.0
        %v8020 = vmax.f32 %v8004, 0.0
        %v8021 = vmax.f32 %v8005, 0.0
        %v8022 = vmax.f32 %v8006, 0.0
        %v8023 = vmax.f32 %v8007, 0.0
        %v8024 = vmax.f32 %v8008, 0.0
        %v8025 = vmax.f32 %v8009, 0.0
        %v8026 = vmax.f32 %v8010, 0.0
        %v8027 = vmax.f32 %v8011, 0.0
        %v8028 = vmax.f32 %v8012, 0.0
        %v8029 = vmax.f32 %v8013, 0.0
        %v8030 = vmax.f32 %v8014, 0.0
        %v8031 = vmax.f32 %v8015, 0.0
        %v8032 = vadd.f32 %v6233, %v8016
        %v8033 = vadd.f32 %v6234, %v8017
        %v8034 = vadd.f32 %v6235, %v8018
        %v8035 = vadd.f32 %v6236, %v8019
        %v8036 = vadd.f32 %v6237, %v8020
        %v8037 = vadd.f32 %v6238, %v8021
        %v8038 = vadd.f32 %v6239, %v8022
        %v8039 = vadd.f32 %v6240, %v8023
        %v8040 = vadd.f32 %v6241, %v8024
        %v8041 = vadd.f32 %v6242, %v8025
        %v8042 = vadd.f32 %v6243, %v8026
        %v8043 = vadd.f32 %v6244, %v8027
        %v8044 = vadd.f32 %v6245, %v8028
        %v8045 = vadd.f32 %v6246, %v8029
        %v8046 = vadd.f32 %v6247, %v8030
        %v8047 = vadd.f32 %v6248, %v8031
        %vm8048 = vcmp.eq.s32.totalorder %v366, 0
        %vm8049 = vmand %vm8048, %vm6362
        %vm8050 = vcmp.eq.s32.totalorder %v366, 1
        %vm8051 = vcmp.ge.s32.totalorder %v383, %v2671
        %vm8052 = vmand %vm8050, %vm8051
        %vm8053 = vcmp.lt.s32.totalorder %v383, %v416
        %vm8054 = vmand %vm8052, %vm8053
        %vm8055 = vmor %vm8049, %vm8054
        %vm8056 = vcmp.eq.s32.totalorder %v366, 2
        %vm8057 = vmand %vm8056, %vm466
        %vm8058 = vmand %vm8057, %vm483
        %vm8059 = vmor %vm8055, %vm8058
        %v8060 = vsel %vm8059, 1.0, 0.0
        %8061 = vmatprep.subr.mxu0 0.0
        %8062 = vmatpush1.msra.mxu0 %v8032
        %8063 = vmatprep.subr.mxu0 0.0
        %8064 = vmatpush1.msra.mxu0 %v8033
        %8065 = vmatprep.subr.mxu0 0.0
        %8066 = vmatpush1.msra.mxu0 %v8034
        %8067 = vmatprep.subr.mxu0 0.0
        %8068 = vmatpush1.msra.mxu0 %v8035
        %8069 = vmatprep.subr.mxu0 0.0
        %8070 = vmatpush1.msra.mxu0 %v8036
        %8071 = vmatprep.subr.mxu0 0.0
        %8072 = vmatpush1.msra.mxu0 %v8037
        %8073 = vmatprep.subr.mxu0 0.0
        %8074 = vmatpush1.msra.mxu0 %v8038
        %8075 = vmatprep.subr.mxu0 0.0
        %8076 = vmatpush1.msra.mxu0 %v8039
        %8077 = vmatprep.subr.mxu0 0.0
        %8078 = vmatpush1.msra.mxu0 %v8040
        %8079 = vmatprep.subr.mxu0 0.0
        %8080 = vmatpush1.msra.mxu0 %v8041
        %8081 = vmatprep.subr.mxu0 0.0
        %8082 = vmatpush1.msra.mxu0 %v8042
        %8083 = vmatprep.subr.mxu0 0.0
        %8084 = vmatpush1.msra.mxu0 %v8043
        %8085 = vmatprep.subr.mxu0 0.0
        %8086 = vmatpush1.msra.mxu0 %v8044
        %8087 = vmatprep.subr.mxu0 0.0
        %8088 = vmatpush1.msra.mxu0 %v8045
        %8089 = vmatprep.subr.mxu0 0.0
        %8090 = vmatpush1.msra.mxu0 %v8046
        %8091 = vmatprep.subr.mxu0 0.0
        %8092 = vmatpush1.msra.mxu0 %v8047
        %8093 = vmatprep.subr.mxu0 0.0
        %8094 = vmatpush1.msra.mxu0 0.0
        %8095 = vmatprep.subr.mxu0 0.0
        %8096 = vmatpush1.msra.mxu0 0.0
        %8097 = vmatprep.subr.mxu0 0.0
        %8098 = vmatpush1.msra.mxu0 0.0
        %8099 = vmatprep.subr.mxu0 0.0
        %8100 = vmatpush1.msra.mxu0 0.0
        %8101 = vmatprep.subr.mxu0 0.0
        %8102 = vmatpush1.msra.mxu0 0.0
        %8103 = vmatprep.subr.mxu0 0.0
        %8104 = vmatpush1.msra.mxu0 0.0
        %8105 = vmatprep.subr.mxu0 0.0
        %8106 = vmatpush1.msra.mxu0 0.0
        %8107 = vmatprep.subr.mxu0 0.0
        %8108 = vmatpush1.msra.mxu0 0.0
        %8109 = vmatprep.subr.mxu0 0.0
        %8110 = vmatpush1.msra.mxu0 0.0
        %8111 = vmatprep.subr.mxu0 0.0
        %8112 = vmatpush1.msra.mxu0 0.0
        %8113 = vmatprep.subr.mxu0 0.0
        %8114 = vmatpush1.msra.mxu0 0.0
        %8115 = vmatprep.subr.mxu0 0.0
        %8116 = vmatpush1.msra.mxu0 0.0
        %8117 = vmatprep.subr.mxu0 0.0
        %8118 = vmatpush1.msra.mxu0 0.0
        %8119 = vmatprep.subr.mxu0 0.0
        %8120 = vmatpush1.msra.mxu0 0.0
        %8121 = vmatprep.subr.mxu0 0.0
        %8122 = vmatpush1.msra.mxu0 0.0
        %8123 = vmatprep.subr.mxu0 0.0
        %8124 = vmatpush1.msra.mxu0 0.0
        %8125 = vmatprep.mubr.f32.mxu0 0.0
        %8126 = vmatmul.mubr.f32.gmra.mrb[0].mxu0 %v8060
        %v8127 = vpop.f32.mrb[0].mxu0
        %v8128 = vadd.f32 0.0, %v8127
        %v8129 = vpop.f32.mrb[0].mxu0
        %8130 = vdwg.mxu0
        %8131 = vst.msk [vmem:[%s352] sm:$0xff] %vm579, %v8128
        %s8132 = sand.u32 %s227, 1
        %s8133 = scalar_lea.sflag [#allocation3], %s8132
        %s8134 = sand.u32 %s227, 1
        %s8135 = smul.addr %s8134, 8
        %s8136 = scalar_lea.vmem [#allocation7], %s8135
        // Predicated region
        $region65: #{tpu_custom_call.1} parent=55 // pred_check
          %p8137 = pneg %p237
        $region66: #{tpu_custom_call.1} parent=55 // pred_check_branch
          %8139 = sbr.rel (%p8137) target = $region68
        $region67: #{tpu_custom_call.1} parent=55 // pred_region
          %s8141 = ssub.s32 128, 128
          %8142 = vsyncadd %s8133, %s8141
          %s8143 = smul.addr %s25, 128
          %s8144 = scalar_lea.hbm %s9, %s8143
          %s8146 = sshll.u32 %s8136, 4
          %s8147 = int_to_ptr.vmem [resolvable:$true] %s8146
          %8149 = dma.vmem_to_hbm [thread:$0]  %s8147, 128, %s8144, %s8133
        $region68: #{tpu_custom_call.1} parent=55 // pred_fallthru
          _
      $region56: #{tpu_custom_call.1} parent=5 // pred_fallthru
        _
      %p8150 = scmp.le.s32.totalorder 2, %s20
      // Predicated region
      $region69: #{tpu_custom_call.1} parent=5 // pred_check
        %p8151 = pneg %p8150
      $region70: #{tpu_custom_call.1} parent=5 // pred_check_branch
        %8153 = sbr.rel (%p8151) target = $region72
      $region71: #{tpu_custom_call.1} parent=5 // pred_region
        %s8154 = ssub.s32 %s20, 2
        // Predicated region
        $region73: #{tpu_custom_call.1} parent=71 // pred_check
          %p8155 = pneg %p243
        $region74: #{tpu_custom_call.1} parent=71 // pred_check_branch
          %8157 = sbr.rel (%p8155) target = $region76
        $region75: #{tpu_custom_call.1} parent=71 // pred_region
          %s8158 = sand.u32 %s228, 1
          %s8159 = scalar_lea.sflag [#allocation3], %s8158
          %s8160 = sand.u32 %s228, 1
          %s8161 = smul.addr %s8160, 8
          %s8162 = scalar_lea.vmem [#allocation7], %s8161
          %8163 = dma.done %s8159, 128
        $region76: #{tpu_custom_call.1} parent=71 // pred_fallthru
          _
      $region72: #{tpu_custom_call.1} parent=5 // pred_fallthru
        _
    $region6: #{tpu_custom_call.1} parent=1 // loop_footer
      %s24 = sadd.s32 1, %s20
    $region7: #{tpu_custom_call.1} parent=1 // loop_footer_branch
      %19 = sbr.rel target = $region3
    $region8: #{tpu_custom_call.1} parent=1 // loop_exit
      _
    %8164 = vsyncpa [#allocation3], 1
    %s8165 = scalar_lea.sflag [#allocation3], 1
    %8166 = vsyncpa %s8165, 1
    %8167 = vsyncpa [#allocation4], 1
    %s8168 = scalar_lea.sflag [#allocation4], 1
    %8169 = vsyncpa %s8168, 1
    %8170 = vsyncpa [#allocation6], 1

</llo_original>
